<compile_context>
chip_gen: v6e
topology: v6e:2x2x1
jax: 0.10.0
libtpu: 0.0.40
codegen_flags: <defaults>
</compile_context>

<pallas_src>
import functools

import jax
import jax.numpy as jnp
from jax.experimental import pallas as pl
from jax.experimental.pallas import tpu as pltpu


def _window_attn_kernel(x_ref, wqkv_ref, bqkv_ref, bias_ref, wp_ref, bp_ref,
                        o_ref, *, num_heads, compute_dtype):
    WB, N, C = x_ref.shape
    d = C // num_heads
    cdt = compute_dtype if compute_dtype is not None else x_ref.dtype

    # Fused qkv projection over all windows in this block: (WB*N, C) @ (C, 3C).
    x = x_ref[...].reshape(WB * N, C).astype(cdt)
    qkv = jnp.dot(x, wqkv_ref[...].astype(cdt),
                  preferred_element_type=jnp.float32)
    qkv = qkv + bqkv_ref[...].astype(jnp.float32)          # (WB*N, 3C), f32

    head_outs = []
    for h in range(num_heads):                             # static, small unroll
        qh = qkv[:, h * d:(h + 1) * d].reshape(WB, N, d)
        kh = qkv[:, C + h * d:C + (h + 1) * d].reshape(WB, N, d)
        vh = qkv[:, 2 * C + h * d:2 * C + (h + 1) * d].reshape(WB, N, d)

        # Scores for all WB windows at once; contraction on d (no explicit .T).
        s = jnp.einsum('bnd,bmd->bnm', qh.astype(cdt), kh.astype(cdt),
                       preferred_element_type=jnp.float32)  # (WB, N, N)
        s = s + bias_ref[h]                                  # rel. position bias

        # Numerically-stable softmax; statistics kept in f32.
        s = s - jnp.max(s, axis=-1, keepdims=True)
        p = jnp.exp(s)
        p = p * pl.reciprocal(jnp.sum(p, axis=-1, keepdims=True), approx=True)

        head_outs.append(
            jnp.einsum('bnm,bmd->bnd', p.astype(cdt), vh.astype(cdt),
                       preferred_element_type=jnp.float32))  # (WB, N, d)

    ctx = jnp.concatenate(head_outs, axis=-1).reshape(WB * N, C).astype(cdt)
    out = jnp.dot(ctx, wp_ref[...].astype(cdt),
                  preferred_element_type=jnp.float32)
    out = out + bp_ref[...].astype(jnp.float32)
    o_ref[...] = out.reshape(WB, N, C).astype(o_ref.dtype)


def window_attention_pallas(x, params, win_size, num_heads, qk_scale=None,
                            window_block=None, compute_dtype=None):
    """x: (B_, N, C) with N == win_size[0]*win_size[1]."""
    B_, N, C = x.shape
    assert N == win_size[0] * win_size[1]
    assert C % num_heads == 0
    head_dim = C // num_heads
    scale = qk_scale if qk_scale is not None else head_dim ** (-0.5)

    # Fuse q / kv projections into a single (C, 3C) weight and fold the qk
    # scale into the q-part (one-time constant fold, outside the kernel).
    wqkv = jnp.concatenate([params["wq"] * scale, params["wkv"]], axis=1)
    bqkv = jnp.concatenate([params["bq"] * scale, params["bkv"]], axis=1)
    wp, bp, rel_bias = params["wp"], params["bp"], params["rel_bias"]

    # Pick how many windows to process per grid step: keep the per-step f32
    # attention footprint (~WB * H * N * N * 4 bytes) around ~4 MiB, which is
    # comfortably inside the 32 MiB scoped-VMEM limit we request below (and
    # well inside v7x's 64 MiB physical VMEM).
    if window_block is None:
        per_window_bytes = num_heads * N * N * 4
        window_block = max(1, min(B_, (4 * 1024 * 1024) // per_window_bytes))
    # Keep >= 2 grid steps when possible so both v7x TensorCores are used.
    if window_block >= B_ and B_ > 1:
        window_block = pl.cdiv(B_, 2)
    window_block = max(1, min(window_block, B_))

    grid = pl.cdiv(B_, window_block)
    B_pad = grid * window_block
    x_in = x if B_pad == B_ else jnp.pad(x, ((0, B_pad - B_), (0, 0), (0, 0)))

    kernel = functools.partial(_window_attn_kernel, num_heads=num_heads,
                               compute_dtype=compute_dtype)
    WB = window_block

    out = pl.pallas_call(
        kernel,
        out_shape=jax.ShapeDtypeStruct((B_pad, N, C), x.dtype),
        grid_spec=pltpu.PrefetchScalarGridSpec(
            num_scalar_prefetch=0,
            grid=(grid,),
            in_specs=[
                pl.BlockSpec((WB, N, C), lambda b: (b, 0, 0)),          # x
                pl.BlockSpec((C, 3 * C), lambda b: (0, 0)),             # Wqkv (fused)
                pl.BlockSpec((1, 3 * C), lambda b: (0, 0)),             # bqkv (fused)
                pl.BlockSpec((num_heads, N, N), lambda b: (0, 0, 0)),   # rel bias
                pl.BlockSpec((C, C), lambda b: (0, 0)),                 # Wproj
                pl.BlockSpec((1, C), lambda b: (0, 0)),                 # bproj
            ],
            out_specs=pl.BlockSpec((WB, N, C), lambda b: (b, 0, 0)),
        ),
        compiler_params=pltpu.CompilerParams(
            dimension_semantics=("parallel",),
            vmem_limit_bytes=32 * 1024 * 1024,
        ),
    )(x_in, wqkv, bqkv, rel_bias, wp, bp)

    return out[:B_] if B_pad != B_ else out


def make_relative_position_bias(table, win_size, num_heads):
    """table: ((2*Wh-1)*(2*Ww-1), num_heads) -> (num_heads, N, N) bias."""
    Wh, Ww = win_size
    coords_h = jnp.arange(Wh)
    coords_w = jnp.arange(Ww)
    coords = jnp.stack(jnp.meshgrid(coords_h, coords_w, indexing="ij"))  # (2, Wh, Ww)
    coords_flatten = coords.reshape(2, -1)                                # (2, N)
    rel = coords_flatten[:, :, None] - coords_flatten[:, None, :]         # (2, N, N)
    rel = jnp.transpose(rel, (1, 2, 0))                                   # (N, N, 2)
    rel = rel.at[:, :, 0].add(Wh - 1)
    rel = rel.at[:, :, 1].add(Ww - 1)
    rel = rel.at[:, :, 0].multiply(2 * Ww - 1)
    rel_index = rel.sum(-1)                                               # (N, N)
    N = Wh * Ww
    bias = table[rel_index.reshape(-1)].reshape(N, N, num_heads)
    return jnp.transpose(bias, (2, 0, 1)).astype(jnp.float32)             # (nH, N, N)


def init_params(key, dim, win_size, num_heads):
    """Deterministic synthetic parameters (shapes match the PyTorch module)."""
    Wh, Ww = win_size
    k1, k2, k3, k4, k5, k6, k7 = jax.random.split(key, 7)
    # nn.Linear weights stored pre-transposed as (in, out) for x @ W.
    wq = jax.random.normal(k1, (dim, dim), jnp.float32) * 0.02
    bq = jax.random.normal(k2, (1, dim), jnp.float32) * 0.02
    wkv = jax.random.normal(k3, (dim, 2 * dim), jnp.float32) * 0.02
    bkv = jax.random.normal(k4, (1, 2 * dim), jnp.float32) * 0.02
    wp = jax.random.normal(k5, (dim, dim), jnp.float32) * 0.02
    bp = jax.random.normal(k6, (1, dim), jnp.float32) * 0.02
    # relative_position_bias_table: trunc_normal_(std=0.02)
    table = 0.02 * jax.random.truncated_normal(
        k7, -2.0, 2.0, ((2 * Wh - 1) * (2 * Ww - 1), num_heads), jnp.float32)
    rel_bias = make_relative_position_bias(table, win_size, num_heads)
    return {"wq": wq, "bq": bq, "wkv": wkv, "bkv": bkv,
            "wp": wp, "bp": bp, "rel_bias": rel_bias}


def window_attention_ref(x, params, win_size, num_heads, qk_scale=None):
    """Pure-JAX reference mirroring the PyTorch forward (linear proj, no mask)."""
    B_, N, C = x.shape
    d = C // num_heads
    scale = qk_scale if qk_scale is not None else d ** (-0.5)
    q = x @ params["wq"] + params["bq"]
    kv = x @ params["wkv"] + params["bkv"]
    k, v = kv[..., :C], kv[..., C:]
    q = q.reshape(B_, N, num_heads, d).transpose(0, 2, 1, 3) * scale
    k = k.reshape(B_, N, num_heads, d).transpose(0, 2, 1, 3)
    v = v.reshape(B_, N, num_heads, d).transpose(0, 2, 1, 3)
    attn = q @ jnp.swapaxes(k, -2, -1) + params["rel_bias"][None]
    attn = jax.nn.softmax(attn, axis=-1)
    out = (attn @ v).transpose(0, 2, 1, 3).reshape(B_, N, C)
    return out @ params["wp"] + params["bp"]


if __name__ == "__main__":
    # Module-consistent small shapes: win_size=(8,8) -> N=64 tokens per window.
    dim = 32
    num_heads = 4
    win_size = (8, 8)
    B_ = 8                              # number of windows
    N = win_size[0] * win_size[1]

    key = jax.random.PRNGKey(0)
    k_x, k_p = jax.random.split(key)
    x = jax.random.normal(k_x, (B_, N, dim), jnp.float32)
    params = init_params(k_p, dim, win_size, num_heads)

    out = window_attention_pallas(x, params, win_size, num_heads)
    out = jax.block_until_ready(out)

    ref = window_attention_ref(x, params, win_size, num_heads)
    assert out.shape == (B_, N, dim)
    assert jnp.allclose(out, ref, atol=2e-4, rtol=2e-4), "mismatch vs reference"

    print("KERNEL_OK")
</pallas_src>

<mosaic_0001>
module attributes {stable_mosaic.version = 11 : i64} {
  func.func @_window_attn_kernel(%arg0: i32, %arg1: memref<4x64x32xf32, #tpu.memory_space<vmem>>, %arg2: memref<32x96xf32, #tpu.memory_space<vmem>>, %arg3: memref<1x96xf32, #tpu.memory_space<vmem>>, %arg4: memref<4x64x64xf32, #tpu.memory_space<vmem>>, %arg5: memref<32x32xf32, #tpu.memory_space<vmem>>, %arg6: memref<1x32xf32, #tpu.memory_space<vmem>>, %arg7: memref<4x64x32xf32, #tpu.memory_space<vmem>>) attributes {dimension_semantics = [#tpu.dimension_semantics<parallel>], iteration_bounds = array<i64: 2>, scalar_prefetch = 0 : i64, scratch_operands = 0 : i64, tpu.core_type = #tpu.core_type<tc>, window_params = [{transform_indices = @transform_0, window_bounds = array<i64: 4, 64, 32>}, {pipeline_mode = #tpu.pipeline_mode<synchronous>, transform_indices = @transform_1, window_bounds = array<i64: 32, 96>}, {pipeline_mode = #tpu.pipeline_mode<synchronous>, transform_indices = @transform_2, window_bounds = array<i64: 1, 96>}, {pipeline_mode = #tpu.pipeline_mode<synchronous>, transform_indices = @transform_3, window_bounds = array<i64: 4, 64, 64>}, {pipeline_mode = #tpu.pipeline_mode<synchronous>, transform_indices = @transform_4, window_bounds = array<i64: 32, 32>}, {pipeline_mode = #tpu.pipeline_mode<synchronous>, transform_indices = @transform_5, window_bounds = array<i64: 1, 32>}, {transform_indices = @transform_6, window_bounds = array<i64: 4, 64, 32>}]} {
    %c0 = arith.constant 0 : index
    %c0_0 = arith.constant 0 : index
    %c0_1 = arith.constant 0 : index
    %0 = vector.load %arg1[%c0, %c0_0, %c0_1] : memref<4x64x32xf32, #tpu.memory_space<vmem>>, vector<4x64x32xf32>
    %1 = vector.shape_cast %0 : vector<4x64x32xf32> to vector<256x32xf32>
    %c0_2 = arith.constant 0 : index
    %c0_3 = arith.constant 0 : index
    %2 = vector.load %arg2[%c0_2, %c0_3] : memref<32x96xf32, #tpu.memory_space<vmem>>, vector<32x96xf32>
    %cst = arith.constant dense<0.000000e+00> : vector<256x96xf32>
    %3 = tpu.matmul %1, %2, %cst {dimension_numbers = #tpu.dot_dimension_numbers<[1], [0], [0], [1], [0, 0, 1, 1], [], []>} : vector<256x32xf32>, vector<32x96xf32>, vector<256x96xf32> -> vector<256x96xf32>
    %c0_4 = arith.constant 0 : index
    %c0_5 = arith.constant 0 : index
    %4 = vector.load %arg3[%c0_4, %c0_5] : memref<1x96xf32, #tpu.memory_space<vmem>>, vector<1x96xf32>
    %5 = vector.broadcast %4 : vector<1x96xf32> to vector<256x96xf32>
    %6 = arith.addf %3, %5 : vector<256x96xf32>
    %7 = vector.extract_strided_slice %6 {offsets = [0, 0], sizes = [256, 8], strides = [1, 1]} : vector<256x96xf32> to vector<256x8xf32>
    %8 = vector.shape_cast %7 : vector<256x8xf32> to vector<4x64x8xf32>
    %9 = vector.extract_strided_slice %6 {offsets = [0, 32], sizes = [256, 8], strides = [1, 1]} : vector<256x96xf32> to vector<256x8xf32>
    %10 = vector.shape_cast %9 : vector<256x8xf32> to vector<4x64x8xf32>
    %11 = vector.extract_strided_slice %6 {offsets = [0, 64], sizes = [256, 8], strides = [1, 1]} : vector<256x96xf32> to vector<256x8xf32>
    %12 = vector.shape_cast %11 : vector<256x8xf32> to vector<4x64x8xf32>
    "tpu.trace_start"() <{level = 10 : i32, message = "bnd,bmd->bnm"}> : () -> ()
    %cst_6 = arith.constant dense<0.000000e+00> : vector<4x64x64xf32>
    %13 = tpu.matmul %8, %10, %cst_6 {dimension_numbers = #tpu.dot_dimension_numbers<[2], [2], [1], [1], [0, 0, 0, 1, 1, 1], [0], [0]>} : vector<4x64x8xf32>, vector<4x64x8xf32>, vector<4x64x64xf32> -> vector<4x64x64xf32>
    "tpu.trace_stop"() : () -> ()
    %c0_7 = arith.constant 0 : index
    %c0_8 = arith.constant 0 : index
    %c0_9 = arith.constant 0 : index
    %14 = vector.load %arg4[%c0_7, %c0_8, %c0_9] : memref<4x64x64xf32, #tpu.memory_space<vmem>>, vector<1x64x64xf32>
    %15 = vector.shape_cast %14 : vector<1x64x64xf32> to vector<64x64xf32>
    %16 = vector.shape_cast %15 : vector<64x64xf32> to vector<1x64x64xf32>
    %17 = vector.broadcast %16 : vector<1x64x64xf32> to vector<4x64x64xf32>
    %18 = arith.addf %13, %17 : vector<4x64x64xf32>
    %cst_10 = arith.constant dense<0xFF800000> : vector<4x64xf32>
    %19 = vector.multi_reduction <maximumf>, %18, %cst_10 [2] : vector<4x64x64xf32> to vector<4x64xf32>
    %20 = vector.shape_cast %19 : vector<4x64xf32> to vector<4x64x1xf32>
    %21 = vector.broadcast %20 : vector<4x64x1xf32> to vector<4x64x64xf32>
    %22 = arith.subf %18, %21 : vector<4x64x64xf32>
    %23 = math.exp %22 : vector<4x64x64xf32>
    %cst_11 = arith.constant dense<0.000000e+00> : vector<4x64xf32>
    %24 = vector.multi_reduction <add>, %23, %cst_11 [2] : vector<4x64x64xf32> to vector<4x64xf32>
    %25 = vector.shape_cast %24 : vector<4x64xf32> to vector<4x64x1xf32>
    %26 = tpu.reciprocal %25 {approx = true} : vector<4x64x1xf32> -> vector<4x64x1xf32>
    %27 = vector.broadcast %26 : vector<4x64x1xf32> to vector<4x64x64xf32>
    %28 = arith.mulf %23, %27 : vector<4x64x64xf32>
    "tpu.trace_start"() <{level = 10 : i32, message = "bnm,bmd->bnd"}> : () -> ()
    %cst_12 = arith.constant dense<0.000000e+00> : vector<4x64x8xf32>
    %29 = tpu.matmul %28, %12, %cst_12 {dimension_numbers = #tpu.dot_dimension_numbers<[2], [1], [1], [2], [0, 0, 0, 1, 1, 2], [0], [0]>} : vector<4x64x64xf32>, vector<4x64x8xf32>, vector<4x64x8xf32> -> vector<4x64x8xf32>
    "tpu.trace_stop"() : () -> ()
    %30 = vector.extract_strided_slice %6 {offsets = [0, 8], sizes = [256, 8], strides = [1, 1]} : vector<256x96xf32> to vector<256x8xf32>
    %31 = vector.shape_cast %30 : vector<256x8xf32> to vector<4x64x8xf32>
    %32 = vector.extract_strided_slice %6 {offsets = [0, 40], sizes = [256, 8], strides = [1, 1]} : vector<256x96xf32> to vector<256x8xf32>
    %33 = vector.shape_cast %32 : vector<256x8xf32> to vector<4x64x8xf32>
    %34 = vector.extract_strided_slice %6 {offsets = [0, 72], sizes = [256, 8], strides = [1, 1]} : vector<256x96xf32> to vector<256x8xf32>
    %35 = vector.shape_cast %34 : vector<256x8xf32> to vector<4x64x8xf32>
    "tpu.trace_start"() <{level = 10 : i32, message = "bnd,bmd->bnm"}> : () -> ()
    %cst_13 = arith.constant dense<0.000000e+00> : vector<4x64x64xf32>
    %36 = tpu.matmul %31, %33, %cst_13 {dimension_numbers = #tpu.dot_dimension_numbers<[2], [2], [1], [1], [0, 0, 0, 1, 1, 1], [0], [0]>} : vector<4x64x8xf32>, vector<4x64x8xf32>, vector<4x64x64xf32> -> vector<4x64x64xf32>
    "tpu.trace_stop"() : () -> ()
    %c1 = arith.constant 1 : index
    %c0_14 = arith.constant 0 : index
    %c0_15 = arith.constant 0 : index
    %37 = vector.load %arg4[%c1, %c0_14, %c0_15] : memref<4x64x64xf32, #tpu.memory_space<vmem>>, vector<1x64x64xf32>
    %38 = vector.shape_cast %37 : vector<1x64x64xf32> to vector<64x64xf32>
    %39 = vector.shape_cast %38 : vector<64x64xf32> to vector<1x64x64xf32>
    %40 = vector.broadcast %39 : vector<1x64x64xf32> to vector<4x64x64xf32>
    %41 = arith.addf %36, %40 : vector<4x64x64xf32>
    %cst_16 = arith.constant dense<0xFF800000> : vector<4x64xf32>
    %42 = vector.multi_reduction <maximumf>, %41, %cst_16 [2] : vector<4x64x64xf32> to vector<4x64xf32>
    %43 = vector.shape_cast %42 : vector<4x64xf32> to vector<4x64x1xf32>
    %44 = vector.broadcast %43 : vector<4x64x1xf32> to vector<4x64x64xf32>
    %45 = arith.subf %41, %44 : vector<4x64x64xf32>
    %46 = math.exp %45 : vector<4x64x64xf32>
    %cst_17 = arith.constant dense<0.000000e+00> : vector<4x64xf32>
    %47 = vector.multi_reduction <add>, %46, %cst_17 [2] : vector<4x64x64xf32> to vector<4x64xf32>
    %48 = vector.shape_cast %47 : vector<4x64xf32> to vector<4x64x1xf32>
    %49 = tpu.reciprocal %48 {approx = true} : vector<4x64x1xf32> -> vector<4x64x1xf32>
    %50 = vector.broadcast %49 : vector<4x64x1xf32> to vector<4x64x64xf32>
    %51 = arith.mulf %46, %50 : vector<4x64x64xf32>
    "tpu.trace_start"() <{level = 10 : i32, message = "bnm,bmd->bnd"}> : () -> ()
    %cst_18 = arith.constant dense<0.000000e+00> : vector<4x64x8xf32>
    %52 = tpu.matmul %51, %35, %cst_18 {dimension_numbers = #tpu.dot_dimension_numbers<[2], [1], [1], [2], [0, 0, 0, 1, 1, 2], [0], [0]>} : vector<4x64x64xf32>, vector<4x64x8xf32>, vector<4x64x8xf32> -> vector<4x64x8xf32>
    "tpu.trace_stop"() : () -> ()
    %53 = vector.extract_strided_slice %6 {offsets = [0, 16], sizes = [256, 8], strides = [1, 1]} : vector<256x96xf32> to vector<256x8xf32>
    %54 = vector.shape_cast %53 : vector<256x8xf32> to vector<4x64x8xf32>
    %55 = vector.extract_strided_slice %6 {offsets = [0, 48], sizes = [256, 8], strides = [1, 1]} : vector<256x96xf32> to vector<256x8xf32>
    %56 = vector.shape_cast %55 : vector<256x8xf32> to vector<4x64x8xf32>
    %57 = vector.extract_strided_slice %6 {offsets = [0, 80], sizes = [256, 8], strides = [1, 1]} : vector<256x96xf32> to vector<256x8xf32>
    %58 = vector.shape_cast %57 : vector<256x8xf32> to vector<4x64x8xf32>
    "tpu.trace_start"() <{level = 10 : i32, message = "bnd,bmd->bnm"}> : () -> ()
    %cst_19 = arith.constant dense<0.000000e+00> : vector<4x64x64xf32>
    %59 = tpu.matmul %54, %56, %cst_19 {dimension_numbers = #tpu.dot_dimension_numbers<[2], [2], [1], [1], [0, 0, 0, 1, 1, 1], [0], [0]>} : vector<4x64x8xf32>, vector<4x64x8xf32>, vector<4x64x64xf32> -> vector<4x64x64xf32>
    "tpu.trace_stop"() : () -> ()
    %c2 = arith.constant 2 : index
    %c0_20 = arith.constant 0 : index
    %c0_21 = arith.constant 0 : index
    %60 = vector.load %arg4[%c2, %c0_20, %c0_21] : memref<4x64x64xf32, #tpu.memory_space<vmem>>, vector<1x64x64xf32>
    %61 = vector.shape_cast %60 : vector<1x64x64xf32> to vector<64x64xf32>
    %62 = vector.shape_cast %61 : vector<64x64xf32> to vector<1x64x64xf32>
    %63 = vector.broadcast %62 : vector<1x64x64xf32> to vector<4x64x64xf32>
    %64 = arith.addf %59, %63 : vector<4x64x64xf32>
    %cst_22 = arith.constant dense<0xFF800000> : vector<4x64xf32>
    %65 = vector.multi_reduction <maximumf>, %64, %cst_22 [2] : vector<4x64x64xf32> to vector<4x64xf32>
    %66 = vector.shape_cast %65 : vector<4x64xf32> to vector<4x64x1xf32>
    %67 = vector.broadcast %66 : vector<4x64x1xf32> to vector<4x64x64xf32>
    %68 = arith.subf %64, %67 : vector<4x64x64xf32>
    %69 = math.exp %68 : vector<4x64x64xf32>
    %cst_23 = arith.constant dense<0.000000e+00> : vector<4x64xf32>
    %70 = vector.multi_reduction <add>, %69, %cst_23 [2] : vector<4x64x64xf32> to vector<4x64xf32>
    %71 = vector.shape_cast %70 : vector<4x64xf32> to vector<4x64x1xf32>
    %72 = tpu.reciprocal %71 {approx = true} : vector<4x64x1xf32> -> vector<4x64x1xf32>
    %73 = vector.broadcast %72 : vector<4x64x1xf32> to vector<4x64x64xf32>
    %74 = arith.mulf %69, %73 : vector<4x64x64xf32>
    "tpu.trace_start"() <{level = 10 : i32, message = "bnm,bmd->bnd"}> : () -> ()
    %cst_24 = arith.constant dense<0.000000e+00> : vector<4x64x8xf32>
    %75 = tpu.matmul %74, %58, %cst_24 {dimension_numbers = #tpu.dot_dimension_numbers<[2], [1], [1], [2], [0, 0, 0, 1, 1, 2], [0], [0]>} : vector<4x64x64xf32>, vector<4x64x8xf32>, vector<4x64x8xf32> -> vector<4x64x8xf32>
    "tpu.trace_stop"() : () -> ()
    %76 = vector.extract_strided_slice %6 {offsets = [0, 24], sizes = [256, 8], strides = [1, 1]} : vector<256x96xf32> to vector<256x8xf32>
    %77 = vector.shape_cast %76 : vector<256x8xf32> to vector<4x64x8xf32>
    %78 = vector.extract_strided_slice %6 {offsets = [0, 56], sizes = [256, 8], strides = [1, 1]} : vector<256x96xf32> to vector<256x8xf32>
    %79 = vector.shape_cast %78 : vector<256x8xf32> to vector<4x64x8xf32>
    %80 = vector.extract_strided_slice %6 {offsets = [0, 88], sizes = [256, 8], strides = [1, 1]} : vector<256x96xf32> to vector<256x8xf32>
    %81 = vector.shape_cast %80 : vector<256x8xf32> to vector<4x64x8xf32>
    "tpu.trace_start"() <{level = 10 : i32, message = "bnd,bmd->bnm"}> : () -> ()
    %cst_25 = arith.constant dense<0.000000e+00> : vector<4x64x64xf32>
    %82 = tpu.matmul %77, %79, %cst_25 {dimension_numbers = #tpu.dot_dimension_numbers<[2], [2], [1], [1], [0, 0, 0, 1, 1, 1], [0], [0]>} : vector<4x64x8xf32>, vector<4x64x8xf32>, vector<4x64x64xf32> -> vector<4x64x64xf32>
    "tpu.trace_stop"() : () -> ()
    %c3 = arith.constant 3 : index
    %c0_26 = arith.constant 0 : index
    %c0_27 = arith.constant 0 : index
    %83 = vector.load %arg4[%c3, %c0_26, %c0_27] : memref<4x64x64xf32, #tpu.memory_space<vmem>>, vector<1x64x64xf32>
    %84 = vector.shape_cast %83 : vector<1x64x64xf32> to vector<64x64xf32>
    %85 = vector.shape_cast %84 : vector<64x64xf32> to vector<1x64x64xf32>
    %86 = vector.broadcast %85 : vector<1x64x64xf32> to vector<4x64x64xf32>
    %87 = arith.addf %82, %86 : vector<4x64x64xf32>
    %cst_28 = arith.constant dense<0xFF800000> : vector<4x64xf32>
    %88 = vector.multi_reduction <maximumf>, %87, %cst_28 [2] : vector<4x64x64xf32> to vector<4x64xf32>
    %89 = vector.shape_cast %88 : vector<4x64xf32> to vector<4x64x1xf32>
    %90 = vector.broadcast %89 : vector<4x64x1xf32> to vector<4x64x64xf32>
    %91 = arith.subf %87, %90 : vector<4x64x64xf32>
    %92 = math.exp %91 : vector<4x64x64xf32>
    %cst_29 = arith.constant dense<0.000000e+00> : vector<4x64xf32>
    %93 = vector.multi_reduction <add>, %92, %cst_29 [2] : vector<4x64x64xf32> to vector<4x64xf32>
    %94 = vector.shape_cast %93 : vector<4x64xf32> to vector<4x64x1xf32>
    %95 = tpu.reciprocal %94 {approx = true} : vector<4x64x1xf32> -> vector<4x64x1xf32>
    %96 = vector.broadcast %95 : vector<4x64x1xf32> to vector<4x64x64xf32>
    %97 = arith.mulf %92, %96 : vector<4x64x64xf32>
    "tpu.trace_start"() <{level = 10 : i32, message = "bnm,bmd->bnd"}> : () -> ()
    %cst_30 = arith.constant dense<0.000000e+00> : vector<4x64x8xf32>
    %98 = tpu.matmul %97, %81, %cst_30 {dimension_numbers = #tpu.dot_dimension_numbers<[2], [1], [1], [2], [0, 0, 0, 1, 1, 2], [0], [0]>} : vector<4x64x64xf32>, vector<4x64x8xf32>, vector<4x64x8xf32> -> vector<4x64x8xf32>
    "tpu.trace_stop"() : () -> ()
    %99 = tpu.concatenate %29, %52, %75, %98 in 2 : vector<4x64x8xf32>, vector<4x64x8xf32>, vector<4x64x8xf32>, vector<4x64x8xf32> -> vector<4x64x32xf32>
    %100 = vector.shape_cast %99 : vector<4x64x32xf32> to vector<256x32xf32>
    %c0_31 = arith.constant 0 : index
    %c0_32 = arith.constant 0 : index
    %101 = vector.load %arg5[%c0_31, %c0_32] : memref<32x32xf32, #tpu.memory_space<vmem>>, vector<32x32xf32>
    %cst_33 = arith.constant dense<0.000000e+00> : vector<256x32xf32>
    %102 = tpu.matmul %100, %101, %cst_33 {dimension_numbers = #tpu.dot_dimension_numbers<[1], [0], [0], [1], [0, 0, 1, 1], [], []>} : vector<256x32xf32>, vector<32x32xf32>, vector<256x32xf32> -> vector<256x32xf32>
    %c0_34 = arith.constant 0 : index
    %c0_35 = arith.constant 0 : index
    %103 = vector.load %arg6[%c0_34, %c0_35] : memref<1x32xf32, #tpu.memory_space<vmem>>, vector<1x32xf32>
    %104 = vector.broadcast %103 : vector<1x32xf32> to vector<256x32xf32>
    %105 = arith.addf %102, %104 : vector<256x32xf32>
    %106 = vector.shape_cast %105 : vector<256x32xf32> to vector<4x64x32xf32>
    %c0_36 = arith.constant 0 : index
    %c0_37 = arith.constant 0 : index
    %c0_38 = arith.constant 0 : index
    %107 = vector.load %arg7[%c0_36, %c0_37, %c0_38] : memref<4x64x32xf32, #tpu.memory_space<vmem>>, vector<4x64x32xf32>
    tpu.vector_store %arg7[%c0_36, %c0_37, %c0_38], %106 {strides = array<i32>} : memref<4x64x32xf32, #tpu.memory_space<vmem>>, vector<4x64x32xf32>,
    return
  }
  func.func @transform_0(%arg0: i32) -> (i32, i32, i32) {
    %c0_i32 = arith.constant 0 : i32
    %c0_i32_0 = arith.constant 0 : i32
    %c0_i32_1 = arith.constant 0 : i32
    return %arg0, %c0_i32, %c0_i32_0 : i32, i32, i32
  }
  func.func @transform_1(%arg0: i32) -> (i32, i32) {
    %c0_i32 = arith.constant 0 : i32
    %c0_i32_0 = arith.constant 0 : i32
    %c0_i32_1 = arith.constant 0 : i32
    return %c0_i32, %c0_i32_0 : i32, i32
  }
  func.func @transform_2(%arg0: i32) -> (i32, i32) {
    %c0_i32 = arith.constant 0 : i32
    %c0_i32_0 = arith.constant 0 : i32
    %c0_i32_1 = arith.constant 0 : i32
    return %c0_i32, %c0_i32_0 : i32, i32
  }
  func.func @transform_3(%arg0: i32) -> (i32, i32, i32) {
    %c0_i32 = arith.constant 0 : i32
    %c0_i32_0 = arith.constant 0 : i32
    %c0_i32_1 = arith.constant 0 : i32
    %c0_i32_2 = arith.constant 0 : i32
    return %c0_i32, %c0_i32_0, %c0_i32_1 : i32, i32, i32
  }
  func.func @transform_4(%arg0: i32) -> (i32, i32) {
    %c0_i32 = arith.constant 0 : i32
    %c0_i32_0 = arith.constant 0 : i32
    %c0_i32_1 = arith.constant 0 : i32
    return %c0_i32, %c0_i32_0 : i32, i32
  }
  func.func @transform_5(%arg0: i32) -> (i32, i32) {
    %c0_i32 = arith.constant 0 : i32
    %c0_i32_0 = arith.constant 0 : i32
    %c0_i32_1 = arith.constant 0 : i32
    return %c0_i32, %c0_i32_0 : i32, i32
  }
  func.func @transform_6(%arg0: i32) -> (i32, i32, i32) {
    %c0_i32 = arith.constant 0 : i32
    %c0_i32_0 = arith.constant 0 : i32
    %c0_i32_1 = arith.constant 0 : i32
    return %arg0, %c0_i32, %c0_i32_0 : i32, i32, i32
  }
}

</mosaic_0001>

<llo_original>
// kernel: tpu_custom_call.1
$region0: #{tpu_custom_call.1}
  #allocation0 [shape = 'u32[]', space=smem, size = 0x4, offset = 0x4, fixed_abs, tag = 'smem constant byte address 0x4 - core index']
  #allocation1 [shape = 'u32[144,128]{1,0:T(1,128)}', space=vmem, size = 0x12000, scoped, tag = 'internal scratch']
  %s0 = inlined_call_operand.vmem [shape: f32[8,64,32], index: 0, kind: input, shape index: {}]
  %s1 = inlined_call_operand.vmem [shape: f32[32,96], index: 1, kind: input, shape index: {}]
  %s2 = inlined_call_operand.vmem [shape: f32[1,96], index: 2, kind: input, shape index: {}]
  %s3 = inlined_call_operand.vmem [shape: f32[4,64,64], index: 3, kind: input, shape index: {}]
  %s4 = inlined_call_operand.vmem [shape: f32[32,32], index: 4, kind: input, shape index: {}]
  %s5 = inlined_call_operand.vmem [shape: f32[1,32], index: 5, kind: input, shape index: {}]
  %s6 = inlined_call_operand.vmem [shape: f32[8,64,32], index: 6, kind: output, shape index: {}]
  %s7 = sld [smem:[#allocation0]]
  $region57: #{tpu_custom_call.1} parent=0
    _
  %s9 = ssub.s32 1, %s7
  %s10 = scalar_select 0, %s9, %s7
  loop: start=0, step=1, limit=4
  $region2: #{tpu_custom_call.1} parent=0 // loop_pre_header
    _
  $region3: #{tpu_custom_call.1} parent=0 // loop_header
    %s12 = sphi 0, %s16
    %p13 = scmp.ge.s32.totalorder %s12, 4
    %s22 = sphi 0, %s24
    %s25 = sphi 0, %s22
    %s26 = sphi 0, %s25
    %s42 = sphi 0, %s26
    %s46 = sphi 0, %s46
    %s48 = sphi 0, %s46
    %s49 = sphi 0, %s48
    %s63 = sphi 0, %s49
    %s67 = sphi 0, %s67
    %s69 = sphi 0, %s67
    %s70 = sphi 0, %s69
    %s84 = sphi 0, %s70
    %s88 = sphi 0, %s88
    %s90 = sphi 0, %s88
    %s91 = sphi 0, %s90
    %s105 = sphi 0, %s91
    %s109 = sphi 0, %s109
    %s111 = sphi 0, %s109
    %s112 = sphi 0, %s111
    %s126 = sphi 0, %s112
    %s130 = sphi 0, %s130
    %s132 = sphi 0, %s130
    %s133 = sphi 0, %s132
    %s147 = sphi 0, %s133
    %s153 = sphi 0, %s155
    %s156 = sphi 0, %s153
    %s157 = sphi 0, %s156
    %s173 = sphi 0, %s157
  $region4: #{tpu_custom_call.1} parent=0 // loop_header_branch
    %15 = sbr.rel (%p13) target = $region8
  $region5: #{tpu_custom_call.1} parent=0 // loop_body
    %s17 = ssub.s32 %s12, 1
    %s18 = ssub.s32 %s12, 2
    %s19 = sadd.s32 %s12, 1
    %s20 = ssub.s32 %s12, %s19
    %p21 = scmp.eq.s32.totalorder %s20, 0
    %s23 = sadd.s32 %s22, 1
    %s24 = scalar_select %p21, %s22, %s23
    %p27 = pneg %p21
    %p28 = scmp.eq.s32.totalorder %s12, 1
    %p29 = por %p27, %p28
    %p30 = scmp.ne.s32.totalorder %s22, %s25
    %p31 = scmp.eq.s32.totalorder %s12, 0
    %p32 = por %p30, %p31
    %p33 = scmp.ne.s32.totalorder %s22, %s25
    %p34 = scmp.eq.s32.totalorder %s17, 1
    %p35 = por %p33, %p34
    %p36 = scmp.ne.s32.totalorder %s25, %s26
    %p37 = scmp.eq.s32.totalorder %s17, 0
    %p38 = por %p36, %p37
    %p39 = scmp.ne.s32.totalorder %s25, %s26
    %p40 = scmp.eq.s32.totalorder %s18, 1
    %p41 = por %p39, %p40
    %p43 = scmp.ne.s32.totalorder %s26, %s42
    %p44 = scmp.eq.s32.totalorder %s18, 0
    %p45 = por %p43, %p44
    %s47 = sadd.s32 %s46, 1
    %p50 = scmp.eq.s32.totalorder %s12, 1
    %p51 = scmp.ne.s32.totalorder %s46, %s48
    %p52 = scmp.eq.s32.totalorder %s12, 0
    %p53 = por %p51, %p52
    %p54 = scmp.ne.s32.totalorder %s46, %s48
    %p55 = scmp.eq.s32.totalorder %s17, 1
    %p56 = por %p54, %p55
    %p57 = scmp.ne.s32.totalorder %s48, %s49
    %p58 = scmp.eq.s32.totalorder %s17, 0
    %p59 = por %p57, %p58
    %p60 = scmp.ne.s32.totalorder %s48, %s49
    %p61 = scmp.eq.s32.totalorder %s18, 1
    %p62 = por %p60, %p61
    %p64 = scmp.ne.s32.totalorder %s49, %s63
    %p65 = scmp.eq.s32.totalorder %s18, 0
    %p66 = por %p64, %p65
    %s68 = sadd.s32 %s67, 1
    %p71 = scmp.eq.s32.totalorder %s12, 1
    %p72 = scmp.ne.s32.totalorder %s67, %s69
    %p73 = scmp.eq.s32.totalorder %s12, 0
    %p74 = por %p72, %p73
    %p75 = scmp.ne.s32.totalorder %s67, %s69
    %p76 = scmp.eq.s32.totalorder %s17, 1
    %p77 = por %p75, %p76
    %p78 = scmp.ne.s32.totalorder %s69, %s70
    %p79 = scmp.eq.s32.totalorder %s17, 0
    %p80 = por %p78, %p79
    %p81 = scmp.ne.s32.totalorder %s69, %s70
    %p82 = scmp.eq.s32.totalorder %s18, 1
    %p83 = por %p81, %p82
    %p85 = scmp.ne.s32.totalorder %s70, %s84
    %p86 = scmp.eq.s32.totalorder %s18, 0
    %p87 = por %p85, %p86
    %s89 = sadd.s32 %s88, 1
    %p92 = scmp.eq.s32.totalorder %s12, 1
    %p93 = scmp.ne.s32.totalorder %s88, %s90
    %p94 = scmp.eq.s32.totalorder %s12, 0
    %p95 = por %p93, %p94
    %p96 = scmp.ne.s32.totalorder %s88, %s90
    %p97 = scmp.eq.s32.totalorder %s17, 1
    %p98 = por %p96, %p97
    %p99 = scmp.ne.s32.totalorder %s90, %s91
    %p100 = scmp.eq.s32.totalorder %s17, 0
    %p101 = por %p99, %p100
    %p102 = scmp.ne.s32.totalorder %s90, %s91
    %p103 = scmp.eq.s32.totalorder %s18, 1
    %p104 = por %p102, %p103
    %p106 = scmp.ne.s32.totalorder %s91, %s105
    %p107 = scmp.eq.s32.totalorder %s18, 0
    %p108 = por %p106, %p107
    %s110 = sadd.s32 %s109, 1
    %p113 = scmp.eq.s32.totalorder %s12, 1
    %p114 = scmp.ne.s32.totalorder %s109, %s111
    %p115 = scmp.eq.s32.totalorder %s12, 0
    %p116 = por %p114, %p115
    %p117 = scmp.ne.s32.totalorder %s109, %s111
    %p118 = scmp.eq.s32.totalorder %s17, 1
    %p119 = por %p117, %p118
    %p120 = scmp.ne.s32.totalorder %s111, %s112
    %p121 = scmp.eq.s32.totalorder %s17, 0
    %p122 = por %p120, %p121
    %p123 = scmp.ne.s32.totalorder %s111, %s112
    %p124 = scmp.eq.s32.totalorder %s18, 1
    %p125 = por %p123, %p124
    %p127 = scmp.ne.s32.totalorder %s112, %s126
    %p128 = scmp.eq.s32.totalorder %s18, 0
    %p129 = por %p127, %p128
    %s131 = sadd.s32 %s130, 1
    %p134 = scmp.eq.s32.totalorder %s12, 1
    %p135 = scmp.ne.s32.totalorder %s130, %s132
    %p136 = scmp.eq.s32.totalorder %s12, 0
    %p137 = por %p135, %p136
    %p138 = scmp.ne.s32.totalorder %s130, %s132
    %p139 = scmp.eq.s32.totalorder %s17, 1
    %p140 = por %p138, %p139
    %p141 = scmp.ne.s32.totalorder %s132, %s133
    %p142 = scmp.eq.s32.totalorder %s17, 0
    %p143 = por %p141, %p142
    %p144 = scmp.ne.s32.totalorder %s132, %s133
    %p145 = scmp.eq.s32.totalorder %s18, 1
    %p146 = por %p144, %p145
    %p148 = scmp.ne.s32.totalorder %s133, %s147
    %p149 = scmp.eq.s32.totalorder %s18, 0
    %p150 = por %p148, %p149
    %s151 = ssub.s32 %s12, %s19
    %p152 = scmp.eq.s32.totalorder %s151, 0
    %s154 = sadd.s32 %s153, 1
    %s155 = scalar_select %p152, %s153, %s154
    %p158 = pneg %p152
    %p159 = scmp.eq.s32.totalorder %s12, 1
    %p160 = por %p158, %p159
    %p161 = scmp.ne.s32.totalorder %s153, %s156
    %p162 = scmp.eq.s32.totalorder %s12, 0
    %p163 = por %p161, %p162
    %p164 = scmp.ne.s32.totalorder %s153, %s156
    %p165 = scmp.eq.s32.totalorder %s17, 1
    %p166 = por %p164, %p165
    %p167 = scmp.ne.s32.totalorder %s156, %s157
    %p168 = scmp.eq.s32.totalorder %s17, 0
    %p169 = por %p167, %p168
    %p170 = scmp.ne.s32.totalorder %s156, %s157
    %p171 = scmp.eq.s32.totalorder %s18, 1
    %p172 = por %p170, %p171
    %p174 = scmp.ne.s32.totalorder %s157, %s173
    %p175 = scmp.eq.s32.totalorder %s18, 0
    %p176 = por %p174, %p175
    %p177 = scmp.le.s32.totalorder 1, %s12
    %p178 = scmp.lt.s32.totalorder %s12, 3
    %p179 = pnand %p177, %p178
    %p180 = pneg %p179
    // Predicated region
    $region9: #{tpu_custom_call.1} parent=5 // pred_check
      _
    $region10: #{tpu_custom_call.1} parent=5 // pred_check_branch
      %182 = sbr.rel (%p179) target = $region12
    $region11: #{tpu_custom_call.1} parent=5 // pred_region
      %s183 = ssub.s32 %s12, 1
      // Predicated region
      $region13: #{tpu_custom_call.1} parent=11 // pred_check
        %p184 = pneg %p59
      $region14: #{tpu_custom_call.1} parent=11 // pred_check_branch
        %186 = sbr.rel (%p184) target = $region16
      $region15: #{tpu_custom_call.1} parent=11 // pred_region
        _
      $region16: #{tpu_custom_call.1} parent=11 // pred_fallthru
        _
      // Predicated region
      $region17: #{tpu_custom_call.1} parent=11 // pred_check
        %p187 = pneg %p80
      $region18: #{tpu_custom_call.1} parent=11 // pred_check_branch
        %189 = sbr.rel (%p187) target = $region20
      $region19: #{tpu_custom_call.1} parent=11 // pred_region
        _
      $region20: #{tpu_custom_call.1} parent=11 // pred_fallthru
        _
      // Predicated region
      $region21: #{tpu_custom_call.1} parent=11 // pred_check
        %p190 = pneg %p101
      $region22: #{tpu_custom_call.1} parent=11 // pred_check_branch
        %192 = sbr.rel (%p190) target = $region24
      $region23: #{tpu_custom_call.1} parent=11 // pred_region
        _
      $region24: #{tpu_custom_call.1} parent=11 // pred_fallthru
        _
      // Predicated region
      $region25: #{tpu_custom_call.1} parent=11 // pred_check
        %p193 = pneg %p122
      $region26: #{tpu_custom_call.1} parent=11 // pred_check_branch
        %195 = sbr.rel (%p193) target = $region28
      $region27: #{tpu_custom_call.1} parent=11 // pred_region
        _
      $region28: #{tpu_custom_call.1} parent=11 // pred_fallthru
        _
      // Predicated region
      $region29: #{tpu_custom_call.1} parent=11 // pred_check
        %p196 = pneg %p143
      $region30: #{tpu_custom_call.1} parent=11 // pred_check_branch
        %198 = sbr.rel (%p196) target = $region32
      $region31: #{tpu_custom_call.1} parent=11 // pred_region
        _
      $region32: #{tpu_custom_call.1} parent=11 // pred_fallthru
        _
    $region12: #{tpu_custom_call.1} parent=5 // pred_fallthru
      _
    %p199 = scmp.lt.s32.totalorder %s12, 2
    // Predicated region
    $region33: #{tpu_custom_call.1} parent=5 // pred_check
      %p200 = pneg %p199
    $region34: #{tpu_custom_call.1} parent=5 // pred_check_branch
      %202 = sbr.rel (%p200) target = $region36
    $region35: #{tpu_custom_call.1} parent=5 // pred_region
      // Predicated region
      $region37: #{tpu_custom_call.1} parent=35 // pred_check
        %p203 = pneg %p32
      $region38: #{tpu_custom_call.1} parent=35 // pred_check_branch
        %205 = sbr.rel (%p203) target = $region40
      $region39: #{tpu_custom_call.1} parent=35 // pred_region
        %s206 = smul.u32 4, %s12
        %p207 = scmp.lt.s32.totalorder %s206, 7
        %s208 = scalar_select %p207, %s206, 7
        %s209 = smul.addr %s208, 8
        %s210 = smul.addr %s209, 8
        %s211 = scalar_lea.vmem %s0, %s210
        %s212 = smul.u32 4, %s12
      $region40: #{tpu_custom_call.1} parent=35 // pred_fallthru
        _
    $region36: #{tpu_custom_call.1} parent=5 // pred_fallthru
      _
    %p213 = scmp.le.s32.totalorder 1, %s12
    %p214 = scmp.lt.s32.totalorder %s12, 3
    %p215 = pnand %p213, %p214
    %p216 = pneg %p215
    // Predicated region
    $region41: #{tpu_custom_call.1} parent=5 // pred_check
      _
    $region42: #{tpu_custom_call.1} parent=5 // pred_check_branch
      %218 = sbr.rel (%p215) target = $region44
    $region43: #{tpu_custom_call.1} parent=5 // pred_region
      %s219 = ssub.s32 %s12, 1
      %s220 = smul.u32 4, %s17
      %p221 = scmp.lt.s32.totalorder %s220, 7
      %s222 = scalar_select %p221, %s220, 7
      %s223 = smul.addr %s222, 8
      %s224 = smul.addr %s223, 8
      %s225 = scalar_lea.vmem %s0, %s224
      %p226 = pneg %p38
      %p227 = pneg %p35
      %p228 = pneg %p59
      %p229 = pneg %p56
      %p230 = pneg %p80
      %p231 = pneg %p77
      %p232 = pneg %p101
      %p233 = pneg %p98
      %p234 = pneg %p122
      %p235 = pneg %p119
      %p236 = pneg %p143
      %p237 = pneg %p140
      %p238 = pneg %p169
      %p239 = pneg %p166
      %s240 = smul.u32 4, %s17
      %p241 = scmp.lt.s32.totalorder %s240, 7
      %s242 = scalar_select %p241, %s240, 7
      %s243 = smul.addr %s242, 8
      %s244 = smul.addr %s243, 8
      %s245 = scalar_lea.vmem %s6, %s244
      %s246 = smul.u32 4, %s17
      %p247 = scmp.lt.s32.totalorder %s246, 7
      %s248 = scalar_select %p247, %s246, 7
      %s249 = smul.addr %s248, 8
      %s250 = smul.addr %s249, 8
      %s251 = scalar_lea.vmem %s0, %s250
      %s252 = smul.u32 4, %s17
      %s253 = smul.u32 4, %s17
      %p254 = scmp.lt.s32.totalorder %s253, 7
      %s255 = scalar_select %p254, %s253, 7
      %s256 = smul.addr %s255, 8
      %s257 = smul.addr %s256, 8
      %s258 = scalar_lea.vmem %s6, %s257
      %s259 = smul.u32 4, %s17
      %v260 = vld [vmem:[%s251] sm:$0xff]
      %v261 = vld [vmem:[%s251 + $0x8] sm:$0xff]
      %v262 = vld [vmem:[%s251 + $0x10] sm:$0xff]
      %v263 = vld [vmem:[%s251 + $0x18] sm:$0xff]
      %v264 = vld [vmem:[%s251 + $0x20] sm:$0xff]
      %v265 = vld [vmem:[%s251 + $0x28] sm:$0xff]
      %v266 = vld [vmem:[%s251 + $0x30] sm:$0xff]
      %v267 = vld [vmem:[%s251 + $0x38] sm:$0xff]
      %v268 = vld [vmem:[%s251 + $0x40] sm:$0xff]
      %v269 = vld [vmem:[%s251 + $0x48] sm:$0xff]
      %v270 = vld [vmem:[%s251 + $0x50] sm:$0xff]
      %v271 = vld [vmem:[%s251 + $0x58] sm:$0xff]
      %v272 = vld [vmem:[%s251 + $0x60] sm:$0xff]
      %v273 = vld [vmem:[%s251 + $0x68] sm:$0xff]
      %v274 = vld [vmem:[%s251 + $0x70] sm:$0xff]
      %v275 = vld [vmem:[%s251 + $0x78] sm:$0xff]
      %v276 = vld [vmem:[%s251 + $0x80] sm:$0xff]
      %v277 = vld [vmem:[%s251 + $0x88] sm:$0xff]
      %v278 = vld [vmem:[%s251 + $0x90] sm:$0xff]
      %v279 = vld [vmem:[%s251 + $0x98] sm:$0xff]
      %v280 = vld [vmem:[%s251 + $0xa0] sm:$0xff]
      %v281 = vld [vmem:[%s251 + $0xa8] sm:$0xff]
      %v282 = vld [vmem:[%s251 + $0xb0] sm:$0xff]
      %v283 = vld [vmem:[%s251 + $0xb8] sm:$0xff]
      %v284 = vld [vmem:[%s251 + $0xc0] sm:$0xff]
      %v285 = vld [vmem:[%s251 + $0xc8] sm:$0xff]
      %v286 = vld [vmem:[%s251 + $0xd0] sm:$0xff]
      %v287 = vld [vmem:[%s251 + $0xd8] sm:$0xff]
      %v288 = vld [vmem:[%s251 + $0xe0] sm:$0xff]
      %v289 = vld [vmem:[%s251 + $0xe8] sm:$0xff]
      %v290 = vld [vmem:[%s251 + $0xf0] sm:$0xff]
      %v291 = vld [vmem:[%s251 + $0xf8] sm:$0xff]
      %v292 = vld [vmem:[%s1] sm:$0xff]
      %v293 = vld [vmem:[%s1 + $0x8] sm:$0xff]
      %v294 = vld [vmem:[%s1 + $0x10] sm:$0xff]
      %v295 = vld [vmem:[%s1 + $0x18] sm:$0xff]
      %v296 = vld [vmem:[%s2] sm:$0x1]
      %v298 = vlaneseq
      %v299 = vshrl.u32 %v298, 7
      %v300 = vsub.s32 0, %v299
      %v301 = vrot.slane %v296, %v300
      %vm303 = vcmask 261120
      %v305 = vsel %vm303, %v260, 0
      %v308 = vsel %vm303, %v261, 0
      %v311 = vsel %vm303, %v262, 0
      %v314 = vsel %vm303, %v263, 0
      %v317 = vsel %vm303, %v264, 0
      %v320 = vsel %vm303, %v265, 0
      %v323 = vsel %vm303, %v266, 0
      %v326 = vsel %vm303, %v267, 0
      %v329 = vsel %vm303, %v268, 0
      %v332 = vsel %vm303, %v269, 0
      %v335 = vsel %vm303, %v270, 0
      %v338 = vsel %vm303, %v271, 0
      %v341 = vsel %vm303, %v272, 0
      %v344 = vsel %vm303, %v273, 0
      %v347 = vsel %vm303, %v274, 0
      %v350 = vsel %vm303, %v275, 0
      %v353 = vsel %vm303, %v276, 0
      %v356 = vsel %vm303, %v277, 0
      %v359 = vsel %vm303, %v278, 0
      %v362 = vsel %vm303, %v279, 0
      %v365 = vsel %vm303, %v280, 0
      %v368 = vsel %vm303, %v281, 0
      %v371 = vsel %vm303, %v282, 0
      %v374 = vsel %vm303, %v283, 0
      %v377 = vsel %vm303, %v284, 0
      %v380 = vsel %vm303, %v285, 0
      %v383 = vsel %vm303, %v286, 0
      %v386 = vsel %vm303, %v287, 0
      %v389 = vsel %vm303, %v288, 0
      %v392 = vsel %vm303, %v289, 0
      %v395 = vsel %vm303, %v290, 0
      %v398 = vsel %vm303, %v291, 0
      %400 = vmatprep.subr.mxu0 0.0
      %401 = vmatpush1.msra.mxu0 0.0
      %402 = vmatprep.subr.mxu0 0.0
      %403 = vmatpush1.msra.mxu0 0.0
      %404 = vmatprep.subr.mxu0 0.0
      %405 = vmatpush1.msra.mxu0 0.0
      %406 = vmatprep.subr.mxu0 0.0
      %407 = vmatpush1.msra.mxu0 0.0
      %408 = vmatprep.subr.mxu0 0.0
      %409 = vmatpush1.msra.mxu0 0.0
      %410 = vmatprep.subr.mxu0 0.0
      %411 = vmatpush1.msra.mxu0 0.0
      %412 = vmatprep.subr.mxu0 0.0
      %413 = vmatpush1.msra.mxu0 0.0
      %414 = vmatprep.subr.mxu0 0.0
      %415 = vmatpush1.msra.mxu0 0.0
      %416 = vmatprep.subr.mxu0 0.0
      %417 = vmatpush1.msra.mxu0 0.0
      %418 = vmatprep.subr.mxu0 0.0
      %419 = vmatpush1.msra.mxu0 0.0
      %420 = vmatprep.subr.mxu0 0.0
      %421 = vmatpush1.msra.mxu0 0.0
      %422 = vmatprep.subr.mxu0 0.0
      %423 = vmatpush1.msra.mxu0 0.0
      %424 = vmatprep.subr.mxu0 0.0
      %425 = vmatpush1.msra.mxu0 %v295
      %426 = vmatprep.subr.mxu0 0.0
      %427 = vmatpush1.msra.mxu0 %v294
      %428 = vmatprep.subr.mxu0 0.0
      %429 = vmatpush1.msra.mxu0 %v293
      %430 = vmatprep.subr.mxu0 0.0
      %431 = vmatpush1.msra.mxu0 %v292
      %432 = vmatprep.subr.mxu0 0.0
      %433 = vmatpush2.msra.mxu0 0.0
      %434 = vmatprep.subr.mxu0 0.0
      %435 = vmatpush2.msra.mxu0 0.0
      %436 = vmatprep.subr.mxu0 0.0
      %437 = vmatpush2.msra.mxu0 0.0
      %438 = vmatprep.subr.mxu0 0.0
      %439 = vmatpush2.msra.mxu0 0.0
      %440 = vmatprep.subr.mxu0 0.0
      %441 = vmatpush2.msra.mxu0 0.0
      %442 = vmatprep.subr.mxu0 0.0
      %443 = vmatpush2.msra.mxu0 0.0
      %444 = vmatprep.subr.mxu0 0.0
      %445 = vmatpush2.msra.mxu0 0.0
      %446 = vmatprep.subr.mxu0 0.0
      %447 = vmatpush2.msra.mxu0 0.0
      %448 = vmatprep.subr.mxu0 0.0
      %449 = vmatpush2.msra.mxu0 0.0
      %450 = vmatprep.subr.mxu0 0.0
      %451 = vmatpush2.msra.mxu0 0.0
      %452 = vmatprep.subr.mxu0 0.0
      %453 = vmatpush2.msra.mxu0 0.0
      %454 = vmatprep.subr.mxu0 0.0
      %455 = vmatpush2.msra.mxu0 0.0
      %456 = vmatprep.subr.mxu0 0.0
      %457 = vmatpush2.msra.mxu0 0.0
      %458 = vmatprep.subr.mxu0 0.0
      %459 = vmatpush2.msra.mxu0 0.0
      %460 = vmatprep.subr.mxu0 0.0
      %461 = vmatpush2.msra.mxu0 0.0
      %462 = vmatprep.subr.mxu0 0.0
      %463 = vmatpush2.msra.mxu0 0.0
      %464 = vmatprep.mubr.f32.mxu0 0.0
      %465 = vmatmul.mubr.f32.gmra.mxu0 %v305
      %v466 = vpop.f32.mrf.mxu0
      %v467 = vadd.f32 %v301, %v466
      %v468 = vpop.f32.mrf.mxu0
      %469 = vmatprep.mubr.f32.mxu0 0.0
      %470 = vmatmul.mubr.f32.gmra.mxu0 %v308
      %v471 = vpop.f32.mrf.mxu0
      %v472 = vadd.f32 %v301, %v471
      %v473 = vpop.f32.mrf.mxu0
      %474 = vmatprep.mubr.f32.mxu0 0.0
      %475 = vmatmul.mubr.f32.gmra.mxu0 %v311
      %v476 = vpop.f32.mrf.mxu0
      %v477 = vadd.f32 %v301, %v476
      %v478 = vpop.f32.mrf.mxu0
      %479 = vmatprep.mubr.f32.mxu0 0.0
      %480 = vmatmul.mubr.f32.gmra.mxu0 %v314
      %v481 = vpop.f32.mrf.mxu0
      %v482 = vadd.f32 %v301, %v481
      %v483 = vpop.f32.mrf.mxu0
      %484 = vmatprep.mubr.f32.mxu0 0.0
      %485 = vmatmul.mubr.f32.gmra.mxu0 %v317
      %v486 = vpop.f32.mrf.mxu0
      %v487 = vadd.f32 %v301, %v486
      %v488 = vpop.f32.mrf.mxu0
      %489 = vmatprep.mubr.f32.mxu0 0.0
      %490 = vmatmul.mubr.f32.gmra.mxu0 %v320
      %v491 = vpop.f32.mrf.mxu0
      %v492 = vadd.f32 %v301, %v491
      %v493 = vpop.f32.mrf.mxu0
      %494 = vmatprep.mubr.f32.mxu0 0.0
      %495 = vmatmul.mubr.f32.gmra.mxu0 %v323
      %v496 = vpop.f32.mrf.mxu0
      %v497 = vadd.f32 %v301, %v496
      %v498 = vpop.f32.mrf.mxu0
      %499 = vmatprep.mubr.f32.mxu0 0.0
      %500 = vmatmul.mubr.f32.gmra.mxu0 %v326
      %v501 = vpop.f32.mrf.mxu0
      %v502 = vadd.f32 %v301, %v501
      %v503 = vpop.f32.mrf.mxu0
      %504 = vmatprep.mubr.f32.mxu0 0.0
      %505 = vmatmul.mubr.f32.gmra.mxu0 %v329
      %v506 = vpop.f32.mrf.mxu0
      %v507 = vadd.f32 %v301, %v506
      %v508 = vpop.f32.mrf.mxu0
      %509 = vmatprep.mubr.f32.mxu0 0.0
      %510 = vmatmul.mubr.f32.gmra.mxu0 %v332
      %v511 = vpop.f32.mrf.mxu0
      %v512 = vadd.f32 %v301, %v511
      %v513 = vpop.f32.mrf.mxu0
      %514 = vmatprep.mubr.f32.mxu0 0.0
      %515 = vmatmul.mubr.f32.gmra.mxu0 %v335
      %v516 = vpop.f32.mrf.mxu0
      %v517 = vadd.f32 %v301, %v516
      %v518 = vpop.f32.mrf.mxu0
      %519 = vmatprep.mubr.f32.mxu0 0.0
      %520 = vmatmul.mubr.f32.gmra.mxu0 %v338
      %v521 = vpop.f32.mrf.mxu0
      %v522 = vadd.f32 %v301, %v521
      %v523 = vpop.f32.mrf.mxu0
      %524 = vmatprep.mubr.f32.mxu0 0.0
      %525 = vmatmul.mubr.f32.gmra.mxu0 %v341
      %v526 = vpop.f32.mrf.mxu0
      %v527 = vadd.f32 %v301, %v526
      %v528 = vpop.f32.mrf.mxu0
      %529 = vmatprep.mubr.f32.mxu0 0.0
      %530 = vmatmul.mubr.f32.gmra.mxu0 %v344
      %v531 = vpop.f32.mrf.mxu0
      %v532 = vadd.f32 %v301, %v531
      %v533 = vpop.f32.mrf.mxu0
      %534 = vmatprep.mubr.f32.mxu0 0.0
      %535 = vmatmul.mubr.f32.gmra.mxu0 %v347
      %v536 = vpop.f32.mrf.mxu0
      %v537 = vadd.f32 %v301, %v536
      %v538 = vpop.f32.mrf.mxu0
      %539 = vmatprep.mubr.f32.mxu0 0.0
      %540 = vmatmul.mubr.f32.gmra.mxu0 %v350
      %v541 = vpop.f32.mrf.mxu0
      %v542 = vadd.f32 %v301, %v541
      %v543 = vpop.f32.mrf.mxu0
      %544 = vmatprep.mubr.f32.mxu0 0.0
      %545 = vmatmul.mubr.f32.gmra.mxu0 %v353
      %v546 = vpop.f32.mrf.mxu0
      %v547 = vadd.f32 %v301, %v546
      %v548 = vpop.f32.mrf.mxu0
      %549 = vmatprep.mubr.f32.mxu0 0.0
      %550 = vmatmul.mubr.f32.gmra.mxu0 %v356
      %v551 = vpop.f32.mrf.mxu0
      %v552 = vadd.f32 %v301, %v551
      %v553 = vpop.f32.mrf.mxu0
      %554 = vmatprep.mubr.f32.mxu0 0.0
      %555 = vmatmul.mubr.f32.gmra.mxu0 %v359
      %v556 = vpop.f32.mrf.mxu0
      %v557 = vadd.f32 %v301, %v556
      %v558 = vpop.f32.mrf.mxu0
      %559 = vmatprep.mubr.f32.mxu0 0.0
      %560 = vmatmul.mubr.f32.gmra.mxu0 %v362
      %v561 = vpop.f32.mrf.mxu0
      %v562 = vadd.f32 %v301, %v561
      %v563 = vpop.f32.mrf.mxu0
      %564 = vmatprep.mubr.f32.mxu0 0.0
      %565 = vmatmul.mubr.f32.gmra.mxu0 %v365
      %v566 = vpop.f32.mrf.mxu0
      %v567 = vadd.f32 %v301, %v566
      %v568 = vpop.f32.mrf.mxu0
      %569 = vmatprep.mubr.f32.mxu0 0.0
      %570 = vmatmul.mubr.f32.gmra.mxu0 %v368
      %v571 = vpop.f32.mrf.mxu0
      %v572 = vadd.f32 %v301, %v571
      %v573 = vpop.f32.mrf.mxu0
      %574 = vmatprep.mubr.f32.mxu0 0.0
      %575 = vmatmul.mubr.f32.gmra.mxu0 %v371
      %v576 = vpop.f32.mrf.mxu0
      %v577 = vadd.f32 %v301, %v576
      %v578 = vpop.f32.mrf.mxu0
      %579 = vmatprep.mubr.f32.mxu0 0.0
      %580 = vmatmul.mubr.f32.gmra.mxu0 %v374
      %v581 = vpop.f32.mrf.mxu0
      %v582 = vadd.f32 %v301, %v581
      %v583 = vpop.f32.mrf.mxu0
      %584 = vmatprep.mubr.f32.mxu0 0.0
      %585 = vmatmul.mubr.f32.gmra.mxu0 %v377
      %v586 = vpop.f32.mrf.mxu0
      %v587 = vadd.f32 %v301, %v586
      %v588 = vpop.f32.mrf.mxu0
      %589 = vmatprep.mubr.f32.mxu0 0.0
      %590 = vmatmul.mubr.f32.gmra.mxu0 %v380
      %v591 = vpop.f32.mrf.mxu0
      %v592 = vadd.f32 %v301, %v591
      %v593 = vpop.f32.mrf.mxu0
      %594 = vmatprep.mubr.f32.mxu0 0.0
      %595 = vmatmul.mubr.f32.gmra.mxu0 %v383
      %v596 = vpop.f32.mrf.mxu0
      %v597 = vadd.f32 %v301, %v596
      %v598 = vpop.f32.mrf.mxu0
      %599 = vmatprep.mubr.f32.mxu0 0.0
      %600 = vmatmul.mubr.f32.gmra.mxu0 %v386
      %v601 = vpop.f32.mrf.mxu0
      %v602 = vadd.f32 %v301, %v601
      %v603 = vpop.f32.mrf.mxu0
      %604 = vmatprep.mubr.f32.mxu0 0.0
      %605 = vmatmul.mubr.f32.gmra.mxu0 %v389
      %v606 = vpop.f32.mrf.mxu0
      %v607 = vadd.f32 %v301, %v606
      %v608 = vpop.f32.mrf.mxu0
      %609 = vmatprep.mubr.f32.mxu0 0.0
      %610 = vmatmul.mubr.f32.gmra.mxu0 %v392
      %v611 = vpop.f32.mrf.mxu0
      %v612 = vadd.f32 %v301, %v611
      %v613 = vpop.f32.mrf.mxu0
      %614 = vmatprep.mubr.f32.mxu0 0.0
      %615 = vmatmul.mubr.f32.gmra.mxu0 %v395
      %v616 = vpop.f32.mrf.mxu0
      %v617 = vadd.f32 %v301, %v616
      %v618 = vpop.f32.mrf.mxu0
      %619 = vmatprep.mubr.f32.mxu0 0.0
      %620 = vmatmul.mubr.f32.gmra.mxu0 %v398
      %v621 = vpop.f32.mrf.mxu0
      %v622 = vadd.f32 %v301, %v621
      %v623 = vpop.f32.mrf.mxu0
      %624 = vdwg.mxu0
      %v625 = vld [vmem:[%s3] sm:$0xff]
      %v626 = vld [vmem:[%s3 + $0x8] sm:$0xff]
      %v627 = vld [vmem:[%s3 + $0x10] sm:$0xff]
      %v628 = vld [vmem:[%s3 + $0x18] sm:$0xff]
      %v629 = vld [vmem:[%s3 + $0x20] sm:$0xff]
      %v630 = vld [vmem:[%s3 + $0x28] sm:$0xff]
      %v631 = vld [vmem:[%s3 + $0x30] sm:$0xff]
      %v632 = vld [vmem:[%s3 + $0x38] sm:$0xff]
      %641 = vrot.lane.b32.xlu0 %v467, 96
      %v642 = vpop.permute.xlu0 %641
      %643 = vrot.lane.b32.xlu0 %v472, 96
      %v644 = vpop.permute.xlu0 %643
      %645 = vrot.lane.b32.xlu0 %v477, 96
      %v646 = vpop.permute.xlu0 %645
      %647 = vrot.lane.b32.xlu0 %v482, 96
      %v648 = vpop.permute.xlu0 %647
      %649 = vrot.lane.b32.xlu0 %v487, 96
      %v650 = vpop.permute.xlu0 %649
      %651 = vrot.lane.b32.xlu0 %v492, 96
      %v652 = vpop.permute.xlu0 %651
      %653 = vrot.lane.b32.xlu0 %v497, 96
      %v654 = vpop.permute.xlu0 %653
      %655 = vrot.lane.b32.xlu0 %v502, 96
      %v656 = vpop.permute.xlu0 %655
      %vm657 = vcmask 64512
      %v658 = vsel %vm657, %v467, 0
      %v660 = vsel %vm657, %v472, 0
      %v662 = vsel %vm657, %v477, 0
      %v664 = vsel %vm657, %v482, 0
      %v666 = vsel %vm657, %v487, 0
      %v668 = vsel %vm657, %v492, 0
      %v670 = vsel %vm657, %v497, 0
      %v672 = vsel %vm657, %v502, 0
      %v674 = vsel %vm657, %v642, 0
      %v676 = vsel %vm657, %v644, 0
      %v678 = vsel %vm657, %v646, 0
      %v680 = vsel %vm657, %v648, 0
      %v682 = vsel %vm657, %v650, 0
      %v684 = vsel %vm657, %v652, 0
      %v686 = vsel %vm657, %v654, 0
      %v688 = vsel %vm657, %v656, 0
      %690 = vmatprep.subr.mxu0 0.0
      %691 = vmatpush1.xpose.msra.mxu0 0.0
      %692 = vmatprep.subr.mxu0 0.0
      %693 = vmatpush1.xpose.msra.mxu0 0.0
      %694 = vmatprep.subr.mxu0 0.0
      %695 = vmatpush1.xpose.msra.mxu0 0.0
      %696 = vmatprep.subr.mxu0 0.0
      %697 = vmatpush1.xpose.msra.mxu0 0.0
      %698 = vmatprep.subr.mxu0 0.0
      %699 = vmatpush1.xpose.msra.mxu0 0.0
      %700 = vmatprep.subr.mxu0 0.0
      %701 = vmatpush1.xpose.msra.mxu0 0.0
      %702 = vmatprep.subr.mxu0 0.0
      %703 = vmatpush1.xpose.msra.mxu0 0.0
      %704 = vmatprep.subr.mxu0 0.0
      %705 = vmatpush1.xpose.msra.mxu0 0.0
      %706 = vmatprep.subr.mxu0 0.0
      %707 = vmatpush1.xpose.msra.mxu0 %v688
      %708 = vmatprep.subr.mxu0 0.0
      %709 = vmatpush1.xpose.msra.mxu0 %v686
      %710 = vmatprep.subr.mxu0 0.0
      %711 = vmatpush1.xpose.msra.mxu0 %v684
      %712 = vmatprep.subr.mxu0 0.0
      %713 = vmatpush1.xpose.msra.mxu0 %v682
      %714 = vmatprep.subr.mxu0 0.0
      %715 = vmatpush1.xpose.msra.mxu0 %v680
      %716 = vmatprep.subr.mxu0 0.0
      %717 = vmatpush1.xpose.msra.mxu0 %v678
      %718 = vmatprep.subr.mxu0 0.0
      %719 = vmatpush1.xpose.msra.mxu0 %v676
      %720 = vmatprep.subr.mxu0 0.0
      %721 = vmatpush1.xpose.msra.mxu0 %v674
      %722 = vmatprep.subr.mxu0 0.0
      %723 = vmatpush2.xpose.msra.mxu0 0.0
      %724 = vmatprep.subr.mxu0 0.0
      %725 = vmatpush2.xpose.msra.mxu0 0.0
      %726 = vmatprep.subr.mxu0 0.0
      %727 = vmatpush2.xpose.msra.mxu0 0.0
      %728 = vmatprep.subr.mxu0 0.0
      %729 = vmatpush2.xpose.msra.mxu0 0.0
      %730 = vmatprep.subr.mxu0 0.0
      %731 = vmatpush2.xpose.msra.mxu0 0.0
      %732 = vmatprep.subr.mxu0 0.0
      %733 = vmatpush2.xpose.msra.mxu0 0.0
      %734 = vmatprep.subr.mxu0 0.0
      %735 = vmatpush2.xpose.msra.mxu0 0.0
      %736 = vmatprep.subr.mxu0 0.0
      %737 = vmatpush2.xpose.msra.mxu0 0.0
      %738 = vmatprep.subr.mxu0 0.0
      %739 = vmatpush2.xpose.msra.mxu0 0.0
      %740 = vmatprep.subr.mxu0 0.0
      %741 = vmatpush2.xpose.msra.mxu0 0.0
      %742 = vmatprep.subr.mxu0 0.0
      %743 = vmatpush2.xpose.msra.mxu0 0.0
      %744 = vmatprep.subr.mxu0 0.0
      %745 = vmatpush2.xpose.msra.mxu0 0.0
      %746 = vmatprep.subr.mxu0 0.0
      %747 = vmatpush2.xpose.msra.mxu0 0.0
      %748 = vmatprep.subr.mxu0 0.0
      %749 = vmatpush2.xpose.msra.mxu0 0.0
      %750 = vmatprep.subr.mxu0 0.0
      %751 = vmatpush2.xpose.msra.mxu0 0.0
      %752 = vmatprep.subr.mxu0 0.0
      %753 = vmatpush2.xpose.msra.mxu0 0.0
      %754 = vmatprep.mubr.f32.mxu0 0.0
      %755 = vmatmul.mubr.f32.gmra.mxu0 %v658
      %v756 = vpop.f32.mrf.mxu0
      %v757 = vadd.f32 %v625, %v756
      %v758 = vpop.f32.mrf.mxu0
      %759 = vmatprep.mubr.f32.mxu0 0.0
      %760 = vmatmul.mubr.f32.gmra.mxu0 %v660
      %v761 = vpop.f32.mrf.mxu0
      %v762 = vadd.f32 %v626, %v761
      %v763 = vpop.f32.mrf.mxu0
      %764 = vmatprep.mubr.f32.mxu0 0.0
      %765 = vmatmul.mubr.f32.gmra.mxu0 %v662
      %v766 = vpop.f32.mrf.mxu0
      %v767 = vadd.f32 %v627, %v766
      %v768 = vpop.f32.mrf.mxu0
      %769 = vmatprep.mubr.f32.mxu0 0.0
      %770 = vmatmul.mubr.f32.gmra.mxu0 %v664
      %v771 = vpop.f32.mrf.mxu0
      %v772 = vadd.f32 %v628, %v771
      %v773 = vpop.f32.mrf.mxu0
      %774 = vmatprep.mubr.f32.mxu0 0.0
      %775 = vmatmul.mubr.f32.gmra.mxu0 %v666
      %v776 = vpop.f32.mrf.mxu0
      %v777 = vadd.f32 %v629, %v776
      %v778 = vpop.f32.mrf.mxu0
      %779 = vmatprep.mubr.f32.mxu0 0.0
      %780 = vmatmul.mubr.f32.gmra.mxu0 %v668
      %v781 = vpop.f32.mrf.mxu0
      %v782 = vadd.f32 %v630, %v781
      %v783 = vpop.f32.mrf.mxu0
      %784 = vmatprep.mubr.f32.mxu0 0.0
      %785 = vmatmul.mubr.f32.gmra.mxu0 %v670
      %v786 = vpop.f32.mrf.mxu0
      %v787 = vadd.f32 %v631, %v786
      %v788 = vpop.f32.mrf.mxu0
      %789 = vmatprep.mubr.f32.mxu0 0.0
      %790 = vmatmul.mubr.f32.gmra.mxu0 %v672
      %v791 = vpop.f32.mrf.mxu0
      %v792 = vadd.f32 %v632, %v791
      %v793 = vpop.f32.mrf.mxu0
      %794 = vdwg.mxu0
      %803 = vrot.lane.b32.xlu0 %v507, 96
      %v804 = vpop.permute.xlu0 %803
      %805 = vrot.lane.b32.xlu0 %v512, 96
      %v806 = vpop.permute.xlu0 %805
      %807 = vrot.lane.b32.xlu0 %v517, 96
      %v808 = vpop.permute.xlu0 %807
      %809 = vrot.lane.b32.xlu0 %v522, 96
      %v810 = vpop.permute.xlu0 %809
      %811 = vrot.lane.b32.xlu0 %v527, 96
      %v812 = vpop.permute.xlu0 %811
      %813 = vrot.lane.b32.xlu0 %v532, 96
      %v814 = vpop.permute.xlu0 %813
      %815 = vrot.lane.b32.xlu0 %v537, 96
      %v816 = vpop.permute.xlu0 %815
      %817 = vrot.lane.b32.xlu0 %v542, 96
      %v818 = vpop.permute.xlu0 %817
      %v819 = vsel %vm657, %v507, 0
      %v821 = vsel %vm657, %v512, 0
      %v823 = vsel %vm657, %v517, 0
      %v825 = vsel %vm657, %v522, 0
      %v827 = vsel %vm657, %v527, 0
      %v829 = vsel %vm657, %v532, 0
      %v831 = vsel %vm657, %v537, 0
      %v833 = vsel %vm657, %v542, 0
      %v835 = vsel %vm657, %v804, 0
      %v837 = vsel %vm657, %v806, 0
      %v839 = vsel %vm657, %v808, 0
      %v841 = vsel %vm657, %v810, 0
      %v843 = vsel %vm657, %v812, 0
      %v845 = vsel %vm657, %v814, 0
      %v847 = vsel %vm657, %v816, 0
      %v849 = vsel %vm657, %v818, 0
      %851 = vmatprep.subr.mxu0 0.0
      %852 = vmatpush1.xpose.msra.mxu0 0.0
      %853 = vmatprep.subr.mxu0 0.0
      %854 = vmatpush1.xpose.msra.mxu0 0.0
      %855 = vmatprep.subr.mxu0 0.0
      %856 = vmatpush1.xpose.msra.mxu0 0.0
      %857 = vmatprep.subr.mxu0 0.0
      %858 = vmatpush1.xpose.msra.mxu0 0.0
      %859 = vmatprep.subr.mxu0 0.0
      %860 = vmatpush1.xpose.msra.mxu0 0.0
      %861 = vmatprep.subr.mxu0 0.0
      %862 = vmatpush1.xpose.msra.mxu0 0.0
      %863 = vmatprep.subr.mxu0 0.0
      %864 = vmatpush1.xpose.msra.mxu0 0.0
      %865 = vmatprep.subr.mxu0 0.0
      %866 = vmatpush1.xpose.msra.mxu0 0.0
      %867 = vmatprep.subr.mxu0 0.0
      %868 = vmatpush1.xpose.msra.mxu0 %v849
      %869 = vmatprep.subr.mxu0 0.0
      %870 = vmatpush1.xpose.msra.mxu0 %v847
      %871 = vmatprep.subr.mxu0 0.0
      %872 = vmatpush1.xpose.msra.mxu0 %v845
      %873 = vmatprep.subr.mxu0 0.0
      %874 = vmatpush1.xpose.msra.mxu0 %v843
      %875 = vmatprep.subr.mxu0 0.0
      %876 = vmatpush1.xpose.msra.mxu0 %v841
      %877 = vmatprep.subr.mxu0 0.0
      %878 = vmatpush1.xpose.msra.mxu0 %v839
      %879 = vmatprep.subr.mxu0 0.0
      %880 = vmatpush1.xpose.msra.mxu0 %v837
      %881 = vmatprep.subr.mxu0 0.0
      %882 = vmatpush1.xpose.msra.mxu0 %v835
      %883 = vmatprep.subr.mxu0 0.0
      %884 = vmatpush2.xpose.msra.mxu0 0.0
      %885 = vmatprep.subr.mxu0 0.0
      %886 = vmatpush2.xpose.msra.mxu0 0.0
      %887 = vmatprep.subr.mxu0 0.0
      %888 = vmatpush2.xpose.msra.mxu0 0.0
      %889 = vmatprep.subr.mxu0 0.0
      %890 = vmatpush2.xpose.msra.mxu0 0.0
      %891 = vmatprep.subr.mxu0 0.0
      %892 = vmatpush2.xpose.msra.mxu0 0.0
      %893 = vmatprep.subr.mxu0 0.0
      %894 = vmatpush2.xpose.msra.mxu0 0.0
      %895 = vmatprep.subr.mxu0 0.0
      %896 = vmatpush2.xpose.msra.mxu0 0.0
      %897 = vmatprep.subr.mxu0 0.0
      %898 = vmatpush2.xpose.msra.mxu0 0.0
      %899 = vmatprep.subr.mxu0 0.0
      %900 = vmatpush2.xpose.msra.mxu0 0.0
      %901 = vmatprep.subr.mxu0 0.0
      %902 = vmatpush2.xpose.msra.mxu0 0.0
      %903 = vmatprep.subr.mxu0 0.0
      %904 = vmatpush2.xpose.msra.mxu0 0.0
      %905 = vmatprep.subr.mxu0 0.0
      %906 = vmatpush2.xpose.msra.mxu0 0.0
      %907 = vmatprep.subr.mxu0 0.0
      %908 = vmatpush2.xpose.msra.mxu0 0.0
      %909 = vmatprep.subr.mxu0 0.0
      %910 = vmatpush2.xpose.msra.mxu0 0.0
      %911 = vmatprep.subr.mxu0 0.0
      %912 = vmatpush2.xpose.msra.mxu0 0.0
      %913 = vmatprep.subr.mxu0 0.0
      %914 = vmatpush2.xpose.msra.mxu0 0.0
      %915 = vmatprep.mubr.f32.mxu0 0.0
      %916 = vmatmul.mubr.f32.gmra.mxu0 %v819
      %v917 = vpop.f32.mrf.mxu0
      %v918 = vadd.f32 %v625, %v917
      %v919 = vpop.f32.mrf.mxu0
      %920 = vmatprep.mubr.f32.mxu0 0.0
      %921 = vmatmul.mubr.f32.gmra.mxu0 %v821
      %v922 = vpop.f32.mrf.mxu0
      %v923 = vadd.f32 %v626, %v922
      %v924 = vpop.f32.mrf.mxu0
      %925 = vmatprep.mubr.f32.mxu0 0.0
      %926 = vmatmul.mubr.f32.gmra.mxu0 %v823
      %v927 = vpop.f32.mrf.mxu0
      %v928 = vadd.f32 %v627, %v927
      %v929 = vpop.f32.mrf.mxu0
      %930 = vmatprep.mubr.f32.mxu0 0.0
      %931 = vmatmul.mubr.f32.gmra.mxu0 %v825
      %v932 = vpop.f32.mrf.mxu0
      %v933 = vadd.f32 %v628, %v932
      %v934 = vpop.f32.mrf.mxu0
      %935 = vmatprep.mubr.f32.mxu0 0.0
      %936 = vmatmul.mubr.f32.gmra.mxu0 %v827
      %v937 = vpop.f32.mrf.mxu0
      %v938 = vadd.f32 %v629, %v937
      %v939 = vpop.f32.mrf.mxu0
      %940 = vmatprep.mubr.f32.mxu0 0.0
      %941 = vmatmul.mubr.f32.gmra.mxu0 %v829
      %v942 = vpop.f32.mrf.mxu0
      %v943 = vadd.f32 %v630, %v942
      %v944 = vpop.f32.mrf.mxu0
      %945 = vmatprep.mubr.f32.mxu0 0.0
      %946 = vmatmul.mubr.f32.gmra.mxu0 %v831
      %v947 = vpop.f32.mrf.mxu0
      %v948 = vadd.f32 %v631, %v947
      %v949 = vpop.f32.mrf.mxu0
      %950 = vmatprep.mubr.f32.mxu0 0.0
      %951 = vmatmul.mubr.f32.gmra.mxu0 %v833
      %v952 = vpop.f32.mrf.mxu0
      %v953 = vadd.f32 %v632, %v952
      %v954 = vpop.f32.mrf.mxu0
      %955 = vdwg.mxu0
      %964 = vrot.lane.b32.xlu0 %v547, 96
      %v965 = vpop.permute.xlu0 %964
      %966 = vrot.lane.b32.xlu0 %v552, 96
      %v967 = vpop.permute.xlu0 %966
      %968 = vrot.lane.b32.xlu0 %v557, 96
      %v969 = vpop.permute.xlu0 %968
      %970 = vrot.lane.b32.xlu0 %v562, 96
      %v971 = vpop.permute.xlu0 %970
      %972 = vrot.lane.b32.xlu0 %v567, 96
      %v973 = vpop.permute.xlu0 %972
      %974 = vrot.lane.b32.xlu0 %v572, 96
      %v975 = vpop.permute.xlu0 %974
      %976 = vrot.lane.b32.xlu0 %v577, 96
      %v977 = vpop.permute.xlu0 %976
      %978 = vrot.lane.b32.xlu0 %v582, 96
      %v979 = vpop.permute.xlu0 %978
      %v980 = vsel %vm657, %v547, 0
      %v982 = vsel %vm657, %v552, 0
      %v984 = vsel %vm657, %v557, 0
      %v986 = vsel %vm657, %v562, 0
      %v988 = vsel %vm657, %v567, 0
      %v990 = vsel %vm657, %v572, 0
      %v992 = vsel %vm657, %v577, 0
      %v994 = vsel %vm657, %v582, 0
      %v996 = vsel %vm657, %v965, 0
      %v998 = vsel %vm657, %v967, 0
      %v1000 = vsel %vm657, %v969, 0
      %v1002 = vsel %vm657, %v971, 0
      %v1004 = vsel %vm657, %v973, 0
      %v1006 = vsel %vm657, %v975, 0
      %v1008 = vsel %vm657, %v977, 0
      %v1010 = vsel %vm657, %v979, 0
      %1012 = vmatprep.subr.mxu0 0.0
      %1013 = vmatpush1.xpose.msra.mxu0 0.0
      %1014 = vmatprep.subr.mxu0 0.0
      %1015 = vmatpush1.xpose.msra.mxu0 0.0
      %1016 = vmatprep.subr.mxu0 0.0
      %1017 = vmatpush1.xpose.msra.mxu0 0.0
      %1018 = vmatprep.subr.mxu0 0.0
      %1019 = vmatpush1.xpose.msra.mxu0 0.0
      %1020 = vmatprep.subr.mxu0 0.0
      %1021 = vmatpush1.xpose.msra.mxu0 0.0
      %1022 = vmatprep.subr.mxu0 0.0
      %1023 = vmatpush1.xpose.msra.mxu0 0.0
      %1024 = vmatprep.subr.mxu0 0.0
      %1025 = vmatpush1.xpose.msra.mxu0 0.0
      %1026 = vmatprep.subr.mxu0 0.0
      %1027 = vmatpush1.xpose.msra.mxu0 0.0
      %1028 = vmatprep.subr.mxu0 0.0
      %1029 = vmatpush1.xpose.msra.mxu0 %v1010
      %1030 = vmatprep.subr.mxu0 0.0
      %1031 = vmatpush1.xpose.msra.mxu0 %v1008
      %1032 = vmatprep.subr.mxu0 0.0
      %1033 = vmatpush1.xpose.msra.mxu0 %v1006
      %1034 = vmatprep.subr.mxu0 0.0
      %1035 = vmatpush1.xpose.msra.mxu0 %v1004
      %1036 = vmatprep.subr.mxu0 0.0
      %1037 = vmatpush1.xpose.msra.mxu0 %v1002
      %1038 = vmatprep.subr.mxu0 0.0
      %1039 = vmatpush1.xpose.msra.mxu0 %v1000
      %1040 = vmatprep.subr.mxu0 0.0
      %1041 = vmatpush1.xpose.msra.mxu0 %v998
      %1042 = vmatprep.subr.mxu0 0.0
      %1043 = vmatpush1.xpose.msra.mxu0 %v996
      %1044 = vmatprep.subr.mxu0 0.0
      %1045 = vmatpush2.xpose.msra.mxu0 0.0
      %1046 = vmatprep.subr.mxu0 0.0
      %1047 = vmatpush2.xpose.msra.mxu0 0.0
      %1048 = vmatprep.subr.mxu0 0.0
      %1049 = vmatpush2.xpose.msra.mxu0 0.0
      %1050 = vmatprep.subr.mxu0 0.0
      %1051 = vmatpush2.xpose.msra.mxu0 0.0
      %1052 = vmatprep.subr.mxu0 0.0
      %1053 = vmatpush2.xpose.msra.mxu0 0.0
      %1054 = vmatprep.subr.mxu0 0.0
      %1055 = vmatpush2.xpose.msra.mxu0 0.0
      %1056 = vmatprep.subr.mxu0 0.0
      %1057 = vmatpush2.xpose.msra.mxu0 0.0
      %1058 = vmatprep.subr.mxu0 0.0
      %1059 = vmatpush2.xpose.msra.mxu0 0.0
      %1060 = vmatprep.subr.mxu0 0.0
      %1061 = vmatpush2.xpose.msra.mxu0 0.0
      %1062 = vmatprep.subr.mxu0 0.0
      %1063 = vmatpush2.xpose.msra.mxu0 0.0
      %1064 = vmatprep.subr.mxu0 0.0
      %1065 = vmatpush2.xpose.msra.mxu0 0.0
      %1066 = vmatprep.subr.mxu0 0.0
      %1067 = vmatpush2.xpose.msra.mxu0 0.0
      %1068 = vmatprep.subr.mxu0 0.0
      %1069 = vmatpush2.xpose.msra.mxu0 0.0
      %1070 = vmatprep.subr.mxu0 0.0
      %1071 = vmatpush2.xpose.msra.mxu0 0.0
      %1072 = vmatprep.subr.mxu0 0.0
      %1073 = vmatpush2.xpose.msra.mxu0 0.0
      %1074 = vmatprep.subr.mxu0 0.0
      %1075 = vmatpush2.xpose.msra.mxu0 0.0
      %1076 = vmatprep.mubr.f32.mxu0 0.0
      %1077 = vmatmul.mubr.f32.gmra.mxu0 %v980
      %v1078 = vpop.f32.mrf.mxu0
      %v1079 = vadd.f32 %v625, %v1078
      %v1080 = vpop.f32.mrf.mxu0
      %1081 = vmatprep.mubr.f32.mxu0 0.0
      %1082 = vmatmul.mubr.f32.gmra.mxu0 %v982
      %v1083 = vpop.f32.mrf.mxu0
      %v1084 = vadd.f32 %v626, %v1083
      %v1085 = vpop.f32.mrf.mxu0
      %1086 = vmatprep.mubr.f32.mxu0 0.0
      %1087 = vmatmul.mubr.f32.gmra.mxu0 %v984
      %v1088 = vpop.f32.mrf.mxu0
      %v1089 = vadd.f32 %v627, %v1088
      %v1090 = vpop.f32.mrf.mxu0
      %1091 = vmatprep.mubr.f32.mxu0 0.0
      %1092 = vmatmul.mubr.f32.gmra.mxu0 %v986
      %v1093 = vpop.f32.mrf.mxu0
      %v1094 = vadd.f32 %v628, %v1093
      %v1095 = vpop.f32.mrf.mxu0
      %1096 = vmatprep.mubr.f32.mxu0 0.0
      %1097 = vmatmul.mubr.f32.gmra.mxu0 %v988
      %v1098 = vpop.f32.mrf.mxu0
      %v1099 = vadd.f32 %v629, %v1098
      %v1100 = vpop.f32.mrf.mxu0
      %1101 = vmatprep.mubr.f32.mxu0 0.0
      %1102 = vmatmul.mubr.f32.gmra.mxu0 %v990
      %v1103 = vpop.f32.mrf.mxu0
      %v1104 = vadd.f32 %v630, %v1103
      %v1105 = vpop.f32.mrf.mxu0
      %1106 = vmatprep.mubr.f32.mxu0 0.0
      %1107 = vmatmul.mubr.f32.gmra.mxu0 %v992
      %v1108 = vpop.f32.mrf.mxu0
      %v1109 = vadd.f32 %v631, %v1108
      %v1110 = vpop.f32.mrf.mxu0
      %1111 = vmatprep.mubr.f32.mxu0 0.0
      %1112 = vmatmul.mubr.f32.gmra.mxu0 %v994
      %v1113 = vpop.f32.mrf.mxu0
      %v1114 = vadd.f32 %v632, %v1113
      %v1115 = vpop.f32.mrf.mxu0
      %1116 = vdwg.mxu0
      %1125 = vrot.lane.b32.xlu0 %v587, 96
      %v1126 = vpop.permute.xlu0 %1125
      %1127 = vrot.lane.b32.xlu0 %v592, 96
      %v1128 = vpop.permute.xlu0 %1127
      %1129 = vrot.lane.b32.xlu0 %v597, 96
      %v1130 = vpop.permute.xlu0 %1129
      %1131 = vrot.lane.b32.xlu0 %v602, 96
      %v1132 = vpop.permute.xlu0 %1131
      %1133 = vrot.lane.b32.xlu0 %v607, 96
      %v1134 = vpop.permute.xlu0 %1133
      %1135 = vrot.lane.b32.xlu0 %v612, 96
      %v1136 = vpop.permute.xlu0 %1135
      %1137 = vrot.lane.b32.xlu0 %v617, 96
      %v1138 = vpop.permute.xlu0 %1137
      %1139 = vrot.lane.b32.xlu0 %v622, 96
      %v1140 = vpop.permute.xlu0 %1139
      %v1141 = vsel %vm657, %v587, 0
      %v1143 = vsel %vm657, %v592, 0
      %v1145 = vsel %vm657, %v597, 0
      %v1147 = vsel %vm657, %v602, 0
      %v1149 = vsel %vm657, %v607, 0
      %v1151 = vsel %vm657, %v612, 0
      %v1153 = vsel %vm657, %v617, 0
      %v1155 = vsel %vm657, %v622, 0
      %v1157 = vsel %vm657, %v1126, 0
      %v1159 = vsel %vm657, %v1128, 0
      %v1161 = vsel %vm657, %v1130, 0
      %v1163 = vsel %vm657, %v1132, 0
      %v1165 = vsel %vm657, %v1134, 0
      %v1167 = vsel %vm657, %v1136, 0
      %v1169 = vsel %vm657, %v1138, 0
      %v1171 = vsel %vm657, %v1140, 0
      %1173 = vmatprep.subr.mxu0 0.0
      %1174 = vmatpush1.xpose.msra.mxu0 0.0
      %1175 = vmatprep.subr.mxu0 0.0
      %1176 = vmatpush1.xpose.msra.mxu0 0.0
      %1177 = vmatprep.subr.mxu0 0.0
      %1178 = vmatpush1.xpose.msra.mxu0 0.0
      %1179 = vmatprep.subr.mxu0 0.0
      %1180 = vmatpush1.xpose.msra.mxu0 0.0
      %1181 = vmatprep.subr.mxu0 0.0
      %1182 = vmatpush1.xpose.msra.mxu0 0.0
      %1183 = vmatprep.subr.mxu0 0.0
      %1184 = vmatpush1.xpose.msra.mxu0 0.0
      %1185 = vmatprep.subr.mxu0 0.0
      %1186 = vmatpush1.xpose.msra.mxu0 0.0
      %1187 = vmatprep.subr.mxu0 0.0
      %1188 = vmatpush1.xpose.msra.mxu0 0.0
      %1189 = vmatprep.subr.mxu0 0.0
      %1190 = vmatpush1.xpose.msra.mxu0 %v1171
      %1191 = vmatprep.subr.mxu0 0.0
      %1192 = vmatpush1.xpose.msra.mxu0 %v1169
      %1193 = vmatprep.subr.mxu0 0.0
      %1194 = vmatpush1.xpose.msra.mxu0 %v1167
      %1195 = vmatprep.subr.mxu0 0.0
      %1196 = vmatpush1.xpose.msra.mxu0 %v1165
      %1197 = vmatprep.subr.mxu0 0.0
      %1198 = vmatpush1.xpose.msra.mxu0 %v1163
      %1199 = vmatprep.subr.mxu0 0.0
      %1200 = vmatpush1.xpose.msra.mxu0 %v1161
      %1201 = vmatprep.subr.mxu0 0.0
      %1202 = vmatpush1.xpose.msra.mxu0 %v1159
      %1203 = vmatprep.subr.mxu0 0.0
      %1204 = vmatpush1.xpose.msra.mxu0 %v1157
      %1205 = vmatprep.subr.mxu0 0.0
      %1206 = vmatpush2.xpose.msra.mxu0 0.0
      %1207 = vmatprep.subr.mxu0 0.0
      %1208 = vmatpush2.xpose.msra.mxu0 0.0
      %1209 = vmatprep.subr.mxu0 0.0
      %1210 = vmatpush2.xpose.msra.mxu0 0.0
      %1211 = vmatprep.subr.mxu0 0.0
      %1212 = vmatpush2.xpose.msra.mxu0 0.0
      %1213 = vmatprep.subr.mxu0 0.0
      %1214 = vmatpush2.xpose.msra.mxu0 0.0
      %1215 = vmatprep.subr.mxu0 0.0
      %1216 = vmatpush2.xpose.msra.mxu0 0.0
      %1217 = vmatprep.subr.mxu0 0.0
      %1218 = vmatpush2.xpose.msra.mxu0 0.0
      %1219 = vmatprep.subr.mxu0 0.0
      %1220 = vmatpush2.xpose.msra.mxu0 0.0
      %1221 = vmatprep.subr.mxu0 0.0
      %1222 = vmatpush2.xpose.msra.mxu0 0.0
      %1223 = vmatprep.subr.mxu0 0.0
      %1224 = vmatpush2.xpose.msra.mxu0 0.0
      %1225 = vmatprep.subr.mxu0 0.0
      %1226 = vmatpush2.xpose.msra.mxu0 0.0
      %1227 = vmatprep.subr.mxu0 0.0
      %1228 = vmatpush2.xpose.msra.mxu0 0.0
      %1229 = vmatprep.subr.mxu0 0.0
      %1230 = vmatpush2.xpose.msra.mxu0 0.0
      %1231 = vmatprep.subr.mxu0 0.0
      %1232 = vmatpush2.xpose.msra.mxu0 0.0
      %1233 = vmatprep.subr.mxu0 0.0
      %1234 = vmatpush2.xpose.msra.mxu0 0.0
      %1235 = vmatprep.subr.mxu0 0.0
      %1236 = vmatpush2.xpose.msra.mxu0 0.0
      %1237 = vmatprep.mubr.f32.mxu0 0.0
      %1238 = vmatmul.mubr.f32.gmra.mxu0 %v1141
      %v1239 = vpop.f32.mrf.mxu0
      %v1240 = vadd.f32 %v625, %v1239
      %v1241 = vpop.f32.mrf.mxu0
      %1242 = vmatprep.mubr.f32.mxu0 0.0
      %1243 = vmatmul.mubr.f32.gmra.mxu0 %v1143
      %v1244 = vpop.f32.mrf.mxu0
      %v1245 = vadd.f32 %v626, %v1244
      %v1246 = vpop.f32.mrf.mxu0
      %1247 = vmatprep.mubr.f32.mxu0 0.0
      %1248 = vmatmul.mubr.f32.gmra.mxu0 %v1145
      %v1249 = vpop.f32.mrf.mxu0
      %v1250 = vadd.f32 %v627, %v1249
      %v1251 = vpop.f32.mrf.mxu0
      %1252 = vmatprep.mubr.f32.mxu0 0.0
      %1253 = vmatmul.mubr.f32.gmra.mxu0 %v1147
      %v1254 = vpop.f32.mrf.mxu0
      %v1255 = vadd.f32 %v628, %v1254
      %v1256 = vpop.f32.mrf.mxu0
      %1257 = vmatprep.mubr.f32.mxu0 0.0
      %1258 = vmatmul.mubr.f32.gmra.mxu0 %v1149
      %v1259 = vpop.f32.mrf.mxu0
      %v1260 = vadd.f32 %v629, %v1259
      %v1261 = vpop.f32.mrf.mxu0
      %1262 = vmatprep.mubr.f32.mxu0 0.0
      %1263 = vmatmul.mubr.f32.gmra.mxu0 %v1151
      %v1264 = vpop.f32.mrf.mxu0
      %v1265 = vadd.f32 %v630, %v1264
      %v1266 = vpop.f32.mrf.mxu0
      %1267 = vmatprep.mubr.f32.mxu0 0.0
      %1268 = vmatmul.mubr.f32.gmra.mxu0 %v1153
      %v1269 = vpop.f32.mrf.mxu0
      %v1270 = vadd.f32 %v631, %v1269
      %v1271 = vpop.f32.mrf.mxu0
      %1272 = vmatprep.mubr.f32.mxu0 0.0
      %1273 = vmatmul.mubr.f32.gmra.mxu0 %v1155
      %v1274 = vpop.f32.mrf.mxu0
      %v1275 = vadd.f32 %v632, %v1274
      %v1276 = vpop.f32.mrf.mxu0
      %1277 = vdwg.mxu0
      %vm1278 = vcmask 523264
      %v1279 = vsel %vm1278, %v757, -inf
      %1280 = vmax.xlane.f32.xlu0 %v1279
      %v1281 = vpop.xlane.xlu0 %1280
      %v1282 = vsel %vm1278, %v762, -inf
      %1283 = vmax.xlane.f32.xlu0 %v1282
      %v1284 = vpop.xlane.xlu0 %1283
      %v1285 = vsel %vm1278, %v767, -inf
      %1286 = vmax.xlane.f32.xlu0 %v1285
      %v1287 = vpop.xlane.xlu0 %1286
      %v1288 = vsel %vm1278, %v772, -inf
      %1289 = vmax.xlane.f32.xlu0 %v1288
      %v1290 = vpop.xlane.xlu0 %1289
      %v1291 = vsel %vm1278, %v777, -inf
      %1292 = vmax.xlane.f32.xlu0 %v1291
      %v1293 = vpop.xlane.xlu0 %1292
      %v1294 = vsel %vm1278, %v782, -inf
      %1295 = vmax.xlane.f32.xlu0 %v1294
      %v1296 = vpop.xlane.xlu0 %1295
      %v1297 = vsel %vm1278, %v787, -inf
      %1298 = vmax.xlane.f32.xlu0 %v1297
      %v1299 = vpop.xlane.xlu0 %1298
      %v1300 = vsel %vm1278, %v792, -inf
      %1301 = vmax.xlane.f32.xlu0 %v1300
      %v1302 = vpop.xlane.xlu0 %1301
      %v1303 = vsel %vm1278, %v918, -inf
      %1304 = vmax.xlane.f32.xlu0 %v1303
      %v1305 = vpop.xlane.xlu0 %1304
      %v1306 = vsel %vm1278, %v923, -inf
      %1307 = vmax.xlane.f32.xlu0 %v1306
      %v1308 = vpop.xlane.xlu0 %1307
      %v1309 = vsel %vm1278, %v928, -inf
      %1310 = vmax.xlane.f32.xlu0 %v1309
      %v1311 = vpop.xlane.xlu0 %1310
      %v1312 = vsel %vm1278, %v933, -inf
      %1313 = vmax.xlane.f32.xlu0 %v1312
      %v1314 = vpop.xlane.xlu0 %1313
      %v1315 = vsel %vm1278, %v938, -inf
      %1316 = vmax.xlane.f32.xlu0 %v1315
      %v1317 = vpop.xlane.xlu0 %1316
      %v1318 = vsel %vm1278, %v943, -inf
      %1319 = vmax.xlane.f32.xlu0 %v1318
      %v1320 = vpop.xlane.xlu0 %1319
      %v1321 = vsel %vm1278, %v948, -inf
      %1322 = vmax.xlane.f32.xlu0 %v1321
      %v1323 = vpop.xlane.xlu0 %1322
      %v1324 = vsel %vm1278, %v953, -inf
      %1325 = vmax.xlane.f32.xlu0 %v1324
      %v1326 = vpop.xlane.xlu0 %1325
      %v1327 = vsel %vm1278, %v1079, -inf
      %1328 = vmax.xlane.f32.xlu0 %v1327
      %v1329 = vpop.xlane.xlu0 %1328
      %v1330 = vsel %vm1278, %v1084, -inf
      %1331 = vmax.xlane.f32.xlu0 %v1330
      %v1332 = vpop.xlane.xlu0 %1331
      %v1333 = vsel %vm1278, %v1089, -inf
      %1334 = vmax.xlane.f32.xlu0 %v1333
      %v1335 = vpop.xlane.xlu0 %1334
      %v1336 = vsel %vm1278, %v1094, -inf
      %1337 = vmax.xlane.f32.xlu0 %v1336
      %v1338 = vpop.xlane.xlu0 %1337
      %v1339 = vsel %vm1278, %v1099, -inf
      %1340 = vmax.xlane.f32.xlu0 %v1339
      %v1341 = vpop.xlane.xlu0 %1340
      %v1342 = vsel %vm1278, %v1104, -inf
      %1343 = vmax.xlane.f32.xlu0 %v1342
      %v1344 = vpop.xlane.xlu0 %1343
      %v1345 = vsel %vm1278, %v1109, -inf
      %1346 = vmax.xlane.f32.xlu0 %v1345
      %v1347 = vpop.xlane.xlu0 %1346
      %v1348 = vsel %vm1278, %v1114, -inf
      %1349 = vmax.xlane.f32.xlu0 %v1348
      %v1350 = vpop.xlane.xlu0 %1349
      %v1351 = vsel %vm1278, %v1240, -inf
      %1352 = vmax.xlane.f32.xlu0 %v1351
      %v1353 = vpop.xlane.xlu0 %1352
      %v1354 = vsel %vm1278, %v1245, -inf
      %1355 = vmax.xlane.f32.xlu0 %v1354
      %v1356 = vpop.xlane.xlu0 %1355
      %v1357 = vsel %vm1278, %v1250, -inf
      %1358 = vmax.xlane.f32.xlu0 %v1357
      %v1359 = vpop.xlane.xlu0 %1358
      %v1360 = vsel %vm1278, %v1255, -inf
      %1361 = vmax.xlane.f32.xlu0 %v1360
      %v1362 = vpop.xlane.xlu0 %1361
      %v1363 = vsel %vm1278, %v1260, -inf
      %1364 = vmax.xlane.f32.xlu0 %v1363
      %v1365 = vpop.xlane.xlu0 %1364
      %v1366 = vsel %vm1278, %v1265, -inf
      %1367 = vmax.xlane.f32.xlu0 %v1366
      %v1368 = vpop.xlane.xlu0 %1367
      %v1369 = vsel %vm1278, %v1270, -inf
      %1370 = vmax.xlane.f32.xlu0 %v1369
      %v1371 = vpop.xlane.xlu0 %1370
      %v1372 = vsel %vm1278, %v1275, -inf
      %1373 = vmax.xlane.f32.xlu0 %v1372
      %v1374 = vpop.xlane.xlu0 %1373
      %v1375 = vsub.f32 %v757, %v1281
      %v1376 = vsub.f32 %v762, %v1284
      %v1377 = vsub.f32 %v767, %v1287
      %v1378 = vsub.f32 %v772, %v1290
      %v1379 = vsub.f32 %v777, %v1293
      %v1380 = vsub.f32 %v782, %v1296
      %v1381 = vsub.f32 %v787, %v1299
      %v1382 = vsub.f32 %v792, %v1302
      %v1383 = vsub.f32 %v918, %v1305
      %v1384 = vsub.f32 %v923, %v1308
      %v1385 = vsub.f32 %v928, %v1311
      %v1386 = vsub.f32 %v933, %v1314
      %v1387 = vsub.f32 %v938, %v1317
      %v1388 = vsub.f32 %v943, %v1320
      %v1389 = vsub.f32 %v948, %v1323
      %v1390 = vsub.f32 %v953, %v1326
      %v1391 = vsub.f32 %v1079, %v1329
      %v1392 = vsub.f32 %v1084, %v1332
      %v1393 = vsub.f32 %v1089, %v1335
      %v1394 = vsub.f32 %v1094, %v1338
      %v1395 = vsub.f32 %v1099, %v1341
      %v1396 = vsub.f32 %v1104, %v1344
      %v1397 = vsub.f32 %v1109, %v1347
      %v1398 = vsub.f32 %v1114, %v1350
      %v1399 = vsub.f32 %v1240, %v1353
      %v1400 = vsub.f32 %v1245, %v1356
      %v1401 = vsub.f32 %v1250, %v1359
      %v1402 = vsub.f32 %v1255, %v1362
      %v1403 = vsub.f32 %v1260, %v1365
      %v1404 = vsub.f32 %v1265, %v1368
      %v1405 = vsub.f32 %v1270, %v1371
      %v1406 = vsub.f32 %v1275, %v1374
      %v1407 = vmul.f32 %v1375, 1.442695
      %v1408 = vpow.pop %v1407
      %v1409 = vmul.f32 %v1376, 1.442695
      %v1410 = vpow.pop %v1409
      %v1411 = vmul.f32 %v1377, 1.442695
      %v1412 = vpow.pop %v1411
      %v1413 = vmul.f32 %v1378, 1.442695
      %v1414 = vpow.pop %v1413
      %v1415 = vmul.f32 %v1379, 1.442695
      %v1416 = vpow.pop %v1415
      %v1417 = vmul.f32 %v1380, 1.442695
      %v1418 = vpow.pop %v1417
      %v1419 = vmul.f32 %v1381, 1.442695
      %v1420 = vpow.pop %v1419
      %v1421 = vmul.f32 %v1382, 1.442695
      %v1422 = vpow.pop %v1421
      %v1423 = vmul.f32 %v1383, 1.442695
      %v1424 = vpow.pop %v1423
      %v1425 = vmul.f32 %v1384, 1.442695
      %v1426 = vpow.pop %v1425
      %v1427 = vmul.f32 %v1385, 1.442695
      %v1428 = vpow.pop %v1427
      %v1429 = vmul.f32 %v1386, 1.442695
      %v1430 = vpow.pop %v1429
      %v1431 = vmul.f32 %v1387, 1.442695
      %v1432 = vpow.pop %v1431
      %v1433 = vmul.f32 %v1388, 1.442695
      %v1434 = vpow.pop %v1433
      %v1435 = vmul.f32 %v1389, 1.442695
      %v1436 = vpow.pop %v1435
      %v1437 = vmul.f32 %v1390, 1.442695
      %v1438 = vpow.pop %v1437
      %v1439 = vmul.f32 %v1391, 1.442695
      %v1440 = vpow.pop %v1439
      %v1441 = vmul.f32 %v1392, 1.442695
      %v1442 = vpow.pop %v1441
      %v1443 = vmul.f32 %v1393, 1.442695
      %v1444 = vpow.pop %v1443
      %v1445 = vmul.f32 %v1394, 1.442695
      %v1446 = vpow.pop %v1445
      %v1447 = vmul.f32 %v1395, 1.442695
      %v1448 = vpow.pop %v1447
      %v1449 = vmul.f32 %v1396, 1.442695
      %v1450 = vpow.pop %v1449
      %v1451 = vmul.f32 %v1397, 1.442695
      %v1452 = vpow.pop %v1451
      %v1453 = vmul.f32 %v1398, 1.442695
      %v1454 = vpow.pop %v1453
      %v1455 = vmul.f32 %v1399, 1.442695
      %v1456 = vpow.pop %v1455
      %v1457 = vmul.f32 %v1400, 1.442695
      %v1458 = vpow.pop %v1457
      %v1459 = vmul.f32 %v1401, 1.442695
      %v1460 = vpow.pop %v1459
      %v1461 = vmul.f32 %v1402, 1.442695
      %v1462 = vpow.pop %v1461
      %v1463 = vmul.f32 %v1403, 1.442695
      %v1464 = vpow.pop %v1463
      %v1465 = vmul.f32 %v1404, 1.442695
      %v1466 = vpow.pop %v1465
      %v1467 = vmul.f32 %v1405, 1.442695
      %v1468 = vpow.pop %v1467
      %v1469 = vmul.f32 %v1406, 1.442695
      %v1470 = vpow.pop %v1469
      %v1471 = vsel %vm1278, %v1408, 0.0
      %1472 = vadd.xlane.f32.xlu0 %v1471
      %v1473 = vpop.xlane.xlu0 %1472
      %v1474 = vsel %vm1278, %v1410, 0.0
      %1475 = vadd.xlane.f32.xlu0 %v1474
      %v1476 = vpop.xlane.xlu0 %1475
      %v1477 = vsel %vm1278, %v1412, 0.0
      %1478 = vadd.xlane.f32.xlu0 %v1477
      %v1479 = vpop.xlane.xlu0 %1478
      %v1480 = vsel %vm1278, %v1414, 0.0
      %1481 = vadd.xlane.f32.xlu0 %v1480
      %v1482 = vpop.xlane.xlu0 %1481
      %v1483 = vsel %vm1278, %v1416, 0.0
      %1484 = vadd.xlane.f32.xlu0 %v1483
      %v1485 = vpop.xlane.xlu0 %1484
      %v1486 = vsel %vm1278, %v1418, 0.0
      %1487 = vadd.xlane.f32.xlu0 %v1486
      %v1488 = vpop.xlane.xlu0 %1487
      %v1489 = vsel %vm1278, %v1420, 0.0
      %1490 = vadd.xlane.f32.xlu0 %v1489
      %v1491 = vpop.xlane.xlu0 %1490
      %v1492 = vsel %vm1278, %v1422, 0.0
      %1493 = vadd.xlane.f32.xlu0 %v1492
      %v1494 = vpop.xlane.xlu0 %1493
      %v1495 = vsel %vm1278, %v1424, 0.0
      %1496 = vadd.xlane.f32.xlu0 %v1495
      %v1497 = vpop.xlane.xlu0 %1496
      %v1498 = vsel %vm1278, %v1426, 0.0
      %1499 = vadd.xlane.f32.xlu0 %v1498
      %v1500 = vpop.xlane.xlu0 %1499
      %v1501 = vsel %vm1278, %v1428, 0.0
      %1502 = vadd.xlane.f32.xlu0 %v1501
      %v1503 = vpop.xlane.xlu0 %1502
      %v1504 = vsel %vm1278, %v1430, 0.0
      %1505 = vadd.xlane.f32.xlu0 %v1504
      %v1506 = vpop.xlane.xlu0 %1505
      %v1507 = vsel %vm1278, %v1432, 0.0
      %1508 = vadd.xlane.f32.xlu0 %v1507
      %v1509 = vpop.xlane.xlu0 %1508
      %v1510 = vsel %vm1278, %v1434, 0.0
      %1511 = vadd.xlane.f32.xlu0 %v1510
      %v1512 = vpop.xlane.xlu0 %1511
      %v1513 = vsel %vm1278, %v1436, 0.0
      %1514 = vadd.xlane.f32.xlu0 %v1513
      %v1515 = vpop.xlane.xlu0 %1514
      %v1516 = vsel %vm1278, %v1438, 0.0
      %1517 = vadd.xlane.f32.xlu0 %v1516
      %v1518 = vpop.xlane.xlu0 %1517
      %v1519 = vsel %vm1278, %v1440, 0.0
      %1520 = vadd.xlane.f32.xlu0 %v1519
      %v1521 = vpop.xlane.xlu0 %1520
      %v1522 = vsel %vm1278, %v1442, 0.0
      %1523 = vadd.xlane.f32.xlu0 %v1522
      %v1524 = vpop.xlane.xlu0 %1523
      %v1525 = vsel %vm1278, %v1444, 0.0
      %1526 = vadd.xlane.f32.xlu0 %v1525
      %v1527 = vpop.xlane.xlu0 %1526
      %v1528 = vsel %vm1278, %v1446, 0.0
      %1529 = vadd.xlane.f32.xlu0 %v1528
      %v1530 = vpop.xlane.xlu0 %1529
      %v1531 = vsel %vm1278, %v1448, 0.0
      %1532 = vadd.xlane.f32.xlu0 %v1531
      %v1533 = vpop.xlane.xlu0 %1532
      %v1534 = vsel %vm1278, %v1450, 0.0
      %1535 = vadd.xlane.f32.xlu0 %v1534
      %v1536 = vpop.xlane.xlu0 %1535
      %v1537 = vsel %vm1278, %v1452, 0.0
      %1538 = vadd.xlane.f32.xlu0 %v1537
      %v1539 = vpop.xlane.xlu0 %1538
      %v1540 = vsel %vm1278, %v1454, 0.0
      %1541 = vadd.xlane.f32.xlu0 %v1540
      %v1542 = vpop.xlane.xlu0 %1541
      %v1543 = vsel %vm1278, %v1456, 0.0
      %1544 = vadd.xlane.f32.xlu0 %v1543
      %v1545 = vpop.xlane.xlu0 %1544
      %v1546 = vsel %vm1278, %v1458, 0.0
      %1547 = vadd.xlane.f32.xlu0 %v1546
      %v1548 = vpop.xlane.xlu0 %1547
      %v1549 = vsel %vm1278, %v1460, 0.0
      %1550 = vadd.xlane.f32.xlu0 %v1549
      %v1551 = vpop.xlane.xlu0 %1550
      %v1552 = vsel %vm1278, %v1462, 0.0
      %1553 = vadd.xlane.f32.xlu0 %v1552
      %v1554 = vpop.xlane.xlu0 %1553
      %v1555 = vsel %vm1278, %v1464, 0.0
      %1556 = vadd.xlane.f32.xlu0 %v1555
      %v1557 = vpop.xlane.xlu0 %1556
      %v1558 = vsel %vm1278, %v1466, 0.0
      %1559 = vadd.xlane.f32.xlu0 %v1558
      %v1560 = vpop.xlane.xlu0 %1559
      %v1561 = vsel %vm1278, %v1468, 0.0
      %1562 = vadd.xlane.f32.xlu0 %v1561
      %v1563 = vpop.xlane.xlu0 %1562
      %v1564 = vsel %vm1278, %v1470, 0.0
      %1565 = vadd.xlane.f32.xlu0 %v1564
      %v1566 = vpop.xlane.xlu0 %1565
      %v1567 = vrcp.pop %v1473
      %v1568 = vrcp.pop %v1476
      %v1569 = vrcp.pop %v1479
      %v1570 = vrcp.pop %v1482
      %v1571 = vrcp.pop %v1485
      %v1572 = vrcp.pop %v1488
      %v1573 = vrcp.pop %v1491
      %v1574 = vrcp.pop %v1494
      %v1575 = vrcp.pop %v1497
      %v1576 = vrcp.pop %v1500
      %v1577 = vrcp.pop %v1503
      %v1578 = vrcp.pop %v1506
      %v1579 = vrcp.pop %v1509
      %v1580 = vrcp.pop %v1512
      %v1581 = vrcp.pop %v1515
      %v1582 = vrcp.pop %v1518
      %v1583 = vrcp.pop %v1521
      %v1584 = vrcp.pop %v1524
      %v1585 = vrcp.pop %v1527
      %v1586 = vrcp.pop %v1530
      %v1587 = vrcp.pop %v1533
      %v1588 = vrcp.pop %v1536
      %v1589 = vrcp.pop %v1539
      %v1590 = vrcp.pop %v1542
      %v1591 = vrcp.pop %v1545
      %v1592 = vrcp.pop %v1548
      %v1593 = vrcp.pop %v1551
      %v1594 = vrcp.pop %v1554
      %v1595 = vrcp.pop %v1557
      %v1596 = vrcp.pop %v1560
      %v1597 = vrcp.pop %v1563
      %v1598 = vrcp.pop %v1566
      %v1599 = vmul.f32 %v1408, %v1567
      %v1600 = vmul.f32 %v1410, %v1568
      %v1601 = vmul.f32 %v1412, %v1569
      %v1602 = vmul.f32 %v1414, %v1570
      %v1603 = vmul.f32 %v1416, %v1571
      %v1604 = vmul.f32 %v1418, %v1572
      %v1605 = vmul.f32 %v1420, %v1573
      %v1606 = vmul.f32 %v1422, %v1574
      %v1607 = vmul.f32 %v1424, %v1575
      %v1608 = vmul.f32 %v1426, %v1576
      %v1609 = vmul.f32 %v1428, %v1577
      %v1610 = vmul.f32 %v1430, %v1578
      %v1611 = vmul.f32 %v1432, %v1579
      %v1612 = vmul.f32 %v1434, %v1580
      %v1613 = vmul.f32 %v1436, %v1581
      %v1614 = vmul.f32 %v1438, %v1582
      %v1615 = vmul.f32 %v1440, %v1583
      %v1616 = vmul.f32 %v1442, %v1584
      %v1617 = vmul.f32 %v1444, %v1585
      %v1618 = vmul.f32 %v1446, %v1586
      %v1619 = vmul.f32 %v1448, %v1587
      %v1620 = vmul.f32 %v1450, %v1588
      %v1621 = vmul.f32 %v1452, %v1589
      %v1622 = vmul.f32 %v1454, %v1590
      %v1623 = vmul.f32 %v1456, %v1591
      %v1624 = vmul.f32 %v1458, %v1592
      %v1625 = vmul.f32 %v1460, %v1593
      %v1626 = vmul.f32 %v1462, %v1594
      %v1627 = vmul.f32 %v1464, %v1595
      %v1628 = vmul.f32 %v1466, %v1596
      %v1629 = vmul.f32 %v1468, %v1597
      %v1630 = vmul.f32 %v1470, %v1598
      %1631 = vrot.lane.b32.xlu0 %v467, 64
      %v1632 = vpop.permute.xlu0 %1631
      %1633 = vrot.lane.b32.xlu0 %v472, 64
      %v1634 = vpop.permute.xlu0 %1633
      %1635 = vrot.lane.b32.xlu0 %v477, 64
      %v1636 = vpop.permute.xlu0 %1635
      %1637 = vrot.lane.b32.xlu0 %v482, 64
      %v1638 = vpop.permute.xlu0 %1637
      %1639 = vrot.lane.b32.xlu0 %v487, 64
      %v1640 = vpop.permute.xlu0 %1639
      %1641 = vrot.lane.b32.xlu0 %v492, 64
      %v1642 = vpop.permute.xlu0 %1641
      %1643 = vrot.lane.b32.xlu0 %v497, 64
      %v1644 = vpop.permute.xlu0 %1643
      %1645 = vrot.lane.b32.xlu0 %v502, 64
      %v1646 = vpop.permute.xlu0 %1645
      %v1656 = vsel %vm1278, %v1599, 0
      %v1659 = vsel %vm1278, %v1600, 0
      %v1662 = vsel %vm1278, %v1601, 0
      %v1665 = vsel %vm1278, %v1602, 0
      %v1668 = vsel %vm1278, %v1603, 0
      %v1671 = vsel %vm1278, %v1604, 0
      %v1674 = vsel %vm1278, %v1605, 0
      %v1677 = vsel %vm1278, %v1606, 0
      %1679 = vmatprep.subr.mxu0 0.0
      %1680 = vmatpush1.msra.mxu0 0.0
      %1681 = vmatprep.subr.mxu0 0.0
      %1682 = vmatpush1.msra.mxu0 0.0
      %1683 = vmatprep.subr.mxu0 0.0
      %1684 = vmatpush1.msra.mxu0 0.0
      %1685 = vmatprep.subr.mxu0 0.0
      %1686 = vmatpush1.msra.mxu0 0.0
      %1687 = vmatprep.subr.mxu0 0.0
      %1688 = vmatpush1.msra.mxu0 0.0
      %1689 = vmatprep.subr.mxu0 0.0
      %1690 = vmatpush1.msra.mxu0 0.0
      %1691 = vmatprep.subr.mxu0 0.0
      %1692 = vmatpush1.msra.mxu0 0.0
      %1693 = vmatprep.subr.mxu0 0.0
      %1694 = vmatpush1.msra.mxu0 0.0
      %1695 = vmatprep.subr.mxu0 0.0
      %1696 = vmatpush1.msra.mxu0 %v1646
      %1697 = vmatprep.subr.mxu0 0.0
      %1698 = vmatpush1.msra.mxu0 %v1644
      %1699 = vmatprep.subr.mxu0 0.0
      %1700 = vmatpush1.msra.mxu0 %v1642
      %1701 = vmatprep.subr.mxu0 0.0
      %1702 = vmatpush1.msra.mxu0 %v1640
      %1703 = vmatprep.subr.mxu0 0.0
      %1704 = vmatpush1.msra.mxu0 %v1638
      %1705 = vmatprep.subr.mxu0 0.0
      %1706 = vmatpush1.msra.mxu0 %v1636
      %1707 = vmatprep.subr.mxu0 0.0
      %1708 = vmatpush1.msra.mxu0 %v1634
      %1709 = vmatprep.subr.mxu0 0.0
      %1710 = vmatpush1.msra.mxu0 %v1632
      %1711 = vmatprep.subr.mxu0 0.0
      %1712 = vmatpush2.msra.mxu0 0.0
      %1713 = vmatprep.subr.mxu0 0.0
      %1714 = vmatpush2.msra.mxu0 0.0
      %1715 = vmatprep.subr.mxu0 0.0
      %1716 = vmatpush2.msra.mxu0 0.0
      %1717 = vmatprep.subr.mxu0 0.0
      %1718 = vmatpush2.msra.mxu0 0.0
      %1719 = vmatprep.subr.mxu0 0.0
      %1720 = vmatpush2.msra.mxu0 0.0
      %1721 = vmatprep.subr.mxu0 0.0
      %1722 = vmatpush2.msra.mxu0 0.0
      %1723 = vmatprep.subr.mxu0 0.0
      %1724 = vmatpush2.msra.mxu0 0.0
      %1725 = vmatprep.subr.mxu0 0.0
      %1726 = vmatpush2.msra.mxu0 0.0
      %1727 = vmatprep.subr.mxu0 0.0
      %1728 = vmatpush2.msra.mxu0 0.0
      %1729 = vmatprep.subr.mxu0 0.0
      %1730 = vmatpush2.msra.mxu0 0.0
      %1731 = vmatprep.subr.mxu0 0.0
      %1732 = vmatpush2.msra.mxu0 0.0
      %1733 = vmatprep.subr.mxu0 0.0
      %1734 = vmatpush2.msra.mxu0 0.0
      %1735 = vmatprep.subr.mxu0 0.0
      %1736 = vmatpush2.msra.mxu0 0.0
      %1737 = vmatprep.subr.mxu0 0.0
      %1738 = vmatpush2.msra.mxu0 0.0
      %1739 = vmatprep.subr.mxu0 0.0
      %1740 = vmatpush2.msra.mxu0 0.0
      %1741 = vmatprep.subr.mxu0 0.0
      %1742 = vmatpush2.msra.mxu0 0.0
      %1743 = vmatprep.mubr.f32.mxu0 0.0
      %1744 = vmatmul.mubr.f32.gmra.mxu0 %v1656
      %v1745 = vpop.f32.mrf.mxu0
      %v1746 = vadd.f32 0.0, %v1745
      %v1747 = vpop.f32.mrf.mxu0
      %1748 = vmatprep.mubr.f32.mxu0 0.0
      %1749 = vmatmul.mubr.f32.gmra.mxu0 %v1659
      %v1750 = vpop.f32.mrf.mxu0
      %v1751 = vadd.f32 0.0, %v1750
      %v1752 = vpop.f32.mrf.mxu0
      %1753 = vmatprep.mubr.f32.mxu0 0.0
      %1754 = vmatmul.mubr.f32.gmra.mxu0 %v1662
      %v1755 = vpop.f32.mrf.mxu0
      %v1756 = vadd.f32 0.0, %v1755
      %v1757 = vpop.f32.mrf.mxu0
      %1758 = vmatprep.mubr.f32.mxu0 0.0
      %1759 = vmatmul.mubr.f32.gmra.mxu0 %v1665
      %v1760 = vpop.f32.mrf.mxu0
      %v1761 = vadd.f32 0.0, %v1760
      %v1762 = vpop.f32.mrf.mxu0
      %1763 = vmatprep.mubr.f32.mxu0 0.0
      %1764 = vmatmul.mubr.f32.gmra.mxu0 %v1668
      %v1765 = vpop.f32.mrf.mxu0
      %v1766 = vadd.f32 0.0, %v1765
      %v1767 = vpop.f32.mrf.mxu0
      %1768 = vmatprep.mubr.f32.mxu0 0.0
      %1769 = vmatmul.mubr.f32.gmra.mxu0 %v1671
      %v1770 = vpop.f32.mrf.mxu0
      %v1771 = vadd.f32 0.0, %v1770
      %v1772 = vpop.f32.mrf.mxu0
      %1773 = vmatprep.mubr.f32.mxu0 0.0
      %1774 = vmatmul.mubr.f32.gmra.mxu0 %v1674
      %v1775 = vpop.f32.mrf.mxu0
      %v1776 = vadd.f32 0.0, %v1775
      %v1777 = vpop.f32.mrf.mxu0
      %1778 = vmatprep.mubr.f32.mxu0 0.0
      %1779 = vmatmul.mubr.f32.gmra.mxu0 %v1677
      %v1780 = vpop.f32.mrf.mxu0
      %v1781 = vadd.f32 0.0, %v1780
      %v1782 = vpop.f32.mrf.mxu0
      %1783 = vdwg.mxu0
      %1784 = vrot.lane.b32.xlu0 %v507, 64
      %v1785 = vpop.permute.xlu0 %1784
      %1786 = vrot.lane.b32.xlu0 %v512, 64
      %v1787 = vpop.permute.xlu0 %1786
      %1788 = vrot.lane.b32.xlu0 %v517, 64
      %v1789 = vpop.permute.xlu0 %1788
      %1790 = vrot.lane.b32.xlu0 %v522, 64
      %v1791 = vpop.permute.xlu0 %1790
      %1792 = vrot.lane.b32.xlu0 %v527, 64
      %v1793 = vpop.permute.xlu0 %1792
      %1794 = vrot.lane.b32.xlu0 %v532, 64
      %v1795 = vpop.permute.xlu0 %1794
      %1796 = vrot.lane.b32.xlu0 %v537, 64
      %v1797 = vpop.permute.xlu0 %1796
      %1798 = vrot.lane.b32.xlu0 %v542, 64
      %v1799 = vpop.permute.xlu0 %1798
      %v1809 = vsel %vm1278, %v1607, 0
      %v1812 = vsel %vm1278, %v1608, 0
      %v1815 = vsel %vm1278, %v1609, 0
      %v1818 = vsel %vm1278, %v1610, 0
      %v1821 = vsel %vm1278, %v1611, 0
      %v1824 = vsel %vm1278, %v1612, 0
      %v1827 = vsel %vm1278, %v1613, 0
      %v1830 = vsel %vm1278, %v1614, 0
      %1832 = vmatprep.subr.mxu0 0.0
      %1833 = vmatpush1.msra.mxu0 0.0
      %1834 = vmatprep.subr.mxu0 0.0
      %1835 = vmatpush1.msra.mxu0 0.0
      %1836 = vmatprep.subr.mxu0 0.0
      %1837 = vmatpush1.msra.mxu0 0.0
      %1838 = vmatprep.subr.mxu0 0.0
      %1839 = vmatpush1.msra.mxu0 0.0
      %1840 = vmatprep.subr.mxu0 0.0
      %1841 = vmatpush1.msra.mxu0 0.0
      %1842 = vmatprep.subr.mxu0 0.0
      %1843 = vmatpush1.msra.mxu0 0.0
      %1844 = vmatprep.subr.mxu0 0.0
      %1845 = vmatpush1.msra.mxu0 0.0
      %1846 = vmatprep.subr.mxu0 0.0
      %1847 = vmatpush1.msra.mxu0 0.0
      %1848 = vmatprep.subr.mxu0 0.0
      %1849 = vmatpush1.msra.mxu0 %v1799
      %1850 = vmatprep.subr.mxu0 0.0
      %1851 = vmatpush1.msra.mxu0 %v1797
      %1852 = vmatprep.subr.mxu0 0.0
      %1853 = vmatpush1.msra.mxu0 %v1795
      %1854 = vmatprep.subr.mxu0 0.0
      %1855 = vmatpush1.msra.mxu0 %v1793
      %1856 = vmatprep.subr.mxu0 0.0
      %1857 = vmatpush1.msra.mxu0 %v1791
      %1858 = vmatprep.subr.mxu0 0.0
      %1859 = vmatpush1.msra.mxu0 %v1789
      %1860 = vmatprep.subr.mxu0 0.0
      %1861 = vmatpush1.msra.mxu0 %v1787
      %1862 = vmatprep.subr.mxu0 0.0
      %1863 = vmatpush1.msra.mxu0 %v1785
      %1864 = vmatprep.subr.mxu0 0.0
      %1865 = vmatpush2.msra.mxu0 0.0
      %1866 = vmatprep.subr.mxu0 0.0
      %1867 = vmatpush2.msra.mxu0 0.0
      %1868 = vmatprep.subr.mxu0 0.0
      %1869 = vmatpush2.msra.mxu0 0.0
      %1870 = vmatprep.subr.mxu0 0.0
      %1871 = vmatpush2.msra.mxu0 0.0
      %1872 = vmatprep.subr.mxu0 0.0
      %1873 = vmatpush2.msra.mxu0 0.0
      %1874 = vmatprep.subr.mxu0 0.0
      %1875 = vmatpush2.msra.mxu0 0.0
      %1876 = vmatprep.subr.mxu0 0.0
      %1877 = vmatpush2.msra.mxu0 0.0
      %1878 = vmatprep.subr.mxu0 0.0
      %1879 = vmatpush2.msra.mxu0 0.0
      %1880 = vmatprep.subr.mxu0 0.0
      %1881 = vmatpush2.msra.mxu0 0.0
      %1882 = vmatprep.subr.mxu0 0.0
      %1883 = vmatpush2.msra.mxu0 0.0
      %1884 = vmatprep.subr.mxu0 0.0
      %1885 = vmatpush2.msra.mxu0 0.0
      %1886 = vmatprep.subr.mxu0 0.0
      %1887 = vmatpush2.msra.mxu0 0.0
      %1888 = vmatprep.subr.mxu0 0.0
      %1889 = vmatpush2.msra.mxu0 0.0
      %1890 = vmatprep.subr.mxu0 0.0
      %1891 = vmatpush2.msra.mxu0 0.0
      %1892 = vmatprep.subr.mxu0 0.0
      %1893 = vmatpush2.msra.mxu0 0.0
      %1894 = vmatprep.subr.mxu0 0.0
      %1895 = vmatpush2.msra.mxu0 0.0
      %1896 = vmatprep.mubr.f32.mxu0 0.0
      %1897 = vmatmul.mubr.f32.gmra.mxu0 %v1809
      %v1898 = vpop.f32.mrf.mxu0
      %v1899 = vadd.f32 0.0, %v1898
      %v1900 = vpop.f32.mrf.mxu0
      %1901 = vmatprep.mubr.f32.mxu0 0.0
      %1902 = vmatmul.mubr.f32.gmra.mxu0 %v1812
      %v1903 = vpop.f32.mrf.mxu0
      %v1904 = vadd.f32 0.0, %v1903
      %v1905 = vpop.f32.mrf.mxu0
      %1906 = vmatprep.mubr.f32.mxu0 0.0
      %1907 = vmatmul.mubr.f32.gmra.mxu0 %v1815
      %v1908 = vpop.f32.mrf.mxu0
      %v1909 = vadd.f32 0.0, %v1908
      %v1910 = vpop.f32.mrf.mxu0
      %1911 = vmatprep.mubr.f32.mxu0 0.0
      %1912 = vmatmul.mubr.f32.gmra.mxu0 %v1818
      %v1913 = vpop.f32.mrf.mxu0
      %v1914 = vadd.f32 0.0, %v1913
      %v1915 = vpop.f32.mrf.mxu0
      %1916 = vmatprep.mubr.f32.mxu0 0.0
      %1917 = vmatmul.mubr.f32.gmra.mxu0 %v1821
      %v1918 = vpop.f32.mrf.mxu0
      %v1919 = vadd.f32 0.0, %v1918
      %v1920 = vpop.f32.mrf.mxu0
      %1921 = vmatprep.mubr.f32.mxu0 0.0
      %1922 = vmatmul.mubr.f32.gmra.mxu0 %v1824
      %v1923 = vpop.f32.mrf.mxu0
      %v1924 = vadd.f32 0.0, %v1923
      %v1925 = vpop.f32.mrf.mxu0
      %1926 = vmatprep.mubr.f32.mxu0 0.0
      %1927 = vmatmul.mubr.f32.gmra.mxu0 %v1827
      %v1928 = vpop.f32.mrf.mxu0
      %v1929 = vadd.f32 0.0, %v1928
      %v1930 = vpop.f32.mrf.mxu0
      %1931 = vmatprep.mubr.f32.mxu0 0.0
      %1932 = vmatmul.mubr.f32.gmra.mxu0 %v1830
      %v1933 = vpop.f32.mrf.mxu0
      %v1934 = vadd.f32 0.0, %v1933
      %v1935 = vpop.f32.mrf.mxu0
      %1936 = vdwg.mxu0
      %1937 = vrot.lane.b32.xlu0 %v547, 64
      %v1938 = vpop.permute.xlu0 %1937
      %1939 = vrot.lane.b32.xlu0 %v552, 64
      %v1940 = vpop.permute.xlu0 %1939
      %1941 = vrot.lane.b32.xlu0 %v557, 64
      %v1942 = vpop.permute.xlu0 %1941
      %1943 = vrot.lane.b32.xlu0 %v562, 64
      %v1944 = vpop.permute.xlu0 %1943
      %1945 = vrot.lane.b32.xlu0 %v567, 64
      %v1946 = vpop.permute.xlu0 %1945
      %1947 = vrot.lane.b32.xlu0 %v572, 64
      %v1948 = vpop.permute.xlu0 %1947
      %1949 = vrot.lane.b32.xlu0 %v577, 64
      %v1950 = vpop.permute.xlu0 %1949
      %1951 = vrot.lane.b32.xlu0 %v582, 64
      %v1952 = vpop.permute.xlu0 %1951
      %v1962 = vsel %vm1278, %v1615, 0
      %v1965 = vsel %vm1278, %v1616, 0
      %v1968 = vsel %vm1278, %v1617, 0
      %v1971 = vsel %vm1278, %v1618, 0
      %v1974 = vsel %vm1278, %v1619, 0
      %v1977 = vsel %vm1278, %v1620, 0
      %v1980 = vsel %vm1278, %v1621, 0
      %v1983 = vsel %vm1278, %v1622, 0
      %1985 = vmatprep.subr.mxu0 0.0
      %1986 = vmatpush1.msra.mxu0 0.0
      %1987 = vmatprep.subr.mxu0 0.0
      %1988 = vmatpush1.msra.mxu0 0.0
      %1989 = vmatprep.subr.mxu0 0.0
      %1990 = vmatpush1.msra.mxu0 0.0
      %1991 = vmatprep.subr.mxu0 0.0
      %1992 = vmatpush1.msra.mxu0 0.0
      %1993 = vmatprep.subr.mxu0 0.0
      %1994 = vmatpush1.msra.mxu0 0.0
      %1995 = vmatprep.subr.mxu0 0.0
      %1996 = vmatpush1.msra.mxu0 0.0
      %1997 = vmatprep.subr.mxu0 0.0
      %1998 = vmatpush1.msra.mxu0 0.0
      %1999 = vmatprep.subr.mxu0 0.0
      %2000 = vmatpush1.msra.mxu0 0.0
      %2001 = vmatprep.subr.mxu0 0.0
      %2002 = vmatpush1.msra.mxu0 %v1952
      %2003 = vmatprep.subr.mxu0 0.0
      %2004 = vmatpush1.msra.mxu0 %v1950
      %2005 = vmatprep.subr.mxu0 0.0
      %2006 = vmatpush1.msra.mxu0 %v1948
      %2007 = vmatprep.subr.mxu0 0.0
      %2008 = vmatpush1.msra.mxu0 %v1946
      %2009 = vmatprep.subr.mxu0 0.0
      %2010 = vmatpush1.msra.mxu0 %v1944
      %2011 = vmatprep.subr.mxu0 0.0
      %2012 = vmatpush1.msra.mxu0 %v1942
      %2013 = vmatprep.subr.mxu0 0.0
      %2014 = vmatpush1.msra.mxu0 %v1940
      %2015 = vmatprep.subr.mxu0 0.0
      %2016 = vmatpush1.msra.mxu0 %v1938
      %2017 = vmatprep.subr.mxu0 0.0
      %2018 = vmatpush2.msra.mxu0 0.0
      %2019 = vmatprep.subr.mxu0 0.0
      %2020 = vmatpush2.msra.mxu0 0.0
      %2021 = vmatprep.subr.mxu0 0.0
      %2022 = vmatpush2.msra.mxu0 0.0
      %2023 = vmatprep.subr.mxu0 0.0
      %2024 = vmatpush2.msra.mxu0 0.0
      %2025 = vmatprep.subr.mxu0 0.0
      %2026 = vmatpush2.msra.mxu0 0.0
      %2027 = vmatprep.subr.mxu0 0.0
      %2028 = vmatpush2.msra.mxu0 0.0
      %2029 = vmatprep.subr.mxu0 0.0
      %2030 = vmatpush2.msra.mxu0 0.0
      %2031 = vmatprep.subr.mxu0 0.0
      %2032 = vmatpush2.msra.mxu0 0.0
      %2033 = vmatprep.subr.mxu0 0.0
      %2034 = vmatpush2.msra.mxu0 0.0
      %2035 = vmatprep.subr.mxu0 0.0
      %2036 = vmatpush2.msra.mxu0 0.0
      %2037 = vmatprep.subr.mxu0 0.0
      %2038 = vmatpush2.msra.mxu0 0.0
      %2039 = vmatprep.subr.mxu0 0.0
      %2040 = vmatpush2.msra.mxu0 0.0
      %2041 = vmatprep.subr.mxu0 0.0
      %2042 = vmatpush2.msra.mxu0 0.0
      %2043 = vmatprep.subr.mxu0 0.0
      %2044 = vmatpush2.msra.mxu0 0.0
      %2045 = vmatprep.subr.mxu0 0.0
      %2046 = vmatpush2.msra.mxu0 0.0
      %2047 = vmatprep.subr.mxu0 0.0
      %2048 = vmatpush2.msra.mxu0 0.0
      %2049 = vmatprep.mubr.f32.mxu0 0.0
      %2050 = vmatmul.mubr.f32.gmra.mxu0 %v1962
      %v2051 = vpop.f32.mrf.mxu0
      %v2052 = vadd.f32 0.0, %v2051
      %v2053 = vpop.f32.mrf.mxu0
      %2054 = vmatprep.mubr.f32.mxu0 0.0
      %2055 = vmatmul.mubr.f32.gmra.mxu0 %v1965
      %v2056 = vpop.f32.mrf.mxu0
      %v2057 = vadd.f32 0.0, %v2056
      %v2058 = vpop.f32.mrf.mxu0
      %2059 = vmatprep.mubr.f32.mxu0 0.0
      %2060 = vmatmul.mubr.f32.gmra.mxu0 %v1968
      %v2061 = vpop.f32.mrf.mxu0
      %v2062 = vadd.f32 0.0, %v2061
      %v2063 = vpop.f32.mrf.mxu0
      %2064 = vmatprep.mubr.f32.mxu0 0.0
      %2065 = vmatmul.mubr.f32.gmra.mxu0 %v1971
      %v2066 = vpop.f32.mrf.mxu0
      %v2067 = vadd.f32 0.0, %v2066
      %v2068 = vpop.f32.mrf.mxu0
      %2069 = vmatprep.mubr.f32.mxu0 0.0
      %2070 = vmatmul.mubr.f32.gmra.mxu0 %v1974
      %v2071 = vpop.f32.mrf.mxu0
      %v2072 = vadd.f32 0.0, %v2071
      %v2073 = vpop.f32.mrf.mxu0
      %2074 = vmatprep.mubr.f32.mxu0 0.0
      %2075 = vmatmul.mubr.f32.gmra.mxu0 %v1977
      %v2076 = vpop.f32.mrf.mxu0
      %v2077 = vadd.f32 0.0, %v2076
      %v2078 = vpop.f32.mrf.mxu0
      %2079 = vmatprep.mubr.f32.mxu0 0.0
      %2080 = vmatmul.mubr.f32.gmra.mxu0 %v1980
      %v2081 = vpop.f32.mrf.mxu0
      %v2082 = vadd.f32 0.0, %v2081
      %v2083 = vpop.f32.mrf.mxu0
      %2084 = vmatprep.mubr.f32.mxu0 0.0
      %2085 = vmatmul.mubr.f32.gmra.mxu0 %v1983
      %v2086 = vpop.f32.mrf.mxu0
      %v2087 = vadd.f32 0.0, %v2086
      %v2088 = vpop.f32.mrf.mxu0
      %2089 = vdwg.mxu0
      %2090 = vrot.lane.b32.xlu0 %v587, 64
      %v2091 = vpop.permute.xlu0 %2090
      %2092 = vrot.lane.b32.xlu0 %v592, 64
      %v2093 = vpop.permute.xlu0 %2092
      %2094 = vrot.lane.b32.xlu0 %v597, 64
      %v2095 = vpop.permute.xlu0 %2094
      %2096 = vrot.lane.b32.xlu0 %v602, 64
      %v2097 = vpop.permute.xlu0 %2096
      %2098 = vrot.lane.b32.xlu0 %v607, 64
      %v2099 = vpop.permute.xlu0 %2098
      %2100 = vrot.lane.b32.xlu0 %v612, 64
      %v2101 = vpop.permute.xlu0 %2100
      %2102 = vrot.lane.b32.xlu0 %v617, 64
      %v2103 = vpop.permute.xlu0 %2102
      %2104 = vrot.lane.b32.xlu0 %v622, 64
      %v2105 = vpop.permute.xlu0 %2104
      %v2115 = vsel %vm1278, %v1623, 0
      %v2118 = vsel %vm1278, %v1624, 0
      %v2121 = vsel %vm1278, %v1625, 0
      %v2124 = vsel %vm1278, %v1626, 0
      %v2127 = vsel %vm1278, %v1627, 0
      %v2130 = vsel %vm1278, %v1628, 0
      %v2133 = vsel %vm1278, %v1629, 0
      %v2136 = vsel %vm1278, %v1630, 0
      %2138 = vmatprep.subr.mxu0 0.0
      %2139 = vmatpush1.msra.mxu0 0.0
      %2140 = vmatprep.subr.mxu0 0.0
      %2141 = vmatpush1.msra.mxu0 0.0
      %2142 = vmatprep.subr.mxu0 0.0
      %2143 = vmatpush1.msra.mxu0 0.0
      %2144 = vmatprep.subr.mxu0 0.0
      %2145 = vmatpush1.msra.mxu0 0.0
      %2146 = vmatprep.subr.mxu0 0.0
      %2147 = vmatpush1.msra.mxu0 0.0
      %2148 = vmatprep.subr.mxu0 0.0
      %2149 = vmatpush1.msra.mxu0 0.0
      %2150 = vmatprep.subr.mxu0 0.0
      %2151 = vmatpush1.msra.mxu0 0.0
      %2152 = vmatprep.subr.mxu0 0.0
      %2153 = vmatpush1.msra.mxu0 0.0
      %2154 = vmatprep.subr.mxu0 0.0
      %2155 = vmatpush1.msra.mxu0 %v2105
      %2156 = vmatprep.subr.mxu0 0.0
      %2157 = vmatpush1.msra.mxu0 %v2103
      %2158 = vmatprep.subr.mxu0 0.0
      %2159 = vmatpush1.msra.mxu0 %v2101
      %2160 = vmatprep.subr.mxu0 0.0
      %2161 = vmatpush1.msra.mxu0 %v2099
      %2162 = vmatprep.subr.mxu0 0.0
      %2163 = vmatpush1.msra.mxu0 %v2097
      %2164 = vmatprep.subr.mxu0 0.0
      %2165 = vmatpush1.msra.mxu0 %v2095
      %2166 = vmatprep.subr.mxu0 0.0
      %2167 = vmatpush1.msra.mxu0 %v2093
      %2168 = vmatprep.subr.mxu0 0.0
      %2169 = vmatpush1.msra.mxu0 %v2091
      %2170 = vmatprep.subr.mxu0 0.0
      %2171 = vmatpush2.msra.mxu0 0.0
      %2172 = vmatprep.subr.mxu0 0.0
      %2173 = vmatpush2.msra.mxu0 0.0
      %2174 = vmatprep.subr.mxu0 0.0
      %2175 = vmatpush2.msra.mxu0 0.0
      %2176 = vmatprep.subr.mxu0 0.0
      %2177 = vmatpush2.msra.mxu0 0.0
      %2178 = vmatprep.subr.mxu0 0.0
      %2179 = vmatpush2.msra.mxu0 0.0
      %2180 = vmatprep.subr.mxu0 0.0
      %2181 = vmatpush2.msra.mxu0 0.0
      %2182 = vmatprep.subr.mxu0 0.0
      %2183 = vmatpush2.msra.mxu0 0.0
      %2184 = vmatprep.subr.mxu0 0.0
      %2185 = vmatpush2.msra.mxu0 0.0
      %2186 = vmatprep.subr.mxu0 0.0
      %2187 = vmatpush2.msra.mxu0 0.0
      %2188 = vmatprep.subr.mxu0 0.0
      %2189 = vmatpush2.msra.mxu0 0.0
      %2190 = vmatprep.subr.mxu0 0.0
      %2191 = vmatpush2.msra.mxu0 0.0
      %2192 = vmatprep.subr.mxu0 0.0
      %2193 = vmatpush2.msra.mxu0 0.0
      %2194 = vmatprep.subr.mxu0 0.0
      %2195 = vmatpush2.msra.mxu0 0.0
      %2196 = vmatprep.subr.mxu0 0.0
      %2197 = vmatpush2.msra.mxu0 0.0
      %2198 = vmatprep.subr.mxu0 0.0
      %2199 = vmatpush2.msra.mxu0 0.0
      %2200 = vmatprep.subr.mxu0 0.0
      %2201 = vmatpush2.msra.mxu0 0.0
      %2202 = vmatprep.mubr.f32.mxu0 0.0
      %2203 = vmatmul.mubr.f32.gmra.mxu0 %v2115
      %v2204 = vpop.f32.mrf.mxu0
      %v2205 = vadd.f32 0.0, %v2204
      %v2206 = vpop.f32.mrf.mxu0
      %2207 = vmatprep.mubr.f32.mxu0 0.0
      %2208 = vmatmul.mubr.f32.gmra.mxu0 %v2118
      %v2209 = vpop.f32.mrf.mxu0
      %v2210 = vadd.f32 0.0, %v2209
      %v2211 = vpop.f32.mrf.mxu0
      %2212 = vmatprep.mubr.f32.mxu0 0.0
      %2213 = vmatmul.mubr.f32.gmra.mxu0 %v2121
      %v2214 = vpop.f32.mrf.mxu0
      %v2215 = vadd.f32 0.0, %v2214
      %v2216 = vpop.f32.mrf.mxu0
      %2217 = vmatprep.mubr.f32.mxu0 0.0
      %2218 = vmatmul.mubr.f32.gmra.mxu0 %v2124
      %v2219 = vpop.f32.mrf.mxu0
      %v2220 = vadd.f32 0.0, %v2219
      %v2221 = vpop.f32.mrf.mxu0
      %2222 = vmatprep.mubr.f32.mxu0 0.0
      %2223 = vmatmul.mubr.f32.gmra.mxu0 %v2127
      %v2224 = vpop.f32.mrf.mxu0
      %v2225 = vadd.f32 0.0, %v2224
      %v2226 = vpop.f32.mrf.mxu0
      %2227 = vmatprep.mubr.f32.mxu0 0.0
      %2228 = vmatmul.mubr.f32.gmra.mxu0 %v2130
      %v2229 = vpop.f32.mrf.mxu0
      %v2230 = vadd.f32 0.0, %v2229
      %v2231 = vpop.f32.mrf.mxu0
      %2232 = vmatprep.mubr.f32.mxu0 0.0
      %2233 = vmatmul.mubr.f32.gmra.mxu0 %v2133
      %v2234 = vpop.f32.mrf.mxu0
      %v2235 = vadd.f32 0.0, %v2234
      %v2236 = vpop.f32.mrf.mxu0
      %2237 = vmatprep.mubr.f32.mxu0 0.0
      %2238 = vmatmul.mubr.f32.gmra.mxu0 %v2136
      %v2239 = vpop.f32.mrf.mxu0
      %v2240 = vadd.f32 0.0, %v2239
      %v2241 = vpop.f32.mrf.mxu0
      %2242 = vdwg.mxu0
      %s2243 = scalar_lea.vmem %s3, 64
      %v2244 = vld [vmem:[%s2243] sm:$0xff]
      %v2245 = vld [vmem:[%s2243 + $0x8] sm:$0xff]
      %v2246 = vld [vmem:[%s2243 + $0x10] sm:$0xff]
      %v2247 = vld [vmem:[%s2243 + $0x18] sm:$0xff]
      %v2248 = vld [vmem:[%s2243 + $0x20] sm:$0xff]
      %v2249 = vld [vmem:[%s2243 + $0x28] sm:$0xff]
      %v2250 = vld [vmem:[%s2243 + $0x30] sm:$0xff]
      %v2251 = vld [vmem:[%s2243 + $0x38] sm:$0xff]
      %2252 = vrot.lane.b32.xlu0 %v467, 120
      %v2253 = vpop.permute.xlu0 %2252
      %2254 = vrot.lane.b32.xlu0 %v472, 120
      %v2255 = vpop.permute.xlu0 %2254
      %2256 = vrot.lane.b32.xlu0 %v477, 120
      %v2257 = vpop.permute.xlu0 %2256
      %2258 = vrot.lane.b32.xlu0 %v482, 120
      %v2259 = vpop.permute.xlu0 %2258
      %2260 = vrot.lane.b32.xlu0 %v487, 120
      %v2261 = vpop.permute.xlu0 %2260
      %2262 = vrot.lane.b32.xlu0 %v492, 120
      %v2263 = vpop.permute.xlu0 %2262
      %2264 = vrot.lane.b32.xlu0 %v497, 120
      %v2265 = vpop.permute.xlu0 %2264
      %2266 = vrot.lane.b32.xlu0 %v502, 120
      %v2267 = vpop.permute.xlu0 %2266
      %2268 = vrot.lane.b32.xlu0 %v467, 88
      %v2269 = vpop.permute.xlu0 %2268
      %2270 = vrot.lane.b32.xlu0 %v472, 88
      %v2271 = vpop.permute.xlu0 %2270
      %2272 = vrot.lane.b32.xlu0 %v477, 88
      %v2273 = vpop.permute.xlu0 %2272
      %2274 = vrot.lane.b32.xlu0 %v482, 88
      %v2275 = vpop.permute.xlu0 %2274
      %2276 = vrot.lane.b32.xlu0 %v487, 88
      %v2277 = vpop.permute.xlu0 %2276
      %2278 = vrot.lane.b32.xlu0 %v492, 88
      %v2279 = vpop.permute.xlu0 %2278
      %2280 = vrot.lane.b32.xlu0 %v497, 88
      %v2281 = vpop.permute.xlu0 %2280
      %2282 = vrot.lane.b32.xlu0 %v502, 88
      %v2283 = vpop.permute.xlu0 %2282
      %v2284 = vsel %vm657, %v2253, 0
      %v2286 = vsel %vm657, %v2255, 0
      %v2288 = vsel %vm657, %v2257, 0
      %v2290 = vsel %vm657, %v2259, 0
      %v2292 = vsel %vm657, %v2261, 0
      %v2294 = vsel %vm657, %v2263, 0
      %v2296 = vsel %vm657, %v2265, 0
      %v2298 = vsel %vm657, %v2267, 0
      %v2300 = vsel %vm657, %v2269, 0
      %v2302 = vsel %vm657, %v2271, 0
      %v2304 = vsel %vm657, %v2273, 0
      %v2306 = vsel %vm657, %v2275, 0
      %v2308 = vsel %vm657, %v2277, 0
      %v2310 = vsel %vm657, %v2279, 0
      %v2312 = vsel %vm657, %v2281, 0
      %v2314 = vsel %vm657, %v2283, 0
      %2316 = vmatprep.subr.mxu0 0.0
      %2317 = vmatpush1.xpose.msra.mxu0 0.0
      %2318 = vmatprep.subr.mxu0 0.0
      %2319 = vmatpush1.xpose.msra.mxu0 0.0
      %2320 = vmatprep.subr.mxu0 0.0
      %2321 = vmatpush1.xpose.msra.mxu0 0.0
      %2322 = vmatprep.subr.mxu0 0.0
      %2323 = vmatpush1.xpose.msra.mxu0 0.0
      %2324 = vmatprep.subr.mxu0 0.0
      %2325 = vmatpush1.xpose.msra.mxu0 0.0
      %2326 = vmatprep.subr.mxu0 0.0
      %2327 = vmatpush1.xpose.msra.mxu0 0.0
      %2328 = vmatprep.subr.mxu0 0.0
      %2329 = vmatpush1.xpose.msra.mxu0 0.0
      %2330 = vmatprep.subr.mxu0 0.0
      %2331 = vmatpush1.xpose.msra.mxu0 0.0
      %2332 = vmatprep.subr.mxu0 0.0
      %2333 = vmatpush1.xpose.msra.mxu0 %v2314
      %2334 = vmatprep.subr.mxu0 0.0
      %2335 = vmatpush1.xpose.msra.mxu0 %v2312
      %2336 = vmatprep.subr.mxu0 0.0
      %2337 = vmatpush1.xpose.msra.mxu0 %v2310
      %2338 = vmatprep.subr.mxu0 0.0
      %2339 = vmatpush1.xpose.msra.mxu0 %v2308
      %2340 = vmatprep.subr.mxu0 0.0
      %2341 = vmatpush1.xpose.msra.mxu0 %v2306
      %2342 = vmatprep.subr.mxu0 0.0
      %2343 = vmatpush1.xpose.msra.mxu0 %v2304
      %2344 = vmatprep.subr.mxu0 0.0
      %2345 = vmatpush1.xpose.msra.mxu0 %v2302
      %2346 = vmatprep.subr.mxu0 0.0
      %2347 = vmatpush1.xpose.msra.mxu0 %v2300
      %2348 = vmatprep.subr.mxu0 0.0
      %2349 = vmatpush2.xpose.msra.mxu0 0.0
      %2350 = vmatprep.subr.mxu0 0.0
      %2351 = vmatpush2.xpose.msra.mxu0 0.0
      %2352 = vmatprep.subr.mxu0 0.0
      %2353 = vmatpush2.xpose.msra.mxu0 0.0
      %2354 = vmatprep.subr.mxu0 0.0
      %2355 = vmatpush2.xpose.msra.mxu0 0.0
      %2356 = vmatprep.subr.mxu0 0.0
      %2357 = vmatpush2.xpose.msra.mxu0 0.0
      %2358 = vmatprep.subr.mxu0 0.0
      %2359 = vmatpush2.xpose.msra.mxu0 0.0
      %2360 = vmatprep.subr.mxu0 0.0
      %2361 = vmatpush2.xpose.msra.mxu0 0.0
      %2362 = vmatprep.subr.mxu0 0.0
      %2363 = vmatpush2.xpose.msra.mxu0 0.0
      %2364 = vmatprep.subr.mxu0 0.0
      %2365 = vmatpush2.xpose.msra.mxu0 0.0
      %2366 = vmatprep.subr.mxu0 0.0
      %2367 = vmatpush2.xpose.msra.mxu0 0.0
      %2368 = vmatprep.subr.mxu0 0.0
      %2369 = vmatpush2.xpose.msra.mxu0 0.0
      %2370 = vmatprep.subr.mxu0 0.0
      %2371 = vmatpush2.xpose.msra.mxu0 0.0
      %2372 = vmatprep.subr.mxu0 0.0
      %2373 = vmatpush2.xpose.msra.mxu0 0.0
      %2374 = vmatprep.subr.mxu0 0.0
      %2375 = vmatpush2.xpose.msra.mxu0 0.0
      %2376 = vmatprep.subr.mxu0 0.0
      %2377 = vmatpush2.xpose.msra.mxu0 0.0
      %2378 = vmatprep.subr.mxu0 0.0
      %2379 = vmatpush2.xpose.msra.mxu0 0.0
      %2380 = vmatprep.mubr.f32.mxu0 0.0
      %2381 = vmatmul.mubr.f32.gmra.mxu0 %v2284
      %v2382 = vpop.f32.mrf.mxu0
      %v2383 = vadd.f32 %v2244, %v2382
      %v2384 = vpop.f32.mrf.mxu0
      %2385 = vmatprep.mubr.f32.mxu0 0.0
      %2386 = vmatmul.mubr.f32.gmra.mxu0 %v2286
      %v2387 = vpop.f32.mrf.mxu0
      %v2388 = vadd.f32 %v2245, %v2387
      %v2389 = vpop.f32.mrf.mxu0
      %2390 = vmatprep.mubr.f32.mxu0 0.0
      %2391 = vmatmul.mubr.f32.gmra.mxu0 %v2288
      %v2392 = vpop.f32.mrf.mxu0
      %v2393 = vadd.f32 %v2246, %v2392
      %v2394 = vpop.f32.mrf.mxu0
      %2395 = vmatprep.mubr.f32.mxu0 0.0
      %2396 = vmatmul.mubr.f32.gmra.mxu0 %v2290
      %v2397 = vpop.f32.mrf.mxu0
      %v2398 = vadd.f32 %v2247, %v2397
      %v2399 = vpop.f32.mrf.mxu0
      %2400 = vmatprep.mubr.f32.mxu0 0.0
      %2401 = vmatmul.mubr.f32.gmra.mxu0 %v2292
      %v2402 = vpop.f32.mrf.mxu0
      %v2403 = vadd.f32 %v2248, %v2402
      %v2404 = vpop.f32.mrf.mxu0
      %2405 = vmatprep.mubr.f32.mxu0 0.0
      %2406 = vmatmul.mubr.f32.gmra.mxu0 %v2294
      %v2407 = vpop.f32.mrf.mxu0
      %v2408 = vadd.f32 %v2249, %v2407
      %v2409 = vpop.f32.mrf.mxu0
      %2410 = vmatprep.mubr.f32.mxu0 0.0
      %2411 = vmatmul.mubr.f32.gmra.mxu0 %v2296
      %v2412 = vpop.f32.mrf.mxu0
      %v2413 = vadd.f32 %v2250, %v2412
      %v2414 = vpop.f32.mrf.mxu0
      %2415 = vmatprep.mubr.f32.mxu0 0.0
      %2416 = vmatmul.mubr.f32.gmra.mxu0 %v2298
      %v2417 = vpop.f32.mrf.mxu0
      %v2418 = vadd.f32 %v2251, %v2417
      %v2419 = vpop.f32.mrf.mxu0
      %2420 = vdwg.mxu0
      %2421 = vrot.lane.b32.xlu0 %v507, 120
      %v2422 = vpop.permute.xlu0 %2421
      %2423 = vrot.lane.b32.xlu0 %v512, 120
      %v2424 = vpop.permute.xlu0 %2423
      %2425 = vrot.lane.b32.xlu0 %v517, 120
      %v2426 = vpop.permute.xlu0 %2425
      %2427 = vrot.lane.b32.xlu0 %v522, 120
      %v2428 = vpop.permute.xlu0 %2427
      %2429 = vrot.lane.b32.xlu0 %v527, 120
      %v2430 = vpop.permute.xlu0 %2429
      %2431 = vrot.lane.b32.xlu0 %v532, 120
      %v2432 = vpop.permute.xlu0 %2431
      %2433 = vrot.lane.b32.xlu0 %v537, 120
      %v2434 = vpop.permute.xlu0 %2433
      %2435 = vrot.lane.b32.xlu0 %v542, 120
      %v2436 = vpop.permute.xlu0 %2435
      %2437 = vrot.lane.b32.xlu0 %v507, 88
      %v2438 = vpop.permute.xlu0 %2437
      %2439 = vrot.lane.b32.xlu0 %v512, 88
      %v2440 = vpop.permute.xlu0 %2439
      %2441 = vrot.lane.b32.xlu0 %v517, 88
      %v2442 = vpop.permute.xlu0 %2441
      %2443 = vrot.lane.b32.xlu0 %v522, 88
      %v2444 = vpop.permute.xlu0 %2443
      %2445 = vrot.lane.b32.xlu0 %v527, 88
      %v2446 = vpop.permute.xlu0 %2445
      %2447 = vrot.lane.b32.xlu0 %v532, 88
      %v2448 = vpop.permute.xlu0 %2447
      %2449 = vrot.lane.b32.xlu0 %v537, 88
      %v2450 = vpop.permute.xlu0 %2449
      %2451 = vrot.lane.b32.xlu0 %v542, 88
      %v2452 = vpop.permute.xlu0 %2451
      %v2453 = vsel %vm657, %v2422, 0
      %v2455 = vsel %vm657, %v2424, 0
      %v2457 = vsel %vm657, %v2426, 0
      %v2459 = vsel %vm657, %v2428, 0
      %v2461 = vsel %vm657, %v2430, 0
      %v2463 = vsel %vm657, %v2432, 0
      %v2465 = vsel %vm657, %v2434, 0
      %v2467 = vsel %vm657, %v2436, 0
      %v2469 = vsel %vm657, %v2438, 0
      %v2471 = vsel %vm657, %v2440, 0
      %v2473 = vsel %vm657, %v2442, 0
      %v2475 = vsel %vm657, %v2444, 0
      %v2477 = vsel %vm657, %v2446, 0
      %v2479 = vsel %vm657, %v2448, 0
      %v2481 = vsel %vm657, %v2450, 0
      %v2483 = vsel %vm657, %v2452, 0
      %2485 = vmatprep.subr.mxu0 0.0
      %2486 = vmatpush1.xpose.msra.mxu0 0.0
      %2487 = vmatprep.subr.mxu0 0.0
      %2488 = vmatpush1.xpose.msra.mxu0 0.0
      %2489 = vmatprep.subr.mxu0 0.0
      %2490 = vmatpush1.xpose.msra.mxu0 0.0
      %2491 = vmatprep.subr.mxu0 0.0
      %2492 = vmatpush1.xpose.msra.mxu0 0.0
      %2493 = vmatprep.subr.mxu0 0.0
      %2494 = vmatpush1.xpose.msra.mxu0 0.0
      %2495 = vmatprep.subr.mxu0 0.0
      %2496 = vmatpush1.xpose.msra.mxu0 0.0
      %2497 = vmatprep.subr.mxu0 0.0
      %2498 = vmatpush1.xpose.msra.mxu0 0.0
      %2499 = vmatprep.subr.mxu0 0.0
      %2500 = vmatpush1.xpose.msra.mxu0 0.0
      %2501 = vmatprep.subr.mxu0 0.0
      %2502 = vmatpush1.xpose.msra.mxu0 %v2483
      %2503 = vmatprep.subr.mxu0 0.0
      %2504 = vmatpush1.xpose.msra.mxu0 %v2481
      %2505 = vmatprep.subr.mxu0 0.0
      %2506 = vmatpush1.xpose.msra.mxu0 %v2479
      %2507 = vmatprep.subr.mxu0 0.0
      %2508 = vmatpush1.xpose.msra.mxu0 %v2477
      %2509 = vmatprep.subr.mxu0 0.0
      %2510 = vmatpush1.xpose.msra.mxu0 %v2475
      %2511 = vmatprep.subr.mxu0 0.0
      %2512 = vmatpush1.xpose.msra.mxu0 %v2473
      %2513 = vmatprep.subr.mxu0 0.0
      %2514 = vmatpush1.xpose.msra.mxu0 %v2471
      %2515 = vmatprep.subr.mxu0 0.0
      %2516 = vmatpush1.xpose.msra.mxu0 %v2469
      %2517 = vmatprep.subr.mxu0 0.0
      %2518 = vmatpush2.xpose.msra.mxu0 0.0
      %2519 = vmatprep.subr.mxu0 0.0
      %2520 = vmatpush2.xpose.msra.mxu0 0.0
      %2521 = vmatprep.subr.mxu0 0.0
      %2522 = vmatpush2.xpose.msra.mxu0 0.0
      %2523 = vmatprep.subr.mxu0 0.0
      %2524 = vmatpush2.xpose.msra.mxu0 0.0
      %2525 = vmatprep.subr.mxu0 0.0
      %2526 = vmatpush2.xpose.msra.mxu0 0.0
      %2527 = vmatprep.subr.mxu0 0.0
      %2528 = vmatpush2.xpose.msra.mxu0 0.0
      %2529 = vmatprep.subr.mxu0 0.0
      %2530 = vmatpush2.xpose.msra.mxu0 0.0
      %2531 = vmatprep.subr.mxu0 0.0
      %2532 = vmatpush2.xpose.msra.mxu0 0.0
      %2533 = vmatprep.subr.mxu0 0.0
      %2534 = vmatpush2.xpose.msra.mxu0 0.0
      %2535 = vmatprep.subr.mxu0 0.0
      %2536 = vmatpush2.xpose.msra.mxu0 0.0
      %2537 = vmatprep.subr.mxu0 0.0
      %2538 = vmatpush2.xpose.msra.mxu0 0.0
      %2539 = vmatprep.subr.mxu0 0.0
      %2540 = vmatpush2.xpose.msra.mxu0 0.0
      %2541 = vmatprep.subr.mxu0 0.0
      %2542 = vmatpush2.xpose.msra.mxu0 0.0
      %2543 = vmatprep.subr.mxu0 0.0
      %2544 = vmatpush2.xpose.msra.mxu0 0.0
      %2545 = vmatprep.subr.mxu0 0.0
      %2546 = vmatpush2.xpose.msra.mxu0 0.0
      %2547 = vmatprep.subr.mxu0 0.0
      %2548 = vmatpush2.xpose.msra.mxu0 0.0
      %2549 = vmatprep.mubr.f32.mxu0 0.0
      %2550 = vmatmul.mubr.f32.gmra.mxu0 %v2453
      %v2551 = vpop.f32.mrf.mxu0
      %v2552 = vadd.f32 %v2244, %v2551
      %v2553 = vpop.f32.mrf.mxu0
      %2554 = vmatprep.mubr.f32.mxu0 0.0
      %2555 = vmatmul.mubr.f32.gmra.mxu0 %v2455
      %v2556 = vpop.f32.mrf.mxu0
      %v2557 = vadd.f32 %v2245, %v2556
      %v2558 = vpop.f32.mrf.mxu0
      %2559 = vmatprep.mubr.f32.mxu0 0.0
      %2560 = vmatmul.mubr.f32.gmra.mxu0 %v2457
      %v2561 = vpop.f32.mrf.mxu0
      %v2562 = vadd.f32 %v2246, %v2561
      %v2563 = vpop.f32.mrf.mxu0
      %2564 = vmatprep.mubr.f32.mxu0 0.0
      %2565 = vmatmul.mubr.f32.gmra.mxu0 %v2459
      %v2566 = vpop.f32.mrf.mxu0
      %v2567 = vadd.f32 %v2247, %v2566
      %v2568 = vpop.f32.mrf.mxu0
      %2569 = vmatprep.mubr.f32.mxu0 0.0
      %2570 = vmatmul.mubr.f32.gmra.mxu0 %v2461
      %v2571 = vpop.f32.mrf.mxu0
      %v2572 = vadd.f32 %v2248, %v2571
      %v2573 = vpop.f32.mrf.mxu0
      %2574 = vmatprep.mubr.f32.mxu0 0.0
      %2575 = vmatmul.mubr.f32.gmra.mxu0 %v2463
      %v2576 = vpop.f32.mrf.mxu0
      %v2577 = vadd.f32 %v2249, %v2576
      %v2578 = vpop.f32.mrf.mxu0
      %2579 = vmatprep.mubr.f32.mxu0 0.0
      %2580 = vmatmul.mubr.f32.gmra.mxu0 %v2465
      %v2581 = vpop.f32.mrf.mxu0
      %v2582 = vadd.f32 %v2250, %v2581
      %v2583 = vpop.f32.mrf.mxu0
      %2584 = vmatprep.mubr.f32.mxu0 0.0
      %2585 = vmatmul.mubr.f32.gmra.mxu0 %v2467
      %v2586 = vpop.f32.mrf.mxu0
      %v2587 = vadd.f32 %v2251, %v2586
      %v2588 = vpop.f32.mrf.mxu0
      %2589 = vdwg.mxu0
      %2590 = vrot.lane.b32.xlu0 %v547, 120
      %v2591 = vpop.permute.xlu0 %2590
      %2592 = vrot.lane.b32.xlu0 %v552, 120
      %v2593 = vpop.permute.xlu0 %2592
      %2594 = vrot.lane.b32.xlu0 %v557, 120
      %v2595 = vpop.permute.xlu0 %2594
      %2596 = vrot.lane.b32.xlu0 %v562, 120
      %v2597 = vpop.permute.xlu0 %2596
      %2598 = vrot.lane.b32.xlu0 %v567, 120
      %v2599 = vpop.permute.xlu0 %2598
      %2600 = vrot.lane.b32.xlu0 %v572, 120
      %v2601 = vpop.permute.xlu0 %2600
      %2602 = vrot.lane.b32.xlu0 %v577, 120
      %v2603 = vpop.permute.xlu0 %2602
      %2604 = vrot.lane.b32.xlu0 %v582, 120
      %v2605 = vpop.permute.xlu0 %2604
      %2606 = vrot.lane.b32.xlu0 %v547, 88
      %v2607 = vpop.permute.xlu0 %2606
      %2608 = vrot.lane.b32.xlu0 %v552, 88
      %v2609 = vpop.permute.xlu0 %2608
      %2610 = vrot.lane.b32.xlu0 %v557, 88
      %v2611 = vpop.permute.xlu0 %2610
      %2612 = vrot.lane.b32.xlu0 %v562, 88
      %v2613 = vpop.permute.xlu0 %2612
      %2614 = vrot.lane.b32.xlu0 %v567, 88
      %v2615 = vpop.permute.xlu0 %2614
      %2616 = vrot.lane.b32.xlu0 %v572, 88
      %v2617 = vpop.permute.xlu0 %2616
      %2618 = vrot.lane.b32.xlu0 %v577, 88
      %v2619 = vpop.permute.xlu0 %2618
      %2620 = vrot.lane.b32.xlu0 %v582, 88
      %v2621 = vpop.permute.xlu0 %2620
      %v2622 = vsel %vm657, %v2591, 0
      %v2624 = vsel %vm657, %v2593, 0
      %v2626 = vsel %vm657, %v2595, 0
      %v2628 = vsel %vm657, %v2597, 0
      %v2630 = vsel %vm657, %v2599, 0
      %v2632 = vsel %vm657, %v2601, 0
      %v2634 = vsel %vm657, %v2603, 0
      %v2636 = vsel %vm657, %v2605, 0
      %v2638 = vsel %vm657, %v2607, 0
      %v2640 = vsel %vm657, %v2609, 0
      %v2642 = vsel %vm657, %v2611, 0
      %v2644 = vsel %vm657, %v2613, 0
      %v2646 = vsel %vm657, %v2615, 0
      %v2648 = vsel %vm657, %v2617, 0
      %v2650 = vsel %vm657, %v2619, 0
      %v2652 = vsel %vm657, %v2621, 0
      %2654 = vmatprep.subr.mxu0 0.0
      %2655 = vmatpush1.xpose.msra.mxu0 0.0
      %2656 = vmatprep.subr.mxu0 0.0
      %2657 = vmatpush1.xpose.msra.mxu0 0.0
      %2658 = vmatprep.subr.mxu0 0.0
      %2659 = vmatpush1.xpose.msra.mxu0 0.0
      %2660 = vmatprep.subr.mxu0 0.0
      %2661 = vmatpush1.xpose.msra.mxu0 0.0
      %2662 = vmatprep.subr.mxu0 0.0
      %2663 = vmatpush1.xpose.msra.mxu0 0.0
      %2664 = vmatprep.subr.mxu0 0.0
      %2665 = vmatpush1.xpose.msra.mxu0 0.0
      %2666 = vmatprep.subr.mxu0 0.0
      %2667 = vmatpush1.xpose.msra.mxu0 0.0
      %2668 = vmatprep.subr.mxu0 0.0
      %2669 = vmatpush1.xpose.msra.mxu0 0.0
      %2670 = vmatprep.subr.mxu0 0.0
      %2671 = vmatpush1.xpose.msra.mxu0 %v2652
      %2672 = vmatprep.subr.mxu0 0.0
      %2673 = vmatpush1.xpose.msra.mxu0 %v2650
      %2674 = vmatprep.subr.mxu0 0.0
      %2675 = vmatpush1.xpose.msra.mxu0 %v2648
      %2676 = vmatprep.subr.mxu0 0.0
      %2677 = vmatpush1.xpose.msra.mxu0 %v2646
      %2678 = vmatprep.subr.mxu0 0.0
      %2679 = vmatpush1.xpose.msra.mxu0 %v2644
      %2680 = vmatprep.subr.mxu0 0.0
      %2681 = vmatpush1.xpose.msra.mxu0 %v2642
      %2682 = vmatprep.subr.mxu0 0.0
      %2683 = vmatpush1.xpose.msra.mxu0 %v2640
      %2684 = vmatprep.subr.mxu0 0.0
      %2685 = vmatpush1.xpose.msra.mxu0 %v2638
      %2686 = vmatprep.subr.mxu0 0.0
      %2687 = vmatpush2.xpose.msra.mxu0 0.0
      %2688 = vmatprep.subr.mxu0 0.0
      %2689 = vmatpush2.xpose.msra.mxu0 0.0
      %2690 = vmatprep.subr.mxu0 0.0
      %2691 = vmatpush2.xpose.msra.mxu0 0.0
      %2692 = vmatprep.subr.mxu0 0.0
      %2693 = vmatpush2.xpose.msra.mxu0 0.0
      %2694 = vmatprep.subr.mxu0 0.0
      %2695 = vmatpush2.xpose.msra.mxu0 0.0
      %2696 = vmatprep.subr.mxu0 0.0
      %2697 = vmatpush2.xpose.msra.mxu0 0.0
      %2698 = vmatprep.subr.mxu0 0.0
      %2699 = vmatpush2.xpose.msra.mxu0 0.0
      %2700 = vmatprep.subr.mxu0 0.0
      %2701 = vmatpush2.xpose.msra.mxu0 0.0
      %2702 = vmatprep.subr.mxu0 0.0
      %2703 = vmatpush2.xpose.msra.mxu0 0.0
      %2704 = vmatprep.subr.mxu0 0.0
      %2705 = vmatpush2.xpose.msra.mxu0 0.0
      %2706 = vmatprep.subr.mxu0 0.0
      %2707 = vmatpush2.xpose.msra.mxu0 0.0
      %2708 = vmatprep.subr.mxu0 0.0
      %2709 = vmatpush2.xpose.msra.mxu0 0.0
      %2710 = vmatprep.subr.mxu0 0.0
      %2711 = vmatpush2.xpose.msra.mxu0 0.0
      %2712 = vmatprep.subr.mxu0 0.0
      %2713 = vmatpush2.xpose.msra.mxu0 0.0
      %2714 = vmatprep.subr.mxu0 0.0
      %2715 = vmatpush2.xpose.msra.mxu0 0.0
      %2716 = vmatprep.subr.mxu0 0.0
      %2717 = vmatpush2.xpose.msra.mxu0 0.0
      %2718 = vmatprep.mubr.f32.mxu0 0.0
      %2719 = vmatmul.mubr.f32.gmra.mxu0 %v2622
      %v2720 = vpop.f32.mrf.mxu0
      %v2721 = vadd.f32 %v2244, %v2720
      %v2722 = vpop.f32.mrf.mxu0
      %2723 = vmatprep.mubr.f32.mxu0 0.0
      %2724 = vmatmul.mubr.f32.gmra.mxu0 %v2624
      %v2725 = vpop.f32.mrf.mxu0
      %v2726 = vadd.f32 %v2245, %v2725
      %v2727 = vpop.f32.mrf.mxu0
      %2728 = vmatprep.mubr.f32.mxu0 0.0
      %2729 = vmatmul.mubr.f32.gmra.mxu0 %v2626
      %v2730 = vpop.f32.mrf.mxu0
      %v2731 = vadd.f32 %v2246, %v2730
      %v2732 = vpop.f32.mrf.mxu0
      %2733 = vmatprep.mubr.f32.mxu0 0.0
      %2734 = vmatmul.mubr.f32.gmra.mxu0 %v2628
      %v2735 = vpop.f32.mrf.mxu0
      %v2736 = vadd.f32 %v2247, %v2735
      %v2737 = vpop.f32.mrf.mxu0
      %2738 = vmatprep.mubr.f32.mxu0 0.0
      %2739 = vmatmul.mubr.f32.gmra.mxu0 %v2630
      %v2740 = vpop.f32.mrf.mxu0
      %v2741 = vadd.f32 %v2248, %v2740
      %v2742 = vpop.f32.mrf.mxu0
      %2743 = vmatprep.mubr.f32.mxu0 0.0
      %2744 = vmatmul.mubr.f32.gmra.mxu0 %v2632
      %v2745 = vpop.f32.mrf.mxu0
      %v2746 = vadd.f32 %v2249, %v2745
      %v2747 = vpop.f32.mrf.mxu0
      %2748 = vmatprep.mubr.f32.mxu0 0.0
      %2749 = vmatmul.mubr.f32.gmra.mxu0 %v2634
      %v2750 = vpop.f32.mrf.mxu0
      %v2751 = vadd.f32 %v2250, %v2750
      %v2752 = vpop.f32.mrf.mxu0
      %2753 = vmatprep.mubr.f32.mxu0 0.0
      %2754 = vmatmul.mubr.f32.gmra.mxu0 %v2636
      %v2755 = vpop.f32.mrf.mxu0
      %v2756 = vadd.f32 %v2251, %v2755
      %v2757 = vpop.f32.mrf.mxu0
      %2758 = vdwg.mxu0
      %2759 = vrot.lane.b32.xlu0 %v587, 120
      %v2760 = vpop.permute.xlu0 %2759
      %2761 = vrot.lane.b32.xlu0 %v592, 120
      %v2762 = vpop.permute.xlu0 %2761
      %2763 = vrot.lane.b32.xlu0 %v597, 120
      %v2764 = vpop.permute.xlu0 %2763
      %2765 = vrot.lane.b32.xlu0 %v602, 120
      %v2766 = vpop.permute.xlu0 %2765
      %2767 = vrot.lane.b32.xlu0 %v607, 120
      %v2768 = vpop.permute.xlu0 %2767
      %2769 = vrot.lane.b32.xlu0 %v612, 120
      %v2770 = vpop.permute.xlu0 %2769
      %2771 = vrot.lane.b32.xlu0 %v617, 120
      %v2772 = vpop.permute.xlu0 %2771
      %2773 = vrot.lane.b32.xlu0 %v622, 120
      %v2774 = vpop.permute.xlu0 %2773
      %2775 = vrot.lane.b32.xlu0 %v587, 88
      %v2776 = vpop.permute.xlu0 %2775
      %2777 = vrot.lane.b32.xlu0 %v592, 88
      %v2778 = vpop.permute.xlu0 %2777
      %2779 = vrot.lane.b32.xlu0 %v597, 88
      %v2780 = vpop.permute.xlu0 %2779
      %2781 = vrot.lane.b32.xlu0 %v602, 88
      %v2782 = vpop.permute.xlu0 %2781
      %2783 = vrot.lane.b32.xlu0 %v607, 88
      %v2784 = vpop.permute.xlu0 %2783
      %2785 = vrot.lane.b32.xlu0 %v612, 88
      %v2786 = vpop.permute.xlu0 %2785
      %2787 = vrot.lane.b32.xlu0 %v617, 88
      %v2788 = vpop.permute.xlu0 %2787
      %2789 = vrot.lane.b32.xlu0 %v622, 88
      %v2790 = vpop.permute.xlu0 %2789
      %v2791 = vsel %vm657, %v2760, 0
      %v2793 = vsel %vm657, %v2762, 0
      %v2795 = vsel %vm657, %v2764, 0
      %v2797 = vsel %vm657, %v2766, 0
      %v2799 = vsel %vm657, %v2768, 0
      %v2801 = vsel %vm657, %v2770, 0
      %v2803 = vsel %vm657, %v2772, 0
      %v2805 = vsel %vm657, %v2774, 0
      %v2807 = vsel %vm657, %v2776, 0
      %v2809 = vsel %vm657, %v2778, 0
      %v2811 = vsel %vm657, %v2780, 0
      %v2813 = vsel %vm657, %v2782, 0
      %v2815 = vsel %vm657, %v2784, 0
      %v2817 = vsel %vm657, %v2786, 0
      %v2819 = vsel %vm657, %v2788, 0
      %v2821 = vsel %vm657, %v2790, 0
      %2823 = vmatprep.subr.mxu0 0.0
      %2824 = vmatpush1.xpose.msra.mxu0 0.0
      %2825 = vmatprep.subr.mxu0 0.0
      %2826 = vmatpush1.xpose.msra.mxu0 0.0
      %2827 = vmatprep.subr.mxu0 0.0
      %2828 = vmatpush1.xpose.msra.mxu0 0.0
      %2829 = vmatprep.subr.mxu0 0.0
      %2830 = vmatpush1.xpose.msra.mxu0 0.0
      %2831 = vmatprep.subr.mxu0 0.0
      %2832 = vmatpush1.xpose.msra.mxu0 0.0
      %2833 = vmatprep.subr.mxu0 0.0
      %2834 = vmatpush1.xpose.msra.mxu0 0.0
      %2835 = vmatprep.subr.mxu0 0.0
      %2836 = vmatpush1.xpose.msra.mxu0 0.0
      %2837 = vmatprep.subr.mxu0 0.0
      %2838 = vmatpush1.xpose.msra.mxu0 0.0
      %2839 = vmatprep.subr.mxu0 0.0
      %2840 = vmatpush1.xpose.msra.mxu0 %v2821
      %2841 = vmatprep.subr.mxu0 0.0
      %2842 = vmatpush1.xpose.msra.mxu0 %v2819
      %2843 = vmatprep.subr.mxu0 0.0
      %2844 = vmatpush1.xpose.msra.mxu0 %v2817
      %2845 = vmatprep.subr.mxu0 0.0
      %2846 = vmatpush1.xpose.msra.mxu0 %v2815
      %2847 = vmatprep.subr.mxu0 0.0
      %2848 = vmatpush1.xpose.msra.mxu0 %v2813
      %2849 = vmatprep.subr.mxu0 0.0
      %2850 = vmatpush1.xpose.msra.mxu0 %v2811
      %2851 = vmatprep.subr.mxu0 0.0
      %2852 = vmatpush1.xpose.msra.mxu0 %v2809
      %2853 = vmatprep.subr.mxu0 0.0
      %2854 = vmatpush1.xpose.msra.mxu0 %v2807
      %2855 = vmatprep.subr.mxu0 0.0
      %2856 = vmatpush2.xpose.msra.mxu0 0.0
      %2857 = vmatprep.subr.mxu0 0.0
      %2858 = vmatpush2.xpose.msra.mxu0 0.0
      %2859 = vmatprep.subr.mxu0 0.0
      %2860 = vmatpush2.xpose.msra.mxu0 0.0
      %2861 = vmatprep.subr.mxu0 0.0
      %2862 = vmatpush2.xpose.msra.mxu0 0.0
      %2863 = vmatprep.subr.mxu0 0.0
      %2864 = vmatpush2.xpose.msra.mxu0 0.0
      %2865 = vmatprep.subr.mxu0 0.0
      %2866 = vmatpush2.xpose.msra.mxu0 0.0
      %2867 = vmatprep.subr.mxu0 0.0
      %2868 = vmatpush2.xpose.msra.mxu0 0.0
      %2869 = vmatprep.subr.mxu0 0.0
      %2870 = vmatpush2.xpose.msra.mxu0 0.0
      %2871 = vmatprep.subr.mxu0 0.0
      %2872 = vmatpush2.xpose.msra.mxu0 0.0
      %2873 = vmatprep.subr.mxu0 0.0
      %2874 = vmatpush2.xpose.msra.mxu0 0.0
      %2875 = vmatprep.subr.mxu0 0.0
      %2876 = vmatpush2.xpose.msra.mxu0 0.0
      %2877 = vmatprep.subr.mxu0 0.0
      %2878 = vmatpush2.xpose.msra.mxu0 0.0
      %2879 = vmatprep.subr.mxu0 0.0
      %2880 = vmatpush2.xpose.msra.mxu0 0.0
      %2881 = vmatprep.subr.mxu0 0.0
      %2882 = vmatpush2.xpose.msra.mxu0 0.0
      %2883 = vmatprep.subr.mxu0 0.0
      %2884 = vmatpush2.xpose.msra.mxu0 0.0
      %2885 = vmatprep.subr.mxu0 0.0
      %2886 = vmatpush2.xpose.msra.mxu0 0.0
      %2887 = vmatprep.mubr.f32.mxu0 0.0
      %2888 = vmatmul.mubr.f32.gmra.mxu0 %v2791
      %v2889 = vpop.f32.mrf.mxu0
      %v2890 = vadd.f32 %v2244, %v2889
      %v2891 = vpop.f32.mrf.mxu0
      %2892 = vmatprep.mubr.f32.mxu0 0.0
      %2893 = vmatmul.mubr.f32.gmra.mxu0 %v2793
      %v2894 = vpop.f32.mrf.mxu0
      %v2895 = vadd.f32 %v2245, %v2894
      %v2896 = vpop.f32.mrf.mxu0
      %2897 = vmatprep.mubr.f32.mxu0 0.0
      %2898 = vmatmul.mubr.f32.gmra.mxu0 %v2795
      %v2899 = vpop.f32.mrf.mxu0
      %v2900 = vadd.f32 %v2246, %v2899
      %v2901 = vpop.f32.mrf.mxu0
      %2902 = vmatprep.mubr.f32.mxu0 0.0
      %2903 = vmatmul.mubr.f32.gmra.mxu0 %v2797
      %v2904 = vpop.f32.mrf.mxu0
      %v2905 = vadd.f32 %v2247, %v2904
      %v2906 = vpop.f32.mrf.mxu0
      %2907 = vmatprep.mubr.f32.mxu0 0.0
      %2908 = vmatmul.mubr.f32.gmra.mxu0 %v2799
      %v2909 = vpop.f32.mrf.mxu0
      %v2910 = vadd.f32 %v2248, %v2909
      %v2911 = vpop.f32.mrf.mxu0
      %2912 = vmatprep.mubr.f32.mxu0 0.0
      %2913 = vmatmul.mubr.f32.gmra.mxu0 %v2801
      %v2914 = vpop.f32.mrf.mxu0
      %v2915 = vadd.f32 %v2249, %v2914
      %v2916 = vpop.f32.mrf.mxu0
      %2917 = vmatprep.mubr.f32.mxu0 0.0
      %2918 = vmatmul.mubr.f32.gmra.mxu0 %v2803
      %v2919 = vpop.f32.mrf.mxu0
      %v2920 = vadd.f32 %v2250, %v2919
      %v2921 = vpop.f32.mrf.mxu0
      %2922 = vmatprep.mubr.f32.mxu0 0.0
      %2923 = vmatmul.mubr.f32.gmra.mxu0 %v2805
      %v2924 = vpop.f32.mrf.mxu0
      %v2925 = vadd.f32 %v2251, %v2924
      %v2926 = vpop.f32.mrf.mxu0
      %2927 = vdwg.mxu0
      %v2928 = vsel %vm1278, %v2383, -inf
      %2929 = vmax.xlane.f32.xlu0 %v2928
      %v2930 = vpop.xlane.xlu0 %2929
      %v2931 = vsel %vm1278, %v2388, -inf
      %2932 = vmax.xlane.f32.xlu0 %v2931
      %v2933 = vpop.xlane.xlu0 %2932
      %v2934 = vsel %vm1278, %v2393, -inf
      %2935 = vmax.xlane.f32.xlu0 %v2934
      %v2936 = vpop.xlane.xlu0 %2935
      %v2937 = vsel %vm1278, %v2398, -inf
      %2938 = vmax.xlane.f32.xlu0 %v2937
      %v2939 = vpop.xlane.xlu0 %2938
      %v2940 = vsel %vm1278, %v2403, -inf
      %2941 = vmax.xlane.f32.xlu0 %v2940
      %v2942 = vpop.xlane.xlu0 %2941
      %v2943 = vsel %vm1278, %v2408, -inf
      %2944 = vmax.xlane.f32.xlu0 %v2943
      %v2945 = vpop.xlane.xlu0 %2944
      %v2946 = vsel %vm1278, %v2413, -inf
      %2947 = vmax.xlane.f32.xlu0 %v2946
      %v2948 = vpop.xlane.xlu0 %2947
      %v2949 = vsel %vm1278, %v2418, -inf
      %2950 = vmax.xlane.f32.xlu0 %v2949
      %v2951 = vpop.xlane.xlu0 %2950
      %v2952 = vsel %vm1278, %v2552, -inf
      %2953 = vmax.xlane.f32.xlu0 %v2952
      %v2954 = vpop.xlane.xlu0 %2953
      %v2955 = vsel %vm1278, %v2557, -inf
      %2956 = vmax.xlane.f32.xlu0 %v2955
      %v2957 = vpop.xlane.xlu0 %2956
      %v2958 = vsel %vm1278, %v2562, -inf
      %2959 = vmax.xlane.f32.xlu0 %v2958
      %v2960 = vpop.xlane.xlu0 %2959
      %v2961 = vsel %vm1278, %v2567, -inf
      %2962 = vmax.xlane.f32.xlu0 %v2961
      %v2963 = vpop.xlane.xlu0 %2962
      %v2964 = vsel %vm1278, %v2572, -inf
      %2965 = vmax.xlane.f32.xlu0 %v2964
      %v2966 = vpop.xlane.xlu0 %2965
      %v2967 = vsel %vm1278, %v2577, -inf
      %2968 = vmax.xlane.f32.xlu0 %v2967
      %v2969 = vpop.xlane.xlu0 %2968
      %v2970 = vsel %vm1278, %v2582, -inf
      %2971 = vmax.xlane.f32.xlu0 %v2970
      %v2972 = vpop.xlane.xlu0 %2971
      %v2973 = vsel %vm1278, %v2587, -inf
      %2974 = vmax.xlane.f32.xlu0 %v2973
      %v2975 = vpop.xlane.xlu0 %2974
      %v2976 = vsel %vm1278, %v2721, -inf
      %2977 = vmax.xlane.f32.xlu0 %v2976
      %v2978 = vpop.xlane.xlu0 %2977
      %v2979 = vsel %vm1278, %v2726, -inf
      %2980 = vmax.xlane.f32.xlu0 %v2979
      %v2981 = vpop.xlane.xlu0 %2980
      %v2982 = vsel %vm1278, %v2731, -inf
      %2983 = vmax.xlane.f32.xlu0 %v2982
      %v2984 = vpop.xlane.xlu0 %2983
      %v2985 = vsel %vm1278, %v2736, -inf
      %2986 = vmax.xlane.f32.xlu0 %v2985
      %v2987 = vpop.xlane.xlu0 %2986
      %v2988 = vsel %vm1278, %v2741, -inf
      %2989 = vmax.xlane.f32.xlu0 %v2988
      %v2990 = vpop.xlane.xlu0 %2989
      %v2991 = vsel %vm1278, %v2746, -inf
      %2992 = vmax.xlane.f32.xlu0 %v2991
      %v2993 = vpop.xlane.xlu0 %2992
      %v2994 = vsel %vm1278, %v2751, -inf
      %2995 = vmax.xlane.f32.xlu0 %v2994
      %v2996 = vpop.xlane.xlu0 %2995
      %v2997 = vsel %vm1278, %v2756, -inf
      %2998 = vmax.xlane.f32.xlu0 %v2997
      %v2999 = vpop.xlane.xlu0 %2998
      %v3000 = vsel %vm1278, %v2890, -inf
      %3001 = vmax.xlane.f32.xlu0 %v3000
      %v3002 = vpop.xlane.xlu0 %3001
      %v3003 = vsel %vm1278, %v2895, -inf
      %3004 = vmax.xlane.f32.xlu0 %v3003
      %v3005 = vpop.xlane.xlu0 %3004
      %v3006 = vsel %vm1278, %v2900, -inf
      %3007 = vmax.xlane.f32.xlu0 %v3006
      %v3008 = vpop.xlane.xlu0 %3007
      %v3009 = vsel %vm1278, %v2905, -inf
      %3010 = vmax.xlane.f32.xlu0 %v3009
      %v3011 = vpop.xlane.xlu0 %3010
      %v3012 = vsel %vm1278, %v2910, -inf
      %3013 = vmax.xlane.f32.xlu0 %v3012
      %v3014 = vpop.xlane.xlu0 %3013
      %v3015 = vsel %vm1278, %v2915, -inf
      %3016 = vmax.xlane.f32.xlu0 %v3015
      %v3017 = vpop.xlane.xlu0 %3016
      %v3018 = vsel %vm1278, %v2920, -inf
      %3019 = vmax.xlane.f32.xlu0 %v3018
      %v3020 = vpop.xlane.xlu0 %3019
      %v3021 = vsel %vm1278, %v2925, -inf
      %3022 = vmax.xlane.f32.xlu0 %v3021
      %v3023 = vpop.xlane.xlu0 %3022
      %v3024 = vsub.f32 %v2383, %v2930
      %v3025 = vsub.f32 %v2388, %v2933
      %v3026 = vsub.f32 %v2393, %v2936
      %v3027 = vsub.f32 %v2398, %v2939
      %v3028 = vsub.f32 %v2403, %v2942
      %v3029 = vsub.f32 %v2408, %v2945
      %v3030 = vsub.f32 %v2413, %v2948
      %v3031 = vsub.f32 %v2418, %v2951
      %v3032 = vsub.f32 %v2552, %v2954
      %v3033 = vsub.f32 %v2557, %v2957
      %v3034 = vsub.f32 %v2562, %v2960
      %v3035 = vsub.f32 %v2567, %v2963
      %v3036 = vsub.f32 %v2572, %v2966
      %v3037 = vsub.f32 %v2577, %v2969
      %v3038 = vsub.f32 %v2582, %v2972
      %v3039 = vsub.f32 %v2587, %v2975
      %v3040 = vsub.f32 %v2721, %v2978
      %v3041 = vsub.f32 %v2726, %v2981
      %v3042 = vsub.f32 %v2731, %v2984
      %v3043 = vsub.f32 %v2736, %v2987
      %v3044 = vsub.f32 %v2741, %v2990
      %v3045 = vsub.f32 %v2746, %v2993
      %v3046 = vsub.f32 %v2751, %v2996
      %v3047 = vsub.f32 %v2756, %v2999
      %v3048 = vsub.f32 %v2890, %v3002
      %v3049 = vsub.f32 %v2895, %v3005
      %v3050 = vsub.f32 %v2900, %v3008
      %v3051 = vsub.f32 %v2905, %v3011
      %v3052 = vsub.f32 %v2910, %v3014
      %v3053 = vsub.f32 %v2915, %v3017
      %v3054 = vsub.f32 %v2920, %v3020
      %v3055 = vsub.f32 %v2925, %v3023
      %v3056 = vmul.f32 %v3024, 1.442695
      %v3057 = vpow.pop %v3056
      %v3058 = vmul.f32 %v3025, 1.442695
      %v3059 = vpow.pop %v3058
      %v3060 = vmul.f32 %v3026, 1.442695
      %v3061 = vpow.pop %v3060
      %v3062 = vmul.f32 %v3027, 1.442695
      %v3063 = vpow.pop %v3062
      %v3064 = vmul.f32 %v3028, 1.442695
      %v3065 = vpow.pop %v3064
      %v3066 = vmul.f32 %v3029, 1.442695
      %v3067 = vpow.pop %v3066
      %v3068 = vmul.f32 %v3030, 1.442695
      %v3069 = vpow.pop %v3068
      %v3070 = vmul.f32 %v3031, 1.442695
      %v3071 = vpow.pop %v3070
      %v3072 = vmul.f32 %v3032, 1.442695
      %v3073 = vpow.pop %v3072
      %v3074 = vmul.f32 %v3033, 1.442695
      %v3075 = vpow.pop %v3074
      %v3076 = vmul.f32 %v3034, 1.442695
      %v3077 = vpow.pop %v3076
      %v3078 = vmul.f32 %v3035, 1.442695
      %v3079 = vpow.pop %v3078
      %v3080 = vmul.f32 %v3036, 1.442695
      %v3081 = vpow.pop %v3080
      %v3082 = vmul.f32 %v3037, 1.442695
      %v3083 = vpow.pop %v3082
      %v3084 = vmul.f32 %v3038, 1.442695
      %v3085 = vpow.pop %v3084
      %v3086 = vmul.f32 %v3039, 1.442695
      %v3087 = vpow.pop %v3086
      %v3088 = vmul.f32 %v3040, 1.442695
      %v3089 = vpow.pop %v3088
      %v3090 = vmul.f32 %v3041, 1.442695
      %v3091 = vpow.pop %v3090
      %v3092 = vmul.f32 %v3042, 1.442695
      %v3093 = vpow.pop %v3092
      %v3094 = vmul.f32 %v3043, 1.442695
      %v3095 = vpow.pop %v3094
      %v3096 = vmul.f32 %v3044, 1.442695
      %v3097 = vpow.pop %v3096
      %v3098 = vmul.f32 %v3045, 1.442695
      %v3099 = vpow.pop %v3098
      %v3100 = vmul.f32 %v3046, 1.442695
      %v3101 = vpow.pop %v3100
      %v3102 = vmul.f32 %v3047, 1.442695
      %v3103 = vpow.pop %v3102
      %v3104 = vmul.f32 %v3048, 1.442695
      %v3105 = vpow.pop %v3104
      %v3106 = vmul.f32 %v3049, 1.442695
      %v3107 = vpow.pop %v3106
      %v3108 = vmul.f32 %v3050, 1.442695
      %v3109 = vpow.pop %v3108
      %v3110 = vmul.f32 %v3051, 1.442695
      %v3111 = vpow.pop %v3110
      %v3112 = vmul.f32 %v3052, 1.442695
      %v3113 = vpow.pop %v3112
      %v3114 = vmul.f32 %v3053, 1.442695
      %v3115 = vpow.pop %v3114
      %v3116 = vmul.f32 %v3054, 1.442695
      %v3117 = vpow.pop %v3116
      %v3118 = vmul.f32 %v3055, 1.442695
      %v3119 = vpow.pop %v3118
      %v3120 = vsel %vm1278, %v3057, 0.0
      %3121 = vadd.xlane.f32.xlu0 %v3120
      %v3122 = vpop.xlane.xlu0 %3121
      %v3123 = vsel %vm1278, %v3059, 0.0
      %3124 = vadd.xlane.f32.xlu0 %v3123
      %v3125 = vpop.xlane.xlu0 %3124
      %v3126 = vsel %vm1278, %v3061, 0.0
      %3127 = vadd.xlane.f32.xlu0 %v3126
      %v3128 = vpop.xlane.xlu0 %3127
      %v3129 = vsel %vm1278, %v3063, 0.0
      %3130 = vadd.xlane.f32.xlu0 %v3129
      %v3131 = vpop.xlane.xlu0 %3130
      %v3132 = vsel %vm1278, %v3065, 0.0
      %3133 = vadd.xlane.f32.xlu0 %v3132
      %v3134 = vpop.xlane.xlu0 %3133
      %v3135 = vsel %vm1278, %v3067, 0.0
      %3136 = vadd.xlane.f32.xlu0 %v3135
      %v3137 = vpop.xlane.xlu0 %3136
      %v3138 = vsel %vm1278, %v3069, 0.0
      %3139 = vadd.xlane.f32.xlu0 %v3138
      %v3140 = vpop.xlane.xlu0 %3139
      %v3141 = vsel %vm1278, %v3071, 0.0
      %3142 = vadd.xlane.f32.xlu0 %v3141
      %v3143 = vpop.xlane.xlu0 %3142
      %v3144 = vsel %vm1278, %v3073, 0.0
      %3145 = vadd.xlane.f32.xlu0 %v3144
      %v3146 = vpop.xlane.xlu0 %3145
      %v3147 = vsel %vm1278, %v3075, 0.0
      %3148 = vadd.xlane.f32.xlu0 %v3147
      %v3149 = vpop.xlane.xlu0 %3148
      %v3150 = vsel %vm1278, %v3077, 0.0
      %3151 = vadd.xlane.f32.xlu0 %v3150
      %v3152 = vpop.xlane.xlu0 %3151
      %v3153 = vsel %vm1278, %v3079, 0.0
      %3154 = vadd.xlane.f32.xlu0 %v3153
      %v3155 = vpop.xlane.xlu0 %3154
      %v3156 = vsel %vm1278, %v3081, 0.0
      %3157 = vadd.xlane.f32.xlu0 %v3156
      %v3158 = vpop.xlane.xlu0 %3157
      %v3159 = vsel %vm1278, %v3083, 0.0
      %3160 = vadd.xlane.f32.xlu0 %v3159
      %v3161 = vpop.xlane.xlu0 %3160
      %v3162 = vsel %vm1278, %v3085, 0.0
      %3163 = vadd.xlane.f32.xlu0 %v3162
      %v3164 = vpop.xlane.xlu0 %3163
      %v3165 = vsel %vm1278, %v3087, 0.0
      %3166 = vadd.xlane.f32.xlu0 %v3165
      %v3167 = vpop.xlane.xlu0 %3166
      %v3168 = vsel %vm1278, %v3089, 0.0
      %3169 = vadd.xlane.f32.xlu0 %v3168
      %v3170 = vpop.xlane.xlu0 %3169
      %v3171 = vsel %vm1278, %v3091, 0.0
      %3172 = vadd.xlane.f32.xlu0 %v3171
      %v3173 = vpop.xlane.xlu0 %3172
      %v3174 = vsel %vm1278, %v3093, 0.0
      %3175 = vadd.xlane.f32.xlu0 %v3174
      %v3176 = vpop.xlane.xlu0 %3175
      %v3177 = vsel %vm1278, %v3095, 0.0
      %3178 = vadd.xlane.f32.xlu0 %v3177
      %v3179 = vpop.xlane.xlu0 %3178
      %v3180 = vsel %vm1278, %v3097, 0.0
      %3181 = vadd.xlane.f32.xlu0 %v3180
      %v3182 = vpop.xlane.xlu0 %3181
      %v3183 = vsel %vm1278, %v3099, 0.0
      %3184 = vadd.xlane.f32.xlu0 %v3183
      %v3185 = vpop.xlane.xlu0 %3184
      %v3186 = vsel %vm1278, %v3101, 0.0
      %3187 = vadd.xlane.f32.xlu0 %v3186
      %v3188 = vpop.xlane.xlu0 %3187
      %v3189 = vsel %vm1278, %v3103, 0.0
      %3190 = vadd.xlane.f32.xlu0 %v3189
      %v3191 = vpop.xlane.xlu0 %3190
      %v3192 = vsel %vm1278, %v3105, 0.0
      %3193 = vadd.xlane.f32.xlu0 %v3192
      %v3194 = vpop.xlane.xlu0 %3193
      %v3195 = vsel %vm1278, %v3107, 0.0
      %3196 = vadd.xlane.f32.xlu0 %v3195
      %v3197 = vpop.xlane.xlu0 %3196
      %v3198 = vsel %vm1278, %v3109, 0.0
      %3199 = vadd.xlane.f32.xlu0 %v3198
      %v3200 = vpop.xlane.xlu0 %3199
      %v3201 = vsel %vm1278, %v3111, 0.0
      %3202 = vadd.xlane.f32.xlu0 %v3201
      %v3203 = vpop.xlane.xlu0 %3202
      %v3204 = vsel %vm1278, %v3113, 0.0
      %3205 = vadd.xlane.f32.xlu0 %v3204
      %v3206 = vpop.xlane.xlu0 %3205
      %v3207 = vsel %vm1278, %v3115, 0.0
      %3208 = vadd.xlane.f32.xlu0 %v3207
      %v3209 = vpop.xlane.xlu0 %3208
      %v3210 = vsel %vm1278, %v3117, 0.0
      %3211 = vadd.xlane.f32.xlu0 %v3210
      %v3212 = vpop.xlane.xlu0 %3211
      %v3213 = vsel %vm1278, %v3119, 0.0
      %3214 = vadd.xlane.f32.xlu0 %v3213
      %v3215 = vpop.xlane.xlu0 %3214
      %v3216 = vrcp.pop %v3122
      %v3217 = vrcp.pop %v3125
      %v3218 = vrcp.pop %v3128
      %v3219 = vrcp.pop %v3131
      %v3220 = vrcp.pop %v3134
      %v3221 = vrcp.pop %v3137
      %v3222 = vrcp.pop %v3140
      %v3223 = vrcp.pop %v3143
      %v3224 = vrcp.pop %v3146
      %v3225 = vrcp.pop %v3149
      %v3226 = vrcp.pop %v3152
      %v3227 = vrcp.pop %v3155
      %v3228 = vrcp.pop %v3158
      %v3229 = vrcp.pop %v3161
      %v3230 = vrcp.pop %v3164
      %v3231 = vrcp.pop %v3167
      %v3232 = vrcp.pop %v3170
      %v3233 = vrcp.pop %v3173
      %v3234 = vrcp.pop %v3176
      %v3235 = vrcp.pop %v3179
      %v3236 = vrcp.pop %v3182
      %v3237 = vrcp.pop %v3185
      %v3238 = vrcp.pop %v3188
      %v3239 = vrcp.pop %v3191
      %v3240 = vrcp.pop %v3194
      %v3241 = vrcp.pop %v3197
      %v3242 = vrcp.pop %v3200
      %v3243 = vrcp.pop %v3203
      %v3244 = vrcp.pop %v3206
      %v3245 = vrcp.pop %v3209
      %v3246 = vrcp.pop %v3212
      %v3247 = vrcp.pop %v3215
      %v3248 = vmul.f32 %v3057, %v3216
      %v3249 = vmul.f32 %v3059, %v3217
      %v3250 = vmul.f32 %v3061, %v3218
      %v3251 = vmul.f32 %v3063, %v3219
      %v3252 = vmul.f32 %v3065, %v3220
      %v3253 = vmul.f32 %v3067, %v3221
      %v3254 = vmul.f32 %v3069, %v3222
      %v3255 = vmul.f32 %v3071, %v3223
      %v3256 = vmul.f32 %v3073, %v3224
      %v3257 = vmul.f32 %v3075, %v3225
      %v3258 = vmul.f32 %v3077, %v3226
      %v3259 = vmul.f32 %v3079, %v3227
      %v3260 = vmul.f32 %v3081, %v3228
      %v3261 = vmul.f32 %v3083, %v3229
      %v3262 = vmul.f32 %v3085, %v3230
      %v3263 = vmul.f32 %v3087, %v3231
      %v3264 = vmul.f32 %v3089, %v3232
      %v3265 = vmul.f32 %v3091, %v3233
      %v3266 = vmul.f32 %v3093, %v3234
      %v3267 = vmul.f32 %v3095, %v3235
      %v3268 = vmul.f32 %v3097, %v3236
      %v3269 = vmul.f32 %v3099, %v3237
      %v3270 = vmul.f32 %v3101, %v3238
      %v3271 = vmul.f32 %v3103, %v3239
      %v3272 = vmul.f32 %v3105, %v3240
      %v3273 = vmul.f32 %v3107, %v3241
      %v3274 = vmul.f32 %v3109, %v3242
      %v3275 = vmul.f32 %v3111, %v3243
      %v3276 = vmul.f32 %v3113, %v3244
      %v3277 = vmul.f32 %v3115, %v3245
      %v3278 = vmul.f32 %v3117, %v3246
      %v3279 = vmul.f32 %v3119, %v3247
      %3280 = vrot.lane.b32.xlu0 %v467, 56
      %v3281 = vpop.permute.xlu0 %3280
      %3282 = vrot.lane.b32.xlu0 %v472, 56
      %v3283 = vpop.permute.xlu0 %3282
      %3284 = vrot.lane.b32.xlu0 %v477, 56
      %v3285 = vpop.permute.xlu0 %3284
      %3286 = vrot.lane.b32.xlu0 %v482, 56
      %v3287 = vpop.permute.xlu0 %3286
      %3288 = vrot.lane.b32.xlu0 %v487, 56
      %v3289 = vpop.permute.xlu0 %3288
      %3290 = vrot.lane.b32.xlu0 %v492, 56
      %v3291 = vpop.permute.xlu0 %3290
      %3292 = vrot.lane.b32.xlu0 %v497, 56
      %v3293 = vpop.permute.xlu0 %3292
      %3294 = vrot.lane.b32.xlu0 %v502, 56
      %v3295 = vpop.permute.xlu0 %3294
      %v3305 = vsel %vm1278, %v3248, 0
      %v3308 = vsel %vm1278, %v3249, 0
      %v3311 = vsel %vm1278, %v3250, 0
      %v3314 = vsel %vm1278, %v3251, 0
      %v3317 = vsel %vm1278, %v3252, 0
      %v3320 = vsel %vm1278, %v3253, 0
      %v3323 = vsel %vm1278, %v3254, 0
      %v3326 = vsel %vm1278, %v3255, 0
      %3328 = vmatprep.subr.mxu0 0.0
      %3329 = vmatpush1.msra.mxu0 0.0
      %3330 = vmatprep.subr.mxu0 0.0
      %3331 = vmatpush1.msra.mxu0 0.0
      %3332 = vmatprep.subr.mxu0 0.0
      %3333 = vmatpush1.msra.mxu0 0.0
      %3334 = vmatprep.subr.mxu0 0.0
      %3335 = vmatpush1.msra.mxu0 0.0
      %3336 = vmatprep.subr.mxu0 0.0
      %3337 = vmatpush1.msra.mxu0 0.0
      %3338 = vmatprep.subr.mxu0 0.0
      %3339 = vmatpush1.msra.mxu0 0.0
      %3340 = vmatprep.subr.mxu0 0.0
      %3341 = vmatpush1.msra.mxu0 0.0
      %3342 = vmatprep.subr.mxu0 0.0
      %3343 = vmatpush1.msra.mxu0 0.0
      %3344 = vmatprep.subr.mxu0 0.0
      %3345 = vmatpush1.msra.mxu0 %v3295
      %3346 = vmatprep.subr.mxu0 0.0
      %3347 = vmatpush1.msra.mxu0 %v3293
      %3348 = vmatprep.subr.mxu0 0.0
      %3349 = vmatpush1.msra.mxu0 %v3291
      %3350 = vmatprep.subr.mxu0 0.0
      %3351 = vmatpush1.msra.mxu0 %v3289
      %3352 = vmatprep.subr.mxu0 0.0
      %3353 = vmatpush1.msra.mxu0 %v3287
      %3354 = vmatprep.subr.mxu0 0.0
      %3355 = vmatpush1.msra.mxu0 %v3285
      %3356 = vmatprep.subr.mxu0 0.0
      %3357 = vmatpush1.msra.mxu0 %v3283
      %3358 = vmatprep.subr.mxu0 0.0
      %3359 = vmatpush1.msra.mxu0 %v3281
      %3360 = vmatprep.subr.mxu0 0.0
      %3361 = vmatpush2.msra.mxu0 0.0
      %3362 = vmatprep.subr.mxu0 0.0
      %3363 = vmatpush2.msra.mxu0 0.0
      %3364 = vmatprep.subr.mxu0 0.0
      %3365 = vmatpush2.msra.mxu0 0.0
      %3366 = vmatprep.subr.mxu0 0.0
      %3367 = vmatpush2.msra.mxu0 0.0
      %3368 = vmatprep.subr.mxu0 0.0
      %3369 = vmatpush2.msra.mxu0 0.0
      %3370 = vmatprep.subr.mxu0 0.0
      %3371 = vmatpush2.msra.mxu0 0.0
      %3372 = vmatprep.subr.mxu0 0.0
      %3373 = vmatpush2.msra.mxu0 0.0
      %3374 = vmatprep.subr.mxu0 0.0
      %3375 = vmatpush2.msra.mxu0 0.0
      %3376 = vmatprep.subr.mxu0 0.0
      %3377 = vmatpush2.msra.mxu0 0.0
      %3378 = vmatprep.subr.mxu0 0.0
      %3379 = vmatpush2.msra.mxu0 0.0
      %3380 = vmatprep.subr.mxu0 0.0
      %3381 = vmatpush2.msra.mxu0 0.0
      %3382 = vmatprep.subr.mxu0 0.0
      %3383 = vmatpush2.msra.mxu0 0.0
      %3384 = vmatprep.subr.mxu0 0.0
      %3385 = vmatpush2.msra.mxu0 0.0
      %3386 = vmatprep.subr.mxu0 0.0
      %3387 = vmatpush2.msra.mxu0 0.0
      %3388 = vmatprep.subr.mxu0 0.0
      %3389 = vmatpush2.msra.mxu0 0.0
      %3390 = vmatprep.subr.mxu0 0.0
      %3391 = vmatpush2.msra.mxu0 0.0
      %3392 = vmatprep.mubr.f32.mxu0 0.0
      %3393 = vmatmul.mubr.f32.gmra.mxu0 %v3305
      %v3394 = vpop.f32.mrf.mxu0
      %v3395 = vadd.f32 0.0, %v3394
      %v3396 = vpop.f32.mrf.mxu0
      %3397 = vmatprep.mubr.f32.mxu0 0.0
      %3398 = vmatmul.mubr.f32.gmra.mxu0 %v3308
      %v3399 = vpop.f32.mrf.mxu0
      %v3400 = vadd.f32 0.0, %v3399
      %v3401 = vpop.f32.mrf.mxu0
      %3402 = vmatprep.mubr.f32.mxu0 0.0
      %3403 = vmatmul.mubr.f32.gmra.mxu0 %v3311
      %v3404 = vpop.f32.mrf.mxu0
      %v3405 = vadd.f32 0.0, %v3404
      %v3406 = vpop.f32.mrf.mxu0
      %3407 = vmatprep.mubr.f32.mxu0 0.0
      %3408 = vmatmul.mubr.f32.gmra.mxu0 %v3314
      %v3409 = vpop.f32.mrf.mxu0
      %v3410 = vadd.f32 0.0, %v3409
      %v3411 = vpop.f32.mrf.mxu0
      %3412 = vmatprep.mubr.f32.mxu0 0.0
      %3413 = vmatmul.mubr.f32.gmra.mxu0 %v3317
      %v3414 = vpop.f32.mrf.mxu0
      %v3415 = vadd.f32 0.0, %v3414
      %v3416 = vpop.f32.mrf.mxu0
      %3417 = vmatprep.mubr.f32.mxu0 0.0
      %3418 = vmatmul.mubr.f32.gmra.mxu0 %v3320
      %v3419 = vpop.f32.mrf.mxu0
      %v3420 = vadd.f32 0.0, %v3419
      %v3421 = vpop.f32.mrf.mxu0
      %3422 = vmatprep.mubr.f32.mxu0 0.0
      %3423 = vmatmul.mubr.f32.gmra.mxu0 %v3323
      %v3424 = vpop.f32.mrf.mxu0
      %v3425 = vadd.f32 0.0, %v3424
      %v3426 = vpop.f32.mrf.mxu0
      %3427 = vmatprep.mubr.f32.mxu0 0.0
      %3428 = vmatmul.mubr.f32.gmra.mxu0 %v3326
      %v3429 = vpop.f32.mrf.mxu0
      %v3430 = vadd.f32 0.0, %v3429
      %v3431 = vpop.f32.mrf.mxu0
      %3432 = vdwg.mxu0
      %3433 = vrot.lane.b32.xlu0 %v507, 56
      %v3434 = vpop.permute.xlu0 %3433
      %3435 = vrot.lane.b32.xlu0 %v512, 56
      %v3436 = vpop.permute.xlu0 %3435
      %3437 = vrot.lane.b32.xlu0 %v517, 56
      %v3438 = vpop.permute.xlu0 %3437
      %3439 = vrot.lane.b32.xlu0 %v522, 56
      %v3440 = vpop.permute.xlu0 %3439
      %3441 = vrot.lane.b32.xlu0 %v527, 56
      %v3442 = vpop.permute.xlu0 %3441
      %3443 = vrot.lane.b32.xlu0 %v532, 56
      %v3444 = vpop.permute.xlu0 %3443
      %3445 = vrot.lane.b32.xlu0 %v537, 56
      %v3446 = vpop.permute.xlu0 %3445
      %3447 = vrot.lane.b32.xlu0 %v542, 56
      %v3448 = vpop.permute.xlu0 %3447
      %v3458 = vsel %vm1278, %v3256, 0
      %v3461 = vsel %vm1278, %v3257, 0
      %v3464 = vsel %vm1278, %v3258, 0
      %v3467 = vsel %vm1278, %v3259, 0
      %v3470 = vsel %vm1278, %v3260, 0
      %v3473 = vsel %vm1278, %v3261, 0
      %v3476 = vsel %vm1278, %v3262, 0
      %v3479 = vsel %vm1278, %v3263, 0
      %3481 = vmatprep.subr.mxu0 0.0
      %3482 = vmatpush1.msra.mxu0 0.0
      %3483 = vmatprep.subr.mxu0 0.0
      %3484 = vmatpush1.msra.mxu0 0.0
      %3485 = vmatprep.subr.mxu0 0.0
      %3486 = vmatpush1.msra.mxu0 0.0
      %3487 = vmatprep.subr.mxu0 0.0
      %3488 = vmatpush1.msra.mxu0 0.0
      %3489 = vmatprep.subr.mxu0 0.0
      %3490 = vmatpush1.msra.mxu0 0.0
      %3491 = vmatprep.subr.mxu0 0.0
      %3492 = vmatpush1.msra.mxu0 0.0
      %3493 = vmatprep.subr.mxu0 0.0
      %3494 = vmatpush1.msra.mxu0 0.0
      %3495 = vmatprep.subr.mxu0 0.0
      %3496 = vmatpush1.msra.mxu0 0.0
      %3497 = vmatprep.subr.mxu0 0.0
      %3498 = vmatpush1.msra.mxu0 %v3448
      %3499 = vmatprep.subr.mxu0 0.0
      %3500 = vmatpush1.msra.mxu0 %v3446
      %3501 = vmatprep.subr.mxu0 0.0
      %3502 = vmatpush1.msra.mxu0 %v3444
      %3503 = vmatprep.subr.mxu0 0.0
      %3504 = vmatpush1.msra.mxu0 %v3442
      %3505 = vmatprep.subr.mxu0 0.0
      %3506 = vmatpush1.msra.mxu0 %v3440
      %3507 = vmatprep.subr.mxu0 0.0
      %3508 = vmatpush1.msra.mxu0 %v3438
      %3509 = vmatprep.subr.mxu0 0.0
      %3510 = vmatpush1.msra.mxu0 %v3436
      %3511 = vmatprep.subr.mxu0 0.0
      %3512 = vmatpush1.msra.mxu0 %v3434
      %3513 = vmatprep.subr.mxu0 0.0
      %3514 = vmatpush2.msra.mxu0 0.0
      %3515 = vmatprep.subr.mxu0 0.0
      %3516 = vmatpush2.msra.mxu0 0.0
      %3517 = vmatprep.subr.mxu0 0.0
      %3518 = vmatpush2.msra.mxu0 0.0
      %3519 = vmatprep.subr.mxu0 0.0
      %3520 = vmatpush2.msra.mxu0 0.0
      %3521 = vmatprep.subr.mxu0 0.0
      %3522 = vmatpush2.msra.mxu0 0.0
      %3523 = vmatprep.subr.mxu0 0.0
      %3524 = vmatpush2.msra.mxu0 0.0
      %3525 = vmatprep.subr.mxu0 0.0
      %3526 = vmatpush2.msra.mxu0 0.0
      %3527 = vmatprep.subr.mxu0 0.0
      %3528 = vmatpush2.msra.mxu0 0.0
      %3529 = vmatprep.subr.mxu0 0.0
      %3530 = vmatpush2.msra.mxu0 0.0
      %3531 = vmatprep.subr.mxu0 0.0
      %3532 = vmatpush2.msra.mxu0 0.0
      %3533 = vmatprep.subr.mxu0 0.0
      %3534 = vmatpush2.msra.mxu0 0.0
      %3535 = vmatprep.subr.mxu0 0.0
      %3536 = vmatpush2.msra.mxu0 0.0
      %3537 = vmatprep.subr.mxu0 0.0
      %3538 = vmatpush2.msra.mxu0 0.0
      %3539 = vmatprep.subr.mxu0 0.0
      %3540 = vmatpush2.msra.mxu0 0.0
      %3541 = vmatprep.subr.mxu0 0.0
      %3542 = vmatpush2.msra.mxu0 0.0
      %3543 = vmatprep.subr.mxu0 0.0
      %3544 = vmatpush2.msra.mxu0 0.0
      %3545 = vmatprep.mubr.f32.mxu0 0.0
      %3546 = vmatmul.mubr.f32.gmra.mxu0 %v3458
      %v3547 = vpop.f32.mrf.mxu0
      %v3548 = vadd.f32 0.0, %v3547
      %v3549 = vpop.f32.mrf.mxu0
      %3550 = vmatprep.mubr.f32.mxu0 0.0
      %3551 = vmatmul.mubr.f32.gmra.mxu0 %v3461
      %v3552 = vpop.f32.mrf.mxu0
      %v3553 = vadd.f32 0.0, %v3552
      %v3554 = vpop.f32.mrf.mxu0
      %3555 = vmatprep.mubr.f32.mxu0 0.0
      %3556 = vmatmul.mubr.f32.gmra.mxu0 %v3464
      %v3557 = vpop.f32.mrf.mxu0
      %v3558 = vadd.f32 0.0, %v3557
      %v3559 = vpop.f32.mrf.mxu0
      %3560 = vmatprep.mubr.f32.mxu0 0.0
      %3561 = vmatmul.mubr.f32.gmra.mxu0 %v3467
      %v3562 = vpop.f32.mrf.mxu0
      %v3563 = vadd.f32 0.0, %v3562
      %v3564 = vpop.f32.mrf.mxu0
      %3565 = vmatprep.mubr.f32.mxu0 0.0
      %3566 = vmatmul.mubr.f32.gmra.mxu0 %v3470
      %v3567 = vpop.f32.mrf.mxu0
      %v3568 = vadd.f32 0.0, %v3567
      %v3569 = vpop.f32.mrf.mxu0
      %3570 = vmatprep.mubr.f32.mxu0 0.0
      %3571 = vmatmul.mubr.f32.gmra.mxu0 %v3473
      %v3572 = vpop.f32.mrf.mxu0
      %v3573 = vadd.f32 0.0, %v3572
      %v3574 = vpop.f32.mrf.mxu0
      %3575 = vmatprep.mubr.f32.mxu0 0.0
      %3576 = vmatmul.mubr.f32.gmra.mxu0 %v3476
      %v3577 = vpop.f32.mrf.mxu0
      %v3578 = vadd.f32 0.0, %v3577
      %v3579 = vpop.f32.mrf.mxu0
      %3580 = vmatprep.mubr.f32.mxu0 0.0
      %3581 = vmatmul.mubr.f32.gmra.mxu0 %v3479
      %v3582 = vpop.f32.mrf.mxu0
      %v3583 = vadd.f32 0.0, %v3582
      %v3584 = vpop.f32.mrf.mxu0
      %3585 = vdwg.mxu0
      %3586 = vrot.lane.b32.xlu0 %v547, 56
      %v3587 = vpop.permute.xlu0 %3586
      %3588 = vrot.lane.b32.xlu0 %v552, 56
      %v3589 = vpop.permute.xlu0 %3588
      %3590 = vrot.lane.b32.xlu0 %v557, 56
      %v3591 = vpop.permute.xlu0 %3590
      %3592 = vrot.lane.b32.xlu0 %v562, 56
      %v3593 = vpop.permute.xlu0 %3592
      %3594 = vrot.lane.b32.xlu0 %v567, 56
      %v3595 = vpop.permute.xlu0 %3594
      %3596 = vrot.lane.b32.xlu0 %v572, 56
      %v3597 = vpop.permute.xlu0 %3596
      %3598 = vrot.lane.b32.xlu0 %v577, 56
      %v3599 = vpop.permute.xlu0 %3598
      %3600 = vrot.lane.b32.xlu0 %v582, 56
      %v3601 = vpop.permute.xlu0 %3600
      %v3611 = vsel %vm1278, %v3264, 0
      %v3614 = vsel %vm1278, %v3265, 0
      %v3617 = vsel %vm1278, %v3266, 0
      %v3620 = vsel %vm1278, %v3267, 0
      %v3623 = vsel %vm1278, %v3268, 0
      %v3626 = vsel %vm1278, %v3269, 0
      %v3629 = vsel %vm1278, %v3270, 0
      %v3632 = vsel %vm1278, %v3271, 0
      %3634 = vmatprep.subr.mxu0 0.0
      %3635 = vmatpush1.msra.mxu0 0.0
      %3636 = vmatprep.subr.mxu0 0.0
      %3637 = vmatpush1.msra.mxu0 0.0
      %3638 = vmatprep.subr.mxu0 0.0
      %3639 = vmatpush1.msra.mxu0 0.0
      %3640 = vmatprep.subr.mxu0 0.0
      %3641 = vmatpush1.msra.mxu0 0.0
      %3642 = vmatprep.subr.mxu0 0.0
      %3643 = vmatpush1.msra.mxu0 0.0
      %3644 = vmatprep.subr.mxu0 0.0
      %3645 = vmatpush1.msra.mxu0 0.0
      %3646 = vmatprep.subr.mxu0 0.0
      %3647 = vmatpush1.msra.mxu0 0.0
      %3648 = vmatprep.subr.mxu0 0.0
      %3649 = vmatpush1.msra.mxu0 0.0
      %3650 = vmatprep.subr.mxu0 0.0
      %3651 = vmatpush1.msra.mxu0 %v3601
      %3652 = vmatprep.subr.mxu0 0.0
      %3653 = vmatpush1.msra.mxu0 %v3599
      %3654 = vmatprep.subr.mxu0 0.0
      %3655 = vmatpush1.msra.mxu0 %v3597
      %3656 = vmatprep.subr.mxu0 0.0
      %3657 = vmatpush1.msra.mxu0 %v3595
      %3658 = vmatprep.subr.mxu0 0.0
      %3659 = vmatpush1.msra.mxu0 %v3593
      %3660 = vmatprep.subr.mxu0 0.0
      %3661 = vmatpush1.msra.mxu0 %v3591
      %3662 = vmatprep.subr.mxu0 0.0
      %3663 = vmatpush1.msra.mxu0 %v3589
      %3664 = vmatprep.subr.mxu0 0.0
      %3665 = vmatpush1.msra.mxu0 %v3587
      %3666 = vmatprep.subr.mxu0 0.0
      %3667 = vmatpush2.msra.mxu0 0.0
      %3668 = vmatprep.subr.mxu0 0.0
      %3669 = vmatpush2.msra.mxu0 0.0
      %3670 = vmatprep.subr.mxu0 0.0
      %3671 = vmatpush2.msra.mxu0 0.0
      %3672 = vmatprep.subr.mxu0 0.0
      %3673 = vmatpush2.msra.mxu0 0.0
      %3674 = vmatprep.subr.mxu0 0.0
      %3675 = vmatpush2.msra.mxu0 0.0
      %3676 = vmatprep.subr.mxu0 0.0
      %3677 = vmatpush2.msra.mxu0 0.0
      %3678 = vmatprep.subr.mxu0 0.0
      %3679 = vmatpush2.msra.mxu0 0.0
      %3680 = vmatprep.subr.mxu0 0.0
      %3681 = vmatpush2.msra.mxu0 0.0
      %3682 = vmatprep.subr.mxu0 0.0
      %3683 = vmatpush2.msra.mxu0 0.0
      %3684 = vmatprep.subr.mxu0 0.0
      %3685 = vmatpush2.msra.mxu0 0.0
      %3686 = vmatprep.subr.mxu0 0.0
      %3687 = vmatpush2.msra.mxu0 0.0
      %3688 = vmatprep.subr.mxu0 0.0
      %3689 = vmatpush2.msra.mxu0 0.0
      %3690 = vmatprep.subr.mxu0 0.0
      %3691 = vmatpush2.msra.mxu0 0.0
      %3692 = vmatprep.subr.mxu0 0.0
      %3693 = vmatpush2.msra.mxu0 0.0
      %3694 = vmatprep.subr.mxu0 0.0
      %3695 = vmatpush2.msra.mxu0 0.0
      %3696 = vmatprep.subr.mxu0 0.0
      %3697 = vmatpush2.msra.mxu0 0.0
      %3698 = vmatprep.mubr.f32.mxu0 0.0
      %3699 = vmatmul.mubr.f32.gmra.mxu0 %v3611
      %v3700 = vpop.f32.mrf.mxu0
      %v3701 = vadd.f32 0.0, %v3700
      %v3702 = vpop.f32.mrf.mxu0
      %3703 = vmatprep.mubr.f32.mxu0 0.0
      %3704 = vmatmul.mubr.f32.gmra.mxu0 %v3614
      %v3705 = vpop.f32.mrf.mxu0
      %v3706 = vadd.f32 0.0, %v3705
      %v3707 = vpop.f32.mrf.mxu0
      %3708 = vmatprep.mubr.f32.mxu0 0.0
      %3709 = vmatmul.mubr.f32.gmra.mxu0 %v3617
      %v3710 = vpop.f32.mrf.mxu0
      %v3711 = vadd.f32 0.0, %v3710
      %v3712 = vpop.f32.mrf.mxu0
      %3713 = vmatprep.mubr.f32.mxu0 0.0
      %3714 = vmatmul.mubr.f32.gmra.mxu0 %v3620
      %v3715 = vpop.f32.mrf.mxu0
      %v3716 = vadd.f32 0.0, %v3715
      %v3717 = vpop.f32.mrf.mxu0
      %3718 = vmatprep.mubr.f32.mxu0 0.0
      %3719 = vmatmul.mubr.f32.gmra.mxu0 %v3623
      %v3720 = vpop.f32.mrf.mxu0
      %v3721 = vadd.f32 0.0, %v3720
      %v3722 = vpop.f32.mrf.mxu0
      %3723 = vmatprep.mubr.f32.mxu0 0.0
      %3724 = vmatmul.mubr.f32.gmra.mxu0 %v3626
      %v3725 = vpop.f32.mrf.mxu0
      %v3726 = vadd.f32 0.0, %v3725
      %v3727 = vpop.f32.mrf.mxu0
      %3728 = vmatprep.mubr.f32.mxu0 0.0
      %3729 = vmatmul.mubr.f32.gmra.mxu0 %v3629
      %v3730 = vpop.f32.mrf.mxu0
      %v3731 = vadd.f32 0.0, %v3730
      %v3732 = vpop.f32.mrf.mxu0
      %3733 = vmatprep.mubr.f32.mxu0 0.0
      %3734 = vmatmul.mubr.f32.gmra.mxu0 %v3632
      %v3735 = vpop.f32.mrf.mxu0
      %v3736 = vadd.f32 0.0, %v3735
      %v3737 = vpop.f32.mrf.mxu0
      %3738 = vdwg.mxu0
      %3739 = vrot.lane.b32.xlu0 %v587, 56
      %v3740 = vpop.permute.xlu0 %3739
      %3741 = vrot.lane.b32.xlu0 %v592, 56
      %v3742 = vpop.permute.xlu0 %3741
      %3743 = vrot.lane.b32.xlu0 %v597, 56
      %v3744 = vpop.permute.xlu0 %3743
      %3745 = vrot.lane.b32.xlu0 %v602, 56
      %v3746 = vpop.permute.xlu0 %3745
      %3747 = vrot.lane.b32.xlu0 %v607, 56
      %v3748 = vpop.permute.xlu0 %3747
      %3749 = vrot.lane.b32.xlu0 %v612, 56
      %v3750 = vpop.permute.xlu0 %3749
      %3751 = vrot.lane.b32.xlu0 %v617, 56
      %v3752 = vpop.permute.xlu0 %3751
      %3753 = vrot.lane.b32.xlu0 %v622, 56
      %v3754 = vpop.permute.xlu0 %3753
      %v3764 = vsel %vm1278, %v3272, 0
      %v3767 = vsel %vm1278, %v3273, 0
      %v3770 = vsel %vm1278, %v3274, 0
      %v3773 = vsel %vm1278, %v3275, 0
      %v3776 = vsel %vm1278, %v3276, 0
      %v3779 = vsel %vm1278, %v3277, 0
      %v3782 = vsel %vm1278, %v3278, 0
      %v3785 = vsel %vm1278, %v3279, 0
      %3787 = vmatprep.subr.mxu0 0.0
      %3788 = vmatpush1.msra.mxu0 0.0
      %3789 = vmatprep.subr.mxu0 0.0
      %3790 = vmatpush1.msra.mxu0 0.0
      %3791 = vmatprep.subr.mxu0 0.0
      %3792 = vmatpush1.msra.mxu0 0.0
      %3793 = vmatprep.subr.mxu0 0.0
      %3794 = vmatpush1.msra.mxu0 0.0
      %3795 = vmatprep.subr.mxu0 0.0
      %3796 = vmatpush1.msra.mxu0 0.0
      %3797 = vmatprep.subr.mxu0 0.0
      %3798 = vmatpush1.msra.mxu0 0.0
      %3799 = vmatprep.subr.mxu0 0.0
      %3800 = vmatpush1.msra.mxu0 0.0
      %3801 = vmatprep.subr.mxu0 0.0
      %3802 = vmatpush1.msra.mxu0 0.0
      %3803 = vmatprep.subr.mxu0 0.0
      %3804 = vmatpush1.msra.mxu0 %v3754
      %3805 = vmatprep.subr.mxu0 0.0
      %3806 = vmatpush1.msra.mxu0 %v3752
      %3807 = vmatprep.subr.mxu0 0.0
      %3808 = vmatpush1.msra.mxu0 %v3750
      %3809 = vmatprep.subr.mxu0 0.0
      %3810 = vmatpush1.msra.mxu0 %v3748
      %3811 = vmatprep.subr.mxu0 0.0
      %3812 = vmatpush1.msra.mxu0 %v3746
      %3813 = vmatprep.subr.mxu0 0.0
      %3814 = vmatpush1.msra.mxu0 %v3744
      %3815 = vmatprep.subr.mxu0 0.0
      %3816 = vmatpush1.msra.mxu0 %v3742
      %3817 = vmatprep.subr.mxu0 0.0
      %3818 = vmatpush1.msra.mxu0 %v3740
      %3819 = vmatprep.subr.mxu0 0.0
      %3820 = vmatpush2.msra.mxu0 0.0
      %3821 = vmatprep.subr.mxu0 0.0
      %3822 = vmatpush2.msra.mxu0 0.0
      %3823 = vmatprep.subr.mxu0 0.0
      %3824 = vmatpush2.msra.mxu0 0.0
      %3825 = vmatprep.subr.mxu0 0.0
      %3826 = vmatpush2.msra.mxu0 0.0
      %3827 = vmatprep.subr.mxu0 0.0
      %3828 = vmatpush2.msra.mxu0 0.0
      %3829 = vmatprep.subr.mxu0 0.0
      %3830 = vmatpush2.msra.mxu0 0.0
      %3831 = vmatprep.subr.mxu0 0.0
      %3832 = vmatpush2.msra.mxu0 0.0
      %3833 = vmatprep.subr.mxu0 0.0
      %3834 = vmatpush2.msra.mxu0 0.0
      %3835 = vmatprep.subr.mxu0 0.0
      %3836 = vmatpush2.msra.mxu0 0.0
      %3837 = vmatprep.subr.mxu0 0.0
      %3838 = vmatpush2.msra.mxu0 0.0
      %3839 = vmatprep.subr.mxu0 0.0
      %3840 = vmatpush2.msra.mxu0 0.0
      %3841 = vmatprep.subr.mxu0 0.0
      %3842 = vmatpush2.msra.mxu0 0.0
      %3843 = vmatprep.subr.mxu0 0.0
      %3844 = vmatpush2.msra.mxu0 0.0
      %3845 = vmatprep.subr.mxu0 0.0
      %3846 = vmatpush2.msra.mxu0 0.0
      %3847 = vmatprep.subr.mxu0 0.0
      %3848 = vmatpush2.msra.mxu0 0.0
      %3849 = vmatprep.subr.mxu0 0.0
      %3850 = vmatpush2.msra.mxu0 0.0
      %3851 = vmatprep.mubr.f32.mxu0 0.0
      %3852 = vmatmul.mubr.f32.gmra.mxu0 %v3764
      %v3853 = vpop.f32.mrf.mxu0
      %v3854 = vadd.f32 0.0, %v3853
      %v3855 = vpop.f32.mrf.mxu0
      %3856 = vmatprep.mubr.f32.mxu0 0.0
      %3857 = vmatmul.mubr.f32.gmra.mxu0 %v3767
      %v3858 = vpop.f32.mrf.mxu0
      %v3859 = vadd.f32 0.0, %v3858
      %v3860 = vpop.f32.mrf.mxu0
      %3861 = vmatprep.mubr.f32.mxu0 0.0
      %3862 = vmatmul.mubr.f32.gmra.mxu0 %v3770
      %v3863 = vpop.f32.mrf.mxu0
      %v3864 = vadd.f32 0.0, %v3863
      %v3865 = vpop.f32.mrf.mxu0
      %3866 = vmatprep.mubr.f32.mxu0 0.0
      %3867 = vmatmul.mubr.f32.gmra.mxu0 %v3773
      %v3868 = vpop.f32.mrf.mxu0
      %v3869 = vadd.f32 0.0, %v3868
      %v3870 = vpop.f32.mrf.mxu0
      %3871 = vmatprep.mubr.f32.mxu0 0.0
      %3872 = vmatmul.mubr.f32.gmra.mxu0 %v3776
      %v3873 = vpop.f32.mrf.mxu0
      %v3874 = vadd.f32 0.0, %v3873
      %v3875 = vpop.f32.mrf.mxu0
      %3876 = vmatprep.mubr.f32.mxu0 0.0
      %3877 = vmatmul.mubr.f32.gmra.mxu0 %v3779
      %v3878 = vpop.f32.mrf.mxu0
      %v3879 = vadd.f32 0.0, %v3878
      %v3880 = vpop.f32.mrf.mxu0
      %3881 = vmatprep.mubr.f32.mxu0 0.0
      %3882 = vmatmul.mubr.f32.gmra.mxu0 %v3782
      %v3883 = vpop.f32.mrf.mxu0
      %v3884 = vadd.f32 0.0, %v3883
      %v3885 = vpop.f32.mrf.mxu0
      %3886 = vmatprep.mubr.f32.mxu0 0.0
      %3887 = vmatmul.mubr.f32.gmra.mxu0 %v3785
      %v3888 = vpop.f32.mrf.mxu0
      %v3889 = vadd.f32 0.0, %v3888
      %v3890 = vpop.f32.mrf.mxu0
      %3891 = vdwg.mxu0
      %s3892 = scalar_lea.vmem %s3, 128
      %v3893 = vld [vmem:[%s3892] sm:$0xff]
      %v3894 = vld [vmem:[%s3892 + $0x8] sm:$0xff]
      %v3895 = vld [vmem:[%s3892 + $0x10] sm:$0xff]
      %v3896 = vld [vmem:[%s3892 + $0x18] sm:$0xff]
      %v3897 = vld [vmem:[%s3892 + $0x20] sm:$0xff]
      %v3898 = vld [vmem:[%s3892 + $0x28] sm:$0xff]
      %v3899 = vld [vmem:[%s3892 + $0x30] sm:$0xff]
      %v3900 = vld [vmem:[%s3892 + $0x38] sm:$0xff]
      %3901 = vrot.lane.b32.xlu0 %v467, 112
      %v3902 = vpop.permute.xlu0 %3901
      %3903 = vrot.lane.b32.xlu0 %v472, 112
      %v3904 = vpop.permute.xlu0 %3903
      %3905 = vrot.lane.b32.xlu0 %v477, 112
      %v3906 = vpop.permute.xlu0 %3905
      %3907 = vrot.lane.b32.xlu0 %v482, 112
      %v3908 = vpop.permute.xlu0 %3907
      %3909 = vrot.lane.b32.xlu0 %v487, 112
      %v3910 = vpop.permute.xlu0 %3909
      %3911 = vrot.lane.b32.xlu0 %v492, 112
      %v3912 = vpop.permute.xlu0 %3911
      %3913 = vrot.lane.b32.xlu0 %v497, 112
      %v3914 = vpop.permute.xlu0 %3913
      %3915 = vrot.lane.b32.xlu0 %v502, 112
      %v3916 = vpop.permute.xlu0 %3915
      %3917 = vrot.lane.b32.xlu0 %v467, 80
      %v3918 = vpop.permute.xlu0 %3917
      %3919 = vrot.lane.b32.xlu0 %v472, 80
      %v3920 = vpop.permute.xlu0 %3919
      %3921 = vrot.lane.b32.xlu0 %v477, 80
      %v3922 = vpop.permute.xlu0 %3921
      %3923 = vrot.lane.b32.xlu0 %v482, 80
      %v3924 = vpop.permute.xlu0 %3923
      %3925 = vrot.lane.b32.xlu0 %v487, 80
      %v3926 = vpop.permute.xlu0 %3925
      %3927 = vrot.lane.b32.xlu0 %v492, 80
      %v3928 = vpop.permute.xlu0 %3927
      %3929 = vrot.lane.b32.xlu0 %v497, 80
      %v3930 = vpop.permute.xlu0 %3929
      %3931 = vrot.lane.b32.xlu0 %v502, 80
      %v3932 = vpop.permute.xlu0 %3931
      %v3933 = vsel %vm657, %v3902, 0
      %v3935 = vsel %vm657, %v3904, 0
      %v3937 = vsel %vm657, %v3906, 0
      %v3939 = vsel %vm657, %v3908, 0
      %v3941 = vsel %vm657, %v3910, 0
      %v3943 = vsel %vm657, %v3912, 0
      %v3945 = vsel %vm657, %v3914, 0
      %v3947 = vsel %vm657, %v3916, 0
      %v3949 = vsel %vm657, %v3918, 0
      %v3951 = vsel %vm657, %v3920, 0
      %v3953 = vsel %vm657, %v3922, 0
      %v3955 = vsel %vm657, %v3924, 0
      %v3957 = vsel %vm657, %v3926, 0
      %v3959 = vsel %vm657, %v3928, 0
      %v3961 = vsel %vm657, %v3930, 0
      %v3963 = vsel %vm657, %v3932, 0
      %3965 = vmatprep.subr.mxu0 0.0
      %3966 = vmatpush1.xpose.msra.mxu0 0.0
      %3967 = vmatprep.subr.mxu0 0.0
      %3968 = vmatpush1.xpose.msra.mxu0 0.0
      %3969 = vmatprep.subr.mxu0 0.0
      %3970 = vmatpush1.xpose.msra.mxu0 0.0
      %3971 = vmatprep.subr.mxu0 0.0
      %3972 = vmatpush1.xpose.msra.mxu0 0.0
      %3973 = vmatprep.subr.mxu0 0.0
      %3974 = vmatpush1.xpose.msra.mxu0 0.0
      %3975 = vmatprep.subr.mxu0 0.0
      %3976 = vmatpush1.xpose.msra.mxu0 0.0
      %3977 = vmatprep.subr.mxu0 0.0
      %3978 = vmatpush1.xpose.msra.mxu0 0.0
      %3979 = vmatprep.subr.mxu0 0.0
      %3980 = vmatpush1.xpose.msra.mxu0 0.0
      %3981 = vmatprep.subr.mxu0 0.0
      %3982 = vmatpush1.xpose.msra.mxu0 %v3963
      %3983 = vmatprep.subr.mxu0 0.0
      %3984 = vmatpush1.xpose.msra.mxu0 %v3961
      %3985 = vmatprep.subr.mxu0 0.0
      %3986 = vmatpush1.xpose.msra.mxu0 %v3959
      %3987 = vmatprep.subr.mxu0 0.0
      %3988 = vmatpush1.xpose.msra.mxu0 %v3957
      %3989 = vmatprep.subr.mxu0 0.0
      %3990 = vmatpush1.xpose.msra.mxu0 %v3955
      %3991 = vmatprep.subr.mxu0 0.0
      %3992 = vmatpush1.xpose.msra.mxu0 %v3953
      %3993 = vmatprep.subr.mxu0 0.0
      %3994 = vmatpush1.xpose.msra.mxu0 %v3951
      %3995 = vmatprep.subr.mxu0 0.0
      %3996 = vmatpush1.xpose.msra.mxu0 %v3949
      %3997 = vmatprep.subr.mxu0 0.0
      %3998 = vmatpush2.xpose.msra.mxu0 0.0
      %3999 = vmatprep.subr.mxu0 0.0
      %4000 = vmatpush2.xpose.msra.mxu0 0.0
      %4001 = vmatprep.subr.mxu0 0.0
      %4002 = vmatpush2.xpose.msra.mxu0 0.0
      %4003 = vmatprep.subr.mxu0 0.0
      %4004 = vmatpush2.xpose.msra.mxu0 0.0
      %4005 = vmatprep.subr.mxu0 0.0
      %4006 = vmatpush2.xpose.msra.mxu0 0.0
      %4007 = vmatprep.subr.mxu0 0.0
      %4008 = vmatpush2.xpose.msra.mxu0 0.0
      %4009 = vmatprep.subr.mxu0 0.0
      %4010 = vmatpush2.xpose.msra.mxu0 0.0
      %4011 = vmatprep.subr.mxu0 0.0
      %4012 = vmatpush2.xpose.msra.mxu0 0.0
      %4013 = vmatprep.subr.mxu0 0.0
      %4014 = vmatpush2.xpose.msra.mxu0 0.0
      %4015 = vmatprep.subr.mxu0 0.0
      %4016 = vmatpush2.xpose.msra.mxu0 0.0
      %4017 = vmatprep.subr.mxu0 0.0
      %4018 = vmatpush2.xpose.msra.mxu0 0.0
      %4019 = vmatprep.subr.mxu0 0.0
      %4020 = vmatpush2.xpose.msra.mxu0 0.0
      %4021 = vmatprep.subr.mxu0 0.0
      %4022 = vmatpush2.xpose.msra.mxu0 0.0
      %4023 = vmatprep.subr.mxu0 0.0
      %4024 = vmatpush2.xpose.msra.mxu0 0.0
      %4025 = vmatprep.subr.mxu0 0.0
      %4026 = vmatpush2.xpose.msra.mxu0 0.0
      %4027 = vmatprep.subr.mxu0 0.0
      %4028 = vmatpush2.xpose.msra.mxu0 0.0
      %4029 = vmatprep.mubr.f32.mxu0 0.0
      %4030 = vmatmul.mubr.f32.gmra.mxu0 %v3933
      %v4031 = vpop.f32.mrf.mxu0
      %v4032 = vadd.f32 %v3893, %v4031
      %v4033 = vpop.f32.mrf.mxu0
      %4034 = vmatprep.mubr.f32.mxu0 0.0
      %4035 = vmatmul.mubr.f32.gmra.mxu0 %v3935
      %v4036 = vpop.f32.mrf.mxu0
      %v4037 = vadd.f32 %v3894, %v4036
      %v4038 = vpop.f32.mrf.mxu0
      %4039 = vmatprep.mubr.f32.mxu0 0.0
      %4040 = vmatmul.mubr.f32.gmra.mxu0 %v3937
      %v4041 = vpop.f32.mrf.mxu0
      %v4042 = vadd.f32 %v3895, %v4041
      %v4043 = vpop.f32.mrf.mxu0
      %4044 = vmatprep.mubr.f32.mxu0 0.0
      %4045 = vmatmul.mubr.f32.gmra.mxu0 %v3939
      %v4046 = vpop.f32.mrf.mxu0
      %v4047 = vadd.f32 %v3896, %v4046
      %v4048 = vpop.f32.mrf.mxu0
      %4049 = vmatprep.mubr.f32.mxu0 0.0
      %4050 = vmatmul.mubr.f32.gmra.mxu0 %v3941
      %v4051 = vpop.f32.mrf.mxu0
      %v4052 = vadd.f32 %v3897, %v4051
      %v4053 = vpop.f32.mrf.mxu0
      %4054 = vmatprep.mubr.f32.mxu0 0.0
      %4055 = vmatmul.mubr.f32.gmra.mxu0 %v3943
      %v4056 = vpop.f32.mrf.mxu0
      %v4057 = vadd.f32 %v3898, %v4056
      %v4058 = vpop.f32.mrf.mxu0
      %4059 = vmatprep.mubr.f32.mxu0 0.0
      %4060 = vmatmul.mubr.f32.gmra.mxu0 %v3945
      %v4061 = vpop.f32.mrf.mxu0
      %v4062 = vadd.f32 %v3899, %v4061
      %v4063 = vpop.f32.mrf.mxu0
      %4064 = vmatprep.mubr.f32.mxu0 0.0
      %4065 = vmatmul.mubr.f32.gmra.mxu0 %v3947
      %v4066 = vpop.f32.mrf.mxu0
      %v4067 = vadd.f32 %v3900, %v4066
      %v4068 = vpop.f32.mrf.mxu0
      %4069 = vdwg.mxu0
      %4070 = vrot.lane.b32.xlu0 %v507, 112
      %v4071 = vpop.permute.xlu0 %4070
      %4072 = vrot.lane.b32.xlu0 %v512, 112
      %v4073 = vpop.permute.xlu0 %4072
      %4074 = vrot.lane.b32.xlu0 %v517, 112
      %v4075 = vpop.permute.xlu0 %4074
      %4076 = vrot.lane.b32.xlu0 %v522, 112
      %v4077 = vpop.permute.xlu0 %4076
      %4078 = vrot.lane.b32.xlu0 %v527, 112
      %v4079 = vpop.permute.xlu0 %4078
      %4080 = vrot.lane.b32.xlu0 %v532, 112
      %v4081 = vpop.permute.xlu0 %4080
      %4082 = vrot.lane.b32.xlu0 %v537, 112
      %v4083 = vpop.permute.xlu0 %4082
      %4084 = vrot.lane.b32.xlu0 %v542, 112
      %v4085 = vpop.permute.xlu0 %4084
      %4086 = vrot.lane.b32.xlu0 %v507, 80
      %v4087 = vpop.permute.xlu0 %4086
      %4088 = vrot.lane.b32.xlu0 %v512, 80
      %v4089 = vpop.permute.xlu0 %4088
      %4090 = vrot.lane.b32.xlu0 %v517, 80
      %v4091 = vpop.permute.xlu0 %4090
      %4092 = vrot.lane.b32.xlu0 %v522, 80
      %v4093 = vpop.permute.xlu0 %4092
      %4094 = vrot.lane.b32.xlu0 %v527, 80
      %v4095 = vpop.permute.xlu0 %4094
      %4096 = vrot.lane.b32.xlu0 %v532, 80
      %v4097 = vpop.permute.xlu0 %4096
      %4098 = vrot.lane.b32.xlu0 %v537, 80
      %v4099 = vpop.permute.xlu0 %4098
      %4100 = vrot.lane.b32.xlu0 %v542, 80
      %v4101 = vpop.permute.xlu0 %4100
      %v4102 = vsel %vm657, %v4071, 0
      %v4104 = vsel %vm657, %v4073, 0
      %v4106 = vsel %vm657, %v4075, 0
      %v4108 = vsel %vm657, %v4077, 0
      %v4110 = vsel %vm657, %v4079, 0
      %v4112 = vsel %vm657, %v4081, 0
      %v4114 = vsel %vm657, %v4083, 0
      %v4116 = vsel %vm657, %v4085, 0
      %v4118 = vsel %vm657, %v4087, 0
      %v4120 = vsel %vm657, %v4089, 0
      %v4122 = vsel %vm657, %v4091, 0
      %v4124 = vsel %vm657, %v4093, 0
      %v4126 = vsel %vm657, %v4095, 0
      %v4128 = vsel %vm657, %v4097, 0
      %v4130 = vsel %vm657, %v4099, 0
      %v4132 = vsel %vm657, %v4101, 0
      %4134 = vmatprep.subr.mxu0 0.0
      %4135 = vmatpush1.xpose.msra.mxu0 0.0
      %4136 = vmatprep.subr.mxu0 0.0
      %4137 = vmatpush1.xpose.msra.mxu0 0.0
      %4138 = vmatprep.subr.mxu0 0.0
      %4139 = vmatpush1.xpose.msra.mxu0 0.0
      %4140 = vmatprep.subr.mxu0 0.0
      %4141 = vmatpush1.xpose.msra.mxu0 0.0
      %4142 = vmatprep.subr.mxu0 0.0
      %4143 = vmatpush1.xpose.msra.mxu0 0.0
      %4144 = vmatprep.subr.mxu0 0.0
      %4145 = vmatpush1.xpose.msra.mxu0 0.0
      %4146 = vmatprep.subr.mxu0 0.0
      %4147 = vmatpush1.xpose.msra.mxu0 0.0
      %4148 = vmatprep.subr.mxu0 0.0
      %4149 = vmatpush1.xpose.msra.mxu0 0.0
      %4150 = vmatprep.subr.mxu0 0.0
      %4151 = vmatpush1.xpose.msra.mxu0 %v4132
      %4152 = vmatprep.subr.mxu0 0.0
      %4153 = vmatpush1.xpose.msra.mxu0 %v4130
      %4154 = vmatprep.subr.mxu0 0.0
      %4155 = vmatpush1.xpose.msra.mxu0 %v4128
      %4156 = vmatprep.subr.mxu0 0.0
      %4157 = vmatpush1.xpose.msra.mxu0 %v4126
      %4158 = vmatprep.subr.mxu0 0.0
      %4159 = vmatpush1.xpose.msra.mxu0 %v4124
      %4160 = vmatprep.subr.mxu0 0.0
      %4161 = vmatpush1.xpose.msra.mxu0 %v4122
      %4162 = vmatprep.subr.mxu0 0.0
      %4163 = vmatpush1.xpose.msra.mxu0 %v4120
      %4164 = vmatprep.subr.mxu0 0.0
      %4165 = vmatpush1.xpose.msra.mxu0 %v4118
      %4166 = vmatprep.subr.mxu0 0.0
      %4167 = vmatpush2.xpose.msra.mxu0 0.0
      %4168 = vmatprep.subr.mxu0 0.0
      %4169 = vmatpush2.xpose.msra.mxu0 0.0
      %4170 = vmatprep.subr.mxu0 0.0
      %4171 = vmatpush2.xpose.msra.mxu0 0.0
      %4172 = vmatprep.subr.mxu0 0.0
      %4173 = vmatpush2.xpose.msra.mxu0 0.0
      %4174 = vmatprep.subr.mxu0 0.0
      %4175 = vmatpush2.xpose.msra.mxu0 0.0
      %4176 = vmatprep.subr.mxu0 0.0
      %4177 = vmatpush2.xpose.msra.mxu0 0.0
      %4178 = vmatprep.subr.mxu0 0.0
      %4179 = vmatpush2.xpose.msra.mxu0 0.0
      %4180 = vmatprep.subr.mxu0 0.0
      %4181 = vmatpush2.xpose.msra.mxu0 0.0
      %4182 = vmatprep.subr.mxu0 0.0
      %4183 = vmatpush2.xpose.msra.mxu0 0.0
      %4184 = vmatprep.subr.mxu0 0.0
      %4185 = vmatpush2.xpose.msra.mxu0 0.0
      %4186 = vmatprep.subr.mxu0 0.0
      %4187 = vmatpush2.xpose.msra.mxu0 0.0
      %4188 = vmatprep.subr.mxu0 0.0
      %4189 = vmatpush2.xpose.msra.mxu0 0.0
      %4190 = vmatprep.subr.mxu0 0.0
      %4191 = vmatpush2.xpose.msra.mxu0 0.0
      %4192 = vmatprep.subr.mxu0 0.0
      %4193 = vmatpush2.xpose.msra.mxu0 0.0
      %4194 = vmatprep.subr.mxu0 0.0
      %4195 = vmatpush2.xpose.msra.mxu0 0.0
      %4196 = vmatprep.subr.mxu0 0.0
      %4197 = vmatpush2.xpose.msra.mxu0 0.0
      %4198 = vmatprep.mubr.f32.mxu0 0.0
      %4199 = vmatmul.mubr.f32.gmra.mxu0 %v4102
      %v4200 = vpop.f32.mrf.mxu0
      %v4201 = vadd.f32 %v3893, %v4200
      %v4202 = vpop.f32.mrf.mxu0
      %4203 = vmatprep.mubr.f32.mxu0 0.0
      %4204 = vmatmul.mubr.f32.gmra.mxu0 %v4104
      %v4205 = vpop.f32.mrf.mxu0
      %v4206 = vadd.f32 %v3894, %v4205
      %v4207 = vpop.f32.mrf.mxu0
      %4208 = vmatprep.mubr.f32.mxu0 0.0
      %4209 = vmatmul.mubr.f32.gmra.mxu0 %v4106
      %v4210 = vpop.f32.mrf.mxu0
      %v4211 = vadd.f32 %v3895, %v4210
      %v4212 = vpop.f32.mrf.mxu0
      %4213 = vmatprep.mubr.f32.mxu0 0.0
      %4214 = vmatmul.mubr.f32.gmra.mxu0 %v4108
      %v4215 = vpop.f32.mrf.mxu0
      %v4216 = vadd.f32 %v3896, %v4215
      %v4217 = vpop.f32.mrf.mxu0
      %4218 = vmatprep.mubr.f32.mxu0 0.0
      %4219 = vmatmul.mubr.f32.gmra.mxu0 %v4110
      %v4220 = vpop.f32.mrf.mxu0
      %v4221 = vadd.f32 %v3897, %v4220
      %v4222 = vpop.f32.mrf.mxu0
      %4223 = vmatprep.mubr.f32.mxu0 0.0
      %4224 = vmatmul.mubr.f32.gmra.mxu0 %v4112
      %v4225 = vpop.f32.mrf.mxu0
      %v4226 = vadd.f32 %v3898, %v4225
      %v4227 = vpop.f32.mrf.mxu0
      %4228 = vmatprep.mubr.f32.mxu0 0.0
      %4229 = vmatmul.mubr.f32.gmra.mxu0 %v4114
      %v4230 = vpop.f32.mrf.mxu0
      %v4231 = vadd.f32 %v3899, %v4230
      %v4232 = vpop.f32.mrf.mxu0
      %4233 = vmatprep.mubr.f32.mxu0 0.0
      %4234 = vmatmul.mubr.f32.gmra.mxu0 %v4116
      %v4235 = vpop.f32.mrf.mxu0
      %v4236 = vadd.f32 %v3900, %v4235
      %v4237 = vpop.f32.mrf.mxu0
      %4238 = vdwg.mxu0
      %4239 = vrot.lane.b32.xlu0 %v547, 112
      %v4240 = vpop.permute.xlu0 %4239
      %4241 = vrot.lane.b32.xlu0 %v552, 112
      %v4242 = vpop.permute.xlu0 %4241
      %4243 = vrot.lane.b32.xlu0 %v557, 112
      %v4244 = vpop.permute.xlu0 %4243
      %4245 = vrot.lane.b32.xlu0 %v562, 112
      %v4246 = vpop.permute.xlu0 %4245
      %4247 = vrot.lane.b32.xlu0 %v567, 112
      %v4248 = vpop.permute.xlu0 %4247
      %4249 = vrot.lane.b32.xlu0 %v572, 112
      %v4250 = vpop.permute.xlu0 %4249
      %4251 = vrot.lane.b32.xlu0 %v577, 112
      %v4252 = vpop.permute.xlu0 %4251
      %4253 = vrot.lane.b32.xlu0 %v582, 112
      %v4254 = vpop.permute.xlu0 %4253
      %4255 = vrot.lane.b32.xlu0 %v547, 80
      %v4256 = vpop.permute.xlu0 %4255
      %4257 = vrot.lane.b32.xlu0 %v552, 80
      %v4258 = vpop.permute.xlu0 %4257
      %4259 = vrot.lane.b32.xlu0 %v557, 80
      %v4260 = vpop.permute.xlu0 %4259
      %4261 = vrot.lane.b32.xlu0 %v562, 80
      %v4262 = vpop.permute.xlu0 %4261
      %4263 = vrot.lane.b32.xlu0 %v567, 80
      %v4264 = vpop.permute.xlu0 %4263
      %4265 = vrot.lane.b32.xlu0 %v572, 80
      %v4266 = vpop.permute.xlu0 %4265
      %4267 = vrot.lane.b32.xlu0 %v577, 80
      %v4268 = vpop.permute.xlu0 %4267
      %4269 = vrot.lane.b32.xlu0 %v582, 80
      %v4270 = vpop.permute.xlu0 %4269
      %v4271 = vsel %vm657, %v4240, 0
      %v4273 = vsel %vm657, %v4242, 0
      %v4275 = vsel %vm657, %v4244, 0
      %v4277 = vsel %vm657, %v4246, 0
      %v4279 = vsel %vm657, %v4248, 0
      %v4281 = vsel %vm657, %v4250, 0
      %v4283 = vsel %vm657, %v4252, 0
      %v4285 = vsel %vm657, %v4254, 0
      %v4287 = vsel %vm657, %v4256, 0
      %v4289 = vsel %vm657, %v4258, 0
      %v4291 = vsel %vm657, %v4260, 0
      %v4293 = vsel %vm657, %v4262, 0
      %v4295 = vsel %vm657, %v4264, 0
      %v4297 = vsel %vm657, %v4266, 0
      %v4299 = vsel %vm657, %v4268, 0
      %v4301 = vsel %vm657, %v4270, 0
      %4303 = vmatprep.subr.mxu0 0.0
      %4304 = vmatpush1.xpose.msra.mxu0 0.0
      %4305 = vmatprep.subr.mxu0 0.0
      %4306 = vmatpush1.xpose.msra.mxu0 0.0
      %4307 = vmatprep.subr.mxu0 0.0
      %4308 = vmatpush1.xpose.msra.mxu0 0.0
      %4309 = vmatprep.subr.mxu0 0.0
      %4310 = vmatpush1.xpose.msra.mxu0 0.0
      %4311 = vmatprep.subr.mxu0 0.0
      %4312 = vmatpush1.xpose.msra.mxu0 0.0
      %4313 = vmatprep.subr.mxu0 0.0
      %4314 = vmatpush1.xpose.msra.mxu0 0.0
      %4315 = vmatprep.subr.mxu0 0.0
      %4316 = vmatpush1.xpose.msra.mxu0 0.0
      %4317 = vmatprep.subr.mxu0 0.0
      %4318 = vmatpush1.xpose.msra.mxu0 0.0
      %4319 = vmatprep.subr.mxu0 0.0
      %4320 = vmatpush1.xpose.msra.mxu0 %v4301
      %4321 = vmatprep.subr.mxu0 0.0
      %4322 = vmatpush1.xpose.msra.mxu0 %v4299
      %4323 = vmatprep.subr.mxu0 0.0
      %4324 = vmatpush1.xpose.msra.mxu0 %v4297
      %4325 = vmatprep.subr.mxu0 0.0
      %4326 = vmatpush1.xpose.msra.mxu0 %v4295
      %4327 = vmatprep.subr.mxu0 0.0
      %4328 = vmatpush1.xpose.msra.mxu0 %v4293
      %4329 = vmatprep.subr.mxu0 0.0
      %4330 = vmatpush1.xpose.msra.mxu0 %v4291
      %4331 = vmatprep.subr.mxu0 0.0
      %4332 = vmatpush1.xpose.msra.mxu0 %v4289
      %4333 = vmatprep.subr.mxu0 0.0
      %4334 = vmatpush1.xpose.msra.mxu0 %v4287
      %4335 = vmatprep.subr.mxu0 0.0
      %4336 = vmatpush2.xpose.msra.mxu0 0.0
      %4337 = vmatprep.subr.mxu0 0.0
      %4338 = vmatpush2.xpose.msra.mxu0 0.0
      %4339 = vmatprep.subr.mxu0 0.0
      %4340 = vmatpush2.xpose.msra.mxu0 0.0
      %4341 = vmatprep.subr.mxu0 0.0
      %4342 = vmatpush2.xpose.msra.mxu0 0.0
      %4343 = vmatprep.subr.mxu0 0.0
      %4344 = vmatpush2.xpose.msra.mxu0 0.0
      %4345 = vmatprep.subr.mxu0 0.0
      %4346 = vmatpush2.xpose.msra.mxu0 0.0
      %4347 = vmatprep.subr.mxu0 0.0
      %4348 = vmatpush2.xpose.msra.mxu0 0.0
      %4349 = vmatprep.subr.mxu0 0.0
      %4350 = vmatpush2.xpose.msra.mxu0 0.0
      %4351 = vmatprep.subr.mxu0 0.0
      %4352 = vmatpush2.xpose.msra.mxu0 0.0
      %4353 = vmatprep.subr.mxu0 0.0
      %4354 = vmatpush2.xpose.msra.mxu0 0.0
      %4355 = vmatprep.subr.mxu0 0.0
      %4356 = vmatpush2.xpose.msra.mxu0 0.0
      %4357 = vmatprep.subr.mxu0 0.0
      %4358 = vmatpush2.xpose.msra.mxu0 0.0
      %4359 = vmatprep.subr.mxu0 0.0
      %4360 = vmatpush2.xpose.msra.mxu0 0.0
      %4361 = vmatprep.subr.mxu0 0.0
      %4362 = vmatpush2.xpose.msra.mxu0 0.0
      %4363 = vmatprep.subr.mxu0 0.0
      %4364 = vmatpush2.xpose.msra.mxu0 0.0
      %4365 = vmatprep.subr.mxu0 0.0
      %4366 = vmatpush2.xpose.msra.mxu0 0.0
      %4367 = vmatprep.mubr.f32.mxu0 0.0
      %4368 = vmatmul.mubr.f32.gmra.mxu0 %v4271
      %v4369 = vpop.f32.mrf.mxu0
      %v4370 = vadd.f32 %v3893, %v4369
      %v4371 = vpop.f32.mrf.mxu0
      %4372 = vmatprep.mubr.f32.mxu0 0.0
      %4373 = vmatmul.mubr.f32.gmra.mxu0 %v4273
      %v4374 = vpop.f32.mrf.mxu0
      %v4375 = vadd.f32 %v3894, %v4374
      %v4376 = vpop.f32.mrf.mxu0
      %4377 = vmatprep.mubr.f32.mxu0 0.0
      %4378 = vmatmul.mubr.f32.gmra.mxu0 %v4275
      %v4379 = vpop.f32.mrf.mxu0
      %v4380 = vadd.f32 %v3895, %v4379
      %v4381 = vpop.f32.mrf.mxu0
      %4382 = vmatprep.mubr.f32.mxu0 0.0
      %4383 = vmatmul.mubr.f32.gmra.mxu0 %v4277
      %v4384 = vpop.f32.mrf.mxu0
      %v4385 = vadd.f32 %v3896, %v4384
      %v4386 = vpop.f32.mrf.mxu0
      %4387 = vmatprep.mubr.f32.mxu0 0.0
      %4388 = vmatmul.mubr.f32.gmra.mxu0 %v4279
      %v4389 = vpop.f32.mrf.mxu0
      %v4390 = vadd.f32 %v3897, %v4389
      %v4391 = vpop.f32.mrf.mxu0
      %4392 = vmatprep.mubr.f32.mxu0 0.0
      %4393 = vmatmul.mubr.f32.gmra.mxu0 %v4281
      %v4394 = vpop.f32.mrf.mxu0
      %v4395 = vadd.f32 %v3898, %v4394
      %v4396 = vpop.f32.mrf.mxu0
      %4397 = vmatprep.mubr.f32.mxu0 0.0
      %4398 = vmatmul.mubr.f32.gmra.mxu0 %v4283
      %v4399 = vpop.f32.mrf.mxu0
      %v4400 = vadd.f32 %v3899, %v4399
      %v4401 = vpop.f32.mrf.mxu0
      %4402 = vmatprep.mubr.f32.mxu0 0.0
      %4403 = vmatmul.mubr.f32.gmra.mxu0 %v4285
      %v4404 = vpop.f32.mrf.mxu0
      %v4405 = vadd.f32 %v3900, %v4404
      %v4406 = vpop.f32.mrf.mxu0
      %4407 = vdwg.mxu0
      %4408 = vrot.lane.b32.xlu0 %v587, 112
      %v4409 = vpop.permute.xlu0 %4408
      %4410 = vrot.lane.b32.xlu0 %v592, 112
      %v4411 = vpop.permute.xlu0 %4410
      %4412 = vrot.lane.b32.xlu0 %v597, 112
      %v4413 = vpop.permute.xlu0 %4412
      %4414 = vrot.lane.b32.xlu0 %v602, 112
      %v4415 = vpop.permute.xlu0 %4414
      %4416 = vrot.lane.b32.xlu0 %v607, 112
      %v4417 = vpop.permute.xlu0 %4416
      %4418 = vrot.lane.b32.xlu0 %v612, 112
      %v4419 = vpop.permute.xlu0 %4418
      %4420 = vrot.lane.b32.xlu0 %v617, 112
      %v4421 = vpop.permute.xlu0 %4420
      %4422 = vrot.lane.b32.xlu0 %v622, 112
      %v4423 = vpop.permute.xlu0 %4422
      %4424 = vrot.lane.b32.xlu0 %v587, 80
      %v4425 = vpop.permute.xlu0 %4424
      %4426 = vrot.lane.b32.xlu0 %v592, 80
      %v4427 = vpop.permute.xlu0 %4426
      %4428 = vrot.lane.b32.xlu0 %v597, 80
      %v4429 = vpop.permute.xlu0 %4428
      %4430 = vrot.lane.b32.xlu0 %v602, 80
      %v4431 = vpop.permute.xlu0 %4430
      %4432 = vrot.lane.b32.xlu0 %v607, 80
      %v4433 = vpop.permute.xlu0 %4432
      %4434 = vrot.lane.b32.xlu0 %v612, 80
      %v4435 = vpop.permute.xlu0 %4434
      %4436 = vrot.lane.b32.xlu0 %v617, 80
      %v4437 = vpop.permute.xlu0 %4436
      %4438 = vrot.lane.b32.xlu0 %v622, 80
      %v4439 = vpop.permute.xlu0 %4438
      %v4440 = vsel %vm657, %v4409, 0
      %v4442 = vsel %vm657, %v4411, 0
      %v4444 = vsel %vm657, %v4413, 0
      %v4446 = vsel %vm657, %v4415, 0
      %v4448 = vsel %vm657, %v4417, 0
      %v4450 = vsel %vm657, %v4419, 0
      %v4452 = vsel %vm657, %v4421, 0
      %v4454 = vsel %vm657, %v4423, 0
      %v4456 = vsel %vm657, %v4425, 0
      %v4458 = vsel %vm657, %v4427, 0
      %v4460 = vsel %vm657, %v4429, 0
      %v4462 = vsel %vm657, %v4431, 0
      %v4464 = vsel %vm657, %v4433, 0
      %v4466 = vsel %vm657, %v4435, 0
      %v4468 = vsel %vm657, %v4437, 0
      %v4470 = vsel %vm657, %v4439, 0
      %4472 = vmatprep.subr.mxu0 0.0
      %4473 = vmatpush1.xpose.msra.mxu0 0.0
      %4474 = vmatprep.subr.mxu0 0.0
      %4475 = vmatpush1.xpose.msra.mxu0 0.0
      %4476 = vmatprep.subr.mxu0 0.0
      %4477 = vmatpush1.xpose.msra.mxu0 0.0
      %4478 = vmatprep.subr.mxu0 0.0
      %4479 = vmatpush1.xpose.msra.mxu0 0.0
      %4480 = vmatprep.subr.mxu0 0.0
      %4481 = vmatpush1.xpose.msra.mxu0 0.0
      %4482 = vmatprep.subr.mxu0 0.0
      %4483 = vmatpush1.xpose.msra.mxu0 0.0
      %4484 = vmatprep.subr.mxu0 0.0
      %4485 = vmatpush1.xpose.msra.mxu0 0.0
      %4486 = vmatprep.subr.mxu0 0.0
      %4487 = vmatpush1.xpose.msra.mxu0 0.0
      %4488 = vmatprep.subr.mxu0 0.0
      %4489 = vmatpush1.xpose.msra.mxu0 %v4470
      %4490 = vmatprep.subr.mxu0 0.0
      %4491 = vmatpush1.xpose.msra.mxu0 %v4468
      %4492 = vmatprep.subr.mxu0 0.0
      %4493 = vmatpush1.xpose.msra.mxu0 %v4466
      %4494 = vmatprep.subr.mxu0 0.0
      %4495 = vmatpush1.xpose.msra.mxu0 %v4464
      %4496 = vmatprep.subr.mxu0 0.0
      %4497 = vmatpush1.xpose.msra.mxu0 %v4462
      %4498 = vmatprep.subr.mxu0 0.0
      %4499 = vmatpush1.xpose.msra.mxu0 %v4460
      %4500 = vmatprep.subr.mxu0 0.0
      %4501 = vmatpush1.xpose.msra.mxu0 %v4458
      %4502 = vmatprep.subr.mxu0 0.0
      %4503 = vmatpush1.xpose.msra.mxu0 %v4456
      %4504 = vmatprep.subr.mxu0 0.0
      %4505 = vmatpush2.xpose.msra.mxu0 0.0
      %4506 = vmatprep.subr.mxu0 0.0
      %4507 = vmatpush2.xpose.msra.mxu0 0.0
      %4508 = vmatprep.subr.mxu0 0.0
      %4509 = vmatpush2.xpose.msra.mxu0 0.0
      %4510 = vmatprep.subr.mxu0 0.0
      %4511 = vmatpush2.xpose.msra.mxu0 0.0
      %4512 = vmatprep.subr.mxu0 0.0
      %4513 = vmatpush2.xpose.msra.mxu0 0.0
      %4514 = vmatprep.subr.mxu0 0.0
      %4515 = vmatpush2.xpose.msra.mxu0 0.0
      %4516 = vmatprep.subr.mxu0 0.0
      %4517 = vmatpush2.xpose.msra.mxu0 0.0
      %4518 = vmatprep.subr.mxu0 0.0
      %4519 = vmatpush2.xpose.msra.mxu0 0.0
      %4520 = vmatprep.subr.mxu0 0.0
      %4521 = vmatpush2.xpose.msra.mxu0 0.0
      %4522 = vmatprep.subr.mxu0 0.0
      %4523 = vmatpush2.xpose.msra.mxu0 0.0
      %4524 = vmatprep.subr.mxu0 0.0
      %4525 = vmatpush2.xpose.msra.mxu0 0.0
      %4526 = vmatprep.subr.mxu0 0.0
      %4527 = vmatpush2.xpose.msra.mxu0 0.0
      %4528 = vmatprep.subr.mxu0 0.0
      %4529 = vmatpush2.xpose.msra.mxu0 0.0
      %4530 = vmatprep.subr.mxu0 0.0
      %4531 = vmatpush2.xpose.msra.mxu0 0.0
      %4532 = vmatprep.subr.mxu0 0.0
      %4533 = vmatpush2.xpose.msra.mxu0 0.0
      %4534 = vmatprep.subr.mxu0 0.0
      %4535 = vmatpush2.xpose.msra.mxu0 0.0
      %4536 = vmatprep.mubr.f32.mxu0 0.0
      %4537 = vmatmul.mubr.f32.gmra.mxu0 %v4440
      %v4538 = vpop.f32.mrf.mxu0
      %v4539 = vadd.f32 %v3893, %v4538
      %v4540 = vpop.f32.mrf.mxu0
      %4541 = vmatprep.mubr.f32.mxu0 0.0
      %4542 = vmatmul.mubr.f32.gmra.mxu0 %v4442
      %v4543 = vpop.f32.mrf.mxu0
      %v4544 = vadd.f32 %v3894, %v4543
      %v4545 = vpop.f32.mrf.mxu0
      %4546 = vmatprep.mubr.f32.mxu0 0.0
      %4547 = vmatmul.mubr.f32.gmra.mxu0 %v4444
      %v4548 = vpop.f32.mrf.mxu0
      %v4549 = vadd.f32 %v3895, %v4548
      %v4550 = vpop.f32.mrf.mxu0
      %4551 = vmatprep.mubr.f32.mxu0 0.0
      %4552 = vmatmul.mubr.f32.gmra.mxu0 %v4446
      %v4553 = vpop.f32.mrf.mxu0
      %v4554 = vadd.f32 %v3896, %v4553
      %v4555 = vpop.f32.mrf.mxu0
      %4556 = vmatprep.mubr.f32.mxu0 0.0
      %4557 = vmatmul.mubr.f32.gmra.mxu0 %v4448
      %v4558 = vpop.f32.mrf.mxu0
      %v4559 = vadd.f32 %v3897, %v4558
      %v4560 = vpop.f32.mrf.mxu0
      %4561 = vmatprep.mubr.f32.mxu0 0.0
      %4562 = vmatmul.mubr.f32.gmra.mxu0 %v4450
      %v4563 = vpop.f32.mrf.mxu0
      %v4564 = vadd.f32 %v3898, %v4563
      %v4565 = vpop.f32.mrf.mxu0
      %4566 = vmatprep.mubr.f32.mxu0 0.0
      %4567 = vmatmul.mubr.f32.gmra.mxu0 %v4452
      %v4568 = vpop.f32.mrf.mxu0
      %v4569 = vadd.f32 %v3899, %v4568
      %v4570 = vpop.f32.mrf.mxu0
      %4571 = vmatprep.mubr.f32.mxu0 0.0
      %4572 = vmatmul.mubr.f32.gmra.mxu0 %v4454
      %v4573 = vpop.f32.mrf.mxu0
      %v4574 = vadd.f32 %v3900, %v4573
      %v4575 = vpop.f32.mrf.mxu0
      %4576 = vdwg.mxu0
      %v4577 = vsel %vm1278, %v4032, -inf
      %4578 = vmax.xlane.f32.xlu0 %v4577
      %v4579 = vpop.xlane.xlu0 %4578
      %v4580 = vsel %vm1278, %v4037, -inf
      %4581 = vmax.xlane.f32.xlu0 %v4580
      %v4582 = vpop.xlane.xlu0 %4581
      %v4583 = vsel %vm1278, %v4042, -inf
      %4584 = vmax.xlane.f32.xlu0 %v4583
      %v4585 = vpop.xlane.xlu0 %4584
      %v4586 = vsel %vm1278, %v4047, -inf
      %4587 = vmax.xlane.f32.xlu0 %v4586
      %v4588 = vpop.xlane.xlu0 %4587
      %v4589 = vsel %vm1278, %v4052, -inf
      %4590 = vmax.xlane.f32.xlu0 %v4589
      %v4591 = vpop.xlane.xlu0 %4590
      %v4592 = vsel %vm1278, %v4057, -inf
      %4593 = vmax.xlane.f32.xlu0 %v4592
      %v4594 = vpop.xlane.xlu0 %4593
      %v4595 = vsel %vm1278, %v4062, -inf
      %4596 = vmax.xlane.f32.xlu0 %v4595
      %v4597 = vpop.xlane.xlu0 %4596
      %v4598 = vsel %vm1278, %v4067, -inf
      %4599 = vmax.xlane.f32.xlu0 %v4598
      %v4600 = vpop.xlane.xlu0 %4599
      %v4601 = vsel %vm1278, %v4201, -inf
      %4602 = vmax.xlane.f32.xlu0 %v4601
      %v4603 = vpop.xlane.xlu0 %4602
      %v4604 = vsel %vm1278, %v4206, -inf
      %4605 = vmax.xlane.f32.xlu0 %v4604
      %v4606 = vpop.xlane.xlu0 %4605
      %v4607 = vsel %vm1278, %v4211, -inf
      %4608 = vmax.xlane.f32.xlu0 %v4607
      %v4609 = vpop.xlane.xlu0 %4608
      %v4610 = vsel %vm1278, %v4216, -inf
      %4611 = vmax.xlane.f32.xlu0 %v4610
      %v4612 = vpop.xlane.xlu0 %4611
      %v4613 = vsel %vm1278, %v4221, -inf
      %4614 = vmax.xlane.f32.xlu0 %v4613
      %v4615 = vpop.xlane.xlu0 %4614
      %v4616 = vsel %vm1278, %v4226, -inf
      %4617 = vmax.xlane.f32.xlu0 %v4616
      %v4618 = vpop.xlane.xlu0 %4617
      %v4619 = vsel %vm1278, %v4231, -inf
      %4620 = vmax.xlane.f32.xlu0 %v4619
      %v4621 = vpop.xlane.xlu0 %4620
      %v4622 = vsel %vm1278, %v4236, -inf
      %4623 = vmax.xlane.f32.xlu0 %v4622
      %v4624 = vpop.xlane.xlu0 %4623
      %v4625 = vsel %vm1278, %v4370, -inf
      %4626 = vmax.xlane.f32.xlu0 %v4625
      %v4627 = vpop.xlane.xlu0 %4626
      %v4628 = vsel %vm1278, %v4375, -inf
      %4629 = vmax.xlane.f32.xlu0 %v4628
      %v4630 = vpop.xlane.xlu0 %4629
      %v4631 = vsel %vm1278, %v4380, -inf
      %4632 = vmax.xlane.f32.xlu0 %v4631
      %v4633 = vpop.xlane.xlu0 %4632
      %v4634 = vsel %vm1278, %v4385, -inf
      %4635 = vmax.xlane.f32.xlu0 %v4634
      %v4636 = vpop.xlane.xlu0 %4635
      %v4637 = vsel %vm1278, %v4390, -inf
      %4638 = vmax.xlane.f32.xlu0 %v4637
      %v4639 = vpop.xlane.xlu0 %4638
      %v4640 = vsel %vm1278, %v4395, -inf
      %4641 = vmax.xlane.f32.xlu0 %v4640
      %v4642 = vpop.xlane.xlu0 %4641
      %v4643 = vsel %vm1278, %v4400, -inf
      %4644 = vmax.xlane.f32.xlu0 %v4643
      %v4645 = vpop.xlane.xlu0 %4644
      %v4646 = vsel %vm1278, %v4405, -inf
      %4647 = vmax.xlane.f32.xlu0 %v4646
      %v4648 = vpop.xlane.xlu0 %4647
      %v4649 = vsel %vm1278, %v4539, -inf
      %4650 = vmax.xlane.f32.xlu0 %v4649
      %v4651 = vpop.xlane.xlu0 %4650
      %v4652 = vsel %vm1278, %v4544, -inf
      %4653 = vmax.xlane.f32.xlu0 %v4652
      %v4654 = vpop.xlane.xlu0 %4653
      %v4655 = vsel %vm1278, %v4549, -inf
      %4656 = vmax.xlane.f32.xlu0 %v4655
      %v4657 = vpop.xlane.xlu0 %4656
      %v4658 = vsel %vm1278, %v4554, -inf
      %4659 = vmax.xlane.f32.xlu0 %v4658
      %v4660 = vpop.xlane.xlu0 %4659
      %v4661 = vsel %vm1278, %v4559, -inf
      %4662 = vmax.xlane.f32.xlu0 %v4661
      %v4663 = vpop.xlane.xlu0 %4662
      %v4664 = vsel %vm1278, %v4564, -inf
      %4665 = vmax.xlane.f32.xlu0 %v4664
      %v4666 = vpop.xlane.xlu0 %4665
      %v4667 = vsel %vm1278, %v4569, -inf
      %4668 = vmax.xlane.f32.xlu0 %v4667
      %v4669 = vpop.xlane.xlu0 %4668
      %v4670 = vsel %vm1278, %v4574, -inf
      %4671 = vmax.xlane.f32.xlu0 %v4670
      %v4672 = vpop.xlane.xlu0 %4671
      %v4673 = vsub.f32 %v4032, %v4579
      %v4674 = vsub.f32 %v4037, %v4582
      %v4675 = vsub.f32 %v4042, %v4585
      %v4676 = vsub.f32 %v4047, %v4588
      %v4677 = vsub.f32 %v4052, %v4591
      %v4678 = vsub.f32 %v4057, %v4594
      %v4679 = vsub.f32 %v4062, %v4597
      %v4680 = vsub.f32 %v4067, %v4600
      %v4681 = vsub.f32 %v4201, %v4603
      %v4682 = vsub.f32 %v4206, %v4606
      %v4683 = vsub.f32 %v4211, %v4609
      %v4684 = vsub.f32 %v4216, %v4612
      %v4685 = vsub.f32 %v4221, %v4615
      %v4686 = vsub.f32 %v4226, %v4618
      %v4687 = vsub.f32 %v4231, %v4621
      %v4688 = vsub.f32 %v4236, %v4624
      %v4689 = vsub.f32 %v4370, %v4627
      %v4690 = vsub.f32 %v4375, %v4630
      %v4691 = vsub.f32 %v4380, %v4633
      %v4692 = vsub.f32 %v4385, %v4636
      %v4693 = vsub.f32 %v4390, %v4639
      %v4694 = vsub.f32 %v4395, %v4642
      %v4695 = vsub.f32 %v4400, %v4645
      %v4696 = vsub.f32 %v4405, %v4648
      %v4697 = vsub.f32 %v4539, %v4651
      %v4698 = vsub.f32 %v4544, %v4654
      %v4699 = vsub.f32 %v4549, %v4657
      %v4700 = vsub.f32 %v4554, %v4660
      %v4701 = vsub.f32 %v4559, %v4663
      %v4702 = vsub.f32 %v4564, %v4666
      %v4703 = vsub.f32 %v4569, %v4669
      %v4704 = vsub.f32 %v4574, %v4672
      %v4705 = vmul.f32 %v4673, 1.442695
      %v4706 = vpow.pop %v4705
      %v4707 = vmul.f32 %v4674, 1.442695
      %v4708 = vpow.pop %v4707
      %v4709 = vmul.f32 %v4675, 1.442695
      %v4710 = vpow.pop %v4709
      %v4711 = vmul.f32 %v4676, 1.442695
      %v4712 = vpow.pop %v4711
      %v4713 = vmul.f32 %v4677, 1.442695
      %v4714 = vpow.pop %v4713
      %v4715 = vmul.f32 %v4678, 1.442695
      %v4716 = vpow.pop %v4715
      %v4717 = vmul.f32 %v4679, 1.442695
      %v4718 = vpow.pop %v4717
      %v4719 = vmul.f32 %v4680, 1.442695
      %v4720 = vpow.pop %v4719
      %v4721 = vmul.f32 %v4681, 1.442695
      %v4722 = vpow.pop %v4721
      %v4723 = vmul.f32 %v4682, 1.442695
      %v4724 = vpow.pop %v4723
      %v4725 = vmul.f32 %v4683, 1.442695
      %v4726 = vpow.pop %v4725
      %v4727 = vmul.f32 %v4684, 1.442695
      %v4728 = vpow.pop %v4727
      %v4729 = vmul.f32 %v4685, 1.442695
      %v4730 = vpow.pop %v4729
      %v4731 = vmul.f32 %v4686, 1.442695
      %v4732 = vpow.pop %v4731
      %v4733 = vmul.f32 %v4687, 1.442695
      %v4734 = vpow.pop %v4733
      %v4735 = vmul.f32 %v4688, 1.442695
      %v4736 = vpow.pop %v4735
      %v4737 = vmul.f32 %v4689, 1.442695
      %v4738 = vpow.pop %v4737
      %v4739 = vmul.f32 %v4690, 1.442695
      %v4740 = vpow.pop %v4739
      %v4741 = vmul.f32 %v4691, 1.442695
      %v4742 = vpow.pop %v4741
      %v4743 = vmul.f32 %v4692, 1.442695
      %v4744 = vpow.pop %v4743
      %v4745 = vmul.f32 %v4693, 1.442695
      %v4746 = vpow.pop %v4745
      %v4747 = vmul.f32 %v4694, 1.442695
      %v4748 = vpow.pop %v4747
      %v4749 = vmul.f32 %v4695, 1.442695
      %v4750 = vpow.pop %v4749
      %v4751 = vmul.f32 %v4696, 1.442695
      %v4752 = vpow.pop %v4751
      %v4753 = vmul.f32 %v4697, 1.442695
      %v4754 = vpow.pop %v4753
      %v4755 = vmul.f32 %v4698, 1.442695
      %v4756 = vpow.pop %v4755
      %v4757 = vmul.f32 %v4699, 1.442695
      %v4758 = vpow.pop %v4757
      %v4759 = vmul.f32 %v4700, 1.442695
      %v4760 = vpow.pop %v4759
      %v4761 = vmul.f32 %v4701, 1.442695
      %v4762 = vpow.pop %v4761
      %v4763 = vmul.f32 %v4702, 1.442695
      %v4764 = vpow.pop %v4763
      %v4765 = vmul.f32 %v4703, 1.442695
      %v4766 = vpow.pop %v4765
      %v4767 = vmul.f32 %v4704, 1.442695
      %v4768 = vpow.pop %v4767
      %v4769 = vsel %vm1278, %v4706, 0.0
      %4770 = vadd.xlane.f32.xlu0 %v4769
      %v4771 = vpop.xlane.xlu0 %4770
      %v4772 = vsel %vm1278, %v4708, 0.0
      %4773 = vadd.xlane.f32.xlu0 %v4772
      %v4774 = vpop.xlane.xlu0 %4773
      %v4775 = vsel %vm1278, %v4710, 0.0
      %4776 = vadd.xlane.f32.xlu0 %v4775
      %v4777 = vpop.xlane.xlu0 %4776
      %v4778 = vsel %vm1278, %v4712, 0.0
      %4779 = vadd.xlane.f32.xlu0 %v4778
      %v4780 = vpop.xlane.xlu0 %4779
      %v4781 = vsel %vm1278, %v4714, 0.0
      %4782 = vadd.xlane.f32.xlu0 %v4781
      %v4783 = vpop.xlane.xlu0 %4782
      %v4784 = vsel %vm1278, %v4716, 0.0
      %4785 = vadd.xlane.f32.xlu0 %v4784
      %v4786 = vpop.xlane.xlu0 %4785
      %v4787 = vsel %vm1278, %v4718, 0.0
      %4788 = vadd.xlane.f32.xlu0 %v4787
      %v4789 = vpop.xlane.xlu0 %4788
      %v4790 = vsel %vm1278, %v4720, 0.0
      %4791 = vadd.xlane.f32.xlu0 %v4790
      %v4792 = vpop.xlane.xlu0 %4791
      %v4793 = vsel %vm1278, %v4722, 0.0
      %4794 = vadd.xlane.f32.xlu0 %v4793
      %v4795 = vpop.xlane.xlu0 %4794
      %v4796 = vsel %vm1278, %v4724, 0.0
      %4797 = vadd.xlane.f32.xlu0 %v4796
      %v4798 = vpop.xlane.xlu0 %4797
      %v4799 = vsel %vm1278, %v4726, 0.0
      %4800 = vadd.xlane.f32.xlu0 %v4799
      %v4801 = vpop.xlane.xlu0 %4800
      %v4802 = vsel %vm1278, %v4728, 0.0
      %4803 = vadd.xlane.f32.xlu0 %v4802
      %v4804 = vpop.xlane.xlu0 %4803
      %v4805 = vsel %vm1278, %v4730, 0.0
      %4806 = vadd.xlane.f32.xlu0 %v4805
      %v4807 = vpop.xlane.xlu0 %4806
      %v4808 = vsel %vm1278, %v4732, 0.0
      %4809 = vadd.xlane.f32.xlu0 %v4808
      %v4810 = vpop.xlane.xlu0 %4809
      %v4811 = vsel %vm1278, %v4734, 0.0
      %4812 = vadd.xlane.f32.xlu0 %v4811
      %v4813 = vpop.xlane.xlu0 %4812
      %v4814 = vsel %vm1278, %v4736, 0.0
      %4815 = vadd.xlane.f32.xlu0 %v4814
      %v4816 = vpop.xlane.xlu0 %4815
      %v4817 = vsel %vm1278, %v4738, 0.0
      %4818 = vadd.xlane.f32.xlu0 %v4817
      %v4819 = vpop.xlane.xlu0 %4818
      %v4820 = vsel %vm1278, %v4740, 0.0
      %4821 = vadd.xlane.f32.xlu0 %v4820
      %v4822 = vpop.xlane.xlu0 %4821
      %v4823 = vsel %vm1278, %v4742, 0.0
      %4824 = vadd.xlane.f32.xlu0 %v4823
      %v4825 = vpop.xlane.xlu0 %4824
      %v4826 = vsel %vm1278, %v4744, 0.0
      %4827 = vadd.xlane.f32.xlu0 %v4826
      %v4828 = vpop.xlane.xlu0 %4827
      %v4829 = vsel %vm1278, %v4746, 0.0
      %4830 = vadd.xlane.f32.xlu0 %v4829
      %v4831 = vpop.xlane.xlu0 %4830
      %v4832 = vsel %vm1278, %v4748, 0.0
      %4833 = vadd.xlane.f32.xlu0 %v4832
      %v4834 = vpop.xlane.xlu0 %4833
      %v4835 = vsel %vm1278, %v4750, 0.0
      %4836 = vadd.xlane.f32.xlu0 %v4835
      %v4837 = vpop.xlane.xlu0 %4836
      %v4838 = vsel %vm1278, %v4752, 0.0
      %4839 = vadd.xlane.f32.xlu0 %v4838
      %v4840 = vpop.xlane.xlu0 %4839
      %v4841 = vsel %vm1278, %v4754, 0.0
      %4842 = vadd.xlane.f32.xlu0 %v4841
      %v4843 = vpop.xlane.xlu0 %4842
      %v4844 = vsel %vm1278, %v4756, 0.0
      %4845 = vadd.xlane.f32.xlu0 %v4844
      %v4846 = vpop.xlane.xlu0 %4845
      %v4847 = vsel %vm1278, %v4758, 0.0
      %4848 = vadd.xlane.f32.xlu0 %v4847
      %v4849 = vpop.xlane.xlu0 %4848
      %v4850 = vsel %vm1278, %v4760, 0.0
      %4851 = vadd.xlane.f32.xlu0 %v4850
      %v4852 = vpop.xlane.xlu0 %4851
      %v4853 = vsel %vm1278, %v4762, 0.0
      %4854 = vadd.xlane.f32.xlu0 %v4853
      %v4855 = vpop.xlane.xlu0 %4854
      %v4856 = vsel %vm1278, %v4764, 0.0
      %4857 = vadd.xlane.f32.xlu0 %v4856
      %v4858 = vpop.xlane.xlu0 %4857
      %v4859 = vsel %vm1278, %v4766, 0.0
      %4860 = vadd.xlane.f32.xlu0 %v4859
      %v4861 = vpop.xlane.xlu0 %4860
      %v4862 = vsel %vm1278, %v4768, 0.0
      %4863 = vadd.xlane.f32.xlu0 %v4862
      %v4864 = vpop.xlane.xlu0 %4863
      %v4865 = vrcp.pop %v4771
      %v4866 = vrcp.pop %v4774
      %v4867 = vrcp.pop %v4777
      %v4868 = vrcp.pop %v4780
      %v4869 = vrcp.pop %v4783
      %v4870 = vrcp.pop %v4786
      %v4871 = vrcp.pop %v4789
      %v4872 = vrcp.pop %v4792
      %v4873 = vrcp.pop %v4795
      %v4874 = vrcp.pop %v4798
      %v4875 = vrcp.pop %v4801
      %v4876 = vrcp.pop %v4804
      %v4877 = vrcp.pop %v4807
      %v4878 = vrcp.pop %v4810
      %v4879 = vrcp.pop %v4813
      %v4880 = vrcp.pop %v4816
      %v4881 = vrcp.pop %v4819
      %v4882 = vrcp.pop %v4822
      %v4883 = vrcp.pop %v4825
      %v4884 = vrcp.pop %v4828
      %v4885 = vrcp.pop %v4831
      %v4886 = vrcp.pop %v4834
      %v4887 = vrcp.pop %v4837
      %v4888 = vrcp.pop %v4840
      %v4889 = vrcp.pop %v4843
      %v4890 = vrcp.pop %v4846
      %v4891 = vrcp.pop %v4849
      %v4892 = vrcp.pop %v4852
      %v4893 = vrcp.pop %v4855
      %v4894 = vrcp.pop %v4858
      %v4895 = vrcp.pop %v4861
      %v4896 = vrcp.pop %v4864
      %v4897 = vmul.f32 %v4706, %v4865
      %v4898 = vmul.f32 %v4708, %v4866
      %v4899 = vmul.f32 %v4710, %v4867
      %v4900 = vmul.f32 %v4712, %v4868
      %v4901 = vmul.f32 %v4714, %v4869
      %v4902 = vmul.f32 %v4716, %v4870
      %v4903 = vmul.f32 %v4718, %v4871
      %v4904 = vmul.f32 %v4720, %v4872
      %v4905 = vmul.f32 %v4722, %v4873
      %v4906 = vmul.f32 %v4724, %v4874
      %v4907 = vmul.f32 %v4726, %v4875
      %v4908 = vmul.f32 %v4728, %v4876
      %v4909 = vmul.f32 %v4730, %v4877
      %v4910 = vmul.f32 %v4732, %v4878
      %v4911 = vmul.f32 %v4734, %v4879
      %v4912 = vmul.f32 %v4736, %v4880
      %v4913 = vmul.f32 %v4738, %v4881
      %v4914 = vmul.f32 %v4740, %v4882
      %v4915 = vmul.f32 %v4742, %v4883
      %v4916 = vmul.f32 %v4744, %v4884
      %v4917 = vmul.f32 %v4746, %v4885
      %v4918 = vmul.f32 %v4748, %v4886
      %v4919 = vmul.f32 %v4750, %v4887
      %v4920 = vmul.f32 %v4752, %v4888
      %v4921 = vmul.f32 %v4754, %v4889
      %v4922 = vmul.f32 %v4756, %v4890
      %v4923 = vmul.f32 %v4758, %v4891
      %v4924 = vmul.f32 %v4760, %v4892
      %v4925 = vmul.f32 %v4762, %v4893
      %v4926 = vmul.f32 %v4764, %v4894
      %v4927 = vmul.f32 %v4766, %v4895
      %v4928 = vmul.f32 %v4768, %v4896
      %4929 = vrot.lane.b32.xlu0 %v467, 48
      %v4930 = vpop.permute.xlu0 %4929
      %4931 = vrot.lane.b32.xlu0 %v472, 48
      %v4932 = vpop.permute.xlu0 %4931
      %4933 = vrot.lane.b32.xlu0 %v477, 48
      %v4934 = vpop.permute.xlu0 %4933
      %4935 = vrot.lane.b32.xlu0 %v482, 48
      %v4936 = vpop.permute.xlu0 %4935
      %4937 = vrot.lane.b32.xlu0 %v487, 48
      %v4938 = vpop.permute.xlu0 %4937
      %4939 = vrot.lane.b32.xlu0 %v492, 48
      %v4940 = vpop.permute.xlu0 %4939
      %4941 = vrot.lane.b32.xlu0 %v497, 48
      %v4942 = vpop.permute.xlu0 %4941
      %4943 = vrot.lane.b32.xlu0 %v502, 48
      %v4944 = vpop.permute.xlu0 %4943
      %v4954 = vsel %vm1278, %v4897, 0
      %v4957 = vsel %vm1278, %v4898, 0
      %v4960 = vsel %vm1278, %v4899, 0
      %v4963 = vsel %vm1278, %v4900, 0
      %v4966 = vsel %vm1278, %v4901, 0
      %v4969 = vsel %vm1278, %v4902, 0
      %v4972 = vsel %vm1278, %v4903, 0
      %v4975 = vsel %vm1278, %v4904, 0
      %4977 = vmatprep.subr.mxu0 0.0
      %4978 = vmatpush1.msra.mxu0 0.0
      %4979 = vmatprep.subr.mxu0 0.0
      %4980 = vmatpush1.msra.mxu0 0.0
      %4981 = vmatprep.subr.mxu0 0.0
      %4982 = vmatpush1.msra.mxu0 0.0
      %4983 = vmatprep.subr.mxu0 0.0
      %4984 = vmatpush1.msra.mxu0 0.0
      %4985 = vmatprep.subr.mxu0 0.0
      %4986 = vmatpush1.msra.mxu0 0.0
      %4987 = vmatprep.subr.mxu0 0.0
      %4988 = vmatpush1.msra.mxu0 0.0
      %4989 = vmatprep.subr.mxu0 0.0
      %4990 = vmatpush1.msra.mxu0 0.0
      %4991 = vmatprep.subr.mxu0 0.0
      %4992 = vmatpush1.msra.mxu0 0.0
      %4993 = vmatprep.subr.mxu0 0.0
      %4994 = vmatpush1.msra.mxu0 %v4944
      %4995 = vmatprep.subr.mxu0 0.0
      %4996 = vmatpush1.msra.mxu0 %v4942
      %4997 = vmatprep.subr.mxu0 0.0
      %4998 = vmatpush1.msra.mxu0 %v4940
      %4999 = vmatprep.subr.mxu0 0.0
      %5000 = vmatpush1.msra.mxu0 %v4938
      %5001 = vmatprep.subr.mxu0 0.0
      %5002 = vmatpush1.msra.mxu0 %v4936
      %5003 = vmatprep.subr.mxu0 0.0
      %5004 = vmatpush1.msra.mxu0 %v4934
      %5005 = vmatprep.subr.mxu0 0.0
      %5006 = vmatpush1.msra.mxu0 %v4932
      %5007 = vmatprep.subr.mxu0 0.0
      %5008 = vmatpush1.msra.mxu0 %v4930
      %5009 = vmatprep.subr.mxu0 0.0
      %5010 = vmatpush2.msra.mxu0 0.0
      %5011 = vmatprep.subr.mxu0 0.0
      %5012 = vmatpush2.msra.mxu0 0.0
      %5013 = vmatprep.subr.mxu0 0.0
      %5014 = vmatpush2.msra.mxu0 0.0
      %5015 = vmatprep.subr.mxu0 0.0
      %5016 = vmatpush2.msra.mxu0 0.0
      %5017 = vmatprep.subr.mxu0 0.0
      %5018 = vmatpush2.msra.mxu0 0.0
      %5019 = vmatprep.subr.mxu0 0.0
      %5020 = vmatpush2.msra.mxu0 0.0
      %5021 = vmatprep.subr.mxu0 0.0
      %5022 = vmatpush2.msra.mxu0 0.0
      %5023 = vmatprep.subr.mxu0 0.0
      %5024 = vmatpush2.msra.mxu0 0.0
      %5025 = vmatprep.subr.mxu0 0.0
      %5026 = vmatpush2.msra.mxu0 0.0
      %5027 = vmatprep.subr.mxu0 0.0
      %5028 = vmatpush2.msra.mxu0 0.0
      %5029 = vmatprep.subr.mxu0 0.0
      %5030 = vmatpush2.msra.mxu0 0.0
      %5031 = vmatprep.subr.mxu0 0.0
      %5032 = vmatpush2.msra.mxu0 0.0
      %5033 = vmatprep.subr.mxu0 0.0
      %5034 = vmatpush2.msra.mxu0 0.0
      %5035 = vmatprep.subr.mxu0 0.0
      %5036 = vmatpush2.msra.mxu0 0.0
      %5037 = vmatprep.subr.mxu0 0.0
      %5038 = vmatpush2.msra.mxu0 0.0
      %5039 = vmatprep.subr.mxu0 0.0
      %5040 = vmatpush2.msra.mxu0 0.0
      %5041 = vmatprep.mubr.f32.mxu0 0.0
      %5042 = vmatmul.mubr.f32.gmra.mxu0 %v4954
      %v5043 = vpop.f32.mrf.mxu0
      %v5044 = vadd.f32 0.0, %v5043
      %v5045 = vpop.f32.mrf.mxu0
      %5046 = vmatprep.mubr.f32.mxu0 0.0
      %5047 = vmatmul.mubr.f32.gmra.mxu0 %v4957
      %v5048 = vpop.f32.mrf.mxu0
      %v5049 = vadd.f32 0.0, %v5048
      %v5050 = vpop.f32.mrf.mxu0
      %5051 = vmatprep.mubr.f32.mxu0 0.0
      %5052 = vmatmul.mubr.f32.gmra.mxu0 %v4960
      %v5053 = vpop.f32.mrf.mxu0
      %v5054 = vadd.f32 0.0, %v5053
      %v5055 = vpop.f32.mrf.mxu0
      %5056 = vmatprep.mubr.f32.mxu0 0.0
      %5057 = vmatmul.mubr.f32.gmra.mxu0 %v4963
      %v5058 = vpop.f32.mrf.mxu0
      %v5059 = vadd.f32 0.0, %v5058
      %v5060 = vpop.f32.mrf.mxu0
      %5061 = vmatprep.mubr.f32.mxu0 0.0
      %5062 = vmatmul.mubr.f32.gmra.mxu0 %v4966
      %v5063 = vpop.f32.mrf.mxu0
      %v5064 = vadd.f32 0.0, %v5063
      %v5065 = vpop.f32.mrf.mxu0
      %5066 = vmatprep.mubr.f32.mxu0 0.0
      %5067 = vmatmul.mubr.f32.gmra.mxu0 %v4969
      %v5068 = vpop.f32.mrf.mxu0
      %v5069 = vadd.f32 0.0, %v5068
      %v5070 = vpop.f32.mrf.mxu0
      %5071 = vmatprep.mubr.f32.mxu0 0.0
      %5072 = vmatmul.mubr.f32.gmra.mxu0 %v4972
      %v5073 = vpop.f32.mrf.mxu0
      %v5074 = vadd.f32 0.0, %v5073
      %v5075 = vpop.f32.mrf.mxu0
      %5076 = vmatprep.mubr.f32.mxu0 0.0
      %5077 = vmatmul.mubr.f32.gmra.mxu0 %v4975
      %v5078 = vpop.f32.mrf.mxu0
      %v5079 = vadd.f32 0.0, %v5078
      %v5080 = vpop.f32.mrf.mxu0
      %5081 = vdwg.mxu0
      %5082 = vrot.lane.b32.xlu0 %v507, 48
      %v5083 = vpop.permute.xlu0 %5082
      %5084 = vrot.lane.b32.xlu0 %v512, 48
      %v5085 = vpop.permute.xlu0 %5084
      %5086 = vrot.lane.b32.xlu0 %v517, 48
      %v5087 = vpop.permute.xlu0 %5086
      %5088 = vrot.lane.b32.xlu0 %v522, 48
      %v5089 = vpop.permute.xlu0 %5088
      %5090 = vrot.lane.b32.xlu0 %v527, 48
      %v5091 = vpop.permute.xlu0 %5090
      %5092 = vrot.lane.b32.xlu0 %v532, 48
      %v5093 = vpop.permute.xlu0 %5092
      %5094 = vrot.lane.b32.xlu0 %v537, 48
      %v5095 = vpop.permute.xlu0 %5094
      %5096 = vrot.lane.b32.xlu0 %v542, 48
      %v5097 = vpop.permute.xlu0 %5096
      %v5107 = vsel %vm1278, %v4905, 0
      %v5110 = vsel %vm1278, %v4906, 0
      %v5113 = vsel %vm1278, %v4907, 0
      %v5116 = vsel %vm1278, %v4908, 0
      %v5119 = vsel %vm1278, %v4909, 0
      %v5122 = vsel %vm1278, %v4910, 0
      %v5125 = vsel %vm1278, %v4911, 0
      %v5128 = vsel %vm1278, %v4912, 0
      %5130 = vmatprep.subr.mxu0 0.0
      %5131 = vmatpush1.msra.mxu0 0.0
      %5132 = vmatprep.subr.mxu0 0.0
      %5133 = vmatpush1.msra.mxu0 0.0
      %5134 = vmatprep.subr.mxu0 0.0
      %5135 = vmatpush1.msra.mxu0 0.0
      %5136 = vmatprep.subr.mxu0 0.0
      %5137 = vmatpush1.msra.mxu0 0.0
      %5138 = vmatprep.subr.mxu0 0.0
      %5139 = vmatpush1.msra.mxu0 0.0
      %5140 = vmatprep.subr.mxu0 0.0
      %5141 = vmatpush1.msra.mxu0 0.0
      %5142 = vmatprep.subr.mxu0 0.0
      %5143 = vmatpush1.msra.mxu0 0.0
      %5144 = vmatprep.subr.mxu0 0.0
      %5145 = vmatpush1.msra.mxu0 0.0
      %5146 = vmatprep.subr.mxu0 0.0
      %5147 = vmatpush1.msra.mxu0 %v5097
      %5148 = vmatprep.subr.mxu0 0.0
      %5149 = vmatpush1.msra.mxu0 %v5095
      %5150 = vmatprep.subr.mxu0 0.0
      %5151 = vmatpush1.msra.mxu0 %v5093
      %5152 = vmatprep.subr.mxu0 0.0
      %5153 = vmatpush1.msra.mxu0 %v5091
      %5154 = vmatprep.subr.mxu0 0.0
      %5155 = vmatpush1.msra.mxu0 %v5089
      %5156 = vmatprep.subr.mxu0 0.0
      %5157 = vmatpush1.msra.mxu0 %v5087
      %5158 = vmatprep.subr.mxu0 0.0
      %5159 = vmatpush1.msra.mxu0 %v5085
      %5160 = vmatprep.subr.mxu0 0.0
      %5161 = vmatpush1.msra.mxu0 %v5083
      %5162 = vmatprep.subr.mxu0 0.0
      %5163 = vmatpush2.msra.mxu0 0.0
      %5164 = vmatprep.subr.mxu0 0.0
      %5165 = vmatpush2.msra.mxu0 0.0
      %5166 = vmatprep.subr.mxu0 0.0
      %5167 = vmatpush2.msra.mxu0 0.0
      %5168 = vmatprep.subr.mxu0 0.0
      %5169 = vmatpush2.msra.mxu0 0.0
      %5170 = vmatprep.subr.mxu0 0.0
      %5171 = vmatpush2.msra.mxu0 0.0
      %5172 = vmatprep.subr.mxu0 0.0
      %5173 = vmatpush2.msra.mxu0 0.0
      %5174 = vmatprep.subr.mxu0 0.0
      %5175 = vmatpush2.msra.mxu0 0.0
      %5176 = vmatprep.subr.mxu0 0.0
      %5177 = vmatpush2.msra.mxu0 0.0
      %5178 = vmatprep.subr.mxu0 0.0
      %5179 = vmatpush2.msra.mxu0 0.0
      %5180 = vmatprep.subr.mxu0 0.0
      %5181 = vmatpush2.msra.mxu0 0.0
      %5182 = vmatprep.subr.mxu0 0.0
      %5183 = vmatpush2.msra.mxu0 0.0
      %5184 = vmatprep.subr.mxu0 0.0
      %5185 = vmatpush2.msra.mxu0 0.0
      %5186 = vmatprep.subr.mxu0 0.0
      %5187 = vmatpush2.msra.mxu0 0.0
      %5188 = vmatprep.subr.mxu0 0.0
      %5189 = vmatpush2.msra.mxu0 0.0
      %5190 = vmatprep.subr.mxu0 0.0
      %5191 = vmatpush2.msra.mxu0 0.0
      %5192 = vmatprep.subr.mxu0 0.0
      %5193 = vmatpush2.msra.mxu0 0.0
      %5194 = vmatprep.mubr.f32.mxu0 0.0
      %5195 = vmatmul.mubr.f32.gmra.mxu0 %v5107
      %v5196 = vpop.f32.mrf.mxu0
      %v5197 = vadd.f32 0.0, %v5196
      %v5198 = vpop.f32.mrf.mxu0
      %5199 = vmatprep.mubr.f32.mxu0 0.0
      %5200 = vmatmul.mubr.f32.gmra.mxu0 %v5110
      %v5201 = vpop.f32.mrf.mxu0
      %v5202 = vadd.f32 0.0, %v5201
      %v5203 = vpop.f32.mrf.mxu0
      %5204 = vmatprep.mubr.f32.mxu0 0.0
      %5205 = vmatmul.mubr.f32.gmra.mxu0 %v5113
      %v5206 = vpop.f32.mrf.mxu0
      %v5207 = vadd.f32 0.0, %v5206
      %v5208 = vpop.f32.mrf.mxu0
      %5209 = vmatprep.mubr.f32.mxu0 0.0
      %5210 = vmatmul.mubr.f32.gmra.mxu0 %v5116
      %v5211 = vpop.f32.mrf.mxu0
      %v5212 = vadd.f32 0.0, %v5211
      %v5213 = vpop.f32.mrf.mxu0
      %5214 = vmatprep.mubr.f32.mxu0 0.0
      %5215 = vmatmul.mubr.f32.gmra.mxu0 %v5119
      %v5216 = vpop.f32.mrf.mxu0
      %v5217 = vadd.f32 0.0, %v5216
      %v5218 = vpop.f32.mrf.mxu0
      %5219 = vmatprep.mubr.f32.mxu0 0.0
      %5220 = vmatmul.mubr.f32.gmra.mxu0 %v5122
      %v5221 = vpop.f32.mrf.mxu0
      %v5222 = vadd.f32 0.0, %v5221
      %v5223 = vpop.f32.mrf.mxu0
      %5224 = vmatprep.mubr.f32.mxu0 0.0
      %5225 = vmatmul.mubr.f32.gmra.mxu0 %v5125
      %v5226 = vpop.f32.mrf.mxu0
      %v5227 = vadd.f32 0.0, %v5226
      %v5228 = vpop.f32.mrf.mxu0
      %5229 = vmatprep.mubr.f32.mxu0 0.0
      %5230 = vmatmul.mubr.f32.gmra.mxu0 %v5128
      %v5231 = vpop.f32.mrf.mxu0
      %v5232 = vadd.f32 0.0, %v5231
      %v5233 = vpop.f32.mrf.mxu0
      %5234 = vdwg.mxu0
      %5235 = vrot.lane.b32.xlu0 %v547, 48
      %v5236 = vpop.permute.xlu0 %5235
      %5237 = vrot.lane.b32.xlu0 %v552, 48
      %v5238 = vpop.permute.xlu0 %5237
      %5239 = vrot.lane.b32.xlu0 %v557, 48
      %v5240 = vpop.permute.xlu0 %5239
      %5241 = vrot.lane.b32.xlu0 %v562, 48
      %v5242 = vpop.permute.xlu0 %5241
      %5243 = vrot.lane.b32.xlu0 %v567, 48
      %v5244 = vpop.permute.xlu0 %5243
      %5245 = vrot.lane.b32.xlu0 %v572, 48
      %v5246 = vpop.permute.xlu0 %5245
      %5247 = vrot.lane.b32.xlu0 %v577, 48
      %v5248 = vpop.permute.xlu0 %5247
      %5249 = vrot.lane.b32.xlu0 %v582, 48
      %v5250 = vpop.permute.xlu0 %5249
      %v5260 = vsel %vm1278, %v4913, 0
      %v5263 = vsel %vm1278, %v4914, 0
      %v5266 = vsel %vm1278, %v4915, 0
      %v5269 = vsel %vm1278, %v4916, 0
      %v5272 = vsel %vm1278, %v4917, 0
      %v5275 = vsel %vm1278, %v4918, 0
      %v5278 = vsel %vm1278, %v4919, 0
      %v5281 = vsel %vm1278, %v4920, 0
      %5283 = vmatprep.subr.mxu0 0.0
      %5284 = vmatpush1.msra.mxu0 0.0
      %5285 = vmatprep.subr.mxu0 0.0
      %5286 = vmatpush1.msra.mxu0 0.0
      %5287 = vmatprep.subr.mxu0 0.0
      %5288 = vmatpush1.msra.mxu0 0.0
      %5289 = vmatprep.subr.mxu0 0.0
      %5290 = vmatpush1.msra.mxu0 0.0
      %5291 = vmatprep.subr.mxu0 0.0
      %5292 = vmatpush1.msra.mxu0 0.0
      %5293 = vmatprep.subr.mxu0 0.0
      %5294 = vmatpush1.msra.mxu0 0.0
      %5295 = vmatprep.subr.mxu0 0.0
      %5296 = vmatpush1.msra.mxu0 0.0
      %5297 = vmatprep.subr.mxu0 0.0
      %5298 = vmatpush1.msra.mxu0 0.0
      %5299 = vmatprep.subr.mxu0 0.0
      %5300 = vmatpush1.msra.mxu0 %v5250
      %5301 = vmatprep.subr.mxu0 0.0
      %5302 = vmatpush1.msra.mxu0 %v5248
      %5303 = vmatprep.subr.mxu0 0.0
      %5304 = vmatpush1.msra.mxu0 %v5246
      %5305 = vmatprep.subr.mxu0 0.0
      %5306 = vmatpush1.msra.mxu0 %v5244
      %5307 = vmatprep.subr.mxu0 0.0
      %5308 = vmatpush1.msra.mxu0 %v5242
      %5309 = vmatprep.subr.mxu0 0.0
      %5310 = vmatpush1.msra.mxu0 %v5240
      %5311 = vmatprep.subr.mxu0 0.0
      %5312 = vmatpush1.msra.mxu0 %v5238
      %5313 = vmatprep.subr.mxu0 0.0
      %5314 = vmatpush1.msra.mxu0 %v5236
      %5315 = vmatprep.subr.mxu0 0.0
      %5316 = vmatpush2.msra.mxu0 0.0
      %5317 = vmatprep.subr.mxu0 0.0
      %5318 = vmatpush2.msra.mxu0 0.0
      %5319 = vmatprep.subr.mxu0 0.0
      %5320 = vmatpush2.msra.mxu0 0.0
      %5321 = vmatprep.subr.mxu0 0.0
      %5322 = vmatpush2.msra.mxu0 0.0
      %5323 = vmatprep.subr.mxu0 0.0
      %5324 = vmatpush2.msra.mxu0 0.0
      %5325 = vmatprep.subr.mxu0 0.0
      %5326 = vmatpush2.msra.mxu0 0.0
      %5327 = vmatprep.subr.mxu0 0.0
      %5328 = vmatpush2.msra.mxu0 0.0
      %5329 = vmatprep.subr.mxu0 0.0
      %5330 = vmatpush2.msra.mxu0 0.0
      %5331 = vmatprep.subr.mxu0 0.0
      %5332 = vmatpush2.msra.mxu0 0.0
      %5333 = vmatprep.subr.mxu0 0.0
      %5334 = vmatpush2.msra.mxu0 0.0
      %5335 = vmatprep.subr.mxu0 0.0
      %5336 = vmatpush2.msra.mxu0 0.0
      %5337 = vmatprep.subr.mxu0 0.0
      %5338 = vmatpush2.msra.mxu0 0.0
      %5339 = vmatprep.subr.mxu0 0.0
      %5340 = vmatpush2.msra.mxu0 0.0
      %5341 = vmatprep.subr.mxu0 0.0
      %5342 = vmatpush2.msra.mxu0 0.0
      %5343 = vmatprep.subr.mxu0 0.0
      %5344 = vmatpush2.msra.mxu0 0.0
      %5345 = vmatprep.subr.mxu0 0.0
      %5346 = vmatpush2.msra.mxu0 0.0
      %5347 = vmatprep.mubr.f32.mxu0 0.0
      %5348 = vmatmul.mubr.f32.gmra.mxu0 %v5260
      %v5349 = vpop.f32.mrf.mxu0
      %v5350 = vadd.f32 0.0, %v5349
      %v5351 = vpop.f32.mrf.mxu0
      %5352 = vmatprep.mubr.f32.mxu0 0.0
      %5353 = vmatmul.mubr.f32.gmra.mxu0 %v5263
      %v5354 = vpop.f32.mrf.mxu0
      %v5355 = vadd.f32 0.0, %v5354
      %v5356 = vpop.f32.mrf.mxu0
      %5357 = vmatprep.mubr.f32.mxu0 0.0
      %5358 = vmatmul.mubr.f32.gmra.mxu0 %v5266
      %v5359 = vpop.f32.mrf.mxu0
      %v5360 = vadd.f32 0.0, %v5359
      %v5361 = vpop.f32.mrf.mxu0
      %5362 = vmatprep.mubr.f32.mxu0 0.0
      %5363 = vmatmul.mubr.f32.gmra.mxu0 %v5269
      %v5364 = vpop.f32.mrf.mxu0
      %v5365 = vadd.f32 0.0, %v5364
      %v5366 = vpop.f32.mrf.mxu0
      %5367 = vmatprep.mubr.f32.mxu0 0.0
      %5368 = vmatmul.mubr.f32.gmra.mxu0 %v5272
      %v5369 = vpop.f32.mrf.mxu0
      %v5370 = vadd.f32 0.0, %v5369
      %v5371 = vpop.f32.mrf.mxu0
      %5372 = vmatprep.mubr.f32.mxu0 0.0
      %5373 = vmatmul.mubr.f32.gmra.mxu0 %v5275
      %v5374 = vpop.f32.mrf.mxu0
      %v5375 = vadd.f32 0.0, %v5374
      %v5376 = vpop.f32.mrf.mxu0
      %5377 = vmatprep.mubr.f32.mxu0 0.0
      %5378 = vmatmul.mubr.f32.gmra.mxu0 %v5278
      %v5379 = vpop.f32.mrf.mxu0
      %v5380 = vadd.f32 0.0, %v5379
      %v5381 = vpop.f32.mrf.mxu0
      %5382 = vmatprep.mubr.f32.mxu0 0.0
      %5383 = vmatmul.mubr.f32.gmra.mxu0 %v5281
      %v5384 = vpop.f32.mrf.mxu0
      %v5385 = vadd.f32 0.0, %v5384
      %v5386 = vpop.f32.mrf.mxu0
      %5387 = vdwg.mxu0
      %5388 = vrot.lane.b32.xlu0 %v587, 48
      %v5389 = vpop.permute.xlu0 %5388
      %5390 = vrot.lane.b32.xlu0 %v592, 48
      %v5391 = vpop.permute.xlu0 %5390
      %5392 = vrot.lane.b32.xlu0 %v597, 48
      %v5393 = vpop.permute.xlu0 %5392
      %5394 = vrot.lane.b32.xlu0 %v602, 48
      %v5395 = vpop.permute.xlu0 %5394
      %5396 = vrot.lane.b32.xlu0 %v607, 48
      %v5397 = vpop.permute.xlu0 %5396
      %5398 = vrot.lane.b32.xlu0 %v612, 48
      %v5399 = vpop.permute.xlu0 %5398
      %5400 = vrot.lane.b32.xlu0 %v617, 48
      %v5401 = vpop.permute.xlu0 %5400
      %5402 = vrot.lane.b32.xlu0 %v622, 48
      %v5403 = vpop.permute.xlu0 %5402
      %v5413 = vsel %vm1278, %v4921, 0
      %v5416 = vsel %vm1278, %v4922, 0
      %v5419 = vsel %vm1278, %v4923, 0
      %v5422 = vsel %vm1278, %v4924, 0
      %v5425 = vsel %vm1278, %v4925, 0
      %v5428 = vsel %vm1278, %v4926, 0
      %v5431 = vsel %vm1278, %v4927, 0
      %v5434 = vsel %vm1278, %v4928, 0
      %5436 = vmatprep.subr.mxu0 0.0
      %5437 = vmatpush1.msra.mxu0 0.0
      %5438 = vmatprep.subr.mxu0 0.0
      %5439 = vmatpush1.msra.mxu0 0.0
      %5440 = vmatprep.subr.mxu0 0.0
      %5441 = vmatpush1.msra.mxu0 0.0
      %5442 = vmatprep.subr.mxu0 0.0
      %5443 = vmatpush1.msra.mxu0 0.0
      %5444 = vmatprep.subr.mxu0 0.0
      %5445 = vmatpush1.msra.mxu0 0.0
      %5446 = vmatprep.subr.mxu0 0.0
      %5447 = vmatpush1.msra.mxu0 0.0
      %5448 = vmatprep.subr.mxu0 0.0
      %5449 = vmatpush1.msra.mxu0 0.0
      %5450 = vmatprep.subr.mxu0 0.0
      %5451 = vmatpush1.msra.mxu0 0.0
      %5452 = vmatprep.subr.mxu0 0.0
      %5453 = vmatpush1.msra.mxu0 %v5403
      %5454 = vmatprep.subr.mxu0 0.0
      %5455 = vmatpush1.msra.mxu0 %v5401
      %5456 = vmatprep.subr.mxu0 0.0
      %5457 = vmatpush1.msra.mxu0 %v5399
      %5458 = vmatprep.subr.mxu0 0.0
      %5459 = vmatpush1.msra.mxu0 %v5397
      %5460 = vmatprep.subr.mxu0 0.0
      %5461 = vmatpush1.msra.mxu0 %v5395
      %5462 = vmatprep.subr.mxu0 0.0
      %5463 = vmatpush1.msra.mxu0 %v5393
      %5464 = vmatprep.subr.mxu0 0.0
      %5465 = vmatpush1.msra.mxu0 %v5391
      %5466 = vmatprep.subr.mxu0 0.0
      %5467 = vmatpush1.msra.mxu0 %v5389
      %5468 = vmatprep.subr.mxu0 0.0
      %5469 = vmatpush2.msra.mxu0 0.0
      %5470 = vmatprep.subr.mxu0 0.0
      %5471 = vmatpush2.msra.mxu0 0.0
      %5472 = vmatprep.subr.mxu0 0.0
      %5473 = vmatpush2.msra.mxu0 0.0
      %5474 = vmatprep.subr.mxu0 0.0
      %5475 = vmatpush2.msra.mxu0 0.0
      %5476 = vmatprep.subr.mxu0 0.0
      %5477 = vmatpush2.msra.mxu0 0.0
      %5478 = vmatprep.subr.mxu0 0.0
      %5479 = vmatpush2.msra.mxu0 0.0
      %5480 = vmatprep.subr.mxu0 0.0
      %5481 = vmatpush2.msra.mxu0 0.0
      %5482 = vmatprep.subr.mxu0 0.0
      %5483 = vmatpush2.msra.mxu0 0.0
      %5484 = vmatprep.subr.mxu0 0.0
      %5485 = vmatpush2.msra.mxu0 0.0
      %5486 = vmatprep.subr.mxu0 0.0
      %5487 = vmatpush2.msra.mxu0 0.0
      %5488 = vmatprep.subr.mxu0 0.0
      %5489 = vmatpush2.msra.mxu0 0.0
      %5490 = vmatprep.subr.mxu0 0.0
      %5491 = vmatpush2.msra.mxu0 0.0
      %5492 = vmatprep.subr.mxu0 0.0
      %5493 = vmatpush2.msra.mxu0 0.0
      %5494 = vmatprep.subr.mxu0 0.0
      %5495 = vmatpush2.msra.mxu0 0.0
      %5496 = vmatprep.subr.mxu0 0.0
      %5497 = vmatpush2.msra.mxu0 0.0
      %5498 = vmatprep.subr.mxu0 0.0
      %5499 = vmatpush2.msra.mxu0 0.0
      %5500 = vmatprep.mubr.f32.mxu0 0.0
      %5501 = vmatmul.mubr.f32.gmra.mxu0 %v5413
      %v5502 = vpop.f32.mrf.mxu0
      %v5503 = vadd.f32 0.0, %v5502
      %v5504 = vpop.f32.mrf.mxu0
      %5505 = vmatprep.mubr.f32.mxu0 0.0
      %5506 = vmatmul.mubr.f32.gmra.mxu0 %v5416
      %v5507 = vpop.f32.mrf.mxu0
      %v5508 = vadd.f32 0.0, %v5507
      %v5509 = vpop.f32.mrf.mxu0
      %5510 = vmatprep.mubr.f32.mxu0 0.0
      %5511 = vmatmul.mubr.f32.gmra.mxu0 %v5419
      %v5512 = vpop.f32.mrf.mxu0
      %v5513 = vadd.f32 0.0, %v5512
      %v5514 = vpop.f32.mrf.mxu0
      %5515 = vmatprep.mubr.f32.mxu0 0.0
      %5516 = vmatmul.mubr.f32.gmra.mxu0 %v5422
      %v5517 = vpop.f32.mrf.mxu0
      %v5518 = vadd.f32 0.0, %v5517
      %v5519 = vpop.f32.mrf.mxu0
      %5520 = vmatprep.mubr.f32.mxu0 0.0
      %5521 = vmatmul.mubr.f32.gmra.mxu0 %v5425
      %v5522 = vpop.f32.mrf.mxu0
      %v5523 = vadd.f32 0.0, %v5522
      %v5524 = vpop.f32.mrf.mxu0
      %5525 = vmatprep.mubr.f32.mxu0 0.0
      %5526 = vmatmul.mubr.f32.gmra.mxu0 %v5428
      %v5527 = vpop.f32.mrf.mxu0
      %v5528 = vadd.f32 0.0, %v5527
      %v5529 = vpop.f32.mrf.mxu0
      %5530 = vmatprep.mubr.f32.mxu0 0.0
      %5531 = vmatmul.mubr.f32.gmra.mxu0 %v5431
      %v5532 = vpop.f32.mrf.mxu0
      %v5533 = vadd.f32 0.0, %v5532
      %v5534 = vpop.f32.mrf.mxu0
      %5535 = vmatprep.mubr.f32.mxu0 0.0
      %5536 = vmatmul.mubr.f32.gmra.mxu0 %v5434
      %v5537 = vpop.f32.mrf.mxu0
      %v5538 = vadd.f32 0.0, %v5537
      %v5539 = vpop.f32.mrf.mxu0
      %5540 = vdwg.mxu0
      %s5541 = scalar_lea.vmem %s3, 192
      %v5542 = vld [vmem:[%s5541] sm:$0xff]
      %v5543 = vld [vmem:[%s5541 + $0x8] sm:$0xff]
      %v5544 = vld [vmem:[%s5541 + $0x10] sm:$0xff]
      %v5545 = vld [vmem:[%s5541 + $0x18] sm:$0xff]
      %v5546 = vld [vmem:[%s5541 + $0x20] sm:$0xff]
      %v5547 = vld [vmem:[%s5541 + $0x28] sm:$0xff]
      %v5548 = vld [vmem:[%s5541 + $0x30] sm:$0xff]
      %v5549 = vld [vmem:[%s5541 + $0x38] sm:$0xff]
      %5550 = vrot.lane.b32.xlu0 %v467, 104
      %v5551 = vpop.permute.xlu0 %5550
      %5552 = vrot.lane.b32.xlu0 %v472, 104
      %v5553 = vpop.permute.xlu0 %5552
      %5554 = vrot.lane.b32.xlu0 %v477, 104
      %v5555 = vpop.permute.xlu0 %5554
      %5556 = vrot.lane.b32.xlu0 %v482, 104
      %v5557 = vpop.permute.xlu0 %5556
      %5558 = vrot.lane.b32.xlu0 %v487, 104
      %v5559 = vpop.permute.xlu0 %5558
      %5560 = vrot.lane.b32.xlu0 %v492, 104
      %v5561 = vpop.permute.xlu0 %5560
      %5562 = vrot.lane.b32.xlu0 %v497, 104
      %v5563 = vpop.permute.xlu0 %5562
      %5564 = vrot.lane.b32.xlu0 %v502, 104
      %v5565 = vpop.permute.xlu0 %5564
      %5566 = vrot.lane.b32.xlu0 %v467, 72
      %v5567 = vpop.permute.xlu0 %5566
      %5568 = vrot.lane.b32.xlu0 %v472, 72
      %v5569 = vpop.permute.xlu0 %5568
      %5570 = vrot.lane.b32.xlu0 %v477, 72
      %v5571 = vpop.permute.xlu0 %5570
      %5572 = vrot.lane.b32.xlu0 %v482, 72
      %v5573 = vpop.permute.xlu0 %5572
      %5574 = vrot.lane.b32.xlu0 %v487, 72
      %v5575 = vpop.permute.xlu0 %5574
      %5576 = vrot.lane.b32.xlu0 %v492, 72
      %v5577 = vpop.permute.xlu0 %5576
      %5578 = vrot.lane.b32.xlu0 %v497, 72
      %v5579 = vpop.permute.xlu0 %5578
      %5580 = vrot.lane.b32.xlu0 %v502, 72
      %v5581 = vpop.permute.xlu0 %5580
      %v5582 = vsel %vm657, %v5551, 0
      %v5584 = vsel %vm657, %v5553, 0
      %v5586 = vsel %vm657, %v5555, 0
      %v5588 = vsel %vm657, %v5557, 0
      %v5590 = vsel %vm657, %v5559, 0
      %v5592 = vsel %vm657, %v5561, 0
      %v5594 = vsel %vm657, %v5563, 0
      %v5596 = vsel %vm657, %v5565, 0
      %v5598 = vsel %vm657, %v5567, 0
      %v5600 = vsel %vm657, %v5569, 0
      %v5602 = vsel %vm657, %v5571, 0
      %v5604 = vsel %vm657, %v5573, 0
      %v5606 = vsel %vm657, %v5575, 0
      %v5608 = vsel %vm657, %v5577, 0
      %v5610 = vsel %vm657, %v5579, 0
      %v5612 = vsel %vm657, %v5581, 0
      %5614 = vmatprep.subr.mxu0 0.0
      %5615 = vmatpush1.xpose.msra.mxu0 0.0
      %5616 = vmatprep.subr.mxu0 0.0
      %5617 = vmatpush1.xpose.msra.mxu0 0.0
      %5618 = vmatprep.subr.mxu0 0.0
      %5619 = vmatpush1.xpose.msra.mxu0 0.0
      %5620 = vmatprep.subr.mxu0 0.0
      %5621 = vmatpush1.xpose.msra.mxu0 0.0
      %5622 = vmatprep.subr.mxu0 0.0
      %5623 = vmatpush1.xpose.msra.mxu0 0.0
      %5624 = vmatprep.subr.mxu0 0.0
      %5625 = vmatpush1.xpose.msra.mxu0 0.0
      %5626 = vmatprep.subr.mxu0 0.0
      %5627 = vmatpush1.xpose.msra.mxu0 0.0
      %5628 = vmatprep.subr.mxu0 0.0
      %5629 = vmatpush1.xpose.msra.mxu0 0.0
      %5630 = vmatprep.subr.mxu0 0.0
      %5631 = vmatpush1.xpose.msra.mxu0 %v5612
      %5632 = vmatprep.subr.mxu0 0.0
      %5633 = vmatpush1.xpose.msra.mxu0 %v5610
      %5634 = vmatprep.subr.mxu0 0.0
      %5635 = vmatpush1.xpose.msra.mxu0 %v5608
      %5636 = vmatprep.subr.mxu0 0.0
      %5637 = vmatpush1.xpose.msra.mxu0 %v5606
      %5638 = vmatprep.subr.mxu0 0.0
      %5639 = vmatpush1.xpose.msra.mxu0 %v5604
      %5640 = vmatprep.subr.mxu0 0.0
      %5641 = vmatpush1.xpose.msra.mxu0 %v5602
      %5642 = vmatprep.subr.mxu0 0.0
      %5643 = vmatpush1.xpose.msra.mxu0 %v5600
      %5644 = vmatprep.subr.mxu0 0.0
      %5645 = vmatpush1.xpose.msra.mxu0 %v5598
      %5646 = vmatprep.subr.mxu0 0.0
      %5647 = vmatpush2.xpose.msra.mxu0 0.0
      %5648 = vmatprep.subr.mxu0 0.0
      %5649 = vmatpush2.xpose.msra.mxu0 0.0
      %5650 = vmatprep.subr.mxu0 0.0
      %5651 = vmatpush2.xpose.msra.mxu0 0.0
      %5652 = vmatprep.subr.mxu0 0.0
      %5653 = vmatpush2.xpose.msra.mxu0 0.0
      %5654 = vmatprep.subr.mxu0 0.0
      %5655 = vmatpush2.xpose.msra.mxu0 0.0
      %5656 = vmatprep.subr.mxu0 0.0
      %5657 = vmatpush2.xpose.msra.mxu0 0.0
      %5658 = vmatprep.subr.mxu0 0.0
      %5659 = vmatpush2.xpose.msra.mxu0 0.0
      %5660 = vmatprep.subr.mxu0 0.0
      %5661 = vmatpush2.xpose.msra.mxu0 0.0
      %5662 = vmatprep.subr.mxu0 0.0
      %5663 = vmatpush2.xpose.msra.mxu0 0.0
      %5664 = vmatprep.subr.mxu0 0.0
      %5665 = vmatpush2.xpose.msra.mxu0 0.0
      %5666 = vmatprep.subr.mxu0 0.0
      %5667 = vmatpush2.xpose.msra.mxu0 0.0
      %5668 = vmatprep.subr.mxu0 0.0
      %5669 = vmatpush2.xpose.msra.mxu0 0.0
      %5670 = vmatprep.subr.mxu0 0.0
      %5671 = vmatpush2.xpose.msra.mxu0 0.0
      %5672 = vmatprep.subr.mxu0 0.0
      %5673 = vmatpush2.xpose.msra.mxu0 0.0
      %5674 = vmatprep.subr.mxu0 0.0
      %5675 = vmatpush2.xpose.msra.mxu0 0.0
      %5676 = vmatprep.subr.mxu0 0.0
      %5677 = vmatpush2.xpose.msra.mxu0 0.0
      %5678 = vmatprep.mubr.f32.mxu0 0.0
      %5679 = vmatmul.mubr.f32.gmra.mxu0 %v5582
      %v5680 = vpop.f32.mrf.mxu0
      %v5681 = vadd.f32 %v5542, %v5680
      %v5682 = vpop.f32.mrf.mxu0
      %5683 = vmatprep.mubr.f32.mxu0 0.0
      %5684 = vmatmul.mubr.f32.gmra.mxu0 %v5584
      %v5685 = vpop.f32.mrf.mxu0
      %v5686 = vadd.f32 %v5543, %v5685
      %v5687 = vpop.f32.mrf.mxu0
      %5688 = vmatprep.mubr.f32.mxu0 0.0
      %5689 = vmatmul.mubr.f32.gmra.mxu0 %v5586
      %v5690 = vpop.f32.mrf.mxu0
      %v5691 = vadd.f32 %v5544, %v5690
      %v5692 = vpop.f32.mrf.mxu0
      %5693 = vmatprep.mubr.f32.mxu0 0.0
      %5694 = vmatmul.mubr.f32.gmra.mxu0 %v5588
      %v5695 = vpop.f32.mrf.mxu0
      %v5696 = vadd.f32 %v5545, %v5695
      %v5697 = vpop.f32.mrf.mxu0
      %5698 = vmatprep.mubr.f32.mxu0 0.0
      %5699 = vmatmul.mubr.f32.gmra.mxu0 %v5590
      %v5700 = vpop.f32.mrf.mxu0
      %v5701 = vadd.f32 %v5546, %v5700
      %v5702 = vpop.f32.mrf.mxu0
      %5703 = vmatprep.mubr.f32.mxu0 0.0
      %5704 = vmatmul.mubr.f32.gmra.mxu0 %v5592
      %v5705 = vpop.f32.mrf.mxu0
      %v5706 = vadd.f32 %v5547, %v5705
      %v5707 = vpop.f32.mrf.mxu0
      %5708 = vmatprep.mubr.f32.mxu0 0.0
      %5709 = vmatmul.mubr.f32.gmra.mxu0 %v5594
      %v5710 = vpop.f32.mrf.mxu0
      %v5711 = vadd.f32 %v5548, %v5710
      %v5712 = vpop.f32.mrf.mxu0
      %5713 = vmatprep.mubr.f32.mxu0 0.0
      %5714 = vmatmul.mubr.f32.gmra.mxu0 %v5596
      %v5715 = vpop.f32.mrf.mxu0
      %v5716 = vadd.f32 %v5549, %v5715
      %v5717 = vpop.f32.mrf.mxu0
      %5718 = vdwg.mxu0
      %5719 = vrot.lane.b32.xlu0 %v507, 104
      %v5720 = vpop.permute.xlu0 %5719
      %5721 = vrot.lane.b32.xlu0 %v512, 104
      %v5722 = vpop.permute.xlu0 %5721
      %5723 = vrot.lane.b32.xlu0 %v517, 104
      %v5724 = vpop.permute.xlu0 %5723
      %5725 = vrot.lane.b32.xlu0 %v522, 104
      %v5726 = vpop.permute.xlu0 %5725
      %5727 = vrot.lane.b32.xlu0 %v527, 104
      %v5728 = vpop.permute.xlu0 %5727
      %5729 = vrot.lane.b32.xlu0 %v532, 104
      %v5730 = vpop.permute.xlu0 %5729
      %5731 = vrot.lane.b32.xlu0 %v537, 104
      %v5732 = vpop.permute.xlu0 %5731
      %5733 = vrot.lane.b32.xlu0 %v542, 104
      %v5734 = vpop.permute.xlu0 %5733
      %5735 = vrot.lane.b32.xlu0 %v507, 72
      %v5736 = vpop.permute.xlu0 %5735
      %5737 = vrot.lane.b32.xlu0 %v512, 72
      %v5738 = vpop.permute.xlu0 %5737
      %5739 = vrot.lane.b32.xlu0 %v517, 72
      %v5740 = vpop.permute.xlu0 %5739
      %5741 = vrot.lane.b32.xlu0 %v522, 72
      %v5742 = vpop.permute.xlu0 %5741
      %5743 = vrot.lane.b32.xlu0 %v527, 72
      %v5744 = vpop.permute.xlu0 %5743
      %5745 = vrot.lane.b32.xlu0 %v532, 72
      %v5746 = vpop.permute.xlu0 %5745
      %5747 = vrot.lane.b32.xlu0 %v537, 72
      %v5748 = vpop.permute.xlu0 %5747
      %5749 = vrot.lane.b32.xlu0 %v542, 72
      %v5750 = vpop.permute.xlu0 %5749
      %v5751 = vsel %vm657, %v5720, 0
      %v5753 = vsel %vm657, %v5722, 0
      %v5755 = vsel %vm657, %v5724, 0
      %v5757 = vsel %vm657, %v5726, 0
      %v5759 = vsel %vm657, %v5728, 0
      %v5761 = vsel %vm657, %v5730, 0
      %v5763 = vsel %vm657, %v5732, 0
      %v5765 = vsel %vm657, %v5734, 0
      %v5767 = vsel %vm657, %v5736, 0
      %v5769 = vsel %vm657, %v5738, 0
      %v5771 = vsel %vm657, %v5740, 0
      %v5773 = vsel %vm657, %v5742, 0
      %v5775 = vsel %vm657, %v5744, 0
      %v5777 = vsel %vm657, %v5746, 0
      %v5779 = vsel %vm657, %v5748, 0
      %v5781 = vsel %vm657, %v5750, 0
      %5783 = vmatprep.subr.mxu0 0.0
      %5784 = vmatpush1.xpose.msra.mxu0 0.0
      %5785 = vmatprep.subr.mxu0 0.0
      %5786 = vmatpush1.xpose.msra.mxu0 0.0
      %5787 = vmatprep.subr.mxu0 0.0
      %5788 = vmatpush1.xpose.msra.mxu0 0.0
      %5789 = vmatprep.subr.mxu0 0.0
      %5790 = vmatpush1.xpose.msra.mxu0 0.0
      %5791 = vmatprep.subr.mxu0 0.0
      %5792 = vmatpush1.xpose.msra.mxu0 0.0
      %5793 = vmatprep.subr.mxu0 0.0
      %5794 = vmatpush1.xpose.msra.mxu0 0.0
      %5795 = vmatprep.subr.mxu0 0.0
      %5796 = vmatpush1.xpose.msra.mxu0 0.0
      %5797 = vmatprep.subr.mxu0 0.0
      %5798 = vmatpush1.xpose.msra.mxu0 0.0
      %5799 = vmatprep.subr.mxu0 0.0
      %5800 = vmatpush1.xpose.msra.mxu0 %v5781
      %5801 = vmatprep.subr.mxu0 0.0
      %5802 = vmatpush1.xpose.msra.mxu0 %v5779
      %5803 = vmatprep.subr.mxu0 0.0
      %5804 = vmatpush1.xpose.msra.mxu0 %v5777
      %5805 = vmatprep.subr.mxu0 0.0
      %5806 = vmatpush1.xpose.msra.mxu0 %v5775
      %5807 = vmatprep.subr.mxu0 0.0
      %5808 = vmatpush1.xpose.msra.mxu0 %v5773
      %5809 = vmatprep.subr.mxu0 0.0
      %5810 = vmatpush1.xpose.msra.mxu0 %v5771
      %5811 = vmatprep.subr.mxu0 0.0
      %5812 = vmatpush1.xpose.msra.mxu0 %v5769
      %5813 = vmatprep.subr.mxu0 0.0
      %5814 = vmatpush1.xpose.msra.mxu0 %v5767
      %5815 = vmatprep.subr.mxu0 0.0
      %5816 = vmatpush2.xpose.msra.mxu0 0.0
      %5817 = vmatprep.subr.mxu0 0.0
      %5818 = vmatpush2.xpose.msra.mxu0 0.0
      %5819 = vmatprep.subr.mxu0 0.0
      %5820 = vmatpush2.xpose.msra.mxu0 0.0
      %5821 = vmatprep.subr.mxu0 0.0
      %5822 = vmatpush2.xpose.msra.mxu0 0.0
      %5823 = vmatprep.subr.mxu0 0.0
      %5824 = vmatpush2.xpose.msra.mxu0 0.0
      %5825 = vmatprep.subr.mxu0 0.0
      %5826 = vmatpush2.xpose.msra.mxu0 0.0
      %5827 = vmatprep.subr.mxu0 0.0
      %5828 = vmatpush2.xpose.msra.mxu0 0.0
      %5829 = vmatprep.subr.mxu0 0.0
      %5830 = vmatpush2.xpose.msra.mxu0 0.0
      %5831 = vmatprep.subr.mxu0 0.0
      %5832 = vmatpush2.xpose.msra.mxu0 0.0
      %5833 = vmatprep.subr.mxu0 0.0
      %5834 = vmatpush2.xpose.msra.mxu0 0.0
      %5835 = vmatprep.subr.mxu0 0.0
      %5836 = vmatpush2.xpose.msra.mxu0 0.0
      %5837 = vmatprep.subr.mxu0 0.0
      %5838 = vmatpush2.xpose.msra.mxu0 0.0
      %5839 = vmatprep.subr.mxu0 0.0
      %5840 = vmatpush2.xpose.msra.mxu0 0.0
      %5841 = vmatprep.subr.mxu0 0.0
      %5842 = vmatpush2.xpose.msra.mxu0 0.0
      %5843 = vmatprep.subr.mxu0 0.0
      %5844 = vmatpush2.xpose.msra.mxu0 0.0
      %5845 = vmatprep.subr.mxu0 0.0
      %5846 = vmatpush2.xpose.msra.mxu0 0.0
      %5847 = vmatprep.mubr.f32.mxu0 0.0
      %5848 = vmatmul.mubr.f32.gmra.mxu0 %v5751
      %v5849 = vpop.f32.mrf.mxu0
      %v5850 = vadd.f32 %v5542, %v5849
      %v5851 = vpop.f32.mrf.mxu0
      %5852 = vmatprep.mubr.f32.mxu0 0.0
      %5853 = vmatmul.mubr.f32.gmra.mxu0 %v5753
      %v5854 = vpop.f32.mrf.mxu0
      %v5855 = vadd.f32 %v5543, %v5854
      %v5856 = vpop.f32.mrf.mxu0
      %5857 = vmatprep.mubr.f32.mxu0 0.0
      %5858 = vmatmul.mubr.f32.gmra.mxu0 %v5755
      %v5859 = vpop.f32.mrf.mxu0
      %v5860 = vadd.f32 %v5544, %v5859
      %v5861 = vpop.f32.mrf.mxu0
      %5862 = vmatprep.mubr.f32.mxu0 0.0
      %5863 = vmatmul.mubr.f32.gmra.mxu0 %v5757
      %v5864 = vpop.f32.mrf.mxu0
      %v5865 = vadd.f32 %v5545, %v5864
      %v5866 = vpop.f32.mrf.mxu0
      %5867 = vmatprep.mubr.f32.mxu0 0.0
      %5868 = vmatmul.mubr.f32.gmra.mxu0 %v5759
      %v5869 = vpop.f32.mrf.mxu0
      %v5870 = vadd.f32 %v5546, %v5869
      %v5871 = vpop.f32.mrf.mxu0
      %5872 = vmatprep.mubr.f32.mxu0 0.0
      %5873 = vmatmul.mubr.f32.gmra.mxu0 %v5761
      %v5874 = vpop.f32.mrf.mxu0
      %v5875 = vadd.f32 %v5547, %v5874
      %v5876 = vpop.f32.mrf.mxu0
      %5877 = vmatprep.mubr.f32.mxu0 0.0
      %5878 = vmatmul.mubr.f32.gmra.mxu0 %v5763
      %v5879 = vpop.f32.mrf.mxu0
      %v5880 = vadd.f32 %v5548, %v5879
      %v5881 = vpop.f32.mrf.mxu0
      %5882 = vmatprep.mubr.f32.mxu0 0.0
      %5883 = vmatmul.mubr.f32.gmra.mxu0 %v5765
      %v5884 = vpop.f32.mrf.mxu0
      %v5885 = vadd.f32 %v5549, %v5884
      %v5886 = vpop.f32.mrf.mxu0
      %5887 = vdwg.mxu0
      %5888 = vrot.lane.b32.xlu0 %v547, 104
      %v5889 = vpop.permute.xlu0 %5888
      %5890 = vrot.lane.b32.xlu0 %v552, 104
      %v5891 = vpop.permute.xlu0 %5890
      %5892 = vrot.lane.b32.xlu0 %v557, 104
      %v5893 = vpop.permute.xlu0 %5892
      %5894 = vrot.lane.b32.xlu0 %v562, 104
      %v5895 = vpop.permute.xlu0 %5894
      %5896 = vrot.lane.b32.xlu0 %v567, 104
      %v5897 = vpop.permute.xlu0 %5896
      %5898 = vrot.lane.b32.xlu0 %v572, 104
      %v5899 = vpop.permute.xlu0 %5898
      %5900 = vrot.lane.b32.xlu0 %v577, 104
      %v5901 = vpop.permute.xlu0 %5900
      %5902 = vrot.lane.b32.xlu0 %v582, 104
      %v5903 = vpop.permute.xlu0 %5902
      %5904 = vrot.lane.b32.xlu0 %v547, 72
      %v5905 = vpop.permute.xlu0 %5904
      %5906 = vrot.lane.b32.xlu0 %v552, 72
      %v5907 = vpop.permute.xlu0 %5906
      %5908 = vrot.lane.b32.xlu0 %v557, 72
      %v5909 = vpop.permute.xlu0 %5908
      %5910 = vrot.lane.b32.xlu0 %v562, 72
      %v5911 = vpop.permute.xlu0 %5910
      %5912 = vrot.lane.b32.xlu0 %v567, 72
      %v5913 = vpop.permute.xlu0 %5912
      %5914 = vrot.lane.b32.xlu0 %v572, 72
      %v5915 = vpop.permute.xlu0 %5914
      %5916 = vrot.lane.b32.xlu0 %v577, 72
      %v5917 = vpop.permute.xlu0 %5916
      %5918 = vrot.lane.b32.xlu0 %v582, 72
      %v5919 = vpop.permute.xlu0 %5918
      %v5920 = vsel %vm657, %v5889, 0
      %v5922 = vsel %vm657, %v5891, 0
      %v5924 = vsel %vm657, %v5893, 0
      %v5926 = vsel %vm657, %v5895, 0
      %v5928 = vsel %vm657, %v5897, 0
      %v5930 = vsel %vm657, %v5899, 0
      %v5932 = vsel %vm657, %v5901, 0
      %v5934 = vsel %vm657, %v5903, 0
      %v5936 = vsel %vm657, %v5905, 0
      %v5938 = vsel %vm657, %v5907, 0
      %v5940 = vsel %vm657, %v5909, 0
      %v5942 = vsel %vm657, %v5911, 0
      %v5944 = vsel %vm657, %v5913, 0
      %v5946 = vsel %vm657, %v5915, 0
      %v5948 = vsel %vm657, %v5917, 0
      %v5950 = vsel %vm657, %v5919, 0
      %5952 = vmatprep.subr.mxu0 0.0
      %5953 = vmatpush1.xpose.msra.mxu0 0.0
      %5954 = vmatprep.subr.mxu0 0.0
      %5955 = vmatpush1.xpose.msra.mxu0 0.0
      %5956 = vmatprep.subr.mxu0 0.0
      %5957 = vmatpush1.xpose.msra.mxu0 0.0
      %5958 = vmatprep.subr.mxu0 0.0
      %5959 = vmatpush1.xpose.msra.mxu0 0.0
      %5960 = vmatprep.subr.mxu0 0.0
      %5961 = vmatpush1.xpose.msra.mxu0 0.0
      %5962 = vmatprep.subr.mxu0 0.0
      %5963 = vmatpush1.xpose.msra.mxu0 0.0
      %5964 = vmatprep.subr.mxu0 0.0
      %5965 = vmatpush1.xpose.msra.mxu0 0.0
      %5966 = vmatprep.subr.mxu0 0.0
      %5967 = vmatpush1.xpose.msra.mxu0 0.0
      %5968 = vmatprep.subr.mxu0 0.0
      %5969 = vmatpush1.xpose.msra.mxu0 %v5950
      %5970 = vmatprep.subr.mxu0 0.0
      %5971 = vmatpush1.xpose.msra.mxu0 %v5948
      %5972 = vmatprep.subr.mxu0 0.0
      %5973 = vmatpush1.xpose.msra.mxu0 %v5946
      %5974 = vmatprep.subr.mxu0 0.0
      %5975 = vmatpush1.xpose.msra.mxu0 %v5944
      %5976 = vmatprep.subr.mxu0 0.0
      %5977 = vmatpush1.xpose.msra.mxu0 %v5942
      %5978 = vmatprep.subr.mxu0 0.0
      %5979 = vmatpush1.xpose.msra.mxu0 %v5940
      %5980 = vmatprep.subr.mxu0 0.0
      %5981 = vmatpush1.xpose.msra.mxu0 %v5938
      %5982 = vmatprep.subr.mxu0 0.0
      %5983 = vmatpush1.xpose.msra.mxu0 %v5936
      %5984 = vmatprep.subr.mxu0 0.0
      %5985 = vmatpush2.xpose.msra.mxu0 0.0
      %5986 = vmatprep.subr.mxu0 0.0
      %5987 = vmatpush2.xpose.msra.mxu0 0.0
      %5988 = vmatprep.subr.mxu0 0.0
      %5989 = vmatpush2.xpose.msra.mxu0 0.0
      %5990 = vmatprep.subr.mxu0 0.0
      %5991 = vmatpush2.xpose.msra.mxu0 0.0
      %5992 = vmatprep.subr.mxu0 0.0
      %5993 = vmatpush2.xpose.msra.mxu0 0.0
      %5994 = vmatprep.subr.mxu0 0.0
      %5995 = vmatpush2.xpose.msra.mxu0 0.0
      %5996 = vmatprep.subr.mxu0 0.0
      %5997 = vmatpush2.xpose.msra.mxu0 0.0
      %5998 = vmatprep.subr.mxu0 0.0
      %5999 = vmatpush2.xpose.msra.mxu0 0.0
      %6000 = vmatprep.subr.mxu0 0.0
      %6001 = vmatpush2.xpose.msra.mxu0 0.0
      %6002 = vmatprep.subr.mxu0 0.0
      %6003 = vmatpush2.xpose.msra.mxu0 0.0
      %6004 = vmatprep.subr.mxu0 0.0
      %6005 = vmatpush2.xpose.msra.mxu0 0.0
      %6006 = vmatprep.subr.mxu0 0.0
      %6007 = vmatpush2.xpose.msra.mxu0 0.0
      %6008 = vmatprep.subr.mxu0 0.0
      %6009 = vmatpush2.xpose.msra.mxu0 0.0
      %6010 = vmatprep.subr.mxu0 0.0
      %6011 = vmatpush2.xpose.msra.mxu0 0.0
      %6012 = vmatprep.subr.mxu0 0.0
      %6013 = vmatpush2.xpose.msra.mxu0 0.0
      %6014 = vmatprep.subr.mxu0 0.0
      %6015 = vmatpush2.xpose.msra.mxu0 0.0
      %6016 = vmatprep.mubr.f32.mxu0 0.0
      %6017 = vmatmul.mubr.f32.gmra.mxu0 %v5920
      %v6018 = vpop.f32.mrf.mxu0
      %v6019 = vadd.f32 %v5542, %v6018
      %v6020 = vpop.f32.mrf.mxu0
      %6021 = vmatprep.mubr.f32.mxu0 0.0
      %6022 = vmatmul.mubr.f32.gmra.mxu0 %v5922
      %v6023 = vpop.f32.mrf.mxu0
      %v6024 = vadd.f32 %v5543, %v6023
      %v6025 = vpop.f32.mrf.mxu0
      %6026 = vmatprep.mubr.f32.mxu0 0.0
      %6027 = vmatmul.mubr.f32.gmra.mxu0 %v5924
      %v6028 = vpop.f32.mrf.mxu0
      %v6029 = vadd.f32 %v5544, %v6028
      %v6030 = vpop.f32.mrf.mxu0
      %6031 = vmatprep.mubr.f32.mxu0 0.0
      %6032 = vmatmul.mubr.f32.gmra.mxu0 %v5926
      %v6033 = vpop.f32.mrf.mxu0
      %v6034 = vadd.f32 %v5545, %v6033
      %v6035 = vpop.f32.mrf.mxu0
      %6036 = vmatprep.mubr.f32.mxu0 0.0
      %6037 = vmatmul.mubr.f32.gmra.mxu0 %v5928
      %v6038 = vpop.f32.mrf.mxu0
      %v6039 = vadd.f32 %v5546, %v6038
      %v6040 = vpop.f32.mrf.mxu0
      %6041 = vmatprep.mubr.f32.mxu0 0.0
      %6042 = vmatmul.mubr.f32.gmra.mxu0 %v5930
      %v6043 = vpop.f32.mrf.mxu0
      %v6044 = vadd.f32 %v5547, %v6043
      %v6045 = vpop.f32.mrf.mxu0
      %6046 = vmatprep.mubr.f32.mxu0 0.0
      %6047 = vmatmul.mubr.f32.gmra.mxu0 %v5932
      %v6048 = vpop.f32.mrf.mxu0
      %v6049 = vadd.f32 %v5548, %v6048
      %v6050 = vpop.f32.mrf.mxu0
      %6051 = vmatprep.mubr.f32.mxu0 0.0
      %6052 = vmatmul.mubr.f32.gmra.mxu0 %v5934
      %v6053 = vpop.f32.mrf.mxu0
      %v6054 = vadd.f32 %v5549, %v6053
      %v6055 = vpop.f32.mrf.mxu0
      %6056 = vdwg.mxu0
      %6057 = vrot.lane.b32.xlu0 %v587, 104
      %v6058 = vpop.permute.xlu0 %6057
      %6059 = vrot.lane.b32.xlu0 %v592, 104
      %v6060 = vpop.permute.xlu0 %6059
      %6061 = vrot.lane.b32.xlu0 %v597, 104
      %v6062 = vpop.permute.xlu0 %6061
      %6063 = vrot.lane.b32.xlu0 %v602, 104
      %v6064 = vpop.permute.xlu0 %6063
      %6065 = vrot.lane.b32.xlu0 %v607, 104
      %v6066 = vpop.permute.xlu0 %6065
      %6067 = vrot.lane.b32.xlu0 %v612, 104
      %v6068 = vpop.permute.xlu0 %6067
      %6069 = vrot.lane.b32.xlu0 %v617, 104
      %v6070 = vpop.permute.xlu0 %6069
      %6071 = vrot.lane.b32.xlu0 %v622, 104
      %v6072 = vpop.permute.xlu0 %6071
      %6073 = vrot.lane.b32.xlu0 %v587, 72
      %v6074 = vpop.permute.xlu0 %6073
      %6075 = vrot.lane.b32.xlu0 %v592, 72
      %v6076 = vpop.permute.xlu0 %6075
      %6077 = vrot.lane.b32.xlu0 %v597, 72
      %v6078 = vpop.permute.xlu0 %6077
      %6079 = vrot.lane.b32.xlu0 %v602, 72
      %v6080 = vpop.permute.xlu0 %6079
      %6081 = vrot.lane.b32.xlu0 %v607, 72
      %v6082 = vpop.permute.xlu0 %6081
      %6083 = vrot.lane.b32.xlu0 %v612, 72
      %v6084 = vpop.permute.xlu0 %6083
      %6085 = vrot.lane.b32.xlu0 %v617, 72
      %v6086 = vpop.permute.xlu0 %6085
      %6087 = vrot.lane.b32.xlu0 %v622, 72
      %v6088 = vpop.permute.xlu0 %6087
      %v6089 = vsel %vm657, %v6058, 0
      %v6091 = vsel %vm657, %v6060, 0
      %v6093 = vsel %vm657, %v6062, 0
      %v6095 = vsel %vm657, %v6064, 0
      %v6097 = vsel %vm657, %v6066, 0
      %v6099 = vsel %vm657, %v6068, 0
      %v6101 = vsel %vm657, %v6070, 0
      %v6103 = vsel %vm657, %v6072, 0
      %v6105 = vsel %vm657, %v6074, 0
      %v6107 = vsel %vm657, %v6076, 0
      %v6109 = vsel %vm657, %v6078, 0
      %v6111 = vsel %vm657, %v6080, 0
      %v6113 = vsel %vm657, %v6082, 0
      %v6115 = vsel %vm657, %v6084, 0
      %v6117 = vsel %vm657, %v6086, 0
      %v6119 = vsel %vm657, %v6088, 0
      %6121 = vmatprep.subr.mxu0 0.0
      %6122 = vmatpush1.xpose.msra.mxu0 0.0
      %6123 = vmatprep.subr.mxu0 0.0
      %6124 = vmatpush1.xpose.msra.mxu0 0.0
      %6125 = vmatprep.subr.mxu0 0.0
      %6126 = vmatpush1.xpose.msra.mxu0 0.0
      %6127 = vmatprep.subr.mxu0 0.0
      %6128 = vmatpush1.xpose.msra.mxu0 0.0
      %6129 = vmatprep.subr.mxu0 0.0
      %6130 = vmatpush1.xpose.msra.mxu0 0.0
      %6131 = vmatprep.subr.mxu0 0.0
      %6132 = vmatpush1.xpose.msra.mxu0 0.0
      %6133 = vmatprep.subr.mxu0 0.0
      %6134 = vmatpush1.xpose.msra.mxu0 0.0
      %6135 = vmatprep.subr.mxu0 0.0
      %6136 = vmatpush1.xpose.msra.mxu0 0.0
      %6137 = vmatprep.subr.mxu0 0.0
      %6138 = vmatpush1.xpose.msra.mxu0 %v6119
      %6139 = vmatprep.subr.mxu0 0.0
      %6140 = vmatpush1.xpose.msra.mxu0 %v6117
      %6141 = vmatprep.subr.mxu0 0.0
      %6142 = vmatpush1.xpose.msra.mxu0 %v6115
      %6143 = vmatprep.subr.mxu0 0.0
      %6144 = vmatpush1.xpose.msra.mxu0 %v6113
      %6145 = vmatprep.subr.mxu0 0.0
      %6146 = vmatpush1.xpose.msra.mxu0 %v6111
      %6147 = vmatprep.subr.mxu0 0.0
      %6148 = vmatpush1.xpose.msra.mxu0 %v6109
      %6149 = vmatprep.subr.mxu0 0.0
      %6150 = vmatpush1.xpose.msra.mxu0 %v6107
      %6151 = vmatprep.subr.mxu0 0.0
      %6152 = vmatpush1.xpose.msra.mxu0 %v6105
      %6153 = vmatprep.subr.mxu0 0.0
      %6154 = vmatpush2.xpose.msra.mxu0 0.0
      %6155 = vmatprep.subr.mxu0 0.0
      %6156 = vmatpush2.xpose.msra.mxu0 0.0
      %6157 = vmatprep.subr.mxu0 0.0
      %6158 = vmatpush2.xpose.msra.mxu0 0.0
      %6159 = vmatprep.subr.mxu0 0.0
      %6160 = vmatpush2.xpose.msra.mxu0 0.0
      %6161 = vmatprep.subr.mxu0 0.0
      %6162 = vmatpush2.xpose.msra.mxu0 0.0
      %6163 = vmatprep.subr.mxu0 0.0
      %6164 = vmatpush2.xpose.msra.mxu0 0.0
      %6165 = vmatprep.subr.mxu0 0.0
      %6166 = vmatpush2.xpose.msra.mxu0 0.0
      %6167 = vmatprep.subr.mxu0 0.0
      %6168 = vmatpush2.xpose.msra.mxu0 0.0
      %6169 = vmatprep.subr.mxu0 0.0
      %6170 = vmatpush2.xpose.msra.mxu0 0.0
      %6171 = vmatprep.subr.mxu0 0.0
      %6172 = vmatpush2.xpose.msra.mxu0 0.0
      %6173 = vmatprep.subr.mxu0 0.0
      %6174 = vmatpush2.xpose.msra.mxu0 0.0
      %6175 = vmatprep.subr.mxu0 0.0
      %6176 = vmatpush2.xpose.msra.mxu0 0.0
      %6177 = vmatprep.subr.mxu0 0.0
      %6178 = vmatpush2.xpose.msra.mxu0 0.0
      %6179 = vmatprep.subr.mxu0 0.0
      %6180 = vmatpush2.xpose.msra.mxu0 0.0
      %6181 = vmatprep.subr.mxu0 0.0
      %6182 = vmatpush2.xpose.msra.mxu0 0.0
      %6183 = vmatprep.subr.mxu0 0.0
      %6184 = vmatpush2.xpose.msra.mxu0 0.0
      %6185 = vmatprep.mubr.f32.mxu0 0.0
      %6186 = vmatmul.mubr.f32.gmra.mxu0 %v6089
      %v6187 = vpop.f32.mrf.mxu0
      %v6188 = vadd.f32 %v5542, %v6187
      %v6189 = vpop.f32.mrf.mxu0
      %6190 = vmatprep.mubr.f32.mxu0 0.0
      %6191 = vmatmul.mubr.f32.gmra.mxu0 %v6091
      %v6192 = vpop.f32.mrf.mxu0
      %v6193 = vadd.f32 %v5543, %v6192
      %v6194 = vpop.f32.mrf.mxu0
      %6195 = vmatprep.mubr.f32.mxu0 0.0
      %6196 = vmatmul.mubr.f32.gmra.mxu0 %v6093
      %v6197 = vpop.f32.mrf.mxu0
      %v6198 = vadd.f32 %v5544, %v6197
      %v6199 = vpop.f32.mrf.mxu0
      %6200 = vmatprep.mubr.f32.mxu0 0.0
      %6201 = vmatmul.mubr.f32.gmra.mxu0 %v6095
      %v6202 = vpop.f32.mrf.mxu0
      %v6203 = vadd.f32 %v5545, %v6202
      %v6204 = vpop.f32.mrf.mxu0
      %6205 = vmatprep.mubr.f32.mxu0 0.0
      %6206 = vmatmul.mubr.f32.gmra.mxu0 %v6097
      %v6207 = vpop.f32.mrf.mxu0
      %v6208 = vadd.f32 %v5546, %v6207
      %v6209 = vpop.f32.mrf.mxu0
      %6210 = vmatprep.mubr.f32.mxu0 0.0
      %6211 = vmatmul.mubr.f32.gmra.mxu0 %v6099
      %v6212 = vpop.f32.mrf.mxu0
      %v6213 = vadd.f32 %v5547, %v6212
      %v6214 = vpop.f32.mrf.mxu0
      %6215 = vmatprep.mubr.f32.mxu0 0.0
      %6216 = vmatmul.mubr.f32.gmra.mxu0 %v6101
      %v6217 = vpop.f32.mrf.mxu0
      %v6218 = vadd.f32 %v5548, %v6217
      %v6219 = vpop.f32.mrf.mxu0
      %6220 = vmatprep.mubr.f32.mxu0 0.0
      %6221 = vmatmul.mubr.f32.gmra.mxu0 %v6103
      %v6222 = vpop.f32.mrf.mxu0
      %v6223 = vadd.f32 %v5549, %v6222
      %v6224 = vpop.f32.mrf.mxu0
      %6225 = vdwg.mxu0
      %v6226 = vsel %vm1278, %v5681, -inf
      %6227 = vmax.xlane.f32.xlu0 %v6226
      %v6228 = vpop.xlane.xlu0 %6227
      %v6229 = vsel %vm1278, %v5686, -inf
      %6230 = vmax.xlane.f32.xlu0 %v6229
      %v6231 = vpop.xlane.xlu0 %6230
      %v6232 = vsel %vm1278, %v5691, -inf
      %6233 = vmax.xlane.f32.xlu0 %v6232
      %v6234 = vpop.xlane.xlu0 %6233
      %v6235 = vsel %vm1278, %v5696, -inf
      %6236 = vmax.xlane.f32.xlu0 %v6235
      %v6237 = vpop.xlane.xlu0 %6236
      %v6238 = vsel %vm1278, %v5701, -inf
      %6239 = vmax.xlane.f32.xlu0 %v6238
      %v6240 = vpop.xlane.xlu0 %6239
      %v6241 = vsel %vm1278, %v5706, -inf
      %6242 = vmax.xlane.f32.xlu0 %v6241
      %v6243 = vpop.xlane.xlu0 %6242
      %v6244 = vsel %vm1278, %v5711, -inf
      %6245 = vmax.xlane.f32.xlu0 %v6244
      %v6246 = vpop.xlane.xlu0 %6245
      %v6247 = vsel %vm1278, %v5716, -inf
      %6248 = vmax.xlane.f32.xlu0 %v6247
      %v6249 = vpop.xlane.xlu0 %6248
      %v6250 = vsel %vm1278, %v5850, -inf
      %6251 = vmax.xlane.f32.xlu0 %v6250
      %v6252 = vpop.xlane.xlu0 %6251
      %v6253 = vsel %vm1278, %v5855, -inf
      %6254 = vmax.xlane.f32.xlu0 %v6253
      %v6255 = vpop.xlane.xlu0 %6254
      %v6256 = vsel %vm1278, %v5860, -inf
      %6257 = vmax.xlane.f32.xlu0 %v6256
      %v6258 = vpop.xlane.xlu0 %6257
      %v6259 = vsel %vm1278, %v5865, -inf
      %6260 = vmax.xlane.f32.xlu0 %v6259
      %v6261 = vpop.xlane.xlu0 %6260
      %v6262 = vsel %vm1278, %v5870, -inf
      %6263 = vmax.xlane.f32.xlu0 %v6262
      %v6264 = vpop.xlane.xlu0 %6263
      %v6265 = vsel %vm1278, %v5875, -inf
      %6266 = vmax.xlane.f32.xlu0 %v6265
      %v6267 = vpop.xlane.xlu0 %6266
      %v6268 = vsel %vm1278, %v5880, -inf
      %6269 = vmax.xlane.f32.xlu0 %v6268
      %v6270 = vpop.xlane.xlu0 %6269
      %v6271 = vsel %vm1278, %v5885, -inf
      %6272 = vmax.xlane.f32.xlu0 %v6271
      %v6273 = vpop.xlane.xlu0 %6272
      %v6274 = vsel %vm1278, %v6019, -inf
      %6275 = vmax.xlane.f32.xlu0 %v6274
      %v6276 = vpop.xlane.xlu0 %6275
      %v6277 = vsel %vm1278, %v6024, -inf
      %6278 = vmax.xlane.f32.xlu0 %v6277
      %v6279 = vpop.xlane.xlu0 %6278
      %v6280 = vsel %vm1278, %v6029, -inf
      %6281 = vmax.xlane.f32.xlu0 %v6280
      %v6282 = vpop.xlane.xlu0 %6281
      %v6283 = vsel %vm1278, %v6034, -inf
      %6284 = vmax.xlane.f32.xlu0 %v6283
      %v6285 = vpop.xlane.xlu0 %6284
      %v6286 = vsel %vm1278, %v6039, -inf
      %6287 = vmax.xlane.f32.xlu0 %v6286
      %v6288 = vpop.xlane.xlu0 %6287
      %v6289 = vsel %vm1278, %v6044, -inf
      %6290 = vmax.xlane.f32.xlu0 %v6289
      %v6291 = vpop.xlane.xlu0 %6290
      %v6292 = vsel %vm1278, %v6049, -inf
      %6293 = vmax.xlane.f32.xlu0 %v6292
      %v6294 = vpop.xlane.xlu0 %6293
      %v6295 = vsel %vm1278, %v6054, -inf
      %6296 = vmax.xlane.f32.xlu0 %v6295
      %v6297 = vpop.xlane.xlu0 %6296
      %v6298 = vsel %vm1278, %v6188, -inf
      %6299 = vmax.xlane.f32.xlu0 %v6298
      %v6300 = vpop.xlane.xlu0 %6299
      %v6301 = vsel %vm1278, %v6193, -inf
      %6302 = vmax.xlane.f32.xlu0 %v6301
      %v6303 = vpop.xlane.xlu0 %6302
      %v6304 = vsel %vm1278, %v6198, -inf
      %6305 = vmax.xlane.f32.xlu0 %v6304
      %v6306 = vpop.xlane.xlu0 %6305
      %v6307 = vsel %vm1278, %v6203, -inf
      %6308 = vmax.xlane.f32.xlu0 %v6307
      %v6309 = vpop.xlane.xlu0 %6308
      %v6310 = vsel %vm1278, %v6208, -inf
      %6311 = vmax.xlane.f32.xlu0 %v6310
      %v6312 = vpop.xlane.xlu0 %6311
      %v6313 = vsel %vm1278, %v6213, -inf
      %6314 = vmax.xlane.f32.xlu0 %v6313
      %v6315 = vpop.xlane.xlu0 %6314
      %v6316 = vsel %vm1278, %v6218, -inf
      %6317 = vmax.xlane.f32.xlu0 %v6316
      %v6318 = vpop.xlane.xlu0 %6317
      %v6319 = vsel %vm1278, %v6223, -inf
      %6320 = vmax.xlane.f32.xlu0 %v6319
      %v6321 = vpop.xlane.xlu0 %6320
      %v6322 = vsub.f32 %v5681, %v6228
      %v6323 = vsub.f32 %v5686, %v6231
      %v6324 = vsub.f32 %v5691, %v6234
      %v6325 = vsub.f32 %v5696, %v6237
      %v6326 = vsub.f32 %v5701, %v6240
      %v6327 = vsub.f32 %v5706, %v6243
      %v6328 = vsub.f32 %v5711, %v6246
      %v6329 = vsub.f32 %v5716, %v6249
      %v6330 = vsub.f32 %v5850, %v6252
      %v6331 = vsub.f32 %v5855, %v6255
      %v6332 = vsub.f32 %v5860, %v6258
      %v6333 = vsub.f32 %v5865, %v6261
      %v6334 = vsub.f32 %v5870, %v6264
      %v6335 = vsub.f32 %v5875, %v6267
      %v6336 = vsub.f32 %v5880, %v6270
      %v6337 = vsub.f32 %v5885, %v6273
      %v6338 = vsub.f32 %v6019, %v6276
      %v6339 = vsub.f32 %v6024, %v6279
      %v6340 = vsub.f32 %v6029, %v6282
      %v6341 = vsub.f32 %v6034, %v6285
      %v6342 = vsub.f32 %v6039, %v6288
      %v6343 = vsub.f32 %v6044, %v6291
      %v6344 = vsub.f32 %v6049, %v6294
      %v6345 = vsub.f32 %v6054, %v6297
      %v6346 = vsub.f32 %v6188, %v6300
      %v6347 = vsub.f32 %v6193, %v6303
      %v6348 = vsub.f32 %v6198, %v6306
      %v6349 = vsub.f32 %v6203, %v6309
      %v6350 = vsub.f32 %v6208, %v6312
      %v6351 = vsub.f32 %v6213, %v6315
      %v6352 = vsub.f32 %v6218, %v6318
      %v6353 = vsub.f32 %v6223, %v6321
      %v6354 = vmul.f32 %v6322, 1.442695
      %v6355 = vpow.pop %v6354
      %v6356 = vmul.f32 %v6323, 1.442695
      %v6357 = vpow.pop %v6356
      %v6358 = vmul.f32 %v6324, 1.442695
      %v6359 = vpow.pop %v6358
      %v6360 = vmul.f32 %v6325, 1.442695
      %v6361 = vpow.pop %v6360
      %v6362 = vmul.f32 %v6326, 1.442695
      %v6363 = vpow.pop %v6362
      %v6364 = vmul.f32 %v6327, 1.442695
      %v6365 = vpow.pop %v6364
      %v6366 = vmul.f32 %v6328, 1.442695
      %v6367 = vpow.pop %v6366
      %v6368 = vmul.f32 %v6329, 1.442695
      %v6369 = vpow.pop %v6368
      %v6370 = vmul.f32 %v6330, 1.442695
      %v6371 = vpow.pop %v6370
      %v6372 = vmul.f32 %v6331, 1.442695
      %v6373 = vpow.pop %v6372
      %v6374 = vmul.f32 %v6332, 1.442695
      %v6375 = vpow.pop %v6374
      %v6376 = vmul.f32 %v6333, 1.442695
      %v6377 = vpow.pop %v6376
      %v6378 = vmul.f32 %v6334, 1.442695
      %v6379 = vpow.pop %v6378
      %v6380 = vmul.f32 %v6335, 1.442695
      %v6381 = vpow.pop %v6380
      %v6382 = vmul.f32 %v6336, 1.442695
      %v6383 = vpow.pop %v6382
      %v6384 = vmul.f32 %v6337, 1.442695
      %v6385 = vpow.pop %v6384
      %v6386 = vmul.f32 %v6338, 1.442695
      %v6387 = vpow.pop %v6386
      %v6388 = vmul.f32 %v6339, 1.442695
      %v6389 = vpow.pop %v6388
      %v6390 = vmul.f32 %v6340, 1.442695
      %v6391 = vpow.pop %v6390
      %v6392 = vmul.f32 %v6341, 1.442695
      %v6393 = vpow.pop %v6392
      %v6394 = vmul.f32 %v6342, 1.442695
      %v6395 = vpow.pop %v6394
      %v6396 = vmul.f32 %v6343, 1.442695
      %v6397 = vpow.pop %v6396
      %v6398 = vmul.f32 %v6344, 1.442695
      %v6399 = vpow.pop %v6398
      %v6400 = vmul.f32 %v6345, 1.442695
      %v6401 = vpow.pop %v6400
      %v6402 = vmul.f32 %v6346, 1.442695
      %v6403 = vpow.pop %v6402
      %v6404 = vmul.f32 %v6347, 1.442695
      %v6405 = vpow.pop %v6404
      %v6406 = vmul.f32 %v6348, 1.442695
      %v6407 = vpow.pop %v6406
      %v6408 = vmul.f32 %v6349, 1.442695
      %v6409 = vpow.pop %v6408
      %v6410 = vmul.f32 %v6350, 1.442695
      %v6411 = vpow.pop %v6410
      %v6412 = vmul.f32 %v6351, 1.442695
      %v6413 = vpow.pop %v6412
      %v6414 = vmul.f32 %v6352, 1.442695
      %v6415 = vpow.pop %v6414
      %v6416 = vmul.f32 %v6353, 1.442695
      %v6417 = vpow.pop %v6416
      %v6418 = vsel %vm1278, %v6355, 0.0
      %6419 = vadd.xlane.f32.xlu0 %v6418
      %v6420 = vpop.xlane.xlu0 %6419
      %v6421 = vsel %vm1278, %v6357, 0.0
      %6422 = vadd.xlane.f32.xlu0 %v6421
      %v6423 = vpop.xlane.xlu0 %6422
      %v6424 = vsel %vm1278, %v6359, 0.0
      %6425 = vadd.xlane.f32.xlu0 %v6424
      %v6426 = vpop.xlane.xlu0 %6425
      %v6427 = vsel %vm1278, %v6361, 0.0
      %6428 = vadd.xlane.f32.xlu0 %v6427
      %v6429 = vpop.xlane.xlu0 %6428
      %v6430 = vsel %vm1278, %v6363, 0.0
      %6431 = vadd.xlane.f32.xlu0 %v6430
      %v6432 = vpop.xlane.xlu0 %6431
      %v6433 = vsel %vm1278, %v6365, 0.0
      %6434 = vadd.xlane.f32.xlu0 %v6433
      %v6435 = vpop.xlane.xlu0 %6434
      %v6436 = vsel %vm1278, %v6367, 0.0
      %6437 = vadd.xlane.f32.xlu0 %v6436
      %v6438 = vpop.xlane.xlu0 %6437
      %v6439 = vsel %vm1278, %v6369, 0.0
      %6440 = vadd.xlane.f32.xlu0 %v6439
      %v6441 = vpop.xlane.xlu0 %6440
      %v6442 = vsel %vm1278, %v6371, 0.0
      %6443 = vadd.xlane.f32.xlu0 %v6442
      %v6444 = vpop.xlane.xlu0 %6443
      %v6445 = vsel %vm1278, %v6373, 0.0
      %6446 = vadd.xlane.f32.xlu0 %v6445
      %v6447 = vpop.xlane.xlu0 %6446
      %v6448 = vsel %vm1278, %v6375, 0.0
      %6449 = vadd.xlane.f32.xlu0 %v6448
      %v6450 = vpop.xlane.xlu0 %6449
      %v6451 = vsel %vm1278, %v6377, 0.0
      %6452 = vadd.xlane.f32.xlu0 %v6451
      %v6453 = vpop.xlane.xlu0 %6452
      %v6454 = vsel %vm1278, %v6379, 0.0
      %6455 = vadd.xlane.f32.xlu0 %v6454
      %v6456 = vpop.xlane.xlu0 %6455
      %v6457 = vsel %vm1278, %v6381, 0.0
      %6458 = vadd.xlane.f32.xlu0 %v6457
      %v6459 = vpop.xlane.xlu0 %6458
      %v6460 = vsel %vm1278, %v6383, 0.0
      %6461 = vadd.xlane.f32.xlu0 %v6460
      %v6462 = vpop.xlane.xlu0 %6461
      %v6463 = vsel %vm1278, %v6385, 0.0
      %6464 = vadd.xlane.f32.xlu0 %v6463
      %v6465 = vpop.xlane.xlu0 %6464
      %v6466 = vsel %vm1278, %v6387, 0.0
      %6467 = vadd.xlane.f32.xlu0 %v6466
      %v6468 = vpop.xlane.xlu0 %6467
      %v6469 = vsel %vm1278, %v6389, 0.0
      %6470 = vadd.xlane.f32.xlu0 %v6469
      %v6471 = vpop.xlane.xlu0 %6470
      %v6472 = vsel %vm1278, %v6391, 0.0
      %6473 = vadd.xlane.f32.xlu0 %v6472
      %v6474 = vpop.xlane.xlu0 %6473
      %v6475 = vsel %vm1278, %v6393, 0.0
      %6476 = vadd.xlane.f32.xlu0 %v6475
      %v6477 = vpop.xlane.xlu0 %6476
      %v6478 = vsel %vm1278, %v6395, 0.0
      %6479 = vadd.xlane.f32.xlu0 %v6478
      %v6480 = vpop.xlane.xlu0 %6479
      %v6481 = vsel %vm1278, %v6397, 0.0
      %6482 = vadd.xlane.f32.xlu0 %v6481
      %v6483 = vpop.xlane.xlu0 %6482
      %v6484 = vsel %vm1278, %v6399, 0.0
      %6485 = vadd.xlane.f32.xlu0 %v6484
      %v6486 = vpop.xlane.xlu0 %6485
      %v6487 = vsel %vm1278, %v6401, 0.0
      %6488 = vadd.xlane.f32.xlu0 %v6487
      %v6489 = vpop.xlane.xlu0 %6488
      %v6490 = vsel %vm1278, %v6403, 0.0
      %6491 = vadd.xlane.f32.xlu0 %v6490
      %v6492 = vpop.xlane.xlu0 %6491
      %v6493 = vsel %vm1278, %v6405, 0.0
      %6494 = vadd.xlane.f32.xlu0 %v6493
      %v6495 = vpop.xlane.xlu0 %6494
      %v6496 = vsel %vm1278, %v6407, 0.0
      %6497 = vadd.xlane.f32.xlu0 %v6496
      %v6498 = vpop.xlane.xlu0 %6497
      %v6499 = vsel %vm1278, %v6409, 0.0
      %6500 = vadd.xlane.f32.xlu0 %v6499
      %v6501 = vpop.xlane.xlu0 %6500
      %v6502 = vsel %vm1278, %v6411, 0.0
      %6503 = vadd.xlane.f32.xlu0 %v6502
      %v6504 = vpop.xlane.xlu0 %6503
      %v6505 = vsel %vm1278, %v6413, 0.0
      %6506 = vadd.xlane.f32.xlu0 %v6505
      %v6507 = vpop.xlane.xlu0 %6506
      %v6508 = vsel %vm1278, %v6415, 0.0
      %6509 = vadd.xlane.f32.xlu0 %v6508
      %v6510 = vpop.xlane.xlu0 %6509
      %v6511 = vsel %vm1278, %v6417, 0.0
      %6512 = vadd.xlane.f32.xlu0 %v6511
      %v6513 = vpop.xlane.xlu0 %6512
      %v6514 = vrcp.pop %v6420
      %v6515 = vrcp.pop %v6423
      %v6516 = vrcp.pop %v6426
      %v6517 = vrcp.pop %v6429
      %v6518 = vrcp.pop %v6432
      %v6519 = vrcp.pop %v6435
      %v6520 = vrcp.pop %v6438
      %v6521 = vrcp.pop %v6441
      %v6522 = vrcp.pop %v6444
      %v6523 = vrcp.pop %v6447
      %v6524 = vrcp.pop %v6450
      %v6525 = vrcp.pop %v6453
      %v6526 = vrcp.pop %v6456
      %v6527 = vrcp.pop %v6459
      %v6528 = vrcp.pop %v6462
      %v6529 = vrcp.pop %v6465
      %v6530 = vrcp.pop %v6468
      %v6531 = vrcp.pop %v6471
      %v6532 = vrcp.pop %v6474
      %v6533 = vrcp.pop %v6477
      %v6534 = vrcp.pop %v6480
      %v6535 = vrcp.pop %v6483
      %v6536 = vrcp.pop %v6486
      %v6537 = vrcp.pop %v6489
      %v6538 = vrcp.pop %v6492
      %v6539 = vrcp.pop %v6495
      %v6540 = vrcp.pop %v6498
      %v6541 = vrcp.pop %v6501
      %v6542 = vrcp.pop %v6504
      %v6543 = vrcp.pop %v6507
      %v6544 = vrcp.pop %v6510
      %v6545 = vrcp.pop %v6513
      %v6546 = vmul.f32 %v6355, %v6514
      %v6547 = vmul.f32 %v6357, %v6515
      %v6548 = vmul.f32 %v6359, %v6516
      %v6549 = vmul.f32 %v6361, %v6517
      %v6550 = vmul.f32 %v6363, %v6518
      %v6551 = vmul.f32 %v6365, %v6519
      %v6552 = vmul.f32 %v6367, %v6520
      %v6553 = vmul.f32 %v6369, %v6521
      %v6554 = vmul.f32 %v6371, %v6522
      %v6555 = vmul.f32 %v6373, %v6523
      %v6556 = vmul.f32 %v6375, %v6524
      %v6557 = vmul.f32 %v6377, %v6525
      %v6558 = vmul.f32 %v6379, %v6526
      %v6559 = vmul.f32 %v6381, %v6527
      %v6560 = vmul.f32 %v6383, %v6528
      %v6561 = vmul.f32 %v6385, %v6529
      %v6562 = vmul.f32 %v6387, %v6530
      %v6563 = vmul.f32 %v6389, %v6531
      %v6564 = vmul.f32 %v6391, %v6532
      %v6565 = vmul.f32 %v6393, %v6533
      %v6566 = vmul.f32 %v6395, %v6534
      %v6567 = vmul.f32 %v6397, %v6535
      %v6568 = vmul.f32 %v6399, %v6536
      %v6569 = vmul.f32 %v6401, %v6537
      %v6570 = vmul.f32 %v6403, %v6538
      %v6571 = vmul.f32 %v6405, %v6539
      %v6572 = vmul.f32 %v6407, %v6540
      %v6573 = vmul.f32 %v6409, %v6541
      %v6574 = vmul.f32 %v6411, %v6542
      %v6575 = vmul.f32 %v6413, %v6543
      %v6576 = vmul.f32 %v6415, %v6544
      %v6577 = vmul.f32 %v6417, %v6545
      %6578 = vrot.lane.b32.xlu0 %v467, 40
      %v6579 = vpop.permute.xlu0 %6578
      %6580 = vrot.lane.b32.xlu0 %v472, 40
      %v6581 = vpop.permute.xlu0 %6580
      %6582 = vrot.lane.b32.xlu0 %v477, 40
      %v6583 = vpop.permute.xlu0 %6582
      %6584 = vrot.lane.b32.xlu0 %v482, 40
      %v6585 = vpop.permute.xlu0 %6584
      %6586 = vrot.lane.b32.xlu0 %v487, 40
      %v6587 = vpop.permute.xlu0 %6586
      %6588 = vrot.lane.b32.xlu0 %v492, 40
      %v6589 = vpop.permute.xlu0 %6588
      %6590 = vrot.lane.b32.xlu0 %v497, 40
      %v6591 = vpop.permute.xlu0 %6590
      %6592 = vrot.lane.b32.xlu0 %v502, 40
      %v6593 = vpop.permute.xlu0 %6592
      %v6603 = vsel %vm1278, %v6546, 0
      %v6606 = vsel %vm1278, %v6547, 0
      %v6609 = vsel %vm1278, %v6548, 0
      %v6612 = vsel %vm1278, %v6549, 0
      %v6615 = vsel %vm1278, %v6550, 0
      %v6618 = vsel %vm1278, %v6551, 0
      %v6621 = vsel %vm1278, %v6552, 0
      %v6624 = vsel %vm1278, %v6553, 0
      %6626 = vmatprep.subr.mxu0 0.0
      %6627 = vmatpush1.msra.mxu0 0.0
      %6628 = vmatprep.subr.mxu0 0.0
      %6629 = vmatpush1.msra.mxu0 0.0
      %6630 = vmatprep.subr.mxu0 0.0
      %6631 = vmatpush1.msra.mxu0 0.0
      %6632 = vmatprep.subr.mxu0 0.0
      %6633 = vmatpush1.msra.mxu0 0.0
      %6634 = vmatprep.subr.mxu0 0.0
      %6635 = vmatpush1.msra.mxu0 0.0
      %6636 = vmatprep.subr.mxu0 0.0
      %6637 = vmatpush1.msra.mxu0 0.0
      %6638 = vmatprep.subr.mxu0 0.0
      %6639 = vmatpush1.msra.mxu0 0.0
      %6640 = vmatprep.subr.mxu0 0.0
      %6641 = vmatpush1.msra.mxu0 0.0
      %6642 = vmatprep.subr.mxu0 0.0
      %6643 = vmatpush1.msra.mxu0 %v6593
      %6644 = vmatprep.subr.mxu0 0.0
      %6645 = vmatpush1.msra.mxu0 %v6591
      %6646 = vmatprep.subr.mxu0 0.0
      %6647 = vmatpush1.msra.mxu0 %v6589
      %6648 = vmatprep.subr.mxu0 0.0
      %6649 = vmatpush1.msra.mxu0 %v6587
      %6650 = vmatprep.subr.mxu0 0.0
      %6651 = vmatpush1.msra.mxu0 %v6585
      %6652 = vmatprep.subr.mxu0 0.0
      %6653 = vmatpush1.msra.mxu0 %v6583
      %6654 = vmatprep.subr.mxu0 0.0
      %6655 = vmatpush1.msra.mxu0 %v6581
      %6656 = vmatprep.subr.mxu0 0.0
      %6657 = vmatpush1.msra.mxu0 %v6579
      %6658 = vmatprep.subr.mxu0 0.0
      %6659 = vmatpush2.msra.mxu0 0.0
      %6660 = vmatprep.subr.mxu0 0.0
      %6661 = vmatpush2.msra.mxu0 0.0
      %6662 = vmatprep.subr.mxu0 0.0
      %6663 = vmatpush2.msra.mxu0 0.0
      %6664 = vmatprep.subr.mxu0 0.0
      %6665 = vmatpush2.msra.mxu0 0.0
      %6666 = vmatprep.subr.mxu0 0.0
      %6667 = vmatpush2.msra.mxu0 0.0
      %6668 = vmatprep.subr.mxu0 0.0
      %6669 = vmatpush2.msra.mxu0 0.0
      %6670 = vmatprep.subr.mxu0 0.0
      %6671 = vmatpush2.msra.mxu0 0.0
      %6672 = vmatprep.subr.mxu0 0.0
      %6673 = vmatpush2.msra.mxu0 0.0
      %6674 = vmatprep.subr.mxu0 0.0
      %6675 = vmatpush2.msra.mxu0 0.0
      %6676 = vmatprep.subr.mxu0 0.0
      %6677 = vmatpush2.msra.mxu0 0.0
      %6678 = vmatprep.subr.mxu0 0.0
      %6679 = vmatpush2.msra.mxu0 0.0
      %6680 = vmatprep.subr.mxu0 0.0
      %6681 = vmatpush2.msra.mxu0 0.0
      %6682 = vmatprep.subr.mxu0 0.0
      %6683 = vmatpush2.msra.mxu0 0.0
      %6684 = vmatprep.subr.mxu0 0.0
      %6685 = vmatpush2.msra.mxu0 0.0
      %6686 = vmatprep.subr.mxu0 0.0
      %6687 = vmatpush2.msra.mxu0 0.0
      %6688 = vmatprep.subr.mxu0 0.0
      %6689 = vmatpush2.msra.mxu0 0.0
      %6690 = vmatprep.mubr.f32.mxu0 0.0
      %6691 = vmatmul.mubr.f32.gmra.mxu0 %v6603
      %v6692 = vpop.f32.mrf.mxu0
      %v6693 = vadd.f32 0.0, %v6692
      %v6694 = vpop.f32.mrf.mxu0
      %6695 = vmatprep.mubr.f32.mxu0 0.0
      %6696 = vmatmul.mubr.f32.gmra.mxu0 %v6606
      %v6697 = vpop.f32.mrf.mxu0
      %v6698 = vadd.f32 0.0, %v6697
      %v6699 = vpop.f32.mrf.mxu0
      %6700 = vmatprep.mubr.f32.mxu0 0.0
      %6701 = vmatmul.mubr.f32.gmra.mxu0 %v6609
      %v6702 = vpop.f32.mrf.mxu0
      %v6703 = vadd.f32 0.0, %v6702
      %v6704 = vpop.f32.mrf.mxu0
      %6705 = vmatprep.mubr.f32.mxu0 0.0
      %6706 = vmatmul.mubr.f32.gmra.mxu0 %v6612
      %v6707 = vpop.f32.mrf.mxu0
      %v6708 = vadd.f32 0.0, %v6707
      %v6709 = vpop.f32.mrf.mxu0
      %6710 = vmatprep.mubr.f32.mxu0 0.0
      %6711 = vmatmul.mubr.f32.gmra.mxu0 %v6615
      %v6712 = vpop.f32.mrf.mxu0
      %v6713 = vadd.f32 0.0, %v6712
      %v6714 = vpop.f32.mrf.mxu0
      %6715 = vmatprep.mubr.f32.mxu0 0.0
      %6716 = vmatmul.mubr.f32.gmra.mxu0 %v6618
      %v6717 = vpop.f32.mrf.mxu0
      %v6718 = vadd.f32 0.0, %v6717
      %v6719 = vpop.f32.mrf.mxu0
      %6720 = vmatprep.mubr.f32.mxu0 0.0
      %6721 = vmatmul.mubr.f32.gmra.mxu0 %v6621
      %v6722 = vpop.f32.mrf.mxu0
      %v6723 = vadd.f32 0.0, %v6722
      %v6724 = vpop.f32.mrf.mxu0
      %6725 = vmatprep.mubr.f32.mxu0 0.0
      %6726 = vmatmul.mubr.f32.gmra.mxu0 %v6624
      %v6727 = vpop.f32.mrf.mxu0
      %v6728 = vadd.f32 0.0, %v6727
      %v6729 = vpop.f32.mrf.mxu0
      %6730 = vdwg.mxu0
      %6731 = vrot.lane.b32.xlu0 %v507, 40
      %v6732 = vpop.permute.xlu0 %6731
      %6733 = vrot.lane.b32.xlu0 %v512, 40
      %v6734 = vpop.permute.xlu0 %6733
      %6735 = vrot.lane.b32.xlu0 %v517, 40
      %v6736 = vpop.permute.xlu0 %6735
      %6737 = vrot.lane.b32.xlu0 %v522, 40
      %v6738 = vpop.permute.xlu0 %6737
      %6739 = vrot.lane.b32.xlu0 %v527, 40
      %v6740 = vpop.permute.xlu0 %6739
      %6741 = vrot.lane.b32.xlu0 %v532, 40
      %v6742 = vpop.permute.xlu0 %6741
      %6743 = vrot.lane.b32.xlu0 %v537, 40
      %v6744 = vpop.permute.xlu0 %6743
      %6745 = vrot.lane.b32.xlu0 %v542, 40
      %v6746 = vpop.permute.xlu0 %6745
      %v6756 = vsel %vm1278, %v6554, 0
      %v6759 = vsel %vm1278, %v6555, 0
      %v6762 = vsel %vm1278, %v6556, 0
      %v6765 = vsel %vm1278, %v6557, 0
      %v6768 = vsel %vm1278, %v6558, 0
      %v6771 = vsel %vm1278, %v6559, 0
      %v6774 = vsel %vm1278, %v6560, 0
      %v6777 = vsel %vm1278, %v6561, 0
      %6779 = vmatprep.subr.mxu0 0.0
      %6780 = vmatpush1.msra.mxu0 0.0
      %6781 = vmatprep.subr.mxu0 0.0
      %6782 = vmatpush1.msra.mxu0 0.0
      %6783 = vmatprep.subr.mxu0 0.0
      %6784 = vmatpush1.msra.mxu0 0.0
      %6785 = vmatprep.subr.mxu0 0.0
      %6786 = vmatpush1.msra.mxu0 0.0
      %6787 = vmatprep.subr.mxu0 0.0
      %6788 = vmatpush1.msra.mxu0 0.0
      %6789 = vmatprep.subr.mxu0 0.0
      %6790 = vmatpush1.msra.mxu0 0.0
      %6791 = vmatprep.subr.mxu0 0.0
      %6792 = vmatpush1.msra.mxu0 0.0
      %6793 = vmatprep.subr.mxu0 0.0
      %6794 = vmatpush1.msra.mxu0 0.0
      %6795 = vmatprep.subr.mxu0 0.0
      %6796 = vmatpush1.msra.mxu0 %v6746
      %6797 = vmatprep.subr.mxu0 0.0
      %6798 = vmatpush1.msra.mxu0 %v6744
      %6799 = vmatprep.subr.mxu0 0.0
      %6800 = vmatpush1.msra.mxu0 %v6742
      %6801 = vmatprep.subr.mxu0 0.0
      %6802 = vmatpush1.msra.mxu0 %v6740
      %6803 = vmatprep.subr.mxu0 0.0
      %6804 = vmatpush1.msra.mxu0 %v6738
      %6805 = vmatprep.subr.mxu0 0.0
      %6806 = vmatpush1.msra.mxu0 %v6736
      %6807 = vmatprep.subr.mxu0 0.0
      %6808 = vmatpush1.msra.mxu0 %v6734
      %6809 = vmatprep.subr.mxu0 0.0
      %6810 = vmatpush1.msra.mxu0 %v6732
      %6811 = vmatprep.subr.mxu0 0.0
      %6812 = vmatpush2.msra.mxu0 0.0
      %6813 = vmatprep.subr.mxu0 0.0
      %6814 = vmatpush2.msra.mxu0 0.0
      %6815 = vmatprep.subr.mxu0 0.0
      %6816 = vmatpush2.msra.mxu0 0.0
      %6817 = vmatprep.subr.mxu0 0.0
      %6818 = vmatpush2.msra.mxu0 0.0
      %6819 = vmatprep.subr.mxu0 0.0
      %6820 = vmatpush2.msra.mxu0 0.0
      %6821 = vmatprep.subr.mxu0 0.0
      %6822 = vmatpush2.msra.mxu0 0.0
      %6823 = vmatprep.subr.mxu0 0.0
      %6824 = vmatpush2.msra.mxu0 0.0
      %6825 = vmatprep.subr.mxu0 0.0
      %6826 = vmatpush2.msra.mxu0 0.0
      %6827 = vmatprep.subr.mxu0 0.0
      %6828 = vmatpush2.msra.mxu0 0.0
      %6829 = vmatprep.subr.mxu0 0.0
      %6830 = vmatpush2.msra.mxu0 0.0
      %6831 = vmatprep.subr.mxu0 0.0
      %6832 = vmatpush2.msra.mxu0 0.0
      %6833 = vmatprep.subr.mxu0 0.0
      %6834 = vmatpush2.msra.mxu0 0.0
      %6835 = vmatprep.subr.mxu0 0.0
      %6836 = vmatpush2.msra.mxu0 0.0
      %6837 = vmatprep.subr.mxu0 0.0
      %6838 = vmatpush2.msra.mxu0 0.0
      %6839 = vmatprep.subr.mxu0 0.0
      %6840 = vmatpush2.msra.mxu0 0.0
      %6841 = vmatprep.subr.mxu0 0.0
      %6842 = vmatpush2.msra.mxu0 0.0
      %6843 = vmatprep.mubr.f32.mxu0 0.0
      %6844 = vmatmul.mubr.f32.gmra.mxu0 %v6756
      %v6845 = vpop.f32.mrf.mxu0
      %v6846 = vadd.f32 0.0, %v6845
      %v6847 = vpop.f32.mrf.mxu0
      %6848 = vmatprep.mubr.f32.mxu0 0.0
      %6849 = vmatmul.mubr.f32.gmra.mxu0 %v6759
      %v6850 = vpop.f32.mrf.mxu0
      %v6851 = vadd.f32 0.0, %v6850
      %v6852 = vpop.f32.mrf.mxu0
      %6853 = vmatprep.mubr.f32.mxu0 0.0
      %6854 = vmatmul.mubr.f32.gmra.mxu0 %v6762
      %v6855 = vpop.f32.mrf.mxu0
      %v6856 = vadd.f32 0.0, %v6855
      %v6857 = vpop.f32.mrf.mxu0
      %6858 = vmatprep.mubr.f32.mxu0 0.0
      %6859 = vmatmul.mubr.f32.gmra.mxu0 %v6765
      %v6860 = vpop.f32.mrf.mxu0
      %v6861 = vadd.f32 0.0, %v6860
      %v6862 = vpop.f32.mrf.mxu0
      %6863 = vmatprep.mubr.f32.mxu0 0.0
      %6864 = vmatmul.mubr.f32.gmra.mxu0 %v6768
      %v6865 = vpop.f32.mrf.mxu0
      %v6866 = vadd.f32 0.0, %v6865
      %v6867 = vpop.f32.mrf.mxu0
      %6868 = vmatprep.mubr.f32.mxu0 0.0
      %6869 = vmatmul.mubr.f32.gmra.mxu0 %v6771
      %v6870 = vpop.f32.mrf.mxu0
      %v6871 = vadd.f32 0.0, %v6870
      %v6872 = vpop.f32.mrf.mxu0
      %6873 = vmatprep.mubr.f32.mxu0 0.0
      %6874 = vmatmul.mubr.f32.gmra.mxu0 %v6774
      %v6875 = vpop.f32.mrf.mxu0
      %v6876 = vadd.f32 0.0, %v6875
      %v6877 = vpop.f32.mrf.mxu0
      %6878 = vmatprep.mubr.f32.mxu0 0.0
      %6879 = vmatmul.mubr.f32.gmra.mxu0 %v6777
      %v6880 = vpop.f32.mrf.mxu0
      %v6881 = vadd.f32 0.0, %v6880
      %v6882 = vpop.f32.mrf.mxu0
      %6883 = vdwg.mxu0
      %6884 = vrot.lane.b32.xlu0 %v547, 40
      %v6885 = vpop.permute.xlu0 %6884
      %6886 = vrot.lane.b32.xlu0 %v552, 40
      %v6887 = vpop.permute.xlu0 %6886
      %6888 = vrot.lane.b32.xlu0 %v557, 40
      %v6889 = vpop.permute.xlu0 %6888
      %6890 = vrot.lane.b32.xlu0 %v562, 40
      %v6891 = vpop.permute.xlu0 %6890
      %6892 = vrot.lane.b32.xlu0 %v567, 40
      %v6893 = vpop.permute.xlu0 %6892
      %6894 = vrot.lane.b32.xlu0 %v572, 40
      %v6895 = vpop.permute.xlu0 %6894
      %6896 = vrot.lane.b32.xlu0 %v577, 40
      %v6897 = vpop.permute.xlu0 %6896
      %6898 = vrot.lane.b32.xlu0 %v582, 40
      %v6899 = vpop.permute.xlu0 %6898
      %v6909 = vsel %vm1278, %v6562, 0
      %v6912 = vsel %vm1278, %v6563, 0
      %v6915 = vsel %vm1278, %v6564, 0
      %v6918 = vsel %vm1278, %v6565, 0
      %v6921 = vsel %vm1278, %v6566, 0
      %v6924 = vsel %vm1278, %v6567, 0
      %v6927 = vsel %vm1278, %v6568, 0
      %v6930 = vsel %vm1278, %v6569, 0
      %6932 = vmatprep.subr.mxu0 0.0
      %6933 = vmatpush1.msra.mxu0 0.0
      %6934 = vmatprep.subr.mxu0 0.0
      %6935 = vmatpush1.msra.mxu0 0.0
      %6936 = vmatprep.subr.mxu0 0.0
      %6937 = vmatpush1.msra.mxu0 0.0
      %6938 = vmatprep.subr.mxu0 0.0
      %6939 = vmatpush1.msra.mxu0 0.0
      %6940 = vmatprep.subr.mxu0 0.0
      %6941 = vmatpush1.msra.mxu0 0.0
      %6942 = vmatprep.subr.mxu0 0.0
      %6943 = vmatpush1.msra.mxu0 0.0
      %6944 = vmatprep.subr.mxu0 0.0
      %6945 = vmatpush1.msra.mxu0 0.0
      %6946 = vmatprep.subr.mxu0 0.0
      %6947 = vmatpush1.msra.mxu0 0.0
      %6948 = vmatprep.subr.mxu0 0.0
      %6949 = vmatpush1.msra.mxu0 %v6899
      %6950 = vmatprep.subr.mxu0 0.0
      %6951 = vmatpush1.msra.mxu0 %v6897
      %6952 = vmatprep.subr.mxu0 0.0
      %6953 = vmatpush1.msra.mxu0 %v6895
      %6954 = vmatprep.subr.mxu0 0.0
      %6955 = vmatpush1.msra.mxu0 %v6893
      %6956 = vmatprep.subr.mxu0 0.0
      %6957 = vmatpush1.msra.mxu0 %v6891
      %6958 = vmatprep.subr.mxu0 0.0
      %6959 = vmatpush1.msra.mxu0 %v6889
      %6960 = vmatprep.subr.mxu0 0.0
      %6961 = vmatpush1.msra.mxu0 %v6887
      %6962 = vmatprep.subr.mxu0 0.0
      %6963 = vmatpush1.msra.mxu0 %v6885
      %6964 = vmatprep.subr.mxu0 0.0
      %6965 = vmatpush2.msra.mxu0 0.0
      %6966 = vmatprep.subr.mxu0 0.0
      %6967 = vmatpush2.msra.mxu0 0.0
      %6968 = vmatprep.subr.mxu0 0.0
      %6969 = vmatpush2.msra.mxu0 0.0
      %6970 = vmatprep.subr.mxu0 0.0
      %6971 = vmatpush2.msra.mxu0 0.0
      %6972 = vmatprep.subr.mxu0 0.0
      %6973 = vmatpush2.msra.mxu0 0.0
      %6974 = vmatprep.subr.mxu0 0.0
      %6975 = vmatpush2.msra.mxu0 0.0
      %6976 = vmatprep.subr.mxu0 0.0
      %6977 = vmatpush2.msra.mxu0 0.0
      %6978 = vmatprep.subr.mxu0 0.0
      %6979 = vmatpush2.msra.mxu0 0.0
      %6980 = vmatprep.subr.mxu0 0.0
      %6981 = vmatpush2.msra.mxu0 0.0
      %6982 = vmatprep.subr.mxu0 0.0
      %6983 = vmatpush2.msra.mxu0 0.0
      %6984 = vmatprep.subr.mxu0 0.0
      %6985 = vmatpush2.msra.mxu0 0.0
      %6986 = vmatprep.subr.mxu0 0.0
      %6987 = vmatpush2.msra.mxu0 0.0
      %6988 = vmatprep.subr.mxu0 0.0
      %6989 = vmatpush2.msra.mxu0 0.0
      %6990 = vmatprep.subr.mxu0 0.0
      %6991 = vmatpush2.msra.mxu0 0.0
      %6992 = vmatprep.subr.mxu0 0.0
      %6993 = vmatpush2.msra.mxu0 0.0
      %6994 = vmatprep.subr.mxu0 0.0
      %6995 = vmatpush2.msra.mxu0 0.0
      %6996 = vmatprep.mubr.f32.mxu0 0.0
      %6997 = vmatmul.mubr.f32.gmra.mxu0 %v6909
      %v6998 = vpop.f32.mrf.mxu0
      %v6999 = vadd.f32 0.0, %v6998
      %v7000 = vpop.f32.mrf.mxu0
      %7001 = vmatprep.mubr.f32.mxu0 0.0
      %7002 = vmatmul.mubr.f32.gmra.mxu0 %v6912
      %v7003 = vpop.f32.mrf.mxu0
      %v7004 = vadd.f32 0.0, %v7003
      %v7005 = vpop.f32.mrf.mxu0
      %7006 = vmatprep.mubr.f32.mxu0 0.0
      %7007 = vmatmul.mubr.f32.gmra.mxu0 %v6915
      %v7008 = vpop.f32.mrf.mxu0
      %v7009 = vadd.f32 0.0, %v7008
      %v7010 = vpop.f32.mrf.mxu0
      %7011 = vmatprep.mubr.f32.mxu0 0.0
      %7012 = vmatmul.mubr.f32.gmra.mxu0 %v6918
      %v7013 = vpop.f32.mrf.mxu0
      %v7014 = vadd.f32 0.0, %v7013
      %v7015 = vpop.f32.mrf.mxu0
      %7016 = vmatprep.mubr.f32.mxu0 0.0
      %7017 = vmatmul.mubr.f32.gmra.mxu0 %v6921
      %v7018 = vpop.f32.mrf.mxu0
      %v7019 = vadd.f32 0.0, %v7018
      %v7020 = vpop.f32.mrf.mxu0
      %7021 = vmatprep.mubr.f32.mxu0 0.0
      %7022 = vmatmul.mubr.f32.gmra.mxu0 %v6924
      %v7023 = vpop.f32.mrf.mxu0
      %v7024 = vadd.f32 0.0, %v7023
      %v7025 = vpop.f32.mrf.mxu0
      %7026 = vmatprep.mubr.f32.mxu0 0.0
      %7027 = vmatmul.mubr.f32.gmra.mxu0 %v6927
      %v7028 = vpop.f32.mrf.mxu0
      %v7029 = vadd.f32 0.0, %v7028
      %v7030 = vpop.f32.mrf.mxu0
      %7031 = vmatprep.mubr.f32.mxu0 0.0
      %7032 = vmatmul.mubr.f32.gmra.mxu0 %v6930
      %v7033 = vpop.f32.mrf.mxu0
      %v7034 = vadd.f32 0.0, %v7033
      %v7035 = vpop.f32.mrf.mxu0
      %7036 = vdwg.mxu0
      %7037 = vrot.lane.b32.xlu0 %v587, 40
      %v7038 = vpop.permute.xlu0 %7037
      %7039 = vrot.lane.b32.xlu0 %v592, 40
      %v7040 = vpop.permute.xlu0 %7039
      %7041 = vrot.lane.b32.xlu0 %v597, 40
      %v7042 = vpop.permute.xlu0 %7041
      %7043 = vrot.lane.b32.xlu0 %v602, 40
      %v7044 = vpop.permute.xlu0 %7043
      %7045 = vrot.lane.b32.xlu0 %v607, 40
      %v7046 = vpop.permute.xlu0 %7045
      %7047 = vrot.lane.b32.xlu0 %v612, 40
      %v7048 = vpop.permute.xlu0 %7047
      %7049 = vrot.lane.b32.xlu0 %v617, 40
      %v7050 = vpop.permute.xlu0 %7049
      %7051 = vrot.lane.b32.xlu0 %v622, 40
      %v7052 = vpop.permute.xlu0 %7051
      %v7062 = vsel %vm1278, %v6570, 0
      %v7065 = vsel %vm1278, %v6571, 0
      %v7068 = vsel %vm1278, %v6572, 0
      %v7071 = vsel %vm1278, %v6573, 0
      %v7074 = vsel %vm1278, %v6574, 0
      %v7077 = vsel %vm1278, %v6575, 0
      %v7080 = vsel %vm1278, %v6576, 0
      %v7083 = vsel %vm1278, %v6577, 0
      %7085 = vmatprep.subr.mxu0 0.0
      %7086 = vmatpush1.msra.mxu0 0.0
      %7087 = vmatprep.subr.mxu0 0.0
      %7088 = vmatpush1.msra.mxu0 0.0
      %7089 = vmatprep.subr.mxu0 0.0
      %7090 = vmatpush1.msra.mxu0 0.0
      %7091 = vmatprep.subr.mxu0 0.0
      %7092 = vmatpush1.msra.mxu0 0.0
      %7093 = vmatprep.subr.mxu0 0.0
      %7094 = vmatpush1.msra.mxu0 0.0
      %7095 = vmatprep.subr.mxu0 0.0
      %7096 = vmatpush1.msra.mxu0 0.0
      %7097 = vmatprep.subr.mxu0 0.0
      %7098 = vmatpush1.msra.mxu0 0.0
      %7099 = vmatprep.subr.mxu0 0.0
      %7100 = vmatpush1.msra.mxu0 0.0
      %7101 = vmatprep.subr.mxu0 0.0
      %7102 = vmatpush1.msra.mxu0 %v7052
      %7103 = vmatprep.subr.mxu0 0.0
      %7104 = vmatpush1.msra.mxu0 %v7050
      %7105 = vmatprep.subr.mxu0 0.0
      %7106 = vmatpush1.msra.mxu0 %v7048
      %7107 = vmatprep.subr.mxu0 0.0
      %7108 = vmatpush1.msra.mxu0 %v7046
      %7109 = vmatprep.subr.mxu0 0.0
      %7110 = vmatpush1.msra.mxu0 %v7044
      %7111 = vmatprep.subr.mxu0 0.0
      %7112 = vmatpush1.msra.mxu0 %v7042
      %7113 = vmatprep.subr.mxu0 0.0
      %7114 = vmatpush1.msra.mxu0 %v7040
      %7115 = vmatprep.subr.mxu0 0.0
      %7116 = vmatpush1.msra.mxu0 %v7038
      %7117 = vmatprep.subr.mxu0 0.0
      %7118 = vmatpush2.msra.mxu0 0.0
      %7119 = vmatprep.subr.mxu0 0.0
      %7120 = vmatpush2.msra.mxu0 0.0
      %7121 = vmatprep.subr.mxu0 0.0
      %7122 = vmatpush2.msra.mxu0 0.0
      %7123 = vmatprep.subr.mxu0 0.0
      %7124 = vmatpush2.msra.mxu0 0.0
      %7125 = vmatprep.subr.mxu0 0.0
      %7126 = vmatpush2.msra.mxu0 0.0
      %7127 = vmatprep.subr.mxu0 0.0
      %7128 = vmatpush2.msra.mxu0 0.0
      %7129 = vmatprep.subr.mxu0 0.0
      %7130 = vmatpush2.msra.mxu0 0.0
      %7131 = vmatprep.subr.mxu0 0.0
      %7132 = vmatpush2.msra.mxu0 0.0
      %7133 = vmatprep.subr.mxu0 0.0
      %7134 = vmatpush2.msra.mxu0 0.0
      %7135 = vmatprep.subr.mxu0 0.0
      %7136 = vmatpush2.msra.mxu0 0.0
      %7137 = vmatprep.subr.mxu0 0.0
      %7138 = vmatpush2.msra.mxu0 0.0
      %7139 = vmatprep.subr.mxu0 0.0
      %7140 = vmatpush2.msra.mxu0 0.0
      %7141 = vmatprep.subr.mxu0 0.0
      %7142 = vmatpush2.msra.mxu0 0.0
      %7143 = vmatprep.subr.mxu0 0.0
      %7144 = vmatpush2.msra.mxu0 0.0
      %7145 = vmatprep.subr.mxu0 0.0
      %7146 = vmatpush2.msra.mxu0 0.0
      %7147 = vmatprep.subr.mxu0 0.0
      %7148 = vmatpush2.msra.mxu0 0.0
      %7149 = vmatprep.mubr.f32.mxu0 0.0
      %7150 = vmatmul.mubr.f32.gmra.mxu0 %v7062
      %v7151 = vpop.f32.mrf.mxu0
      %v7152 = vadd.f32 0.0, %v7151
      %v7153 = vpop.f32.mrf.mxu0
      %7154 = vmatprep.mubr.f32.mxu0 0.0
      %7155 = vmatmul.mubr.f32.gmra.mxu0 %v7065
      %v7156 = vpop.f32.mrf.mxu0
      %v7157 = vadd.f32 0.0, %v7156
      %v7158 = vpop.f32.mrf.mxu0
      %7159 = vmatprep.mubr.f32.mxu0 0.0
      %7160 = vmatmul.mubr.f32.gmra.mxu0 %v7068
      %v7161 = vpop.f32.mrf.mxu0
      %v7162 = vadd.f32 0.0, %v7161
      %v7163 = vpop.f32.mrf.mxu0
      %7164 = vmatprep.mubr.f32.mxu0 0.0
      %7165 = vmatmul.mubr.f32.gmra.mxu0 %v7071
      %v7166 = vpop.f32.mrf.mxu0
      %v7167 = vadd.f32 0.0, %v7166
      %v7168 = vpop.f32.mrf.mxu0
      %7169 = vmatprep.mubr.f32.mxu0 0.0
      %7170 = vmatmul.mubr.f32.gmra.mxu0 %v7074
      %v7171 = vpop.f32.mrf.mxu0
      %v7172 = vadd.f32 0.0, %v7171
      %v7173 = vpop.f32.mrf.mxu0
      %7174 = vmatprep.mubr.f32.mxu0 0.0
      %7175 = vmatmul.mubr.f32.gmra.mxu0 %v7077
      %v7176 = vpop.f32.mrf.mxu0
      %v7177 = vadd.f32 0.0, %v7176
      %v7178 = vpop.f32.mrf.mxu0
      %7179 = vmatprep.mubr.f32.mxu0 0.0
      %7180 = vmatmul.mubr.f32.gmra.mxu0 %v7080
      %v7181 = vpop.f32.mrf.mxu0
      %v7182 = vadd.f32 0.0, %v7181
      %v7183 = vpop.f32.mrf.mxu0
      %7184 = vmatprep.mubr.f32.mxu0 0.0
      %7185 = vmatmul.mubr.f32.gmra.mxu0 %v7083
      %v7186 = vpop.f32.mrf.mxu0
      %v7187 = vadd.f32 0.0, %v7186
      %v7188 = vpop.f32.mrf.mxu0
      %7189 = vdwg.mxu0
      %7222 = vrot.lane.b32.xlu0 %v3395, 8
      %v7223 = vpop.permute.xlu0 %7222
      %7224 = vrot.lane.b32.xlu0 %v3400, 8
      %v7225 = vpop.permute.xlu0 %7224
      %7226 = vrot.lane.b32.xlu0 %v3405, 8
      %v7227 = vpop.permute.xlu0 %7226
      %7228 = vrot.lane.b32.xlu0 %v3410, 8
      %v7229 = vpop.permute.xlu0 %7228
      %7230 = vrot.lane.b32.xlu0 %v3415, 8
      %v7231 = vpop.permute.xlu0 %7230
      %7232 = vrot.lane.b32.xlu0 %v3420, 8
      %v7233 = vpop.permute.xlu0 %7232
      %7234 = vrot.lane.b32.xlu0 %v3425, 8
      %v7235 = vpop.permute.xlu0 %7234
      %7236 = vrot.lane.b32.xlu0 %v3430, 8
      %v7237 = vpop.permute.xlu0 %7236
      %7238 = vrot.lane.b32.xlu0 %v3548, 8
      %v7239 = vpop.permute.xlu0 %7238
      %7240 = vrot.lane.b32.xlu0 %v3553, 8
      %v7241 = vpop.permute.xlu0 %7240
      %7242 = vrot.lane.b32.xlu0 %v3558, 8
      %v7243 = vpop.permute.xlu0 %7242
      %7244 = vrot.lane.b32.xlu0 %v3563, 8
      %v7245 = vpop.permute.xlu0 %7244
      %7246 = vrot.lane.b32.xlu0 %v3568, 8
      %v7247 = vpop.permute.xlu0 %7246
      %7248 = vrot.lane.b32.xlu0 %v3573, 8
      %v7249 = vpop.permute.xlu0 %7248
      %7250 = vrot.lane.b32.xlu0 %v3578, 8
      %v7251 = vpop.permute.xlu0 %7250
      %7252 = vrot.lane.b32.xlu0 %v3583, 8
      %v7253 = vpop.permute.xlu0 %7252
      %7254 = vrot.lane.b32.xlu0 %v3701, 8
      %v7255 = vpop.permute.xlu0 %7254
      %7256 = vrot.lane.b32.xlu0 %v3706, 8
      %v7257 = vpop.permute.xlu0 %7256
      %7258 = vrot.lane.b32.xlu0 %v3711, 8
      %v7259 = vpop.permute.xlu0 %7258
      %7260 = vrot.lane.b32.xlu0 %v3716, 8
      %v7261 = vpop.permute.xlu0 %7260
      %7262 = vrot.lane.b32.xlu0 %v3721, 8
      %v7263 = vpop.permute.xlu0 %7262
      %7264 = vrot.lane.b32.xlu0 %v3726, 8
      %v7265 = vpop.permute.xlu0 %7264
      %7266 = vrot.lane.b32.xlu0 %v3731, 8
      %v7267 = vpop.permute.xlu0 %7266
      %7268 = vrot.lane.b32.xlu0 %v3736, 8
      %v7269 = vpop.permute.xlu0 %7268
      %7270 = vrot.lane.b32.xlu0 %v3854, 8
      %v7271 = vpop.permute.xlu0 %7270
      %7272 = vrot.lane.b32.xlu0 %v3859, 8
      %v7273 = vpop.permute.xlu0 %7272
      %7274 = vrot.lane.b32.xlu0 %v3864, 8
      %v7275 = vpop.permute.xlu0 %7274
      %7276 = vrot.lane.b32.xlu0 %v3869, 8
      %v7277 = vpop.permute.xlu0 %7276
      %7278 = vrot.lane.b32.xlu0 %v3874, 8
      %v7279 = vpop.permute.xlu0 %7278
      %7280 = vrot.lane.b32.xlu0 %v3879, 8
      %v7281 = vpop.permute.xlu0 %7280
      %7282 = vrot.lane.b32.xlu0 %v3884, 8
      %v7283 = vpop.permute.xlu0 %7282
      %7284 = vrot.lane.b32.xlu0 %v3889, 8
      %v7285 = vpop.permute.xlu0 %7284
      %7350 = vrot.lane.b32.xlu0 %v5044, 16
      %v7351 = vpop.permute.xlu0 %7350
      %7352 = vrot.lane.b32.xlu0 %v5049, 16
      %v7353 = vpop.permute.xlu0 %7352
      %7354 = vrot.lane.b32.xlu0 %v5054, 16
      %v7355 = vpop.permute.xlu0 %7354
      %7356 = vrot.lane.b32.xlu0 %v5059, 16
      %v7357 = vpop.permute.xlu0 %7356
      %7358 = vrot.lane.b32.xlu0 %v5064, 16
      %v7359 = vpop.permute.xlu0 %7358
      %7360 = vrot.lane.b32.xlu0 %v5069, 16
      %v7361 = vpop.permute.xlu0 %7360
      %7362 = vrot.lane.b32.xlu0 %v5074, 16
      %v7363 = vpop.permute.xlu0 %7362
      %7364 = vrot.lane.b32.xlu0 %v5079, 16
      %v7365 = vpop.permute.xlu0 %7364
      %7366 = vrot.lane.b32.xlu0 %v5197, 16
      %v7367 = vpop.permute.xlu0 %7366
      %7368 = vrot.lane.b32.xlu0 %v5202, 16
      %v7369 = vpop.permute.xlu0 %7368
      %7370 = vrot.lane.b32.xlu0 %v5207, 16
      %v7371 = vpop.permute.xlu0 %7370
      %7372 = vrot.lane.b32.xlu0 %v5212, 16
      %v7373 = vpop.permute.xlu0 %7372
      %7374 = vrot.lane.b32.xlu0 %v5217, 16
      %v7375 = vpop.permute.xlu0 %7374
      %7376 = vrot.lane.b32.xlu0 %v5222, 16
      %v7377 = vpop.permute.xlu0 %7376
      %7378 = vrot.lane.b32.xlu0 %v5227, 16
      %v7379 = vpop.permute.xlu0 %7378
      %7380 = vrot.lane.b32.xlu0 %v5232, 16
      %v7381 = vpop.permute.xlu0 %7380
      %7382 = vrot.lane.b32.xlu0 %v5350, 16
      %v7383 = vpop.permute.xlu0 %7382
      %7384 = vrot.lane.b32.xlu0 %v5355, 16
      %v7385 = vpop.permute.xlu0 %7384
      %7386 = vrot.lane.b32.xlu0 %v5360, 16
      %v7387 = vpop.permute.xlu0 %7386
      %7388 = vrot.lane.b32.xlu0 %v5365, 16
      %v7389 = vpop.permute.xlu0 %7388
      %7390 = vrot.lane.b32.xlu0 %v5370, 16
      %v7391 = vpop.permute.xlu0 %7390
      %7392 = vrot.lane.b32.xlu0 %v5375, 16
      %v7393 = vpop.permute.xlu0 %7392
      %7394 = vrot.lane.b32.xlu0 %v5380, 16
      %v7395 = vpop.permute.xlu0 %7394
      %7396 = vrot.lane.b32.xlu0 %v5385, 16
      %v7397 = vpop.permute.xlu0 %7396
      %7398 = vrot.lane.b32.xlu0 %v5503, 16
      %v7399 = vpop.permute.xlu0 %7398
      %7400 = vrot.lane.b32.xlu0 %v5508, 16
      %v7401 = vpop.permute.xlu0 %7400
      %7402 = vrot.lane.b32.xlu0 %v5513, 16
      %v7403 = vpop.permute.xlu0 %7402
      %7404 = vrot.lane.b32.xlu0 %v5518, 16
      %v7405 = vpop.permute.xlu0 %7404
      %7406 = vrot.lane.b32.xlu0 %v5523, 16
      %v7407 = vpop.permute.xlu0 %7406
      %7408 = vrot.lane.b32.xlu0 %v5528, 16
      %v7409 = vpop.permute.xlu0 %7408
      %7410 = vrot.lane.b32.xlu0 %v5533, 16
      %v7411 = vpop.permute.xlu0 %7410
      %7412 = vrot.lane.b32.xlu0 %v5538, 16
      %v7413 = vpop.permute.xlu0 %7412
      %7478 = vrot.lane.b32.xlu0 %v6693, 24
      %v7479 = vpop.permute.xlu0 %7478
      %7480 = vrot.lane.b32.xlu0 %v6698, 24
      %v7481 = vpop.permute.xlu0 %7480
      %7482 = vrot.lane.b32.xlu0 %v6703, 24
      %v7483 = vpop.permute.xlu0 %7482
      %7484 = vrot.lane.b32.xlu0 %v6708, 24
      %v7485 = vpop.permute.xlu0 %7484
      %7486 = vrot.lane.b32.xlu0 %v6713, 24
      %v7487 = vpop.permute.xlu0 %7486
      %7488 = vrot.lane.b32.xlu0 %v6718, 24
      %v7489 = vpop.permute.xlu0 %7488
      %7490 = vrot.lane.b32.xlu0 %v6723, 24
      %v7491 = vpop.permute.xlu0 %7490
      %7492 = vrot.lane.b32.xlu0 %v6728, 24
      %v7493 = vpop.permute.xlu0 %7492
      %7494 = vrot.lane.b32.xlu0 %v6846, 24
      %v7495 = vpop.permute.xlu0 %7494
      %7496 = vrot.lane.b32.xlu0 %v6851, 24
      %v7497 = vpop.permute.xlu0 %7496
      %7498 = vrot.lane.b32.xlu0 %v6856, 24
      %v7499 = vpop.permute.xlu0 %7498
      %7500 = vrot.lane.b32.xlu0 %v6861, 24
      %v7501 = vpop.permute.xlu0 %7500
      %7502 = vrot.lane.b32.xlu0 %v6866, 24
      %v7503 = vpop.permute.xlu0 %7502
      %7504 = vrot.lane.b32.xlu0 %v6871, 24
      %v7505 = vpop.permute.xlu0 %7504
      %7506 = vrot.lane.b32.xlu0 %v6876, 24
      %v7507 = vpop.permute.xlu0 %7506
      %7508 = vrot.lane.b32.xlu0 %v6881, 24
      %v7509 = vpop.permute.xlu0 %7508
      %7510 = vrot.lane.b32.xlu0 %v6999, 24
      %v7511 = vpop.permute.xlu0 %7510
      %7512 = vrot.lane.b32.xlu0 %v7004, 24
      %v7513 = vpop.permute.xlu0 %7512
      %7514 = vrot.lane.b32.xlu0 %v7009, 24
      %v7515 = vpop.permute.xlu0 %7514
      %7516 = vrot.lane.b32.xlu0 %v7014, 24
      %v7517 = vpop.permute.xlu0 %7516
      %7518 = vrot.lane.b32.xlu0 %v7019, 24
      %v7519 = vpop.permute.xlu0 %7518
      %7520 = vrot.lane.b32.xlu0 %v7024, 24
      %v7521 = vpop.permute.xlu0 %7520
      %7522 = vrot.lane.b32.xlu0 %v7029, 24
      %v7523 = vpop.permute.xlu0 %7522
      %7524 = vrot.lane.b32.xlu0 %v7034, 24
      %v7525 = vpop.permute.xlu0 %7524
      %7526 = vrot.lane.b32.xlu0 %v7152, 24
      %v7527 = vpop.permute.xlu0 %7526
      %7528 = vrot.lane.b32.xlu0 %v7157, 24
      %v7529 = vpop.permute.xlu0 %7528
      %7530 = vrot.lane.b32.xlu0 %v7162, 24
      %v7531 = vpop.permute.xlu0 %7530
      %7532 = vrot.lane.b32.xlu0 %v7167, 24
      %v7533 = vpop.permute.xlu0 %7532
      %7534 = vrot.lane.b32.xlu0 %v7172, 24
      %v7535 = vpop.permute.xlu0 %7534
      %7536 = vrot.lane.b32.xlu0 %v7177, 24
      %v7537 = vpop.permute.xlu0 %7536
      %7538 = vrot.lane.b32.xlu0 %v7182, 24
      %v7539 = vpop.permute.xlu0 %7538
      %7540 = vrot.lane.b32.xlu0 %v7187, 24
      %v7541 = vpop.permute.xlu0 %7540
      %v7574 = vsel %vm657, %v1746, %v7223
      %v7575 = vsel %vm657, %v1751, %v7225
      %v7576 = vsel %vm657, %v1756, %v7227
      %v7577 = vsel %vm657, %v1761, %v7229
      %v7578 = vsel %vm657, %v1766, %v7231
      %v7579 = vsel %vm657, %v1771, %v7233
      %v7580 = vsel %vm657, %v1776, %v7235
      %v7581 = vsel %vm657, %v1781, %v7237
      %v7582 = vsel %vm657, %v1899, %v7239
      %v7583 = vsel %vm657, %v1904, %v7241
      %v7584 = vsel %vm657, %v1909, %v7243
      %v7585 = vsel %vm657, %v1914, %v7245
      %v7586 = vsel %vm657, %v1919, %v7247
      %v7587 = vsel %vm657, %v1924, %v7249
      %v7588 = vsel %vm657, %v1929, %v7251
      %v7589 = vsel %vm657, %v1934, %v7253
      %v7590 = vsel %vm657, %v2052, %v7255
      %v7591 = vsel %vm657, %v2057, %v7257
      %v7592 = vsel %vm657, %v2062, %v7259
      %v7593 = vsel %vm657, %v2067, %v7261
      %v7594 = vsel %vm657, %v2072, %v7263
      %v7595 = vsel %vm657, %v2077, %v7265
      %v7596 = vsel %vm657, %v2082, %v7267
      %v7597 = vsel %vm657, %v2087, %v7269
      %v7598 = vsel %vm657, %v2205, %v7271
      %v7599 = vsel %vm657, %v2210, %v7273
      %v7600 = vsel %vm657, %v2215, %v7275
      %v7601 = vsel %vm657, %v2220, %v7277
      %v7602 = vsel %vm657, %v2225, %v7279
      %v7603 = vsel %vm657, %v2230, %v7281
      %v7604 = vsel %vm657, %v2235, %v7283
      %v7605 = vsel %vm657, %v2240, %v7285
      %vm7606 = vcmask 130048
      %v7607 = vsel %vm7606, %v7574, %v7351
      %v7608 = vsel %vm7606, %v7575, %v7353
      %v7609 = vsel %vm7606, %v7576, %v7355
      %v7610 = vsel %vm7606, %v7577, %v7357
      %v7611 = vsel %vm7606, %v7578, %v7359
      %v7612 = vsel %vm7606, %v7579, %v7361
      %v7613 = vsel %vm7606, %v7580, %v7363
      %v7614 = vsel %vm7606, %v7581, %v7365
      %v7615 = vsel %vm7606, %v7582, %v7367
      %v7616 = vsel %vm7606, %v7583, %v7369
      %v7617 = vsel %vm7606, %v7584, %v7371
      %v7618 = vsel %vm7606, %v7585, %v7373
      %v7619 = vsel %vm7606, %v7586, %v7375
      %v7620 = vsel %vm7606, %v7587, %v7377
      %v7621 = vsel %vm7606, %v7588, %v7379
      %v7622 = vsel %vm7606, %v7589, %v7381
      %v7623 = vsel %vm7606, %v7590, %v7383
      %v7624 = vsel %vm7606, %v7591, %v7385
      %v7625 = vsel %vm7606, %v7592, %v7387
      %v7626 = vsel %vm7606, %v7593, %v7389
      %v7627 = vsel %vm7606, %v7594, %v7391
      %v7628 = vsel %vm7606, %v7595, %v7393
      %v7629 = vsel %vm7606, %v7596, %v7395
      %v7630 = vsel %vm7606, %v7597, %v7397
      %v7631 = vsel %vm7606, %v7598, %v7399
      %v7632 = vsel %vm7606, %v7599, %v7401
      %v7633 = vsel %vm7606, %v7600, %v7403
      %v7634 = vsel %vm7606, %v7601, %v7405
      %v7635 = vsel %vm7606, %v7602, %v7407
      %v7636 = vsel %vm7606, %v7603, %v7409
      %v7637 = vsel %vm7606, %v7604, %v7411
      %v7638 = vsel %vm7606, %v7605, %v7413
      %vm7639 = vcmask 195584
      %v7640 = vsel %vm7639, %v7607, %v7479
      %v7641 = vsel %vm7639, %v7608, %v7481
      %v7642 = vsel %vm7639, %v7609, %v7483
      %v7643 = vsel %vm7639, %v7610, %v7485
      %v7644 = vsel %vm7639, %v7611, %v7487
      %v7645 = vsel %vm7639, %v7612, %v7489
      %v7646 = vsel %vm7639, %v7613, %v7491
      %v7647 = vsel %vm7639, %v7614, %v7493
      %v7648 = vsel %vm7639, %v7615, %v7495
      %v7649 = vsel %vm7639, %v7616, %v7497
      %v7650 = vsel %vm7639, %v7617, %v7499
      %v7651 = vsel %vm7639, %v7618, %v7501
      %v7652 = vsel %vm7639, %v7619, %v7503
      %v7653 = vsel %vm7639, %v7620, %v7505
      %v7654 = vsel %vm7639, %v7621, %v7507
      %v7655 = vsel %vm7639, %v7622, %v7509
      %v7656 = vsel %vm7639, %v7623, %v7511
      %v7657 = vsel %vm7639, %v7624, %v7513
      %v7658 = vsel %vm7639, %v7625, %v7515
      %v7659 = vsel %vm7639, %v7626, %v7517
      %v7660 = vsel %vm7639, %v7627, %v7519
      %v7661 = vsel %vm7639, %v7628, %v7521
      %v7662 = vsel %vm7639, %v7629, %v7523
      %v7663 = vsel %vm7639, %v7630, %v7525
      %v7664 = vsel %vm7639, %v7631, %v7527
      %v7665 = vsel %vm7639, %v7632, %v7529
      %v7666 = vsel %vm7639, %v7633, %v7531
      %v7667 = vsel %vm7639, %v7634, %v7533
      %v7668 = vsel %vm7639, %v7635, %v7535
      %v7669 = vsel %vm7639, %v7636, %v7537
      %v7670 = vsel %vm7639, %v7637, %v7539
      %v7671 = vsel %vm7639, %v7638, %v7541
      %v7672 = vld [vmem:[%s4] sm:$0xff]
      %v7673 = vld [vmem:[%s4 + $0x8] sm:$0xff]
      %v7674 = vld [vmem:[%s4 + $0x10] sm:$0xff]
      %v7675 = vld [vmem:[%s4 + $0x18] sm:$0xff]
      %v7676 = vld [vmem:[%s5] sm:$0x1]
      %v7678 = vlaneseq
      %v7679 = vshrl.u32 %v7678, 7
      %v7680 = vsub.s32 0, %v7679
      %v7681 = vrot.slane %v7676, %v7680
      %v7684 = vsel %vm303, %v7640, 0
      %v7687 = vsel %vm303, %v7641, 0
      %v7690 = vsel %vm303, %v7642, 0
      %v7693 = vsel %vm303, %v7643, 0
      %v7696 = vsel %vm303, %v7644, 0
      %v7699 = vsel %vm303, %v7645, 0
      %v7702 = vsel %vm303, %v7646, 0
      %v7705 = vsel %vm303, %v7647, 0
      %v7708 = vsel %vm303, %v7648, 0
      %v7711 = vsel %vm303, %v7649, 0
      %v7714 = vsel %vm303, %v7650, 0
      %v7717 = vsel %vm303, %v7651, 0
      %v7720 = vsel %vm303, %v7652, 0
      %v7723 = vsel %vm303, %v7653, 0
      %v7726 = vsel %vm303, %v7654, 0
      %v7729 = vsel %vm303, %v7655, 0
      %v7732 = vsel %vm303, %v7656, 0
      %v7735 = vsel %vm303, %v7657, 0
      %v7738 = vsel %vm303, %v7658, 0
      %v7741 = vsel %vm303, %v7659, 0
      %v7744 = vsel %vm303, %v7660, 0
      %v7747 = vsel %vm303, %v7661, 0
      %v7750 = vsel %vm303, %v7662, 0
      %v7753 = vsel %vm303, %v7663, 0
      %v7756 = vsel %vm303, %v7664, 0
      %v7759 = vsel %vm303, %v7665, 0
      %v7762 = vsel %vm303, %v7666, 0
      %v7765 = vsel %vm303, %v7667, 0
      %v7768 = vsel %vm303, %v7668, 0
      %v7771 = vsel %vm303, %v7669, 0
      %v7774 = vsel %vm303, %v7670, 0
      %v7777 = vsel %vm303, %v7671, 0
      %7779 = vmatprep.subr.mxu0 0.0
      %7780 = vmatpush1.msra.mxu0 0.0
      %7781 = vmatprep.subr.mxu0 0.0
      %7782 = vmatpush1.msra.mxu0 0.0
      %7783 = vmatprep.subr.mxu0 0.0
      %7784 = vmatpush1.msra.mxu0 0.0
      %7785 = vmatprep.subr.mxu0 0.0
      %7786 = vmatpush1.msra.mxu0 0.0
      %7787 = vmatprep.subr.mxu0 0.0
      %7788 = vmatpush1.msra.mxu0 0.0
      %7789 = vmatprep.subr.mxu0 0.0
      %7790 = vmatpush1.msra.mxu0 0.0
      %7791 = vmatprep.subr.mxu0 0.0
      %7792 = vmatpush1.msra.mxu0 0.0
      %7793 = vmatprep.subr.mxu0 0.0
      %7794 = vmatpush1.msra.mxu0 0.0
      %7795 = vmatprep.subr.mxu0 0.0
      %7796 = vmatpush1.msra.mxu0 0.0
      %7797 = vmatprep.subr.mxu0 0.0
      %7798 = vmatpush1.msra.mxu0 0.0
      %7799 = vmatprep.subr.mxu0 0.0
      %7800 = vmatpush1.msra.mxu0 0.0
      %7801 = vmatprep.subr.mxu0 0.0
      %7802 = vmatpush1.msra.mxu0 0.0
      %7803 = vmatprep.subr.mxu0 0.0
      %7804 = vmatpush1.msra.mxu0 %v7675
      %7805 = vmatprep.subr.mxu0 0.0
      %7806 = vmatpush1.msra.mxu0 %v7674
      %7807 = vmatprep.subr.mxu0 0.0
      %7808 = vmatpush1.msra.mxu0 %v7673
      %7809 = vmatprep.subr.mxu0 0.0
      %7810 = vmatpush1.msra.mxu0 %v7672
      %7811 = vmatprep.subr.mxu0 0.0
      %7812 = vmatpush2.msra.mxu0 0.0
      %7813 = vmatprep.subr.mxu0 0.0
      %7814 = vmatpush2.msra.mxu0 0.0
      %7815 = vmatprep.subr.mxu0 0.0
      %7816 = vmatpush2.msra.mxu0 0.0
      %7817 = vmatprep.subr.mxu0 0.0
      %7818 = vmatpush2.msra.mxu0 0.0
      %7819 = vmatprep.subr.mxu0 0.0
      %7820 = vmatpush2.msra.mxu0 0.0
      %7821 = vmatprep.subr.mxu0 0.0
      %7822 = vmatpush2.msra.mxu0 0.0
      %7823 = vmatprep.subr.mxu0 0.0
      %7824 = vmatpush2.msra.mxu0 0.0
      %7825 = vmatprep.subr.mxu0 0.0
      %7826 = vmatpush2.msra.mxu0 0.0
      %7827 = vmatprep.subr.mxu0 0.0
      %7828 = vmatpush2.msra.mxu0 0.0
      %7829 = vmatprep.subr.mxu0 0.0
      %7830 = vmatpush2.msra.mxu0 0.0
      %7831 = vmatprep.subr.mxu0 0.0
      %7832 = vmatpush2.msra.mxu0 0.0
      %7833 = vmatprep.subr.mxu0 0.0
      %7834 = vmatpush2.msra.mxu0 0.0
      %7835 = vmatprep.subr.mxu0 0.0
      %7836 = vmatpush2.msra.mxu0 0.0
      %7837 = vmatprep.subr.mxu0 0.0
      %7838 = vmatpush2.msra.mxu0 0.0
      %7839 = vmatprep.subr.mxu0 0.0
      %7840 = vmatpush2.msra.mxu0 0.0
      %7841 = vmatprep.subr.mxu0 0.0
      %7842 = vmatpush2.msra.mxu0 0.0
      %7843 = vmatprep.mubr.f32.mxu0 0.0
      %7844 = vmatmul.mubr.f32.gmra.mxu0 %v7684
      %v7845 = vpop.f32.mrf.mxu0
      %v7846 = vadd.f32 %v7681, %v7845
      %v7847 = vpop.f32.mrf.mxu0
      %7848 = vmatprep.mubr.f32.mxu0 0.0
      %7849 = vmatmul.mubr.f32.gmra.mxu0 %v7687
      %v7850 = vpop.f32.mrf.mxu0
      %v7851 = vadd.f32 %v7681, %v7850
      %v7852 = vpop.f32.mrf.mxu0
      %7853 = vmatprep.mubr.f32.mxu0 0.0
      %7854 = vmatmul.mubr.f32.gmra.mxu0 %v7690
      %v7855 = vpop.f32.mrf.mxu0
      %v7856 = vadd.f32 %v7681, %v7855
      %v7857 = vpop.f32.mrf.mxu0
      %7858 = vmatprep.mubr.f32.mxu0 0.0
      %7859 = vmatmul.mubr.f32.gmra.mxu0 %v7693
      %v7860 = vpop.f32.mrf.mxu0
      %v7861 = vadd.f32 %v7681, %v7860
      %v7862 = vpop.f32.mrf.mxu0
      %7863 = vmatprep.mubr.f32.mxu0 0.0
      %7864 = vmatmul.mubr.f32.gmra.mxu0 %v7696
      %v7865 = vpop.f32.mrf.mxu0
      %v7866 = vadd.f32 %v7681, %v7865
      %v7867 = vpop.f32.mrf.mxu0
      %7868 = vmatprep.mubr.f32.mxu0 0.0
      %7869 = vmatmul.mubr.f32.gmra.mxu0 %v7699
      %v7870 = vpop.f32.mrf.mxu0
      %v7871 = vadd.f32 %v7681, %v7870
      %v7872 = vpop.f32.mrf.mxu0
      %7873 = vmatprep.mubr.f32.mxu0 0.0
      %7874 = vmatmul.mubr.f32.gmra.mxu0 %v7702
      %v7875 = vpop.f32.mrf.mxu0
      %v7876 = vadd.f32 %v7681, %v7875
      %v7877 = vpop.f32.mrf.mxu0
      %7878 = vmatprep.mubr.f32.mxu0 0.0
      %7879 = vmatmul.mubr.f32.gmra.mxu0 %v7705
      %v7880 = vpop.f32.mrf.mxu0
      %v7881 = vadd.f32 %v7681, %v7880
      %v7882 = vpop.f32.mrf.mxu0
      %7883 = vmatprep.mubr.f32.mxu0 0.0
      %7884 = vmatmul.mubr.f32.gmra.mxu0 %v7708
      %v7885 = vpop.f32.mrf.mxu0
      %v7886 = vadd.f32 %v7681, %v7885
      %v7887 = vpop.f32.mrf.mxu0
      %7888 = vmatprep.mubr.f32.mxu0 0.0
      %7889 = vmatmul.mubr.f32.gmra.mxu0 %v7711
      %v7890 = vpop.f32.mrf.mxu0
      %v7891 = vadd.f32 %v7681, %v7890
      %v7892 = vpop.f32.mrf.mxu0
      %7893 = vmatprep.mubr.f32.mxu0 0.0
      %7894 = vmatmul.mubr.f32.gmra.mxu0 %v7714
      %v7895 = vpop.f32.mrf.mxu0
      %v7896 = vadd.f32 %v7681, %v7895
      %v7897 = vpop.f32.mrf.mxu0
      %7898 = vmatprep.mubr.f32.mxu0 0.0
      %7899 = vmatmul.mubr.f32.gmra.mxu0 %v7717
      %v7900 = vpop.f32.mrf.mxu0
      %v7901 = vadd.f32 %v7681, %v7900
      %v7902 = vpop.f32.mrf.mxu0
      %7903 = vmatprep.mubr.f32.mxu0 0.0
      %7904 = vmatmul.mubr.f32.gmra.mxu0 %v7720
      %v7905 = vpop.f32.mrf.mxu0
      %v7906 = vadd.f32 %v7681, %v7905
      %v7907 = vpop.f32.mrf.mxu0
      %7908 = vmatprep.mubr.f32.mxu0 0.0
      %7909 = vmatmul.mubr.f32.gmra.mxu0 %v7723
      %v7910 = vpop.f32.mrf.mxu0
      %v7911 = vadd.f32 %v7681, %v7910
      %v7912 = vpop.f32.mrf.mxu0
      %7913 = vmatprep.mubr.f32.mxu0 0.0
      %7914 = vmatmul.mubr.f32.gmra.mxu0 %v7726
      %v7915 = vpop.f32.mrf.mxu0
      %v7916 = vadd.f32 %v7681, %v7915
      %v7917 = vpop.f32.mrf.mxu0
      %7918 = vmatprep.mubr.f32.mxu0 0.0
      %7919 = vmatmul.mubr.f32.gmra.mxu0 %v7729
      %v7920 = vpop.f32.mrf.mxu0
      %v7921 = vadd.f32 %v7681, %v7920
      %v7922 = vpop.f32.mrf.mxu0
      %7923 = vmatprep.mubr.f32.mxu0 0.0
      %7924 = vmatmul.mubr.f32.gmra.mxu0 %v7732
      %v7925 = vpop.f32.mrf.mxu0
      %v7926 = vadd.f32 %v7681, %v7925
      %v7927 = vpop.f32.mrf.mxu0
      %7928 = vmatprep.mubr.f32.mxu0 0.0
      %7929 = vmatmul.mubr.f32.gmra.mxu0 %v7735
      %v7930 = vpop.f32.mrf.mxu0
      %v7931 = vadd.f32 %v7681, %v7930
      %v7932 = vpop.f32.mrf.mxu0
      %7933 = vmatprep.mubr.f32.mxu0 0.0
      %7934 = vmatmul.mubr.f32.gmra.mxu0 %v7738
      %v7935 = vpop.f32.mrf.mxu0
      %v7936 = vadd.f32 %v7681, %v7935
      %v7937 = vpop.f32.mrf.mxu0
      %7938 = vmatprep.mubr.f32.mxu0 0.0
      %7939 = vmatmul.mubr.f32.gmra.mxu0 %v7741
      %v7940 = vpop.f32.mrf.mxu0
      %v7941 = vadd.f32 %v7681, %v7940
      %v7942 = vpop.f32.mrf.mxu0
      %7943 = vmatprep.mubr.f32.mxu0 0.0
      %7944 = vmatmul.mubr.f32.gmra.mxu0 %v7744
      %v7945 = vpop.f32.mrf.mxu0
      %v7946 = vadd.f32 %v7681, %v7945
      %v7947 = vpop.f32.mrf.mxu0
      %7948 = vmatprep.mubr.f32.mxu0 0.0
      %7949 = vmatmul.mubr.f32.gmra.mxu0 %v7747
      %v7950 = vpop.f32.mrf.mxu0
      %v7951 = vadd.f32 %v7681, %v7950
      %v7952 = vpop.f32.mrf.mxu0
      %7953 = vmatprep.mubr.f32.mxu0 0.0
      %7954 = vmatmul.mubr.f32.gmra.mxu0 %v7750
      %v7955 = vpop.f32.mrf.mxu0
      %v7956 = vadd.f32 %v7681, %v7955
      %v7957 = vpop.f32.mrf.mxu0
      %7958 = vmatprep.mubr.f32.mxu0 0.0
      %7959 = vmatmul.mubr.f32.gmra.mxu0 %v7753
      %v7960 = vpop.f32.mrf.mxu0
      %v7961 = vadd.f32 %v7681, %v7960
      %v7962 = vpop.f32.mrf.mxu0
      %7963 = vmatprep.mubr.f32.mxu0 0.0
      %7964 = vmatmul.mubr.f32.gmra.mxu0 %v7756
      %v7965 = vpop.f32.mrf.mxu0
      %v7966 = vadd.f32 %v7681, %v7965
      %v7967 = vpop.f32.mrf.mxu0
      %7968 = vmatprep.mubr.f32.mxu0 0.0
      %7969 = vmatmul.mubr.f32.gmra.mxu0 %v7759
      %v7970 = vpop.f32.mrf.mxu0
      %v7971 = vadd.f32 %v7681, %v7970
      %v7972 = vpop.f32.mrf.mxu0
      %7973 = vmatprep.mubr.f32.mxu0 0.0
      %7974 = vmatmul.mubr.f32.gmra.mxu0 %v7762
      %v7975 = vpop.f32.mrf.mxu0
      %v7976 = vadd.f32 %v7681, %v7975
      %v7977 = vpop.f32.mrf.mxu0
      %7978 = vmatprep.mubr.f32.mxu0 0.0
      %7979 = vmatmul.mubr.f32.gmra.mxu0 %v7765
      %v7980 = vpop.f32.mrf.mxu0
      %v7981 = vadd.f32 %v7681, %v7980
      %v7982 = vpop.f32.mrf.mxu0
      %7983 = vmatprep.mubr.f32.mxu0 0.0
      %7984 = vmatmul.mubr.f32.gmra.mxu0 %v7768
      %v7985 = vpop.f32.mrf.mxu0
      %v7986 = vadd.f32 %v7681, %v7985
      %v7987 = vpop.f32.mrf.mxu0
      %7988 = vmatprep.mubr.f32.mxu0 0.0
      %7989 = vmatmul.mubr.f32.gmra.mxu0 %v7771
      %v7990 = vpop.f32.mrf.mxu0
      %v7991 = vadd.f32 %v7681, %v7990
      %v7992 = vpop.f32.mrf.mxu0
      %7993 = vmatprep.mubr.f32.mxu0 0.0
      %7994 = vmatmul.mubr.f32.gmra.mxu0 %v7774
      %v7995 = vpop.f32.mrf.mxu0
      %v7996 = vadd.f32 %v7681, %v7995
      %v7997 = vpop.f32.mrf.mxu0
      %7998 = vmatprep.mubr.f32.mxu0 0.0
      %7999 = vmatmul.mubr.f32.gmra.mxu0 %v7777
      %v8000 = vpop.f32.mrf.mxu0
      %v8001 = vadd.f32 %v7681, %v8000
      %v8002 = vpop.f32.mrf.mxu0
      %8003 = vdwg.mxu0
      %8004 = vst.msk [vmem:[%s258] sm:$0xff] %vm303, %v7846
      %8005 = vst.msk [vmem:[%s258 + $0x8] sm:$0xff] %vm303, %v7851
      %8006 = vst.msk [vmem:[%s258 + $0x10] sm:$0xff] %vm303, %v7856
      %8007 = vst.msk [vmem:[%s258 + $0x18] sm:$0xff] %vm303, %v7861
      %8008 = vst.msk [vmem:[%s258 + $0x20] sm:$0xff] %vm303, %v7866
      %8009 = vst.msk [vmem:[%s258 + $0x28] sm:$0xff] %vm303, %v7871
      %8010 = vst.msk [vmem:[%s258 + $0x30] sm:$0xff] %vm303, %v7876
      %8011 = vst.msk [vmem:[%s258 + $0x38] sm:$0xff] %vm303, %v7881
      %8012 = vst.msk [vmem:[%s258 + $0x40] sm:$0xff] %vm303, %v7886
      %8013 = vst.msk [vmem:[%s258 + $0x48] sm:$0xff] %vm303, %v7891
      %8014 = vst.msk [vmem:[%s258 + $0x50] sm:$0xff] %vm303, %v7896
      %8015 = vst.msk [vmem:[%s258 + $0x58] sm:$0xff] %vm303, %v7901
      %8016 = vst.msk [vmem:[%s258 + $0x60] sm:$0xff] %vm303, %v7906
      %8017 = vst.msk [vmem:[%s258 + $0x68] sm:$0xff] %vm303, %v7911
      %8018 = vst.msk [vmem:[%s258 + $0x70] sm:$0xff] %vm303, %v7916
      %8019 = vst.msk [vmem:[%s258 + $0x78] sm:$0xff] %vm303, %v7921
      %8020 = vst.msk [vmem:[%s258 + $0x80] sm:$0xff] %vm303, %v7926
      %8021 = vst.msk [vmem:[%s258 + $0x88] sm:$0xff] %vm303, %v7931
      %8022 = vst.msk [vmem:[%s258 + $0x90] sm:$0xff] %vm303, %v7936
      %8023 = vst.msk [vmem:[%s258 + $0x98] sm:$0xff] %vm303, %v7941
      %8024 = vst.msk [vmem:[%s258 + $0xa0] sm:$0xff] %vm303, %v7946
      %8025 = vst.msk [vmem:[%s258 + $0xa8] sm:$0xff] %vm303, %v7951
      %8026 = vst.msk [vmem:[%s258 + $0xb0] sm:$0xff] %vm303, %v7956
      %8027 = vst.msk [vmem:[%s258 + $0xb8] sm:$0xff] %vm303, %v7961
      %8028 = vst.msk [vmem:[%s258 + $0xc0] sm:$0xff] %vm303, %v7966
      %8029 = vst.msk [vmem:[%s258 + $0xc8] sm:$0xff] %vm303, %v7971
      %8030 = vst.msk [vmem:[%s258 + $0xd0] sm:$0xff] %vm303, %v7976
      %8031 = vst.msk [vmem:[%s258 + $0xd8] sm:$0xff] %vm303, %v7981
      %8032 = vst.msk [vmem:[%s258 + $0xe0] sm:$0xff] %vm303, %v7986
      %8033 = vst.msk [vmem:[%s258 + $0xe8] sm:$0xff] %vm303, %v7991
      %8034 = vst.msk [vmem:[%s258 + $0xf0] sm:$0xff] %vm303, %v7996
      %8035 = vst.msk [vmem:[%s258 + $0xf8] sm:$0xff] %vm303, %v8001
      %s8036 = smul.u32 4, %s17
      %p8037 = scmp.lt.s32.totalorder %s8036, 7
      %s8038 = scalar_select %p8037, %s8036, 7
      %s8039 = smul.addr %s8038, 8
      %s8040 = smul.addr %s8039, 8
      %s8041 = scalar_lea.vmem %s6, %s8040
      // Predicated region
      $region45: #{tpu_custom_call.1} parent=43 // pred_check
        %p8042 = pneg %p166
      $region46: #{tpu_custom_call.1} parent=43 // pred_check_branch
        %8044 = sbr.rel (%p8042) target = $region48
      $region47: #{tpu_custom_call.1} parent=43 // pred_region
        %s8045 = smul.u32 4, %s17
      $region48: #{tpu_custom_call.1} parent=43 // pred_fallthru
        _
    $region44: #{tpu_custom_call.1} parent=5 // pred_fallthru
      _
    %p8046 = scmp.le.s32.totalorder 2, %s12
    // Predicated region
    $region49: #{tpu_custom_call.1} parent=5 // pred_check
      %p8047 = pneg %p8046
    $region50: #{tpu_custom_call.1} parent=5 // pred_check_branch
      %8049 = sbr.rel (%p8047) target = $region52
    $region51: #{tpu_custom_call.1} parent=5 // pred_region
      %s8050 = ssub.s32 %s12, 2
      // Predicated region
      $region53: #{tpu_custom_call.1} parent=51 // pred_check
        %p8051 = pneg %p172
      $region54: #{tpu_custom_call.1} parent=51 // pred_check_branch
        %8053 = sbr.rel (%p8051) target = $region56
      $region55: #{tpu_custom_call.1} parent=51 // pred_region
        %s8054 = smul.u32 4, %s18
        %p8055 = scmp.lt.s32.totalorder %s8054, 7
        %s8056 = scalar_select %p8055, %s8054, 7
        %s8057 = smul.addr %s8056, 8
        %s8058 = smul.addr %s8057, 8
        %s8059 = scalar_lea.vmem %s6, %s8058
      $region56: #{tpu_custom_call.1} parent=51 // pred_fallthru
        _
    $region52: #{tpu_custom_call.1} parent=5 // pred_fallthru
      _
  $region6: #{tpu_custom_call.1} parent=0 // loop_footer
    %s16 = sadd.s32 1, %s12
  $region7: #{tpu_custom_call.1} parent=0 // loop_footer_branch
    %11 = sbr.rel target = $region3
  $region8: #{tpu_custom_call.1} parent=0 // loop_exit
    _

</llo_original>
